<compile_context>
chip_gen: v7x
topology: tpu7x:2x2x1
jax: 0.10.0
libtpu: 0.0.40
codegen_flags: <defaults>
</compile_context>

<pallas_src>
import jax
import jax.numpy as jnp
from jax.experimental import pallas as pl
from jax.experimental.pallas import tpu as pltpu


_ROW_TILE_CAP = 512            # rows per grid step upper bound (multiple of 8)
_SLAB_VMEM_BUDGET = 12 << 20   # bytes for double-buffered per-row inputs


def _row_tile(m, bytes_per_row):
    """Largest row tile <= 512 whose double-buffered inputs fit the budget."""
    t = _SLAB_VMEM_BUDGET // (2 * max(bytes_per_row, 1))
    t = max(8, min(_ROW_TILE_CAP, (t // 8) * 8))
    return m if m <= t else t


# ----------------------------------------------------------------------------
# Pallas kernels
# ----------------------------------------------------------------------------
def _conv_pool_bn_kernel(p00_ref, p01_ref, p10_ref, p11_ref,
                         w_ref, b_ref, scale_ref, shift_ref, o_ref):
    """relu(P_ab @ W + b) for the four 2x2 pool taps, max over taps, BN affine."""
    w = w_ref[...]
    b = b_ref[...]

    def tap(p_ref):
        acc = jnp.dot(p_ref[...], w, preferred_element_type=jnp.float32)
        return jnp.maximum(acc + b, 0.0)

    pooled = jnp.maximum(jnp.maximum(tap(p00_ref), tap(p01_ref)),
                         jnp.maximum(tap(p10_ref), tap(p11_ref)))
    o_ref[...] = (pooled * scale_ref[...] + shift_ref[...]).astype(o_ref.dtype)


def _fc_stack_kernel(x_ref, w1_ref, b1_ref, w2_ref, b2_ref,
                     w3_ref, b3_ref, w4_ref, b4_ref, o_ref):
    """fc4(relu(fc3(relu(fc2(relu(fc1(x))))))) fully inside one kernel."""
    def layer(h, w_ref, b_ref, relu):
        y = jnp.dot(h, w_ref[...], preferred_element_type=jnp.float32) + b_ref[...]
        return jnp.maximum(y, 0.0) if relu else y

    h = layer(x_ref[...], w1_ref, b1_ref, relu=True)
    h = layer(h.astype(jnp.bfloat16), w2_ref, b2_ref, relu=True)
    h = layer(h.astype(jnp.bfloat16), w3_ref, b3_ref, relu=True)
    o = layer(h.astype(jnp.bfloat16), w4_ref, b4_ref, relu=False)
    o_ref[...] = o.astype(o_ref.dtype)


# ----------------------------------------------------------------------------
# Wrappers
# ----------------------------------------------------------------------------
def conv_block(x_nhwc, w_mat, b, scale, shift, k):
    """pool(relu(conv(x))) followed by eval-mode BatchNorm, one pallas_call.

    x_nhwc : [N, H, W, Cin] (cast to bf16 for the MXU)
    w_mat  : [k*k*Cin, Cout] bf16, rows ordered (kh, kw, cin)
    b, scale, shift : [Cout] f32 (BatchNorm folded to scale/shift)
    returns [N, OH//2, OW//2, Cout] bf16
    """
    N, H, W, C = x_nhwc.shape
    oh, ow = H - k + 1, W - k + 1
    oh2, ow2 = oh // 2, ow // 2
    kk_c, cout = w_mat.shape
    assert kk_c == k * k * C

    xb = x_nhwc.astype(jnp.bfloat16)

    # Four pool-tap im2col slabs, built XLA-side (layout plumbing only).
    # TODO(synk): patch extraction still materializes ~k*k x the input in HBM;
    # a fully in-kernel gather (manual DMA of input row bands) would cut that.
    def tap_slab(a, bcol):
        pieces = []
        for i in range(k):
            for j in range(k):
                pieces.append(
                    xb[:, a + i:a + i + 2 * oh2:2,
                       bcol + j:bcol + j + 2 * ow2:2, :])
        p = jnp.concatenate(pieces, axis=-1)          # [N, oh2, ow2, k*k*C]
        return p.reshape(N * oh2 * ow2, k * k * C)

    p00, p01, p10, p11 = (tap_slab(0, 0), tap_slab(0, 1),
                          tap_slab(1, 0), tap_slab(1, 1))

    M = N * oh2 * ow2
    tm = _row_tile(M, 4 * kk_c * 2)                   # 4 bf16 slabs per row
    grid = (pl.cdiv(M, tm),)

    patch_spec = pl.BlockSpec((tm, kk_c), lambda i: (i, 0))
    const_mat = pl.BlockSpec((kk_c, cout), lambda i: (0, 0))
    const_vec = pl.BlockSpec((1, cout), lambda i: (0, 0))

    out = pl.pallas_call(
        _conv_pool_bn_kernel,
        out_shape=jax.ShapeDtypeStruct((M, cout), jnp.bfloat16),
        grid=grid,
        in_specs=[patch_spec, patch_spec, patch_spec, patch_spec,
                  const_mat, const_vec, const_vec, const_vec],
        out_specs=pl.BlockSpec((tm, cout), lambda i: (i, 0)),
        compiler_params=pltpu.CompilerParams(
            dimension_semantics=("parallel",)),
    )(p00, p01, p10, p11, w_mat,
      b.reshape(1, cout), scale.reshape(1, cout), shift.reshape(1, cout))
    return out.reshape(N, oh2, ow2, cout)


def fc_stack(x, w1, b1, w2, b2, w3, b3, w4, b4):
    """Fused fc1..fc4 (+ ReLUs).  x: [N, 1024] bf16 -> [N, 2] f32."""
    M, k1 = x.shape
    n1, n2, n3, n4 = w1.shape[1], w2.shape[1], w3.shape[1], w4.shape[1]
    tm = _row_tile(M, k1 * 2)
    grid = (pl.cdiv(M, tm),)

    def const(shape):
        return pl.BlockSpec(shape, lambda i: (0,) * len(shape))

    return pl.pallas_call(
        _fc_stack_kernel,
        out_shape=jax.ShapeDtypeStruct((M, n4), jnp.float32),
        grid=grid,
        in_specs=[pl.BlockSpec((tm, k1), lambda i: (i, 0)),
                  const(w1.shape), const((1, n1)),
                  const(w2.shape), const((1, n2)),
                  const(w3.shape), const((1, n3)),
                  const(w4.shape), const((1, n4))],
        out_specs=pl.BlockSpec((tm, n4), lambda i: (i, 0)),
        compiler_params=pltpu.CompilerParams(
            dimension_semantics=("parallel",)),
    )(x, w1, b1.reshape(1, n1), w2, b2.reshape(1, n2),
      w3, b3.reshape(1, n3), w4, b4.reshape(1, n4))


# ----------------------------------------------------------------------------
# Parameters (torch-layout init + one-time inference packing)
# ----------------------------------------------------------------------------
def init_params(key):
    """Random parameters in PyTorch layouts (Conv2d / Linear / BatchNorm2d)."""
    def conv_init(key, cout, cin, k):
        k1, k2 = jax.random.split(key)
        bound = 1.0 / (cin * k * k) ** 0.5
        w = jax.random.uniform(k1, (cout, cin, k, k), jnp.float32, -bound, bound)
        b = jax.random.uniform(k2, (cout,), jnp.float32, -bound, bound)
        return w, b

    def fc_init(key, fout, fin):
        k1, k2 = jax.random.split(key)
        bound = 1.0 / fin ** 0.5
        w = jax.random.uniform(k1, (fout, fin), jnp.float32, -bound, bound)
        b = jax.random.uniform(k2, (fout,), jnp.float32, -bound, bound)
        return w, b

    def bn_init(key, c):
        k1, k2, k3, k4 = jax.random.split(key, 4)
        gamma = 1.0 + 0.1 * jax.random.normal(k1, (c,), jnp.float32)
        beta = 0.1 * jax.random.normal(k2, (c,), jnp.float32)
        rmean = 0.1 * jax.random.normal(k3, (c,), jnp.float32)
        rvar = 1.0 + 0.1 * jnp.abs(jax.random.normal(k4, (c,), jnp.float32))
        return gamma, beta, rmean, rvar

    keys = jax.random.split(key, 10)
    p = {}
    p["conv1_w"], p["conv1_b"] = conv_init(keys[0], 64, 3, 5)
    p["conv2_w"], p["conv2_b"] = conv_init(keys[1], 128, 64, 5)
    p["conv3_w"], p["conv3_b"] = conv_init(keys[2], 256, 128, 2)
    p["bn1"] = bn_init(keys[3], 64)
    p["bn2"] = bn_init(keys[4], 128)
    p["bn3"] = bn_init(keys[5], 256)
    p["fc1_w"], p["fc1_b"] = fc_init(keys[6], 128, 256 * 2 * 2)
    p["fc2_w"], p["fc2_b"] = fc_init(keys[7], 64, 128)
    p["fc3_w"], p["fc3_b"] = fc_init(keys[8], 32, 64)
    p["fc4_w"], p["fc4_b"] = fc_init(keys[9], 2, 32)
    return p


def prepare_inference_params(p, eps=1e-5):
    """One-time packing: conv kernels -> [(kh,kw,cin), Cout] bf16 matrices,
    BatchNorm folded to scale/shift, conv1 zero-padded to 128 lanes,
    fc weights pre-transposed (fc1 rows permuted to absorb torch's NCHW flatten)."""
    def conv_mat(w_oihw):
        cout, cin, kh, kw = w_oihw.shape
        return jnp.transpose(w_oihw, (2, 3, 1, 0)).reshape(kh * kw * cin, cout)

    def bn_fold(bn):
        gamma, beta, rmean, rvar = bn
        scale = gamma / jnp.sqrt(rvar + eps)
        shift = beta - rmean * scale
        return scale, shift

    q = {}
    # conv1: pad Cout 64 -> 128 so the pooled-output store is lane-dense.
    s1, t1 = bn_fold(p["bn1"])
    q["c1_w"] = jnp.pad(conv_mat(p["conv1_w"]), ((0, 0), (0, 64))).astype(jnp.bfloat16)
    q["c1_b"] = jnp.pad(p["conv1_b"], (0, 64))
    q["c1_s"] = jnp.pad(s1, (0, 64))
    q["c1_t"] = jnp.pad(t1, (0, 64))

    s2, t2 = bn_fold(p["bn2"])
    q["c2_w"] = conv_mat(p["conv2_w"]).astype(jnp.bfloat16)
    q["c2_b"], q["c2_s"], q["c2_t"] = p["conv2_b"], s2, t2

    s3, t3 = bn_fold(p["bn3"])
    q["c3_w"] = conv_mat(p["conv3_w"]).astype(jnp.bfloat16)
    q["c3_b"], q["c3_s"], q["c3_t"] = p["conv3_b"], s3, t3

    # fc1: [128, 1024] -> [1024, 128], rows re-ordered from torch's (c, h, w)
    # flatten index (c*4 + s) to our (h, w, c) activation index (s*256 + c).
    w1t = p["fc1_w"].T.reshape(256, 4, 128).transpose(1, 0, 2).reshape(1024, 128)
    q["f1_w"] = w1t.astype(jnp.bfloat16)
    q["f1_b"] = p["fc1_b"]
    q["f2_w"] = p["fc2_w"].T.astype(jnp.bfloat16)
    q["f2_b"] = p["fc2_b"]
    q["f3_w"] = p["fc3_w"].T.astype(jnp.bfloat16)
    q["f3_b"] = p["fc3_b"]
    q["f4_w"] = p["fc4_w"].T.astype(jnp.bfloat16)
    q["f4_b"] = p["fc4_b"]
    return q


# ----------------------------------------------------------------------------
# Forward pass
# ----------------------------------------------------------------------------
def cnn_forward(q, x_nchw):
    # TODO(synk): training-mode Dropout / batch-stat BatchNorm not implemented
    # (eval semantics: dropout = identity, BN = running stats).
    N = x_nchw.shape[0]
    x = jnp.transpose(x_nchw, (0, 2, 3, 1))                       # NCHW -> NHWC

    x = conv_block(x, q["c1_w"], q["c1_b"], q["c1_s"], q["c1_t"], k=5)  # [N,14,14,128]
    x = x[..., :64]                                               # drop lane padding
    x = conv_block(x, q["c2_w"], q["c2_b"], q["c2_s"], q["c2_t"], k=5)  # [N,5,5,128]
    x = conv_block(x, q["c3_w"], q["c3_b"], q["c3_s"], q["c3_t"], k=2)  # [N,2,2,256]

    # Row-major (h, w, c) flatten; fc1 weight rows were pre-permuted to match
    # torch's NCHW x.view(-1, 1024) ordering.
    x = x.reshape(N, 2 * 2 * 256)

    return fc_stack(x, q["f1_w"], q["f1_b"], q["f2_w"], q["f2_b"],
                    q["f3_w"], q["f3_b"], q["f4_w"], q["f4_b"])   # [N, 2]


if __name__ == "__main__":
    key = jax.random.PRNGKey(0)
    k_params, k_x = jax.random.split(key)

    params = prepare_inference_params(init_params(k_params))
    # Smallest input consistent with the module: 32x32 spatial, 3 channels.
    x = jax.random.normal(k_x, (2, 3, 32, 32), jnp.float32)

    out = jax.jit(cnn_forward)(params, x)
    out = jax.block_until_ready(out)

    assert out.shape == (2, 2), out.shape
    assert bool(jnp.all(jnp.isfinite(out)))
    print("KERNEL_OK")
</pallas_src>

<mosaic_0001>
module attributes {stable_mosaic.version = 11 : i64} {
  func.func @_conv_pool_bn_kernel(%arg0: i32, %arg1: memref<392x75xbf16, #tpu.memory_space<vmem>>, %arg2: memref<392x75xbf16, #tpu.memory_space<vmem>>, %arg3: memref<392x75xbf16, #tpu.memory_space<vmem>>, %arg4: memref<392x75xbf16, #tpu.memory_space<vmem>>, %arg5: memref<75x128xbf16, #tpu.memory_space<vmem>>, %arg6: memref<1x128xf32, #tpu.memory_space<vmem>>, %arg7: memref<1x128xf32, #tpu.memory_space<vmem>>, %arg8: memref<1x128xf32, #tpu.memory_space<vmem>>, %arg9: memref<392x128xbf16, #tpu.memory_space<vmem>>) attributes {dimension_semantics = [#tpu.dimension_semantics<parallel>], iteration_bounds = array<i64: 1>, scalar_prefetch = 0 : i64, scratch_operands = 0 : i64, tpu.core_type = #tpu.core_type<tc>, window_params = [{transform_indices = @transform_0, window_bounds = array<i64: 392, 75>}, {transform_indices = @transform_1, window_bounds = array<i64: 392, 75>}, {transform_indices = @transform_2, window_bounds = array<i64: 392, 75>}, {transform_indices = @transform_3, window_bounds = array<i64: 392, 75>}, {pipeline_mode = #tpu.pipeline_mode<synchronous>, transform_indices = @transform_4, window_bounds = array<i64: 75, 128>}, {pipeline_mode = #tpu.pipeline_mode<synchronous>, transform_indices = @transform_5, window_bounds = array<i64: 1, 128>}, {pipeline_mode = #tpu.pipeline_mode<synchronous>, transform_indices = @transform_6, window_bounds = array<i64: 1, 128>}, {pipeline_mode = #tpu.pipeline_mode<synchronous>, transform_indices = @transform_7, window_bounds = array<i64: 1, 128>}, {transform_indices = @transform_8, window_bounds = array<i64: 392, 128>}]} {
    %c0 = arith.constant 0 : index
    %c0_0 = arith.constant 0 : index
    %0 = vector.load %arg5[%c0, %c0_0] : memref<75x128xbf16, #tpu.memory_space<vmem>>, vector<75x128xbf16>
    %c0_1 = arith.constant 0 : index
    %c0_2 = arith.constant 0 : index
    %1 = vector.load %arg6[%c0_1, %c0_2] : memref<1x128xf32, #tpu.memory_space<vmem>>, vector<1x128xf32>
    %c0_3 = arith.constant 0 : index
    %c0_4 = arith.constant 0 : index
    %2 = vector.load %arg1[%c0_3, %c0_4] : memref<392x75xbf16, #tpu.memory_space<vmem>>, vector<392x75xbf16>
    %cst = arith.constant dense<0.000000e+00> : vector<392x128xf32>
    %3 = tpu.matmul %2, %0, %cst {dimension_numbers = #tpu.dot_dimension_numbers<[1], [0], [0], [1], [0, 0, 1, 1], [], []>} : vector<392x75xbf16>, vector<75x128xbf16>, vector<392x128xf32> -> vector<392x128xf32>
    %4 = vector.broadcast %1 : vector<1x128xf32> to vector<392x128xf32>
    %5 = arith.addf %3, %4 : vector<392x128xf32>
    %cst_5 = arith.constant 0.000000e+00 : f32
    %6 = vector.broadcast %cst_5 : f32 to vector<392x128xf32>
    %7 = arith.maximumf %5, %6 : vector<392x128xf32>
    %c0_6 = arith.constant 0 : index
    %c0_7 = arith.constant 0 : index
    %8 = vector.load %arg2[%c0_6, %c0_7] : memref<392x75xbf16, #tpu.memory_space<vmem>>, vector<392x75xbf16>
    %cst_8 = arith.constant dense<0.000000e+00> : vector<392x128xf32>
    %9 = tpu.matmul %8, %0, %cst_8 {dimension_numbers = #tpu.dot_dimension_numbers<[1], [0], [0], [1], [0, 0, 1, 1], [], []>} : vector<392x75xbf16>, vector<75x128xbf16>, vector<392x128xf32> -> vector<392x128xf32>
    %10 = vector.broadcast %1 : vector<1x128xf32> to vector<392x128xf32>
    %11 = arith.addf %9, %10 : vector<392x128xf32>
    %cst_9 = arith.constant 0.000000e+00 : f32
    %12 = vector.broadcast %cst_9 : f32 to vector<392x128xf32>
    %13 = arith.maximumf %11, %12 : vector<392x128xf32>
    %14 = arith.maximumf %7, %13 : vector<392x128xf32>
    %c0_10 = arith.constant 0 : index
    %c0_11 = arith.constant 0 : index
    %15 = vector.load %arg3[%c0_10, %c0_11] : memref<392x75xbf16, #tpu.memory_space<vmem>>, vector<392x75xbf16>
    %cst_12 = arith.constant dense<0.000000e+00> : vector<392x128xf32>
    %16 = tpu.matmul %15, %0, %cst_12 {dimension_numbers = #tpu.dot_dimension_numbers<[1], [0], [0], [1], [0, 0, 1, 1], [], []>} : vector<392x75xbf16>, vector<75x128xbf16>, vector<392x128xf32> -> vector<392x128xf32>
    %17 = vector.broadcast %1 : vector<1x128xf32> to vector<392x128xf32>
    %18 = arith.addf %16, %17 : vector<392x128xf32>
    %cst_13 = arith.constant 0.000000e+00 : f32
    %19 = vector.broadcast %cst_13 : f32 to vector<392x128xf32>
    %20 = arith.maximumf %18, %19 : vector<392x128xf32>
    %c0_14 = arith.constant 0 : index
    %c0_15 = arith.constant 0 : index
    %21 = vector.load %arg4[%c0_14, %c0_15] : memref<392x75xbf16, #tpu.memory_space<vmem>>, vector<392x75xbf16>
    %cst_16 = arith.constant dense<0.000000e+00> : vector<392x128xf32>
    %22 = tpu.matmul %21, %0, %cst_16 {dimension_numbers = #tpu.dot_dimension_numbers<[1], [0], [0], [1], [0, 0, 1, 1], [], []>} : vector<392x75xbf16>, vector<75x128xbf16>, vector<392x128xf32> -> vector<392x128xf32>
    %23 = vector.broadcast %1 : vector<1x128xf32> to vector<392x128xf32>
    %24 = arith.addf %22, %23 : vector<392x128xf32>
    %cst_17 = arith.constant 0.000000e+00 : f32
    %25 = vector.broadcast %cst_17 : f32 to vector<392x128xf32>
    %26 = arith.maximumf %24, %25 : vector<392x128xf32>
    %27 = arith.maximumf %20, %26 : vector<392x128xf32>
    %28 = arith.maximumf %14, %27 : vector<392x128xf32>
    %c0_18 = arith.constant 0 : index
    %c0_19 = arith.constant 0 : index
    %29 = vector.load %arg7[%c0_18, %c0_19] : memref<1x128xf32, #tpu.memory_space<vmem>>, vector<1x128xf32>
    %30 = vector.broadcast %29 : vector<1x128xf32> to vector<392x128xf32>
    %31 = arith.mulf %28, %30 : vector<392x128xf32>
    %c0_20 = arith.constant 0 : index
    %c0_21 = arith.constant 0 : index
    %32 = vector.load %arg8[%c0_20, %c0_21] : memref<1x128xf32, #tpu.memory_space<vmem>>, vector<1x128xf32>
    %33 = vector.broadcast %32 : vector<1x128xf32> to vector<392x128xf32>
    %34 = arith.addf %31, %33 : vector<392x128xf32>
    %35 = arith.truncf %34 : vector<392x128xf32> to vector<392x128xbf16>
    %c0_22 = arith.constant 0 : index
    %c0_23 = arith.constant 0 : index
    %36 = vector.load %arg9[%c0_22, %c0_23] : memref<392x128xbf16, #tpu.memory_space<vmem>>, vector<392x128xbf16>
    tpu.vector_store %arg9[%c0_22, %c0_23], %35 {strides = array<i32>} : memref<392x128xbf16, #tpu.memory_space<vmem>>, vector<392x128xbf16>,
    return
  }
  func.func @transform_0(%arg0: i32) -> (i32, i32) {
    %c0_i32 = arith.constant 0 : i32
    %c0_i32_0 = arith.constant 0 : i32
    return %arg0, %c0_i32 : i32, i32
  }
  func.func @transform_1(%arg0: i32) -> (i32, i32) {
    %c0_i32 = arith.constant 0 : i32
    %c0_i32_0 = arith.constant 0 : i32
    return %arg0, %c0_i32 : i32, i32
  }
  func.func @transform_2(%arg0: i32) -> (i32, i32) {
    %c0_i32 = arith.constant 0 : i32
    %c0_i32_0 = arith.constant 0 : i32
    return %arg0, %c0_i32 : i32, i32
  }
  func.func @transform_3(%arg0: i32) -> (i32, i32) {
    %c0_i32 = arith.constant 0 : i32
    %c0_i32_0 = arith.constant 0 : i32
    return %arg0, %c0_i32 : i32, i32
  }
  func.func @transform_4(%arg0: i32) -> (i32, i32) {
    %c0_i32 = arith.constant 0 : i32
    %c0_i32_0 = arith.constant 0 : i32
    %c0_i32_1 = arith.constant 0 : i32
    return %c0_i32, %c0_i32_0 : i32, i32
  }
  func.func @transform_5(%arg0: i32) -> (i32, i32) {
    %c0_i32 = arith.constant 0 : i32
    %c0_i32_0 = arith.constant 0 : i32
    %c0_i32_1 = arith.constant 0 : i32
    return %c0_i32, %c0_i32_0 : i32, i32
  }
  func.func @transform_6(%arg0: i32) -> (i32, i32) {
    %c0_i32 = arith.constant 0 : i32
    %c0_i32_0 = arith.constant 0 : i32
    %c0_i32_1 = arith.constant 0 : i32
    return %c0_i32, %c0_i32_0 : i32, i32
  }
  func.func @transform_7(%arg0: i32) -> (i32, i32) {
    %c0_i32 = arith.constant 0 : i32
    %c0_i32_0 = arith.constant 0 : i32
    %c0_i32_1 = arith.constant 0 : i32
    return %c0_i32, %c0_i32_0 : i32, i32
  }
  func.func @transform_8(%arg0: i32) -> (i32, i32) {
    %c0_i32 = arith.constant 0 : i32
    %c0_i32_0 = arith.constant 0 : i32
    return %arg0, %c0_i32 : i32, i32
  }
}

module attributes {stable_mosaic.version = 11 : i64} {
  func.func @_conv_pool_bn_kernel(%arg0: i32, %arg1: memref<50x1600xbf16, #tpu.memory_space<vmem>>, %arg2: memref<50x1600xbf16, #tpu.memory_space<vmem>>, %arg3: memref<50x1600xbf16, #tpu.memory_space<vmem>>, %arg4: memref<50x1600xbf16, #tpu.memory_space<vmem>>, %arg5: memref<1600x128xbf16, #tpu.memory_space<vmem>>, %arg6: memref<1x128xf32, #tpu.memory_space<vmem>>, %arg7: memref<1x128xf32, #tpu.memory_space<vmem>>, %arg8: memref<1x128xf32, #tpu.memory_space<vmem>>, %arg9: memref<50x128xbf16, #tpu.memory_space<vmem>>) attributes {dimension_semantics = [#tpu.dimension_semantics<parallel>], iteration_bounds = array<i64: 1>, scalar_prefetch = 0 : i64, scratch_operands = 0 : i64, tpu.core_type = #tpu.core_type<tc>, window_params = [{transform_indices = @transform_0, window_bounds = array<i64: 50, 1600>}, {transform_indices = @transform_1, window_bounds = array<i64: 50, 1600>}, {transform_indices = @transform_2, window_bounds = array<i64: 50, 1600>}, {transform_indices = @transform_3, window_bounds = array<i64: 50, 1600>}, {pipeline_mode = #tpu.pipeline_mode<synchronous>, transform_indices = @transform_4, window_bounds = array<i64: 1600, 128>}, {pipeline_mode = #tpu.pipeline_mode<synchronous>, transform_indices = @transform_5, window_bounds = array<i64: 1, 128>}, {pipeline_mode = #tpu.pipeline_mode<synchronous>, transform_indices = @transform_6, window_bounds = array<i64: 1, 128>}, {pipeline_mode = #tpu.pipeline_mode<synchronous>, transform_indices = @transform_7, window_bounds = array<i64: 1, 128>}, {transform_indices = @transform_8, window_bounds = array<i64: 50, 128>}]} {
    %c0 = arith.constant 0 : index
    %c0_0 = arith.constant 0 : index
    %0 = vector.load %arg5[%c0, %c0_0] : memref<1600x128xbf16, #tpu.memory_space<vmem>>, vector<1600x128xbf16>
    %c0_1 = arith.constant 0 : index
    %c0_2 = arith.constant 0 : index
    %1 = vector.load %arg6[%c0_1, %c0_2] : memref<1x128xf32, #tpu.memory_space<vmem>>, vector<1x128xf32>
    %c0_3 = arith.constant 0 : index
    %c0_4 = arith.constant 0 : index
    %2 = vector.load %arg1[%c0_3, %c0_4] : memref<50x1600xbf16, #tpu.memory_space<vmem>>, vector<50x1600xbf16>
    %cst = arith.constant dense<0.000000e+00> : vector<50x128xf32>
    %3 = tpu.matmul %2, %0, %cst {dimension_numbers = #tpu.dot_dimension_numbers<[1], [0], [0], [1], [0, 0, 1, 1], [], []>} : vector<50x1600xbf16>, vector<1600x128xbf16>, vector<50x128xf32> -> vector<50x128xf32>
    %4 = vector.broadcast %1 : vector<1x128xf32> to vector<50x128xf32>
    %5 = arith.addf %3, %4 : vector<50x128xf32>
    %cst_5 = arith.constant 0.000000e+00 : f32
    %6 = vector.broadcast %cst_5 : f32 to vector<50x128xf32>
    %7 = arith.maximumf %5, %6 : vector<50x128xf32>
    %c0_6 = arith.constant 0 : index
    %c0_7 = arith.constant 0 : index
    %8 = vector.load %arg2[%c0_6, %c0_7] : memref<50x1600xbf16, #tpu.memory_space<vmem>>, vector<50x1600xbf16>
    %cst_8 = arith.constant dense<0.000000e+00> : vector<50x128xf32>
    %9 = tpu.matmul %8, %0, %cst_8 {dimension_numbers = #tpu.dot_dimension_numbers<[1], [0], [0], [1], [0, 0, 1, 1], [], []>} : vector<50x1600xbf16>, vector<1600x128xbf16>, vector<50x128xf32> -> vector<50x128xf32>
    %10 = vector.broadcast %1 : vector<1x128xf32> to vector<50x128xf32>
    %11 = arith.addf %9, %10 : vector<50x128xf32>
    %cst_9 = arith.constant 0.000000e+00 : f32
    %12 = vector.broadcast %cst_9 : f32 to vector<50x128xf32>
    %13 = arith.maximumf %11, %12 : vector<50x128xf32>
    %14 = arith.maximumf %7, %13 : vector<50x128xf32>
    %c0_10 = arith.constant 0 : index
    %c0_11 = arith.constant 0 : index
    %15 = vector.load %arg3[%c0_10, %c0_11] : memref<50x1600xbf16, #tpu.memory_space<vmem>>, vector<50x1600xbf16>
    %cst_12 = arith.constant dense<0.000000e+00> : vector<50x128xf32>
    %16 = tpu.matmul %15, %0, %cst_12 {dimension_numbers = #tpu.dot_dimension_numbers<[1], [0], [0], [1], [0, 0, 1, 1], [], []>} : vector<50x1600xbf16>, vector<1600x128xbf16>, vector<50x128xf32> -> vector<50x128xf32>
    %17 = vector.broadcast %1 : vector<1x128xf32> to vector<50x128xf32>
    %18 = arith.addf %16, %17 : vector<50x128xf32>
    %cst_13 = arith.constant 0.000000e+00 : f32
    %19 = vector.broadcast %cst_13 : f32 to vector<50x128xf32>
    %20 = arith.maximumf %18, %19 : vector<50x128xf32>
    %c0_14 = arith.constant 0 : index
    %c0_15 = arith.constant 0 : index
    %21 = vector.load %arg4[%c0_14, %c0_15] : memref<50x1600xbf16, #tpu.memory_space<vmem>>, vector<50x1600xbf16>
    %cst_16 = arith.constant dense<0.000000e+00> : vector<50x128xf32>
    %22 = tpu.matmul %21, %0, %cst_16 {dimension_numbers = #tpu.dot_dimension_numbers<[1], [0], [0], [1], [0, 0, 1, 1], [], []>} : vector<50x1600xbf16>, vector<1600x128xbf16>, vector<50x128xf32> -> vector<50x128xf32>
    %23 = vector.broadcast %1 : vector<1x128xf32> to vector<50x128xf32>
    %24 = arith.addf %22, %23 : vector<50x128xf32>
    %cst_17 = arith.constant 0.000000e+00 : f32
    %25 = vector.broadcast %cst_17 : f32 to vector<50x128xf32>
    %26 = arith.maximumf %24, %25 : vector<50x128xf32>
    %27 = arith.maximumf %20, %26 : vector<50x128xf32>
    %28 = arith.maximumf %14, %27 : vector<50x128xf32>
    %c0_18 = arith.constant 0 : index
    %c0_19 = arith.constant 0 : index
    %29 = vector.load %arg7[%c0_18, %c0_19] : memref<1x128xf32, #tpu.memory_space<vmem>>, vector<1x128xf32>
    %30 = vector.broadcast %29 : vector<1x128xf32> to vector<50x128xf32>
    %31 = arith.mulf %28, %30 : vector<50x128xf32>
    %c0_20 = arith.constant 0 : index
    %c0_21 = arith.constant 0 : index
    %32 = vector.load %arg8[%c0_20, %c0_21] : memref<1x128xf32, #tpu.memory_space<vmem>>, vector<1x128xf32>
    %33 = vector.broadcast %32 : vector<1x128xf32> to vector<50x128xf32>
    %34 = arith.addf %31, %33 : vector<50x128xf32>
    %35 = arith.truncf %34 : vector<50x128xf32> to vector<50x128xbf16>
    %c0_22 = arith.constant 0 : index
    %c0_23 = arith.constant 0 : index
    %36 = vector.load %arg9[%c0_22, %c0_23] : memref<50x128xbf16, #tpu.memory_space<vmem>>, vector<50x128xbf16>
    tpu.vector_store %arg9[%c0_22, %c0_23], %35 {strides = array<i32>} : memref<50x128xbf16, #tpu.memory_space<vmem>>, vector<50x128xbf16>,
    return
  }
  func.func @transform_0(%arg0: i32) -> (i32, i32) {
    %c0_i32 = arith.constant 0 : i32
    %c0_i32_0 = arith.constant 0 : i32
    return %arg0, %c0_i32 : i32, i32
  }
  func.func @transform_1(%arg0: i32) -> (i32, i32) {
    %c0_i32 = arith.constant 0 : i32
    %c0_i32_0 = arith.constant 0 : i32
    return %arg0, %c0_i32 : i32, i32
  }
  func.func @transform_2(%arg0: i32) -> (i32, i32) {
    %c0_i32 = arith.constant 0 : i32
    %c0_i32_0 = arith.constant 0 : i32
    return %arg0, %c0_i32 : i32, i32
  }
  func.func @transform_3(%arg0: i32) -> (i32, i32) {
    %c0_i32 = arith.constant 0 : i32
    %c0_i32_0 = arith.constant 0 : i32
    return %arg0, %c0_i32 : i32, i32
  }
  func.func @transform_4(%arg0: i32) -> (i32, i32) {
    %c0_i32 = arith.constant 0 : i32
    %c0_i32_0 = arith.constant 0 : i32
    %c0_i32_1 = arith.constant 0 : i32
    return %c0_i32, %c0_i32_0 : i32, i32
  }
  func.func @transform_5(%arg0: i32) -> (i32, i32) {
    %c0_i32 = arith.constant 0 : i32
    %c0_i32_0 = arith.constant 0 : i32
    %c0_i32_1 = arith.constant 0 : i32
    return %c0_i32, %c0_i32_0 : i32, i32
  }
  func.func @transform_6(%arg0: i32) -> (i32, i32) {
    %c0_i32 = arith.constant 0 : i32
    %c0_i32_0 = arith.constant 0 : i32
    %c0_i32_1 = arith.constant 0 : i32
    return %c0_i32, %c0_i32_0 : i32, i32
  }
  func.func @transform_7(%arg0: i32) -> (i32, i32) {
    %c0_i32 = arith.constant 0 : i32
    %c0_i32_0 = arith.constant 0 : i32
    %c0_i32_1 = arith.constant 0 : i32
    return %c0_i32, %c0_i32_0 : i32, i32
  }
  func.func @transform_8(%arg0: i32) -> (i32, i32) {
    %c0_i32 = arith.constant 0 : i32
    %c0_i32_0 = arith.constant 0 : i32
    return %arg0, %c0_i32 : i32, i32
  }
}

module attributes {stable_mosaic.version = 11 : i64} {
  func.func @_fc_stack_kernel(%arg0: i32, %arg1: memref<2x1024xbf16, #tpu.memory_space<vmem>>, %arg2: memref<1024x128xbf16, #tpu.memory_space<vmem>>, %arg3: memref<1x128xf32, #tpu.memory_space<vmem>>, %arg4: memref<128x64xbf16, #tpu.memory_space<vmem>>, %arg5: memref<1x64xf32, #tpu.memory_space<vmem>>, %arg6: memref<64x32xbf16, #tpu.memory_space<vmem>>, %arg7: memref<1x32xf32, #tpu.memory_space<vmem>>, %arg8: memref<32x2xbf16, #tpu.memory_space<vmem>>, %arg9: memref<1x2xf32, #tpu.memory_space<vmem>>, %arg10: memref<2x2xf32, #tpu.memory_space<vmem>>) attributes {dimension_semantics = [#tpu.dimension_semantics<parallel>], iteration_bounds = array<i64: 1>, scalar_prefetch = 0 : i64, scratch_operands = 0 : i64, tpu.core_type = #tpu.core_type<tc>, window_params = [{transform_indices = @transform_0, window_bounds = array<i64: 2, 1024>}, {pipeline_mode = #tpu.pipeline_mode<synchronous>, transform_indices = @transform_1, window_bounds = array<i64: 1024, 128>}, {pipeline_mode = #tpu.pipeline_mode<synchronous>, transform_indices = @transform_2, window_bounds = array<i64: 1, 128>}, {pipeline_mode = #tpu.pipeline_mode<synchronous>, transform_indices = @transform_3, window_bounds = array<i64: 128, 64>}, {pipeline_mode = #tpu.pipeline_mode<synchronous>, transform_indices = @transform_4, window_bounds = array<i64: 1, 64>}, {pipeline_mode = #tpu.pipeline_mode<synchronous>, transform_indices = @transform_5, window_bounds = array<i64: 64, 32>}, {pipeline_mode = #tpu.pipeline_mode<synchronous>, transform_indices = @transform_6, window_bounds = array<i64: 1, 32>}, {pipeline_mode = #tpu.pipeline_mode<synchronous>, transform_indices = @transform_7, window_bounds = array<i64: 32, 2>}, {pipeline_mode = #tpu.pipeline_mode<synchronous>, transform_indices = @transform_8, window_bounds = array<i64: 1, 2>}, {transform_indices = @transform_9, window_bounds = array<i64: 2, 2>}]} {
    %c0 = arith.constant 0 : index
    %c0_0 = arith.constant 0 : index
    %0 = vector.load %arg1[%c0, %c0_0] : memref<2x1024xbf16, #tpu.memory_space<vmem>>, vector<2x1024xbf16>
    %c0_1 = arith.constant 0 : index
    %c0_2 = arith.constant 0 : index
    %1 = vector.load %arg2[%c0_1, %c0_2] : memref<1024x128xbf16, #tpu.memory_space<vmem>>, vector<1024x128xbf16>
    %cst = arith.constant dense<0.000000e+00> : vector<2x128xf32>
    %2 = tpu.matmul %0, %1, %cst {dimension_numbers = #tpu.dot_dimension_numbers<[1], [0], [0], [1], [0, 0, 1, 1], [], []>} : vector<2x1024xbf16>, vector<1024x128xbf16>, vector<2x128xf32> -> vector<2x128xf32>
    %c0_3 = arith.constant 0 : index
    %c0_4 = arith.constant 0 : index
    %3 = vector.load %arg3[%c0_3, %c0_4] : memref<1x128xf32, #tpu.memory_space<vmem>>, vector<1x128xf32>
    %4 = vector.broadcast %3 : vector<1x128xf32> to vector<2x128xf32>
    %5 = arith.addf %2, %4 : vector<2x128xf32>
    %cst_5 = arith.constant 0.000000e+00 : f32
    %6 = vector.broadcast %cst_5 : f32 to vector<2x128xf32>
    %7 = arith.maximumf %5, %6 : vector<2x128xf32>
    %8 = arith.truncf %7 : vector<2x128xf32> to vector<2x128xbf16>
    %c0_6 = arith.constant 0 : index
    %c0_7 = arith.constant 0 : index
    %9 = vector.load %arg4[%c0_6, %c0_7] : memref<128x64xbf16, #tpu.memory_space<vmem>>, vector<128x64xbf16>
    %cst_8 = arith.constant dense<0.000000e+00> : vector<2x64xf32>
    %10 = tpu.matmul %8, %9, %cst_8 {dimension_numbers = #tpu.dot_dimension_numbers<[1], [0], [0], [1], [0, 0, 1, 1], [], []>} : vector<2x128xbf16>, vector<128x64xbf16>, vector<2x64xf32> -> vector<2x64xf32>
    %c0_9 = arith.constant 0 : index
    %c0_10 = arith.constant 0 : index
    %11 = vector.load %arg5[%c0_9, %c0_10] : memref<1x64xf32, #tpu.memory_space<vmem>>, vector<1x64xf32>
    %12 = vector.broadcast %11 : vector<1x64xf32> to vector<2x64xf32>
    %13 = arith.addf %10, %12 : vector<2x64xf32>
    %cst_11 = arith.constant 0.000000e+00 : f32
    %14 = vector.broadcast %cst_11 : f32 to vector<2x64xf32>
    %15 = arith.maximumf %13, %14 : vector<2x64xf32>
    %16 = arith.truncf %15 : vector<2x64xf32> to vector<2x64xbf16>
    %c0_12 = arith.constant 0 : index
    %c0_13 = arith.constant 0 : index
    %17 = vector.load %arg6[%c0_12, %c0_13] : memref<64x32xbf16, #tpu.memory_space<vmem>>, vector<64x32xbf16>
    %cst_14 = arith.constant dense<0.000000e+00> : vector<2x32xf32>
    %18 = tpu.matmul %16, %17, %cst_14 {dimension_numbers = #tpu.dot_dimension_numbers<[1], [0], [0], [1], [0, 0, 1, 1], [], []>} : vector<2x64xbf16>, vector<64x32xbf16>, vector<2x32xf32> -> vector<2x32xf32>
    %c0_15 = arith.constant 0 : index
    %c0_16 = arith.constant 0 : index
    %19 = vector.load %arg7[%c0_15, %c0_16] : memref<1x32xf32, #tpu.memory_space<vmem>>, vector<1x32xf32>
    %20 = vector.broadcast %19 : vector<1x32xf32> to vector<2x32xf32>
    %21 = arith.addf %18, %20 : vector<2x32xf32>
    %cst_17 = arith.constant 0.000000e+00 : f32
    %22 = vector.broadcast %cst_17 : f32 to vector<2x32xf32>
    %23 = arith.maximumf %21, %22 : vector<2x32xf32>
    %24 = arith.truncf %23 : vector<2x32xf32> to vector<2x32xbf16>
    %c0_18 = arith.constant 0 : index
    %c0_19 = arith.constant 0 : index
    %25 = vector.load %arg8[%c0_18, %c0_19] : memref<32x2xbf16, #tpu.memory_space<vmem>>, vector<32x2xbf16>
    %cst_20 = arith.constant dense<0.000000e+00> : vector<2x2xf32>
    %26 = tpu.matmul %24, %25, %cst_20 {dimension_numbers = #tpu.dot_dimension_numbers<[1], [0], [0], [1], [0, 0, 1, 1], [], []>} : vector<2x32xbf16>, vector<32x2xbf16>, vector<2x2xf32> -> vector<2x2xf32>
    %c0_21 = arith.constant 0 : index
    %c0_22 = arith.constant 0 : index
    %27 = vector.load %arg9[%c0_21, %c0_22] : memref<1x2xf32, #tpu.memory_space<vmem>>, vector<1x2xf32>
    %28 = vector.broadcast %27 : vector<1x2xf32> to vector<2x2xf32>
    %29 = arith.addf %26, %28 : vector<2x2xf32>
    %c0_23 = arith.constant 0 : index
    %c0_24 = arith.constant 0 : index
    %30 = vector.load %arg10[%c0_23, %c0_24] : memref<2x2xf32, #tpu.memory_space<vmem>>, vector<2x2xf32>
    tpu.vector_store %arg10[%c0_23, %c0_24], %29 {strides = array<i32>} : memref<2x2xf32, #tpu.memory_space<vmem>>, vector<2x2xf32>,
    return
  }
  func.func @transform_0(%arg0: i32) -> (i32, i32) {
    %c0_i32 = arith.constant 0 : i32
    %c0_i32_0 = arith.constant 0 : i32
    return %arg0, %c0_i32 : i32, i32
  }
  func.func @transform_1(%arg0: i32) -> (i32, i32) {
    %c0_i32 = arith.constant 0 : i32
    %c0_i32_0 = arith.constant 0 : i32
    %c0_i32_1 = arith.constant 0 : i32
    return %c0_i32, %c0_i32_0 : i32, i32
  }
  func.func @transform_2(%arg0: i32) -> (i32, i32) {
    %c0_i32 = arith.constant 0 : i32
    %c0_i32_0 = arith.constant 0 : i32
    %c0_i32_1 = arith.constant 0 : i32
    return %c0_i32, %c0_i32_0 : i32, i32
  }
  func.func @transform_3(%arg0: i32) -> (i32, i32) {
    %c0_i32 = arith.constant 0 : i32
    %c0_i32_0 = arith.constant 0 : i32
    %c0_i32_1 = arith.constant 0 : i32
    return %c0_i32, %c0_i32_0 : i32, i32
  }
  func.func @transform_4(%arg0: i32) -> (i32, i32) {
    %c0_i32 = arith.constant 0 : i32
    %c0_i32_0 = arith.constant 0 : i32
    %c0_i32_1 = arith.constant 0 : i32
    return %c0_i32, %c0_i32_0 : i32, i32
  }
  func.func @transform_5(%arg0: i32) -> (i32, i32) {
    %c0_i32 = arith.constant 0 : i32
    %c0_i32_0 = arith.constant 0 : i32
    %c0_i32_1 = arith.constant 0 : i32
    return %c0_i32, %c0_i32_0 : i32, i32
  }
  func.func @transform_6(%arg0: i32) -> (i32, i32) {
    %c0_i32 = arith.constant 0 : i32
    %c0_i32_0 = arith.constant 0 : i32
    %c0_i32_1 = arith.constant 0 : i32
    return %c0_i32, %c0_i32_0 : i32, i32
  }
  func.func @transform_7(%arg0: i32) -> (i32, i32) {
    %c0_i32 = arith.constant 0 : i32
    %c0_i32_0 = arith.constant 0 : i32
    %c0_i32_1 = arith.constant 0 : i32
    return %c0_i32, %c0_i32_0 : i32, i32
  }
  func.func @transform_8(%arg0: i32) -> (i32, i32) {
    %c0_i32 = arith.constant 0 : i32
    %c0_i32_0 = arith.constant 0 : i32
    %c0_i32_1 = arith.constant 0 : i32
    return %c0_i32, %c0_i32_0 : i32, i32
  }
  func.func @transform_9(%arg0: i32) -> (i32, i32) {
    %c0_i32 = arith.constant 0 : i32
    %c0_i32_0 = arith.constant 0 : i32
    return %arg0, %c0_i32 : i32, i32
  }
}

module attributes {stable_mosaic.version = 11 : i64} {
  func.func @_conv_pool_bn_kernel(%arg0: i32, %arg1: memref<8x512xbf16, #tpu.memory_space<vmem>>, %arg2: memref<8x512xbf16, #tpu.memory_space<vmem>>, %arg3: memref<8x512xbf16, #tpu.memory_space<vmem>>, %arg4: memref<8x512xbf16, #tpu.memory_space<vmem>>, %arg5: memref<512x256xbf16, #tpu.memory_space<vmem>>, %arg6: memref<1x256xf32, #tpu.memory_space<vmem>>, %arg7: memref<1x256xf32, #tpu.memory_space<vmem>>, %arg8: memref<1x256xf32, #tpu.memory_space<vmem>>, %arg9: memref<8x256xbf16, #tpu.memory_space<vmem>>) attributes {dimension_semantics = [#tpu.dimension_semantics<parallel>], iteration_bounds = array<i64: 1>, scalar_prefetch = 0 : i64, scratch_operands = 0 : i64, tpu.core_type = #tpu.core_type<tc>, window_params = [{transform_indices = @transform_0, window_bounds = array<i64: 8, 512>}, {transform_indices = @transform_1, window_bounds = array<i64: 8, 512>}, {transform_indices = @transform_2, window_bounds = array<i64: 8, 512>}, {transform_indices = @transform_3, window_bounds = array<i64: 8, 512>}, {pipeline_mode = #tpu.pipeline_mode<synchronous>, transform_indices = @transform_4, window_bounds = array<i64: 512, 256>}, {pipeline_mode = #tpu.pipeline_mode<synchronous>, transform_indices = @transform_5, window_bounds = array<i64: 1, 256>}, {pipeline_mode = #tpu.pipeline_mode<synchronous>, transform_indices = @transform_6, window_bounds = array<i64: 1, 256>}, {pipeline_mode = #tpu.pipeline_mode<synchronous>, transform_indices = @transform_7, window_bounds = array<i64: 1, 256>}, {transform_indices = @transform_8, window_bounds = array<i64: 8, 256>}]} {
    %c0 = arith.constant 0 : index
    %c0_0 = arith.constant 0 : index
    %0 = vector.load %arg5[%c0, %c0_0] : memref<512x256xbf16, #tpu.memory_space<vmem>>, vector<512x256xbf16>
    %c0_1 = arith.constant 0 : index
    %c0_2 = arith.constant 0 : index
    %1 = vector.load %arg6[%c0_1, %c0_2] : memref<1x256xf32, #tpu.memory_space<vmem>>, vector<1x256xf32>
    %c0_3 = arith.constant 0 : index
    %c0_4 = arith.constant 0 : index
    %2 = vector.load %arg1[%c0_3, %c0_4] : memref<8x512xbf16, #tpu.memory_space<vmem>>, vector<8x512xbf16>
    %cst = arith.constant dense<0.000000e+00> : vector<8x256xf32>
    %3 = tpu.matmul %2, %0, %cst {dimension_numbers = #tpu.dot_dimension_numbers<[1], [0], [0], [1], [0, 0, 1, 1], [], []>} : vector<8x512xbf16>, vector<512x256xbf16>, vector<8x256xf32> -> vector<8x256xf32>
    %4 = vector.broadcast %1 : vector<1x256xf32> to vector<8x256xf32>
    %5 = arith.addf %3, %4 : vector<8x256xf32>
    %cst_5 = arith.constant 0.000000e+00 : f32
    %6 = vector.broadcast %cst_5 : f32 to vector<8x256xf32>
    %7 = arith.maximumf %5, %6 : vector<8x256xf32>
    %c0_6 = arith.constant 0 : index
    %c0_7 = arith.constant 0 : index
    %8 = vector.load %arg2[%c0_6, %c0_7] : memref<8x512xbf16, #tpu.memory_space<vmem>>, vector<8x512xbf16>
    %cst_8 = arith.constant dense<0.000000e+00> : vector<8x256xf32>
    %9 = tpu.matmul %8, %0, %cst_8 {dimension_numbers = #tpu.dot_dimension_numbers<[1], [0], [0], [1], [0, 0, 1, 1], [], []>} : vector<8x512xbf16>, vector<512x256xbf16>, vector<8x256xf32> -> vector<8x256xf32>
    %10 = vector.broadcast %1 : vector<1x256xf32> to vector<8x256xf32>
    %11 = arith.addf %9, %10 : vector<8x256xf32>
    %cst_9 = arith.constant 0.000000e+00 : f32
    %12 = vector.broadcast %cst_9 : f32 to vector<8x256xf32>
    %13 = arith.maximumf %11, %12 : vector<8x256xf32>
    %14 = arith.maximumf %7, %13 : vector<8x256xf32>
    %c0_10 = arith.constant 0 : index
    %c0_11 = arith.constant 0 : index
    %15 = vector.load %arg3[%c0_10, %c0_11] : memref<8x512xbf16, #tpu.memory_space<vmem>>, vector<8x512xbf16>
    %cst_12 = arith.constant dense<0.000000e+00> : vector<8x256xf32>
    %16 = tpu.matmul %15, %0, %cst_12 {dimension_numbers = #tpu.dot_dimension_numbers<[1], [0], [0], [1], [0, 0, 1, 1], [], []>} : vector<8x512xbf16>, vector<512x256xbf16>, vector<8x256xf32> -> vector<8x256xf32>
    %17 = vector.broadcast %1 : vector<1x256xf32> to vector<8x256xf32>
    %18 = arith.addf %16, %17 : vector<8x256xf32>
    %cst_13 = arith.constant 0.000000e+00 : f32
    %19 = vector.broadcast %cst_13 : f32 to vector<8x256xf32>
    %20 = arith.maximumf %18, %19 : vector<8x256xf32>
    %c0_14 = arith.constant 0 : index
    %c0_15 = arith.constant 0 : index
    %21 = vector.load %arg4[%c0_14, %c0_15] : memref<8x512xbf16, #tpu.memory_space<vmem>>, vector<8x512xbf16>
    %cst_16 = arith.constant dense<0.000000e+00> : vector<8x256xf32>
    %22 = tpu.matmul %21, %0, %cst_16 {dimension_numbers = #tpu.dot_dimension_numbers<[1], [0], [0], [1], [0, 0, 1, 1], [], []>} : vector<8x512xbf16>, vector<512x256xbf16>, vector<8x256xf32> -> vector<8x256xf32>
    %23 = vector.broadcast %1 : vector<1x256xf32> to vector<8x256xf32>
    %24 = arith.addf %22, %23 : vector<8x256xf32>
    %cst_17 = arith.constant 0.000000e+00 : f32
    %25 = vector.broadcast %cst_17 : f32 to vector<8x256xf32>
    %26 = arith.maximumf %24, %25 : vector<8x256xf32>
    %27 = arith.maximumf %20, %26 : vector<8x256xf32>
    %28 = arith.maximumf %14, %27 : vector<8x256xf32>
    %c0_18 = arith.constant 0 : index
    %c0_19 = arith.constant 0 : index
    %29 = vector.load %arg7[%c0_18, %c0_19] : memref<1x256xf32, #tpu.memory_space<vmem>>, vector<1x256xf32>
    %30 = vector.broadcast %29 : vector<1x256xf32> to vector<8x256xf32>
    %31 = arith.mulf %28, %30 : vector<8x256xf32>
    %c0_20 = arith.constant 0 : index
    %c0_21 = arith.constant 0 : index
    %32 = vector.load %arg8[%c0_20, %c0_21] : memref<1x256xf32, #tpu.memory_space<vmem>>, vector<1x256xf32>
    %33 = vector.broadcast %32 : vector<1x256xf32> to vector<8x256xf32>
    %34 = arith.addf %31, %33 : vector<8x256xf32>
    %35 = arith.truncf %34 : vector<8x256xf32> to vector<8x256xbf16>
    %c0_22 = arith.constant 0 : index
    %c0_23 = arith.constant 0 : index
    %36 = vector.load %arg9[%c0_22, %c0_23] : memref<8x256xbf16, #tpu.memory_space<vmem>>, vector<8x256xbf16>
    tpu.vector_store %arg9[%c0_22, %c0_23], %35 {strides = array<i32>} : memref<8x256xbf16, #tpu.memory_space<vmem>>, vector<8x256xbf16>,
    return
  }
  func.func @transform_0(%arg0: i32) -> (i32, i32) {
    %c0_i32 = arith.constant 0 : i32
    %c0_i32_0 = arith.constant 0 : i32
    return %arg0, %c0_i32 : i32, i32
  }
  func.func @transform_1(%arg0: i32) -> (i32, i32) {
    %c0_i32 = arith.constant 0 : i32
    %c0_i32_0 = arith.constant 0 : i32
    return %arg0, %c0_i32 : i32, i32
  }
  func.func @transform_2(%arg0: i32) -> (i32, i32) {
    %c0_i32 = arith.constant 0 : i32
    %c0_i32_0 = arith.constant 0 : i32
    return %arg0, %c0_i32 : i32, i32
  }
  func.func @transform_3(%arg0: i32) -> (i32, i32) {
    %c0_i32 = arith.constant 0 : i32
    %c0_i32_0 = arith.constant 0 : i32
    return %arg0, %c0_i32 : i32, i32
  }
  func.func @transform_4(%arg0: i32) -> (i32, i32) {
    %c0_i32 = arith.constant 0 : i32
    %c0_i32_0 = arith.constant 0 : i32
    %c0_i32_1 = arith.constant 0 : i32
    return %c0_i32, %c0_i32_0 : i32, i32
  }
  func.func @transform_5(%arg0: i32) -> (i32, i32) {
    %c0_i32 = arith.constant 0 : i32
    %c0_i32_0 = arith.constant 0 : i32
    %c0_i32_1 = arith.constant 0 : i32
    return %c0_i32, %c0_i32_0 : i32, i32
  }
  func.func @transform_6(%arg0: i32) -> (i32, i32) {
    %c0_i32 = arith.constant 0 : i32
    %c0_i32_0 = arith.constant 0 : i32
    %c0_i32_1 = arith.constant 0 : i32
    return %c0_i32, %c0_i32_0 : i32, i32
  }
  func.func @transform_7(%arg0: i32) -> (i32, i32) {
    %c0_i32 = arith.constant 0 : i32
    %c0_i32_0 = arith.constant 0 : i32
    %c0_i32_1 = arith.constant 0 : i32
    return %c0_i32, %c0_i32_0 : i32, i32
  }
  func.func @transform_8(%arg0: i32) -> (i32, i32) {
    %c0_i32 = arith.constant 0 : i32
    %c0_i32_0 = arith.constant 0 : i32
    return %arg0, %c0_i32 : i32, i32
  }
}

</mosaic_0001>

<llo_original>
// kernel: cnn_forward.4
$region0: #{cnn_forward.4}
  #allocation0 [shape = 'u32[]', space=smem, size = 0x4, offset = 0x4, fixed_abs, tag = 'smem constant byte address 0x4 - core index']
  #allocation1 [shape = 'u32[144,128]{1,0:T(1,128)}', space=vmem, size = 0x12000, scoped, tag = 'internal scratch']
  %s0 = inlined_call_operand.vmem [shape: bf16[392,75], index: 0, kind: input, shape index: {}]
  %s1 = inlined_call_operand.vmem [shape: bf16[392,75], index: 1, kind: input, shape index: {}]
  %s2 = inlined_call_operand.vmem [shape: bf16[392,75], index: 2, kind: input, shape index: {}]
  %s3 = inlined_call_operand.vmem [shape: bf16[392,75], index: 3, kind: input, shape index: {}]
  %s4 = inlined_call_operand.vmem [shape: bf16[75,128], index: 4, kind: input, shape index: {}]
  %s5 = inlined_call_operand.vmem [shape: f32[1,128], index: 5, kind: input, shape index: {}]
  %s6 = inlined_call_operand.vmem [shape: f32[1,128], index: 6, kind: input, shape index: {}]
  %s7 = inlined_call_operand.vmem [shape: f32[1,128], index: 7, kind: input, shape index: {}]
  %s8 = inlined_call_operand.vmem [shape: bf16[392,128], index: 8, kind: output, shape index: {}]
  %s9 = sld [smem:[#allocation0]]
  $region42: #{cnn_forward.4} parent=0
    _
  %s11 = ssub.s32 1, %s9
  %s12 = scalar_select 0, %s11, %s9
  // Predicated region
  $region2: #{cnn_forward.4} parent=0 // pred_check
    _
  $region3: #{cnn_forward.4} parent=0 // pred_check_branch
    %14 = sbr.rel (0) target = $region5
  $region4: #{cnn_forward.4} parent=0 // pred_region
    _
  $region5: #{cnn_forward.4} parent=0 // pred_fallthru
    _
  // Predicated region
  $region6: #{cnn_forward.4} parent=0 // pred_check
    _
  $region7: #{cnn_forward.4} parent=0 // pred_check_branch
    %16 = sbr.rel (0) target = $region9
  $region8: #{cnn_forward.4} parent=0 // pred_region
    _
  $region9: #{cnn_forward.4} parent=0 // pred_fallthru
    _
  // Predicated region
  $region10: #{cnn_forward.4} parent=0 // pred_check
    _
  $region11: #{cnn_forward.4} parent=0 // pred_check_branch
    %18 = sbr.rel (0) target = $region13
  $region12: #{cnn_forward.4} parent=0 // pred_region
    _
  $region13: #{cnn_forward.4} parent=0 // pred_fallthru
    _
  // Predicated region
  $region14: #{cnn_forward.4} parent=0 // pred_check
    _
  $region15: #{cnn_forward.4} parent=0 // pred_check_branch
    %20 = sbr.rel (0) target = $region17
  $region16: #{cnn_forward.4} parent=0 // pred_region
    _
  $region17: #{cnn_forward.4} parent=0 // pred_fallthru
    _
  // Predicated region
  $region18: #{cnn_forward.4} parent=0 // pred_check
    _
  $region19: #{cnn_forward.4} parent=0 // pred_check_branch
    %22 = sbr.rel (0) target = $region21
  $region20: #{cnn_forward.4} parent=0 // pred_region
    _
  $region21: #{cnn_forward.4} parent=0 // pred_fallthru
    _
  // Predicated region
  $region22: #{cnn_forward.4} parent=0 // pred_check
    _
  $region23: #{cnn_forward.4} parent=0 // pred_check_branch
    %24 = sbr.rel (0) target = $region25
  $region24: #{cnn_forward.4} parent=0 // pred_region
    _
  $region25: #{cnn_forward.4} parent=0 // pred_fallthru
    _
  // Predicated region
  $region26: #{cnn_forward.4} parent=0 // pred_check
    _
  $region27: #{cnn_forward.4} parent=0 // pred_check_branch
    %26 = sbr.rel (0) target = $region29
  $region28: #{cnn_forward.4} parent=0 // pred_region
    _
  $region29: #{cnn_forward.4} parent=0 // pred_fallthru
    _
  // Predicated region
  $region30: #{cnn_forward.4} parent=0 // pred_check
    _
  $region31: #{cnn_forward.4} parent=0 // pred_check_branch
    %28 = sbr.rel (0) target = $region33
  $region32: #{cnn_forward.4} parent=0 // pred_region
    _
  $region33: #{cnn_forward.4} parent=0 // pred_fallthru
    _
  %v30 = vld [vmem:[%s4] sm:$0xf]
  %v31 = vld [vmem:[%s4 + $0x4] sm:$0xf]
  %v32 = vld [vmem:[%s4 + $0x8] sm:$0xf]
  %v33 = vld [vmem:[%s4 + $0xc] sm:$0xf]
  %v34 = vld [vmem:[%s4 + $0x10] sm:$0xf]
  %v35 = vld [vmem:[%s4 + $0x14] sm:$0xf]
  %v36 = vld [vmem:[%s4 + $0x18] sm:$0xf]
  %v37 = vld [vmem:[%s4 + $0x1c] sm:$0xf]
  %v38 = vld [vmem:[%s4 + $0x20] sm:$0xf]
  %v39 = vld [vmem:[%s4 + $0x24] sm:$0x3]
  %v40 = vld [vmem:[%s5] sm:$0x1]
  %v41 = vld [vmem:[%s0] sm:$0xf]
  %v42 = vld [vmem:[%s0 + $0x4] sm:$0xf]
  %v43 = vld [vmem:[%s0 + $0x8] sm:$0xf]
  %v44 = vld [vmem:[%s0 + $0xc] sm:$0xf]
  %v45 = vld [vmem:[%s0 + $0x10] sm:$0xf]
  %v46 = vld [vmem:[%s0 + $0x14] sm:$0xf]
  %v47 = vld [vmem:[%s0 + $0x18] sm:$0xf]
  %v48 = vld [vmem:[%s0 + $0x1c] sm:$0xf]
  %v49 = vld [vmem:[%s0 + $0x20] sm:$0xf]
  %v50 = vld [vmem:[%s0 + $0x24] sm:$0xf]
  %v51 = vld [vmem:[%s0 + $0x28] sm:$0xf]
  %v52 = vld [vmem:[%s0 + $0x2c] sm:$0xf]
  %v53 = vld [vmem:[%s0 + $0x30] sm:$0xf]
  %v54 = vld [vmem:[%s0 + $0x34] sm:$0xf]
  %v55 = vld [vmem:[%s0 + $0x38] sm:$0xf]
  %v56 = vld [vmem:[%s0 + $0x3c] sm:$0xf]
  %v57 = vld [vmem:[%s0 + $0x40] sm:$0xf]
  %v58 = vld [vmem:[%s0 + $0x44] sm:$0xf]
  %v59 = vld [vmem:[%s0 + $0x48] sm:$0xf]
  %v60 = vld [vmem:[%s0 + $0x4c] sm:$0xf]
  %v61 = vld [vmem:[%s0 + $0x50] sm:$0xf]
  %v62 = vld [vmem:[%s0 + $0x54] sm:$0xf]
  %v63 = vld [vmem:[%s0 + $0x58] sm:$0xf]
  %v64 = vld [vmem:[%s0 + $0x5c] sm:$0xf]
  %v65 = vld [vmem:[%s0 + $0x60] sm:$0xf]
  %v66 = vld [vmem:[%s0 + $0x64] sm:$0xf]
  %v67 = vld [vmem:[%s0 + $0x68] sm:$0xf]
  %v68 = vld [vmem:[%s0 + $0x6c] sm:$0xf]
  %v69 = vld [vmem:[%s0 + $0x70] sm:$0xf]
  %v70 = vld [vmem:[%s0 + $0x74] sm:$0xf]
  %v71 = vld [vmem:[%s0 + $0x78] sm:$0xf]
  %v72 = vld [vmem:[%s0 + $0x7c] sm:$0xf]
  %v73 = vld [vmem:[%s0 + $0x80] sm:$0xf]
  %v74 = vld [vmem:[%s0 + $0x84] sm:$0xf]
  %v75 = vld [vmem:[%s0 + $0x88] sm:$0xf]
  %v76 = vld [vmem:[%s0 + $0x8c] sm:$0xf]
  %v77 = vld [vmem:[%s0 + $0x90] sm:$0xf]
  %v78 = vld [vmem:[%s0 + $0x94] sm:$0xf]
  %v79 = vld [vmem:[%s0 + $0x98] sm:$0xf]
  %v80 = vld [vmem:[%s0 + $0x9c] sm:$0xf]
  %v81 = vld [vmem:[%s0 + $0xa0] sm:$0xf]
  %v82 = vld [vmem:[%s0 + $0xa4] sm:$0xf]
  %v83 = vld [vmem:[%s0 + $0xa8] sm:$0xf]
  %v84 = vld [vmem:[%s0 + $0xac] sm:$0xf]
  %v85 = vld [vmem:[%s0 + $0xb0] sm:$0xf]
  %v86 = vld [vmem:[%s0 + $0xb4] sm:$0xf]
  %v87 = vld [vmem:[%s0 + $0xb8] sm:$0xf]
  %v88 = vld [vmem:[%s0 + $0xbc] sm:$0xf]
  %v89 = vld [vmem:[%s0 + $0xc0] sm:$0xf]
  %v91 = vlaneseq
  %v92 = vshrl.u32 %v91, 7
  %v93 = vsub.s32 0, %v92
  %v94 = vrot.slane %v40, %v93
  %v145 = vunpack.c.l.b16 %v41
  %v146 = vunpack.c.l.b16 %v42
  %v147 = vunpack.c.l.b16 %v43
  %v148 = vunpack.c.l.b16 %v44
  %v149 = vunpack.c.l.b16 %v45
  %v150 = vunpack.c.l.b16 %v46
  %v151 = vunpack.c.l.b16 %v47
  %v152 = vunpack.c.l.b16 %v48
  %v153 = vunpack.c.l.b16 %v49
  %v154 = vunpack.c.l.b16 %v50
  %v155 = vunpack.c.l.b16 %v51
  %v156 = vunpack.c.l.b16 %v52
  %v157 = vunpack.c.l.b16 %v53
  %v158 = vunpack.c.l.b16 %v54
  %v159 = vunpack.c.l.b16 %v55
  %v160 = vunpack.c.l.b16 %v56
  %v161 = vunpack.c.l.b16 %v57
  %v162 = vunpack.c.l.b16 %v58
  %v163 = vunpack.c.l.b16 %v59
  %v164 = vunpack.c.l.b16 %v60
  %v165 = vunpack.c.l.b16 %v61
  %v166 = vunpack.c.l.b16 %v62
  %v167 = vunpack.c.l.b16 %v63
  %v168 = vunpack.c.l.b16 %v64
  %v169 = vunpack.c.l.b16 %v65
  %v170 = vunpack.c.l.b16 %v66
  %v171 = vunpack.c.l.b16 %v67
  %v172 = vunpack.c.l.b16 %v68
  %v173 = vunpack.c.l.b16 %v69
  %v174 = vunpack.c.l.b16 %v70
  %v175 = vunpack.c.l.b16 %v71
  %v176 = vunpack.c.l.b16 %v72
  %v177 = vunpack.c.l.b16 %v73
  %v178 = vunpack.c.l.b16 %v74
  %v179 = vunpack.c.l.b16 %v75
  %v180 = vunpack.c.l.b16 %v76
  %v181 = vunpack.c.l.b16 %v77
  %v182 = vunpack.c.l.b16 %v78
  %v183 = vunpack.c.l.b16 %v79
  %v184 = vunpack.c.l.b16 %v80
  %v185 = vunpack.c.l.b16 %v81
  %v186 = vunpack.c.l.b16 %v82
  %v187 = vunpack.c.l.b16 %v83
  %v188 = vunpack.c.l.b16 %v84
  %v189 = vunpack.c.l.b16 %v85
  %v190 = vunpack.c.l.b16 %v86
  %v191 = vunpack.c.l.b16 %v87
  %v192 = vunpack.c.l.b16 %v88
  %v193 = vunpack.c.l.b16 %v89
  %v194 = vpack.c.b16 %v146, %v145
  %v195 = vpack.c.b16 %v148, %v147
  %v196 = vpack.c.b16 %v150, %v149
  %v197 = vpack.c.b16 %v152, %v151
  %v198 = vpack.c.b16 %v154, %v153
  %v199 = vpack.c.b16 %v156, %v155
  %v200 = vpack.c.b16 %v158, %v157
  %v201 = vpack.c.b16 %v160, %v159
  %v202 = vpack.c.b16 %v162, %v161
  %v203 = vpack.c.b16 %v164, %v163
  %v204 = vpack.c.b16 %v166, %v165
  %v205 = vpack.c.b16 %v168, %v167
  %v206 = vpack.c.b16 %v170, %v169
  %v207 = vpack.c.b16 %v172, %v171
  %v208 = vpack.c.b16 %v174, %v173
  %v209 = vpack.c.b16 %v176, %v175
  %v210 = vpack.c.b16 %v178, %v177
  %v211 = vpack.c.b16 %v180, %v179
  %v212 = vpack.c.b16 %v182, %v181
  %v213 = vpack.c.b16 %v184, %v183
  %v214 = vpack.c.b16 %v186, %v185
  %v215 = vpack.c.b16 %v188, %v187
  %v216 = vpack.c.b16 %v190, %v189
  %v217 = vpack.c.b16 %v192, %v191
  %v218 = vpack.c.b16 %v193, %v193
  %v229 = vunpack.c.l.b16 %v30
  %v230 = vunpack.c.l.b16 %v31
  %v231 = vunpack.c.l.b16 %v32
  %v232 = vunpack.c.l.b16 %v33
  %v233 = vunpack.c.l.b16 %v34
  %v234 = vunpack.c.l.b16 %v35
  %v235 = vunpack.c.l.b16 %v36
  %v236 = vunpack.c.l.b16 %v37
  %v237 = vunpack.c.l.b16 %v38
  %v238 = vunpack.c.l.b16 %v39
  %v239 = vpack.c.b16 %v230, %v229
  %v240 = vpack.c.b16 %v232, %v231
  %v241 = vpack.c.b16 %v234, %v233
  %v242 = vpack.c.b16 %v236, %v235
  %v243 = vpack.c.b16 %v238, %v237
  %vm248 = vcmask 613376
  %v250 = vsel %vm248, %v194, 0
  %v253 = vsel %vm248, %v195, 0
  %v256 = vsel %vm248, %v196, 0
  %v259 = vsel %vm248, %v197, 0
  %v262 = vsel %vm248, %v198, 0
  %v265 = vsel %vm248, %v199, 0
  %v268 = vsel %vm248, %v200, 0
  %v271 = vsel %vm248, %v201, 0
  %v274 = vsel %vm248, %v202, 0
  %v277 = vsel %vm248, %v203, 0
  %v280 = vsel %vm248, %v204, 0
  %v283 = vsel %vm248, %v205, 0
  %v286 = vsel %vm248, %v206, 0
  %v289 = vsel %vm248, %v207, 0
  %v292 = vsel %vm248, %v208, 0
  %v295 = vsel %vm248, %v209, 0
  %v298 = vsel %vm248, %v210, 0
  %v301 = vsel %vm248, %v211, 0
  %v304 = vsel %vm248, %v212, 0
  %v307 = vsel %vm248, %v213, 0
  %v310 = vsel %vm248, %v214, 0
  %v313 = vsel %vm248, %v215, 0
  %v316 = vsel %vm248, %v216, 0
  %v319 = vsel %vm248, %v217, 0
  %v322 = vsel %vm248, %v218, 0
  %vm324 = vcmask 1044480
  %vm325 = vcmask 1045504
  %v326 = vsel %vm324, 4294967295, 65535
  %v327 = vsel %vm325, %v326, 0
  %v329 = vand.u32 %v243, %v327
  %331 = vmatprep.subr.bf16.mxu0 0
  %332 = vmatpush1.bf16.msra.mxu0 %v239
  %333 = vmatprep.subr.bf16.mxu0 0
  %334 = vmatpush1.bf16.msra.mxu0 %v240
  %335 = vmatprep.subr.bf16.mxu0 0
  %336 = vmatpush1.bf16.msra.mxu0 %v241
  %337 = vmatprep.subr.bf16.mxu0 0
  %338 = vmatpush1.bf16.msra.mxu0 %v242
  %339 = vmatprep.subr.bf16.mxu0 0
  %340 = vmatpush1.bf16.msra.mxu0 %v329
  %341 = vmatprep.subr.bf16.mxu0 0
  %342 = vmatpush1.bf16.msra.mxu0 0
  %343 = vmatprep.subr.bf16.mxu0 0
  %344 = vmatpush1.bf16.msra.mxu0 0
  %345 = vmatprep.subr.bf16.mxu0 0
  %346 = vmatpush1.bf16.msra.mxu0 0
  %347 = vmatprep.subr.bf16.mxu0 0
  %348 = vmatpush1.bf16.msra.mxu0 0
  %349 = vmatprep.subr.bf16.mxu0 0
  %350 = vmatpush1.bf16.msra.mxu0 0
  %351 = vmatprep.subr.bf16.mxu0 0
  %352 = vmatpush1.bf16.msra.mxu0 0
  %353 = vmatprep.subr.bf16.mxu0 0
  %354 = vmatpush1.bf16.msra.mxu0 0
  %355 = vmatprep.subr.bf16.mxu0 0
  %356 = vmatpush1.bf16.msra.mxu0 0
  %357 = vmatprep.subr.bf16.mxu0 0
  %358 = vmatpush1.bf16.msra.mxu0 0
  %359 = vmatprep.subr.bf16.mxu0 0
  %360 = vmatpush1.bf16.msra.mxu0 0
  %361 = vmatprep.subr.bf16.mxu0 0
  %362 = vmatpush1.bf16.msra.mxu0 0
  %363 = vmatprep.mubr.bf16.mxu0 0
  %364 = vmatmul.mubr.bf16.gmra.mrb[0].mxu0 %v250
  %v365 = vpop.f32.mrb[0].mxu0
  %v366 = vadd.f32 %v94, %v365
  %v367 = vpop.f32.mrb[0].mxu0
  %v368 = vpop.f32.mrb[0].mxu0
  %v369 = vadd.f32 %v94, %v368
  %v370 = vpop.f32.mrb[0].mxu0
  %371 = vmatprep.mubr.bf16.mxu0 0
  %372 = vmatmul.mubr.bf16.gmra.mrb[0].mxu0 %v253
  %v373 = vpop.f32.mrb[0].mxu0
  %v374 = vadd.f32 %v94, %v373
  %v375 = vpop.f32.mrb[0].mxu0
  %v376 = vpop.f32.mrb[0].mxu0
  %v377 = vadd.f32 %v94, %v376
  %v378 = vpop.f32.mrb[0].mxu0
  %379 = vmatprep.mubr.bf16.mxu0 0
  %380 = vmatmul.mubr.bf16.gmra.mrb[0].mxu0 %v256
  %v381 = vpop.f32.mrb[0].mxu0
  %v382 = vadd.f32 %v94, %v381
  %v383 = vpop.f32.mrb[0].mxu0
  %v384 = vpop.f32.mrb[0].mxu0
  %v385 = vadd.f32 %v94, %v384
  %v386 = vpop.f32.mrb[0].mxu0
  %387 = vmatprep.mubr.bf16.mxu0 0
  %388 = vmatmul.mubr.bf16.gmra.mrb[0].mxu0 %v259
  %v389 = vpop.f32.mrb[0].mxu0
  %v390 = vadd.f32 %v94, %v389
  %v391 = vpop.f32.mrb[0].mxu0
  %v392 = vpop.f32.mrb[0].mxu0
  %v393 = vadd.f32 %v94, %v392
  %v394 = vpop.f32.mrb[0].mxu0
  %395 = vmatprep.mubr.bf16.mxu0 0
  %396 = vmatmul.mubr.bf16.gmra.mrb[0].mxu0 %v262
  %v397 = vpop.f32.mrb[0].mxu0
  %v398 = vadd.f32 %v94, %v397
  %v399 = vpop.f32.mrb[0].mxu0
  %v400 = vpop.f32.mrb[0].mxu0
  %v401 = vadd.f32 %v94, %v400
  %v402 = vpop.f32.mrb[0].mxu0
  %403 = vmatprep.mubr.bf16.mxu0 0
  %404 = vmatmul.mubr.bf16.gmra.mrb[0].mxu0 %v265
  %v405 = vpop.f32.mrb[0].mxu0
  %v406 = vadd.f32 %v94, %v405
  %v407 = vpop.f32.mrb[0].mxu0
  %v408 = vpop.f32.mrb[0].mxu0
  %v409 = vadd.f32 %v94, %v408
  %v410 = vpop.f32.mrb[0].mxu0
  %411 = vmatprep.mubr.bf16.mxu0 0
  %412 = vmatmul.mubr.bf16.gmra.mrb[0].mxu0 %v268
  %v413 = vpop.f32.mrb[0].mxu0
  %v414 = vadd.f32 %v94, %v413
  %v415 = vpop.f32.mrb[0].mxu0
  %v416 = vpop.f32.mrb[0].mxu0
  %v417 = vadd.f32 %v94, %v416
  %v418 = vpop.f32.mrb[0].mxu0
  %419 = vmatprep.mubr.bf16.mxu0 0
  %420 = vmatmul.mubr.bf16.gmra.mrb[0].mxu0 %v271
  %v421 = vpop.f32.mrb[0].mxu0
  %v422 = vadd.f32 %v94, %v421
  %v423 = vpop.f32.mrb[0].mxu0
  %v424 = vpop.f32.mrb[0].mxu0
  %v425 = vadd.f32 %v94, %v424
  %v426 = vpop.f32.mrb[0].mxu0
  %427 = vmatprep.mubr.bf16.mxu0 0
  %428 = vmatmul.mubr.bf16.gmra.mrb[0].mxu0 %v274
  %v429 = vpop.f32.mrb[0].mxu0
  %v430 = vadd.f32 %v94, %v429
  %v431 = vpop.f32.mrb[0].mxu0
  %v432 = vpop.f32.mrb[0].mxu0
  %v433 = vadd.f32 %v94, %v432
  %v434 = vpop.f32.mrb[0].mxu0
  %435 = vmatprep.mubr.bf16.mxu0 0
  %436 = vmatmul.mubr.bf16.gmra.mrb[0].mxu0 %v277
  %v437 = vpop.f32.mrb[0].mxu0
  %v438 = vadd.f32 %v94, %v437
  %v439 = vpop.f32.mrb[0].mxu0
  %v440 = vpop.f32.mrb[0].mxu0
  %v441 = vadd.f32 %v94, %v440
  %v442 = vpop.f32.mrb[0].mxu0
  %443 = vmatprep.mubr.bf16.mxu0 0
  %444 = vmatmul.mubr.bf16.gmra.mrb[0].mxu0 %v280
  %v445 = vpop.f32.mrb[0].mxu0
  %v446 = vadd.f32 %v94, %v445
  %v447 = vpop.f32.mrb[0].mxu0
  %v448 = vpop.f32.mrb[0].mxu0
  %v449 = vadd.f32 %v94, %v448
  %v450 = vpop.f32.mrb[0].mxu0
  %451 = vmatprep.mubr.bf16.mxu0 0
  %452 = vmatmul.mubr.bf16.gmra.mrb[0].mxu0 %v283
  %v453 = vpop.f32.mrb[0].mxu0
  %v454 = vadd.f32 %v94, %v453
  %v455 = vpop.f32.mrb[0].mxu0
  %v456 = vpop.f32.mrb[0].mxu0
  %v457 = vadd.f32 %v94, %v456
  %v458 = vpop.f32.mrb[0].mxu0
  %459 = vmatprep.mubr.bf16.mxu0 0
  %460 = vmatmul.mubr.bf16.gmra.mrb[0].mxu0 %v286
  %v461 = vpop.f32.mrb[0].mxu0
  %v462 = vadd.f32 %v94, %v461
  %v463 = vpop.f32.mrb[0].mxu0
  %v464 = vpop.f32.mrb[0].mxu0
  %v465 = vadd.f32 %v94, %v464
  %v466 = vpop.f32.mrb[0].mxu0
  %467 = vmatprep.mubr.bf16.mxu0 0
  %468 = vmatmul.mubr.bf16.gmra.mrb[0].mxu0 %v289
  %v469 = vpop.f32.mrb[0].mxu0
  %v470 = vadd.f32 %v94, %v469
  %v471 = vpop.f32.mrb[0].mxu0
  %v472 = vpop.f32.mrb[0].mxu0
  %v473 = vadd.f32 %v94, %v472
  %v474 = vpop.f32.mrb[0].mxu0
  %475 = vmatprep.mubr.bf16.mxu0 0
  %476 = vmatmul.mubr.bf16.gmra.mrb[0].mxu0 %v292
  %v477 = vpop.f32.mrb[0].mxu0
  %v478 = vadd.f32 %v94, %v477
  %v479 = vpop.f32.mrb[0].mxu0
  %v480 = vpop.f32.mrb[0].mxu0
  %v481 = vadd.f32 %v94, %v480
  %v482 = vpop.f32.mrb[0].mxu0
  %483 = vmatprep.mubr.bf16.mxu0 0
  %484 = vmatmul.mubr.bf16.gmra.mrb[0].mxu0 %v295
  %v485 = vpop.f32.mrb[0].mxu0
  %v486 = vadd.f32 %v94, %v485
  %v487 = vpop.f32.mrb[0].mxu0
  %v488 = vpop.f32.mrb[0].mxu0
  %v489 = vadd.f32 %v94, %v488
  %v490 = vpop.f32.mrb[0].mxu0
  %491 = vmatprep.mubr.bf16.mxu0 0
  %492 = vmatmul.mubr.bf16.gmra.mrb[0].mxu0 %v298
  %v493 = vpop.f32.mrb[0].mxu0
  %v494 = vadd.f32 %v94, %v493
  %v495 = vpop.f32.mrb[0].mxu0
  %v496 = vpop.f32.mrb[0].mxu0
  %v497 = vadd.f32 %v94, %v496
  %v498 = vpop.f32.mrb[0].mxu0
  %499 = vmatprep.mubr.bf16.mxu0 0
  %500 = vmatmul.mubr.bf16.gmra.mrb[0].mxu0 %v301
  %v501 = vpop.f32.mrb[0].mxu0
  %v502 = vadd.f32 %v94, %v501
  %v503 = vpop.f32.mrb[0].mxu0
  %v504 = vpop.f32.mrb[0].mxu0
  %v505 = vadd.f32 %v94, %v504
  %v506 = vpop.f32.mrb[0].mxu0
  %507 = vmatprep.mubr.bf16.mxu0 0
  %508 = vmatmul.mubr.bf16.gmra.mrb[0].mxu0 %v304
  %v509 = vpop.f32.mrb[0].mxu0
  %v510 = vadd.f32 %v94, %v509
  %v511 = vpop.f32.mrb[0].mxu0
  %v512 = vpop.f32.mrb[0].mxu0
  %v513 = vadd.f32 %v94, %v512
  %v514 = vpop.f32.mrb[0].mxu0
  %515 = vmatprep.mubr.bf16.mxu0 0
  %516 = vmatmul.mubr.bf16.gmra.mrb[0].mxu0 %v307
  %v517 = vpop.f32.mrb[0].mxu0
  %v518 = vadd.f32 %v94, %v517
  %v519 = vpop.f32.mrb[0].mxu0
  %v520 = vpop.f32.mrb[0].mxu0
  %v521 = vadd.f32 %v94, %v520
  %v522 = vpop.f32.mrb[0].mxu0
  %523 = vmatprep.mubr.bf16.mxu0 0
  %524 = vmatmul.mubr.bf16.gmra.mrb[0].mxu0 %v310
  %v525 = vpop.f32.mrb[0].mxu0
  %v526 = vadd.f32 %v94, %v525
  %v527 = vpop.f32.mrb[0].mxu0
  %v528 = vpop.f32.mrb[0].mxu0
  %v529 = vadd.f32 %v94, %v528
  %v530 = vpop.f32.mrb[0].mxu0
  %531 = vmatprep.mubr.bf16.mxu0 0
  %532 = vmatmul.mubr.bf16.gmra.mrb[0].mxu0 %v313
  %v533 = vpop.f32.mrb[0].mxu0
  %v534 = vadd.f32 %v94, %v533
  %v535 = vpop.f32.mrb[0].mxu0
  %v536 = vpop.f32.mrb[0].mxu0
  %v537 = vadd.f32 %v94, %v536
  %v538 = vpop.f32.mrb[0].mxu0
  %539 = vmatprep.mubr.bf16.mxu0 0
  %540 = vmatmul.mubr.bf16.gmra.mrb[0].mxu0 %v316
  %v541 = vpop.f32.mrb[0].mxu0
  %v542 = vadd.f32 %v94, %v541
  %v543 = vpop.f32.mrb[0].mxu0
  %v544 = vpop.f32.mrb[0].mxu0
  %v545 = vadd.f32 %v94, %v544
  %v546 = vpop.f32.mrb[0].mxu0
  %547 = vmatprep.mubr.bf16.mxu0 0
  %548 = vmatmul.mubr.bf16.gmra.mrb[0].mxu0 %v319
  %v549 = vpop.f32.mrb[0].mxu0
  %v550 = vadd.f32 %v94, %v549
  %v551 = vpop.f32.mrb[0].mxu0
  %v552 = vpop.f32.mrb[0].mxu0
  %v553 = vadd.f32 %v94, %v552
  %v554 = vpop.f32.mrb[0].mxu0
  %555 = vmatprep.mubr.bf16.mxu0 0
  %556 = vmatmul.mubr.bf16.gmra.mrb[0].mxu0 %v322
  %v557 = vpop.f32.mrb[0].mxu0
  %v558 = vadd.f32 %v94, %v557
  %v559 = vpop.f32.mrb[0].mxu0
  %v560 = vpop.f32.mrb[0].mxu0
  %v561 = vpop.f32.mrb[0].mxu0
  %562 = vdwg.mxu0
  %v563 = vmax.f32 %v366, 0.0
  %v564 = vmax.f32 %v369, 0.0
  %v565 = vmax.f32 %v374, 0.0
  %v566 = vmax.f32 %v377, 0.0
  %v567 = vmax.f32 %v382, 0.0
  %v568 = vmax.f32 %v385, 0.0
  %v569 = vmax.f32 %v390, 0.0
  %v570 = vmax.f32 %v393, 0.0
  %v571 = vmax.f32 %v398, 0.0
  %v572 = vmax.f32 %v401, 0.0
  %v573 = vmax.f32 %v406, 0.0
  %v574 = vmax.f32 %v409, 0.0
  %v575 = vmax.f32 %v414, 0.0
  %v576 = vmax.f32 %v417, 0.0
  %v577 = vmax.f32 %v422, 0.0
  %v578 = vmax.f32 %v425, 0.0
  %v579 = vmax.f32 %v430, 0.0
  %v580 = vmax.f32 %v433, 0.0
  %v581 = vmax.f32 %v438, 0.0
  %v582 = vmax.f32 %v441, 0.0
  %v583 = vmax.f32 %v446, 0.0
  %v584 = vmax.f32 %v449, 0.0
  %v585 = vmax.f32 %v454, 0.0
  %v586 = vmax.f32 %v457, 0.0
  %v587 = vmax.f32 %v462, 0.0
  %v588 = vmax.f32 %v465, 0.0
  %v589 = vmax.f32 %v470, 0.0
  %v590 = vmax.f32 %v473, 0.0
  %v591 = vmax.f32 %v478, 0.0
  %v592 = vmax.f32 %v481, 0.0
  %v593 = vmax.f32 %v486, 0.0
  %v594 = vmax.f32 %v489, 0.0
  %v595 = vmax.f32 %v494, 0.0
  %v596 = vmax.f32 %v497, 0.0
  %v597 = vmax.f32 %v502, 0.0
  %v598 = vmax.f32 %v505, 0.0
  %v599 = vmax.f32 %v510, 0.0
  %v600 = vmax.f32 %v513, 0.0
  %v601 = vmax.f32 %v518, 0.0
  %v602 = vmax.f32 %v521, 0.0
  %v603 = vmax.f32 %v526, 0.0
  %v604 = vmax.f32 %v529, 0.0
  %v605 = vmax.f32 %v534, 0.0
  %v606 = vmax.f32 %v537, 0.0
  %v607 = vmax.f32 %v542, 0.0
  %v608 = vmax.f32 %v545, 0.0
  %v609 = vmax.f32 %v550, 0.0
  %v610 = vmax.f32 %v553, 0.0
  %v611 = vmax.f32 %v558, 0.0
  %v612 = vld [vmem:[%s1] sm:$0xf]
  %v613 = vld [vmem:[%s1 + $0x4] sm:$0xf]
  %v614 = vld [vmem:[%s1 + $0x8] sm:$0xf]
  %v615 = vld [vmem:[%s1 + $0xc] sm:$0xf]
  %v616 = vld [vmem:[%s1 + $0x10] sm:$0xf]
  %v617 = vld [vmem:[%s1 + $0x14] sm:$0xf]
  %v618 = vld [vmem:[%s1 + $0x18] sm:$0xf]
  %v619 = vld [vmem:[%s1 + $0x1c] sm:$0xf]
  %v620 = vld [vmem:[%s1 + $0x20] sm:$0xf]
  %v621 = vld [vmem:[%s1 + $0x24] sm:$0xf]
  %v622 = vld [vmem:[%s1 + $0x28] sm:$0xf]
  %v623 = vld [vmem:[%s1 + $0x2c] sm:$0xf]
  %v624 = vld [vmem:[%s1 + $0x30] sm:$0xf]
  %v625 = vld [vmem:[%s1 + $0x34] sm:$0xf]
  %v626 = vld [vmem:[%s1 + $0x38] sm:$0xf]
  %v627 = vld [vmem:[%s1 + $0x3c] sm:$0xf]
  %v628 = vld [vmem:[%s1 + $0x40] sm:$0xf]
  %v629 = vld [vmem:[%s1 + $0x44] sm:$0xf]
  %v630 = vld [vmem:[%s1 + $0x48] sm:$0xf]
  %v631 = vld [vmem:[%s1 + $0x4c] sm:$0xf]
  %v632 = vld [vmem:[%s1 + $0x50] sm:$0xf]
  %v633 = vld [vmem:[%s1 + $0x54] sm:$0xf]
  %v634 = vld [vmem:[%s1 + $0x58] sm:$0xf]
  %v635 = vld [vmem:[%s1 + $0x5c] sm:$0xf]
  %v636 = vld [vmem:[%s1 + $0x60] sm:$0xf]
  %v637 = vld [vmem:[%s1 + $0x64] sm:$0xf]
  %v638 = vld [vmem:[%s1 + $0x68] sm:$0xf]
  %v639 = vld [vmem:[%s1 + $0x6c] sm:$0xf]
  %v640 = vld [vmem:[%s1 + $0x70] sm:$0xf]
  %v641 = vld [vmem:[%s1 + $0x74] sm:$0xf]
  %v642 = vld [vmem:[%s1 + $0x78] sm:$0xf]
  %v643 = vld [vmem:[%s1 + $0x7c] sm:$0xf]
  %v644 = vld [vmem:[%s1 + $0x80] sm:$0xf]
  %v645 = vld [vmem:[%s1 + $0x84] sm:$0xf]
  %v646 = vld [vmem:[%s1 + $0x88] sm:$0xf]
  %v647 = vld [vmem:[%s1 + $0x8c] sm:$0xf]
  %v648 = vld [vmem:[%s1 + $0x90] sm:$0xf]
  %v649 = vld [vmem:[%s1 + $0x94] sm:$0xf]
  %v650 = vld [vmem:[%s1 + $0x98] sm:$0xf]
  %v651 = vld [vmem:[%s1 + $0x9c] sm:$0xf]
  %v652 = vld [vmem:[%s1 + $0xa0] sm:$0xf]
  %v653 = vld [vmem:[%s1 + $0xa4] sm:$0xf]
  %v654 = vld [vmem:[%s1 + $0xa8] sm:$0xf]
  %v655 = vld [vmem:[%s1 + $0xac] sm:$0xf]
  %v656 = vld [vmem:[%s1 + $0xb0] sm:$0xf]
  %v657 = vld [vmem:[%s1 + $0xb4] sm:$0xf]
  %v658 = vld [vmem:[%s1 + $0xb8] sm:$0xf]
  %v659 = vld [vmem:[%s1 + $0xbc] sm:$0xf]
  %v660 = vld [vmem:[%s1 + $0xc0] sm:$0xf]
  %v710 = vunpack.c.l.b16 %v612
  %v711 = vunpack.c.l.b16 %v613
  %v712 = vunpack.c.l.b16 %v614
  %v713 = vunpack.c.l.b16 %v615
  %v714 = vunpack.c.l.b16 %v616
  %v715 = vunpack.c.l.b16 %v617
  %v716 = vunpack.c.l.b16 %v618
  %v717 = vunpack.c.l.b16 %v619
  %v718 = vunpack.c.l.b16 %v620
  %v719 = vunpack.c.l.b16 %v621
  %v720 = vunpack.c.l.b16 %v622
  %v721 = vunpack.c.l.b16 %v623
  %v722 = vunpack.c.l.b16 %v624
  %v723 = vunpack.c.l.b16 %v625
  %v724 = vunpack.c.l.b16 %v626
  %v725 = vunpack.c.l.b16 %v627
  %v726 = vunpack.c.l.b16 %v628
  %v727 = vunpack.c.l.b16 %v629
  %v728 = vunpack.c.l.b16 %v630
  %v729 = vunpack.c.l.b16 %v631
  %v730 = vunpack.c.l.b16 %v632
  %v731 = vunpack.c.l.b16 %v633
  %v732 = vunpack.c.l.b16 %v634
  %v733 = vunpack.c.l.b16 %v635
  %v734 = vunpack.c.l.b16 %v636
  %v735 = vunpack.c.l.b16 %v637
  %v736 = vunpack.c.l.b16 %v638
  %v737 = vunpack.c.l.b16 %v639
  %v738 = vunpack.c.l.b16 %v640
  %v739 = vunpack.c.l.b16 %v641
  %v740 = vunpack.c.l.b16 %v642
  %v741 = vunpack.c.l.b16 %v643
  %v742 = vunpack.c.l.b16 %v644
  %v743 = vunpack.c.l.b16 %v645
  %v744 = vunpack.c.l.b16 %v646
  %v745 = vunpack.c.l.b16 %v647
  %v746 = vunpack.c.l.b16 %v648
  %v747 = vunpack.c.l.b16 %v649
  %v748 = vunpack.c.l.b16 %v650
  %v749 = vunpack.c.l.b16 %v651
  %v750 = vunpack.c.l.b16 %v652
  %v751 = vunpack.c.l.b16 %v653
  %v752 = vunpack.c.l.b16 %v654
  %v753 = vunpack.c.l.b16 %v655
  %v754 = vunpack.c.l.b16 %v656
  %v755 = vunpack.c.l.b16 %v657
  %v756 = vunpack.c.l.b16 %v658
  %v757 = vunpack.c.l.b16 %v659
  %v758 = vunpack.c.l.b16 %v660
  %v759 = vpack.c.b16 %v711, %v710
  %v760 = vpack.c.b16 %v713, %v712
  %v761 = vpack.c.b16 %v715, %v714
  %v762 = vpack.c.b16 %v717, %v716
  %v763 = vpack.c.b16 %v719, %v718
  %v764 = vpack.c.b16 %v721, %v720
  %v765 = vpack.c.b16 %v723, %v722
  %v766 = vpack.c.b16 %v725, %v724
  %v767 = vpack.c.b16 %v727, %v726
  %v768 = vpack.c.b16 %v729, %v728
  %v769 = vpack.c.b16 %v731, %v730
  %v770 = vpack.c.b16 %v733, %v732
  %v771 = vpack.c.b16 %v735, %v734
  %v772 = vpack.c.b16 %v737, %v736
  %v773 = vpack.c.b16 %v739, %v738
  %v774 = vpack.c.b16 %v741, %v740
  %v775 = vpack.c.b16 %v743, %v742
  %v776 = vpack.c.b16 %v745, %v744
  %v777 = vpack.c.b16 %v747, %v746
  %v778 = vpack.c.b16 %v749, %v748
  %v779 = vpack.c.b16 %v751, %v750
  %v780 = vpack.c.b16 %v753, %v752
  %v781 = vpack.c.b16 %v755, %v754
  %v782 = vpack.c.b16 %v757, %v756
  %v783 = vpack.c.b16 %v758, %v758
  %v785 = vsel %vm248, %v759, 0
  %v788 = vsel %vm248, %v760, 0
  %v791 = vsel %vm248, %v761, 0
  %v794 = vsel %vm248, %v762, 0
  %v797 = vsel %vm248, %v763, 0
  %v800 = vsel %vm248, %v764, 0
  %v803 = vsel %vm248, %v765, 0
  %v806 = vsel %vm248, %v766, 0
  %v809 = vsel %vm248, %v767, 0
  %v812 = vsel %vm248, %v768, 0
  %v815 = vsel %vm248, %v769, 0
  %v818 = vsel %vm248, %v770, 0
  %v821 = vsel %vm248, %v771, 0
  %v824 = vsel %vm248, %v772, 0
  %v827 = vsel %vm248, %v773, 0
  %v830 = vsel %vm248, %v774, 0
  %v833 = vsel %vm248, %v775, 0
  %v836 = vsel %vm248, %v776, 0
  %v839 = vsel %vm248, %v777, 0
  %v842 = vsel %vm248, %v778, 0
  %v845 = vsel %vm248, %v779, 0
  %v848 = vsel %vm248, %v780, 0
  %v851 = vsel %vm248, %v781, 0
  %v854 = vsel %vm248, %v782, 0
  %v857 = vsel %vm248, %v783, 0
  %859 = vmatprep.subr.bf16.mxu0 0
  %860 = vmatpush1.bf16.msra.mxu0 %v239
  %861 = vmatprep.subr.bf16.mxu0 0
  %862 = vmatpush1.bf16.msra.mxu0 %v240
  %863 = vmatprep.subr.bf16.mxu0 0
  %864 = vmatpush1.bf16.msra.mxu0 %v241
  %865 = vmatprep.subr.bf16.mxu0 0
  %866 = vmatpush1.bf16.msra.mxu0 %v242
  %867 = vmatprep.subr.bf16.mxu0 0
  %868 = vmatpush1.bf16.msra.mxu0 %v329
  %869 = vmatprep.subr.bf16.mxu0 0
  %870 = vmatpush1.bf16.msra.mxu0 0
  %871 = vmatprep.subr.bf16.mxu0 0
  %872 = vmatpush1.bf16.msra.mxu0 0
  %873 = vmatprep.subr.bf16.mxu0 0
  %874 = vmatpush1.bf16.msra.mxu0 0
  %875 = vmatprep.subr.bf16.mxu0 0
  %876 = vmatpush1.bf16.msra.mxu0 0
  %877 = vmatprep.subr.bf16.mxu0 0
  %878 = vmatpush1.bf16.msra.mxu0 0
  %879 = vmatprep.subr.bf16.mxu0 0
  %880 = vmatpush1.bf16.msra.mxu0 0
  %881 = vmatprep.subr.bf16.mxu0 0
  %882 = vmatpush1.bf16.msra.mxu0 0
  %883 = vmatprep.subr.bf16.mxu0 0
  %884 = vmatpush1.bf16.msra.mxu0 0
  %885 = vmatprep.subr.bf16.mxu0 0
  %886 = vmatpush1.bf16.msra.mxu0 0
  %887 = vmatprep.subr.bf16.mxu0 0
  %888 = vmatpush1.bf16.msra.mxu0 0
  %889 = vmatprep.subr.bf16.mxu0 0
  %890 = vmatpush1.bf16.msra.mxu0 0
  %891 = vmatprep.mubr.bf16.mxu0 0
  %892 = vmatmul.mubr.bf16.gmra.mrb[0].mxu0 %v785
  %v893 = vpop.f32.mrb[0].mxu0
  %v894 = vadd.f32 %v94, %v893
  %v895 = vpop.f32.mrb[0].mxu0
  %v896 = vpop.f32.mrb[0].mxu0
  %v897 = vadd.f32 %v94, %v896
  %v898 = vpop.f32.mrb[0].mxu0
  %899 = vmatprep.mubr.bf16.mxu0 0
  %900 = vmatmul.mubr.bf16.gmra.mrb[0].mxu0 %v788
  %v901 = vpop.f32.mrb[0].mxu0
  %v902 = vadd.f32 %v94, %v901
  %v903 = vpop.f32.mrb[0].mxu0
  %v904 = vpop.f32.mrb[0].mxu0
  %v905 = vadd.f32 %v94, %v904
  %v906 = vpop.f32.mrb[0].mxu0
  %907 = vmatprep.mubr.bf16.mxu0 0
  %908 = vmatmul.mubr.bf16.gmra.mrb[0].mxu0 %v791
  %v909 = vpop.f32.mrb[0].mxu0
  %v910 = vadd.f32 %v94, %v909
  %v911 = vpop.f32.mrb[0].mxu0
  %v912 = vpop.f32.mrb[0].mxu0
  %v913 = vadd.f32 %v94, %v912
  %v914 = vpop.f32.mrb[0].mxu0
  %915 = vmatprep.mubr.bf16.mxu0 0
  %916 = vmatmul.mubr.bf16.gmra.mrb[0].mxu0 %v794
  %v917 = vpop.f32.mrb[0].mxu0
  %v918 = vadd.f32 %v94, %v917
  %v919 = vpop.f32.mrb[0].mxu0
  %v920 = vpop.f32.mrb[0].mxu0
  %v921 = vadd.f32 %v94, %v920
  %v922 = vpop.f32.mrb[0].mxu0
  %923 = vmatprep.mubr.bf16.mxu0 0
  %924 = vmatmul.mubr.bf16.gmra.mrb[0].mxu0 %v797
  %v925 = vpop.f32.mrb[0].mxu0
  %v926 = vadd.f32 %v94, %v925
  %v927 = vpop.f32.mrb[0].mxu0
  %v928 = vpop.f32.mrb[0].mxu0
  %v929 = vadd.f32 %v94, %v928
  %v930 = vpop.f32.mrb[0].mxu0
  %931 = vmatprep.mubr.bf16.mxu0 0
  %932 = vmatmul.mubr.bf16.gmra.mrb[0].mxu0 %v800
  %v933 = vpop.f32.mrb[0].mxu0
  %v934 = vadd.f32 %v94, %v933
  %v935 = vpop.f32.mrb[0].mxu0
  %v936 = vpop.f32.mrb[0].mxu0
  %v937 = vadd.f32 %v94, %v936
  %v938 = vpop.f32.mrb[0].mxu0
  %939 = vmatprep.mubr.bf16.mxu0 0
  %940 = vmatmul.mubr.bf16.gmra.mrb[0].mxu0 %v803
  %v941 = vpop.f32.mrb[0].mxu0
  %v942 = vadd.f32 %v94, %v941
  %v943 = vpop.f32.mrb[0].mxu0
  %v944 = vpop.f32.mrb[0].mxu0
  %v945 = vadd.f32 %v94, %v944
  %v946 = vpop.f32.mrb[0].mxu0
  %947 = vmatprep.mubr.bf16.mxu0 0
  %948 = vmatmul.mubr.bf16.gmra.mrb[0].mxu0 %v806
  %v949 = vpop.f32.mrb[0].mxu0
  %v950 = vadd.f32 %v94, %v949
  %v951 = vpop.f32.mrb[0].mxu0
  %v952 = vpop.f32.mrb[0].mxu0
  %v953 = vadd.f32 %v94, %v952
  %v954 = vpop.f32.mrb[0].mxu0
  %955 = vmatprep.mubr.bf16.mxu0 0
  %956 = vmatmul.mubr.bf16.gmra.mrb[0].mxu0 %v809
  %v957 = vpop.f32.mrb[0].mxu0
  %v958 = vadd.f32 %v94, %v957
  %v959 = vpop.f32.mrb[0].mxu0
  %v960 = vpop.f32.mrb[0].mxu0
  %v961 = vadd.f32 %v94, %v960
  %v962 = vpop.f32.mrb[0].mxu0
  %963 = vmatprep.mubr.bf16.mxu0 0
  %964 = vmatmul.mubr.bf16.gmra.mrb[0].mxu0 %v812
  %v965 = vpop.f32.mrb[0].mxu0
  %v966 = vadd.f32 %v94, %v965
  %v967 = vpop.f32.mrb[0].mxu0
  %v968 = vpop.f32.mrb[0].mxu0
  %v969 = vadd.f32 %v94, %v968
  %v970 = vpop.f32.mrb[0].mxu0
  %971 = vmatprep.mubr.bf16.mxu0 0
  %972 = vmatmul.mubr.bf16.gmra.mrb[0].mxu0 %v815
  %v973 = vpop.f32.mrb[0].mxu0
  %v974 = vadd.f32 %v94, %v973
  %v975 = vpop.f32.mrb[0].mxu0
  %v976 = vpop.f32.mrb[0].mxu0
  %v977 = vadd.f32 %v94, %v976
  %v978 = vpop.f32.mrb[0].mxu0
  %979 = vmatprep.mubr.bf16.mxu0 0
  %980 = vmatmul.mubr.bf16.gmra.mrb[0].mxu0 %v818
  %v981 = vpop.f32.mrb[0].mxu0
  %v982 = vadd.f32 %v94, %v981
  %v983 = vpop.f32.mrb[0].mxu0
  %v984 = vpop.f32.mrb[0].mxu0
  %v985 = vadd.f32 %v94, %v984
  %v986 = vpop.f32.mrb[0].mxu0
  %987 = vmatprep.mubr.bf16.mxu0 0
  %988 = vmatmul.mubr.bf16.gmra.mrb[0].mxu0 %v821
  %v989 = vpop.f32.mrb[0].mxu0
  %v990 = vadd.f32 %v94, %v989
  %v991 = vpop.f32.mrb[0].mxu0
  %v992 = vpop.f32.mrb[0].mxu0
  %v993 = vadd.f32 %v94, %v992
  %v994 = vpop.f32.mrb[0].mxu0
  %995 = vmatprep.mubr.bf16.mxu0 0
  %996 = vmatmul.mubr.bf16.gmra.mrb[0].mxu0 %v824
  %v997 = vpop.f32.mrb[0].mxu0
  %v998 = vadd.f32 %v94, %v997
  %v999 = vpop.f32.mrb[0].mxu0
  %v1000 = vpop.f32.mrb[0].mxu0
  %v1001 = vadd.f32 %v94, %v1000
  %v1002 = vpop.f32.mrb[0].mxu0
  %1003 = vmatprep.mubr.bf16.mxu0 0
  %1004 = vmatmul.mubr.bf16.gmra.mrb[0].mxu0 %v827
  %v1005 = vpop.f32.mrb[0].mxu0
  %v1006 = vadd.f32 %v94, %v1005
  %v1007 = vpop.f32.mrb[0].mxu0
  %v1008 = vpop.f32.mrb[0].mxu0
  %v1009 = vadd.f32 %v94, %v1008
  %v1010 = vpop.f32.mrb[0].mxu0
  %1011 = vmatprep.mubr.bf16.mxu0 0
  %1012 = vmatmul.mubr.bf16.gmra.mrb[0].mxu0 %v830
  %v1013 = vpop.f32.mrb[0].mxu0
  %v1014 = vadd.f32 %v94, %v1013
  %v1015 = vpop.f32.mrb[0].mxu0
  %v1016 = vpop.f32.mrb[0].mxu0
  %v1017 = vadd.f32 %v94, %v1016
  %v1018 = vpop.f32.mrb[0].mxu0
  %1019 = vmatprep.mubr.bf16.mxu0 0
  %1020 = vmatmul.mubr.bf16.gmra.mrb[0].mxu0 %v833
  %v1021 = vpop.f32.mrb[0].mxu0
  %v1022 = vadd.f32 %v94, %v1021
  %v1023 = vpop.f32.mrb[0].mxu0
  %v1024 = vpop.f32.mrb[0].mxu0
  %v1025 = vadd.f32 %v94, %v1024
  %v1026 = vpop.f32.mrb[0].mxu0
  %1027 = vmatprep.mubr.bf16.mxu0 0
  %1028 = vmatmul.mubr.bf16.gmra.mrb[0].mxu0 %v836
  %v1029 = vpop.f32.mrb[0].mxu0
  %v1030 = vadd.f32 %v94, %v1029
  %v1031 = vpop.f32.mrb[0].mxu0
  %v1032 = vpop.f32.mrb[0].mxu0
  %v1033 = vadd.f32 %v94, %v1032
  %v1034 = vpop.f32.mrb[0].mxu0
  %1035 = vmatprep.mubr.bf16.mxu0 0
  %1036 = vmatmul.mubr.bf16.gmra.mrb[0].mxu0 %v839
  %v1037 = vpop.f32.mrb[0].mxu0
  %v1038 = vadd.f32 %v94, %v1037
  %v1039 = vpop.f32.mrb[0].mxu0
  %v1040 = vpop.f32.mrb[0].mxu0
  %v1041 = vadd.f32 %v94, %v1040
  %v1042 = vpop.f32.mrb[0].mxu0
  %1043 = vmatprep.mubr.bf16.mxu0 0
  %1044 = vmatmul.mubr.bf16.gmra.mrb[0].mxu0 %v842
  %v1045 = vpop.f32.mrb[0].mxu0
  %v1046 = vadd.f32 %v94, %v1045
  %v1047 = vpop.f32.mrb[0].mxu0
  %v1048 = vpop.f32.mrb[0].mxu0
  %v1049 = vadd.f32 %v94, %v1048
  %v1050 = vpop.f32.mrb[0].mxu0
  %1051 = vmatprep.mubr.bf16.mxu0 0
  %1052 = vmatmul.mubr.bf16.gmra.mrb[0].mxu0 %v845
  %v1053 = vpop.f32.mrb[0].mxu0
  %v1054 = vadd.f32 %v94, %v1053
  %v1055 = vpop.f32.mrb[0].mxu0
  %v1056 = vpop.f32.mrb[0].mxu0
  %v1057 = vadd.f32 %v94, %v1056
  %v1058 = vpop.f32.mrb[0].mxu0
  %1059 = vmatprep.mubr.bf16.mxu0 0
  %1060 = vmatmul.mubr.bf16.gmra.mrb[0].mxu0 %v848
  %v1061 = vpop.f32.mrb[0].mxu0
  %v1062 = vadd.f32 %v94, %v1061
  %v1063 = vpop.f32.mrb[0].mxu0
  %v1064 = vpop.f32.mrb[0].mxu0
  %v1065 = vadd.f32 %v94, %v1064
  %v1066 = vpop.f32.mrb[0].mxu0
  %1067 = vmatprep.mubr.bf16.mxu0 0
  %1068 = vmatmul.mubr.bf16.gmra.mrb[0].mxu0 %v851
  %v1069 = vpop.f32.mrb[0].mxu0
  %v1070 = vadd.f32 %v94, %v1069
  %v1071 = vpop.f32.mrb[0].mxu0
  %v1072 = vpop.f32.mrb[0].mxu0
  %v1073 = vadd.f32 %v94, %v1072
  %v1074 = vpop.f32.mrb[0].mxu0
  %1075 = vmatprep.mubr.bf16.mxu0 0
  %1076 = vmatmul.mubr.bf16.gmra.mrb[0].mxu0 %v854
  %v1077 = vpop.f32.mrb[0].mxu0
  %v1078 = vadd.f32 %v94, %v1077
  %v1079 = vpop.f32.mrb[0].mxu0
  %v1080 = vpop.f32.mrb[0].mxu0
  %v1081 = vadd.f32 %v94, %v1080
  %v1082 = vpop.f32.mrb[0].mxu0
  %1083 = vmatprep.mubr.bf16.mxu0 0
  %1084 = vmatmul.mubr.bf16.gmra.mrb[0].mxu0 %v857
  %v1085 = vpop.f32.mrb[0].mxu0
  %v1086 = vadd.f32 %v94, %v1085
  %v1087 = vpop.f32.mrb[0].mxu0
  %v1088 = vpop.f32.mrb[0].mxu0
  %v1089 = vpop.f32.mrb[0].mxu0
  %1090 = vdwg.mxu0
  %v1091 = vmax.f32 %v894, 0.0
  %v1092 = vmax.f32 %v897, 0.0
  %v1093 = vmax.f32 %v902, 0.0
  %v1094 = vmax.f32 %v905, 0.0
  %v1095 = vmax.f32 %v910, 0.0
  %v1096 = vmax.f32 %v913, 0.0
  %v1097 = vmax.f32 %v918, 0.0
  %v1098 = vmax.f32 %v921, 0.0
  %v1099 = vmax.f32 %v926, 0.0
  %v1100 = vmax.f32 %v929, 0.0
  %v1101 = vmax.f32 %v934, 0.0
  %v1102 = vmax.f32 %v937, 0.0
  %v1103 = vmax.f32 %v942, 0.0
  %v1104 = vmax.f32 %v945, 0.0
  %v1105 = vmax.f32 %v950, 0.0
  %v1106 = vmax.f32 %v953, 0.0
  %v1107 = vmax.f32 %v958, 0.0
  %v1108 = vmax.f32 %v961, 0.0
  %v1109 = vmax.f32 %v966, 0.0
  %v1110 = vmax.f32 %v969, 0.0
  %v1111 = vmax.f32 %v974, 0.0
  %v1112 = vmax.f32 %v977, 0.0
  %v1113 = vmax.f32 %v982, 0.0
  %v1114 = vmax.f32 %v985, 0.0
  %v1115 = vmax.f32 %v990, 0.0
  %v1116 = vmax.f32 %v993, 0.0
  %v1117 = vmax.f32 %v998, 0.0
  %v1118 = vmax.f32 %v1001, 0.0
  %v1119 = vmax.f32 %v1006, 0.0
  %v1120 = vmax.f32 %v1009, 0.0
  %v1121 = vmax.f32 %v1014, 0.0
  %v1122 = vmax.f32 %v1017, 0.0
  %v1123 = vmax.f32 %v1022, 0.0
  %v1124 = vmax.f32 %v1025, 0.0
  %v1125 = vmax.f32 %v1030, 0.0
  %v1126 = vmax.f32 %v1033, 0.0
  %v1127 = vmax.f32 %v1038, 0.0
  %v1128 = vmax.f32 %v1041, 0.0
  %v1129 = vmax.f32 %v1046, 0.0
  %v1130 = vmax.f32 %v1049, 0.0
  %v1131 = vmax.f32 %v1054, 0.0
  %v1132 = vmax.f32 %v1057, 0.0
  %v1133 = vmax.f32 %v1062, 0.0
  %v1134 = vmax.f32 %v1065, 0.0
  %v1135 = vmax.f32 %v1070, 0.0
  %v1136 = vmax.f32 %v1073, 0.0
  %v1137 = vmax.f32 %v1078, 0.0
  %v1138 = vmax.f32 %v1081, 0.0
  %v1139 = vmax.f32 %v1086, 0.0
  %v1140 = vmax.f32 %v563, %v1091
  %v1141 = vmax.f32 %v564, %v1092
  %v1142 = vmax.f32 %v565, %v1093
  %v1143 = vmax.f32 %v566, %v1094
  %v1144 = vmax.f32 %v567, %v1095
  %v1145 = vmax.f32 %v568, %v1096
  %v1146 = vmax.f32 %v569, %v1097
  %v1147 = vmax.f32 %v570, %v1098
  %v1148 = vmax.f32 %v571, %v1099
  %v1149 = vmax.f32 %v572, %v1100
  %v1150 = vmax.f32 %v573, %v1101
  %v1151 = vmax.f32 %v574, %v1102
  %v1152 = vmax.f32 %v575, %v1103
  %v1153 = vmax.f32 %v576, %v1104
  %v1154 = vmax.f32 %v577, %v1105
  %v1155 = vmax.f32 %v578, %v1106
  %v1156 = vmax.f32 %v579, %v1107
  %v1157 = vmax.f32 %v580, %v1108
  %v1158 = vmax.f32 %v581, %v1109
  %v1159 = vmax.f32 %v582, %v1110
  %v1160 = vmax.f32 %v583, %v1111
  %v1161 = vmax.f32 %v584, %v1112
  %v1162 = vmax.f32 %v585, %v1113
  %v1163 = vmax.f32 %v586, %v1114
  %v1164 = vmax.f32 %v587, %v1115
  %v1165 = vmax.f32 %v588, %v1116
  %v1166 = vmax.f32 %v589, %v1117
  %v1167 = vmax.f32 %v590, %v1118
  %v1168 = vmax.f32 %v591, %v1119
  %v1169 = vmax.f32 %v592, %v1120
  %v1170 = vmax.f32 %v593, %v1121
  %v1171 = vmax.f32 %v594, %v1122
  %v1172 = vmax.f32 %v595, %v1123
  %v1173 = vmax.f32 %v596, %v1124
  %v1174 = vmax.f32 %v597, %v1125
  %v1175 = vmax.f32 %v598, %v1126
  %v1176 = vmax.f32 %v599, %v1127
  %v1177 = vmax.f32 %v600, %v1128
  %v1178 = vmax.f32 %v601, %v1129
  %v1179 = vmax.f32 %v602, %v1130
  %v1180 = vmax.f32 %v603, %v1131
  %v1181 = vmax.f32 %v604, %v1132
  %v1182 = vmax.f32 %v605, %v1133
  %v1183 = vmax.f32 %v606, %v1134
  %v1184 = vmax.f32 %v607, %v1135
  %v1185 = vmax.f32 %v608, %v1136
  %v1186 = vmax.f32 %v609, %v1137
  %v1187 = vmax.f32 %v610, %v1138
  %v1188 = vmax.f32 %v611, %v1139
  %v1189 = vld [vmem:[%s2] sm:$0xf]
  %v1190 = vld [vmem:[%s2 + $0x4] sm:$0xf]
  %v1191 = vld [vmem:[%s2 + $0x8] sm:$0xf]
  %v1192 = vld [vmem:[%s2 + $0xc] sm:$0xf]
  %v1193 = vld [vmem:[%s2 + $0x10] sm:$0xf]
  %v1194 = vld [vmem:[%s2 + $0x14] sm:$0xf]
  %v1195 = vld [vmem:[%s2 + $0x18] sm:$0xf]
  %v1196 = vld [vmem:[%s2 + $0x1c] sm:$0xf]
  %v1197 = vld [vmem:[%s2 + $0x20] sm:$0xf]
  %v1198 = vld [vmem:[%s2 + $0x24] sm:$0xf]
  %v1199 = vld [vmem:[%s2 + $0x28] sm:$0xf]
  %v1200 = vld [vmem:[%s2 + $0x2c] sm:$0xf]
  %v1201 = vld [vmem:[%s2 + $0x30] sm:$0xf]
  %v1202 = vld [vmem:[%s2 + $0x34] sm:$0xf]
  %v1203 = vld [vmem:[%s2 + $0x38] sm:$0xf]
  %v1204 = vld [vmem:[%s2 + $0x3c] sm:$0xf]
  %v1205 = vld [vmem:[%s2 + $0x40] sm:$0xf]
  %v1206 = vld [vmem:[%s2 + $0x44] sm:$0xf]
  %v1207 = vld [vmem:[%s2 + $0x48] sm:$0xf]
  %v1208 = vld [vmem:[%s2 + $0x4c] sm:$0xf]
  %v1209 = vld [vmem:[%s2 + $0x50] sm:$0xf]
  %v1210 = vld [vmem:[%s2 + $0x54] sm:$0xf]
  %v1211 = vld [vmem:[%s2 + $0x58] sm:$0xf]
  %v1212 = vld [vmem:[%s2 + $0x5c] sm:$0xf]
  %v1213 = vld [vmem:[%s2 + $0x60] sm:$0xf]
  %v1214 = vld [vmem:[%s2 + $0x64] sm:$0xf]
  %v1215 = vld [vmem:[%s2 + $0x68] sm:$0xf]
  %v1216 = vld [vmem:[%s2 + $0x6c] sm:$0xf]
  %v1217 = vld [vmem:[%s2 + $0x70] sm:$0xf]
  %v1218 = vld [vmem:[%s2 + $0x74] sm:$0xf]
  %v1219 = vld [vmem:[%s2 + $0x78] sm:$0xf]
  %v1220 = vld [vmem:[%s2 + $0x7c] sm:$0xf]
  %v1221 = vld [vmem:[%s2 + $0x80] sm:$0xf]
  %v1222 = vld [vmem:[%s2 + $0x84] sm:$0xf]
  %v1223 = vld [vmem:[%s2 + $0x88] sm:$0xf]
  %v1224 = vld [vmem:[%s2 + $0x8c] sm:$0xf]
  %v1225 = vld [vmem:[%s2 + $0x90] sm:$0xf]
  %v1226 = vld [vmem:[%s2 + $0x94] sm:$0xf]
  %v1227 = vld [vmem:[%s2 + $0x98] sm:$0xf]
  %v1228 = vld [vmem:[%s2 + $0x9c] sm:$0xf]
  %v1229 = vld [vmem:[%s2 + $0xa0] sm:$0xf]
  %v1230 = vld [vmem:[%s2 + $0xa4] sm:$0xf]
  %v1231 = vld [vmem:[%s2 + $0xa8] sm:$0xf]
  %v1232 = vld [vmem:[%s2 + $0xac] sm:$0xf]
  %v1233 = vld [vmem:[%s2 + $0xb0] sm:$0xf]
  %v1234 = vld [vmem:[%s2 + $0xb4] sm:$0xf]
  %v1235 = vld [vmem:[%s2 + $0xb8] sm:$0xf]
  %v1236 = vld [vmem:[%s2 + $0xbc] sm:$0xf]
  %v1237 = vld [vmem:[%s2 + $0xc0] sm:$0xf]
  %v1287 = vunpack.c.l.b16 %v1189
  %v1288 = vunpack.c.l.b16 %v1190
  %v1289 = vunpack.c.l.b16 %v1191
  %v1290 = vunpack.c.l.b16 %v1192
  %v1291 = vunpack.c.l.b16 %v1193
  %v1292 = vunpack.c.l.b16 %v1194
  %v1293 = vunpack.c.l.b16 %v1195
  %v1294 = vunpack.c.l.b16 %v1196
  %v1295 = vunpack.c.l.b16 %v1197
  %v1296 = vunpack.c.l.b16 %v1198
  %v1297 = vunpack.c.l.b16 %v1199
  %v1298 = vunpack.c.l.b16 %v1200
  %v1299 = vunpack.c.l.b16 %v1201
  %v1300 = vunpack.c.l.b16 %v1202
  %v1301 = vunpack.c.l.b16 %v1203
  %v1302 = vunpack.c.l.b16 %v1204
  %v1303 = vunpack.c.l.b16 %v1205
  %v1304 = vunpack.c.l.b16 %v1206
  %v1305 = vunpack.c.l.b16 %v1207
  %v1306 = vunpack.c.l.b16 %v1208
  %v1307 = vunpack.c.l.b16 %v1209
  %v1308 = vunpack.c.l.b16 %v1210
  %v1309 = vunpack.c.l.b16 %v1211
  %v1310 = vunpack.c.l.b16 %v1212
  %v1311 = vunpack.c.l.b16 %v1213
  %v1312 = vunpack.c.l.b16 %v1214
  %v1313 = vunpack.c.l.b16 %v1215
  %v1314 = vunpack.c.l.b16 %v1216
  %v1315 = vunpack.c.l.b16 %v1217
  %v1316 = vunpack.c.l.b16 %v1218
  %v1317 = vunpack.c.l.b16 %v1219
  %v1318 = vunpack.c.l.b16 %v1220
  %v1319 = vunpack.c.l.b16 %v1221
  %v1320 = vunpack.c.l.b16 %v1222
  %v1321 = vunpack.c.l.b16 %v1223
  %v1322 = vunpack.c.l.b16 %v1224
  %v1323 = vunpack.c.l.b16 %v1225
  %v1324 = vunpack.c.l.b16 %v1226
  %v1325 = vunpack.c.l.b16 %v1227
  %v1326 = vunpack.c.l.b16 %v1228
  %v1327 = vunpack.c.l.b16 %v1229
  %v1328 = vunpack.c.l.b16 %v1230
  %v1329 = vunpack.c.l.b16 %v1231
  %v1330 = vunpack.c.l.b16 %v1232
  %v1331 = vunpack.c.l.b16 %v1233
  %v1332 = vunpack.c.l.b16 %v1234
  %v1333 = vunpack.c.l.b16 %v1235
  %v1334 = vunpack.c.l.b16 %v1236
  %v1335 = vunpack.c.l.b16 %v1237
  %v1336 = vpack.c.b16 %v1288, %v1287
  %v1337 = vpack.c.b16 %v1290, %v1289
  %v1338 = vpack.c.b16 %v1292, %v1291
  %v1339 = vpack.c.b16 %v1294, %v1293
  %v1340 = vpack.c.b16 %v1296, %v1295
  %v1341 = vpack.c.b16 %v1298, %v1297
  %v1342 = vpack.c.b16 %v1300, %v1299
  %v1343 = vpack.c.b16 %v1302, %v1301
  %v1344 = vpack.c.b16 %v1304, %v1303
  %v1345 = vpack.c.b16 %v1306, %v1305
  %v1346 = vpack.c.b16 %v1308, %v1307
  %v1347 = vpack.c.b16 %v1310, %v1309
  %v1348 = vpack.c.b16 %v1312, %v1311
  %v1349 = vpack.c.b16 %v1314, %v1313
  %v1350 = vpack.c.b16 %v1316, %v1315
  %v1351 = vpack.c.b16 %v1318, %v1317
  %v1352 = vpack.c.b16 %v1320, %v1319
  %v1353 = vpack.c.b16 %v1322, %v1321
  %v1354 = vpack.c.b16 %v1324, %v1323
  %v1355 = vpack.c.b16 %v1326, %v1325
  %v1356 = vpack.c.b16 %v1328, %v1327
  %v1357 = vpack.c.b16 %v1330, %v1329
  %v1358 = vpack.c.b16 %v1332, %v1331
  %v1359 = vpack.c.b16 %v1334, %v1333
  %v1360 = vpack.c.b16 %v1335, %v1335
  %v1362 = vsel %vm248, %v1336, 0
  %v1365 = vsel %vm248, %v1337, 0
  %v1368 = vsel %vm248, %v1338, 0
  %v1371 = vsel %vm248, %v1339, 0
  %v1374 = vsel %vm248, %v1340, 0
  %v1377 = vsel %vm248, %v1341, 0
  %v1380 = vsel %vm248, %v1342, 0
  %v1383 = vsel %vm248, %v1343, 0
  %v1386 = vsel %vm248, %v1344, 0
  %v1389 = vsel %vm248, %v1345, 0
  %v1392 = vsel %vm248, %v1346, 0
  %v1395 = vsel %vm248, %v1347, 0
  %v1398 = vsel %vm248, %v1348, 0
  %v1401 = vsel %vm248, %v1349, 0
  %v1404 = vsel %vm248, %v1350, 0
  %v1407 = vsel %vm248, %v1351, 0
  %v1410 = vsel %vm248, %v1352, 0
  %v1413 = vsel %vm248, %v1353, 0
  %v1416 = vsel %vm248, %v1354, 0
  %v1419 = vsel %vm248, %v1355, 0
  %v1422 = vsel %vm248, %v1356, 0
  %v1425 = vsel %vm248, %v1357, 0
  %v1428 = vsel %vm248, %v1358, 0
  %v1431 = vsel %vm248, %v1359, 0
  %v1434 = vsel %vm248, %v1360, 0
  %1436 = vmatprep.subr.bf16.mxu0 0
  %1437 = vmatpush1.bf16.msra.mxu0 %v239
  %1438 = vmatprep.subr.bf16.mxu0 0
  %1439 = vmatpush1.bf16.msra.mxu0 %v240
  %1440 = vmatprep.subr.bf16.mxu0 0
  %1441 = vmatpush1.bf16.msra.mxu0 %v241
  %1442 = vmatprep.subr.bf16.mxu0 0
  %1443 = vmatpush1.bf16.msra.mxu0 %v242
  %1444 = vmatprep.subr.bf16.mxu0 0
  %1445 = vmatpush1.bf16.msra.mxu0 %v329
  %1446 = vmatprep.subr.bf16.mxu0 0
  %1447 = vmatpush1.bf16.msra.mxu0 0
  %1448 = vmatprep.subr.bf16.mxu0 0
  %1449 = vmatpush1.bf16.msra.mxu0 0
  %1450 = vmatprep.subr.bf16.mxu0 0
  %1451 = vmatpush1.bf16.msra.mxu0 0
  %1452 = vmatprep.subr.bf16.mxu0 0
  %1453 = vmatpush1.bf16.msra.mxu0 0
  %1454 = vmatprep.subr.bf16.mxu0 0
  %1455 = vmatpush1.bf16.msra.mxu0 0
  %1456 = vmatprep.subr.bf16.mxu0 0
  %1457 = vmatpush1.bf16.msra.mxu0 0
  %1458 = vmatprep.subr.bf16.mxu0 0
  %1459 = vmatpush1.bf16.msra.mxu0 0
  %1460 = vmatprep.subr.bf16.mxu0 0
  %1461 = vmatpush1.bf16.msra.mxu0 0
  %1462 = vmatprep.subr.bf16.mxu0 0
  %1463 = vmatpush1.bf16.msra.mxu0 0
  %1464 = vmatprep.subr.bf16.mxu0 0
  %1465 = vmatpush1.bf16.msra.mxu0 0
  %1466 = vmatprep.subr.bf16.mxu0 0
  %1467 = vmatpush1.bf16.msra.mxu0 0
  %1468 = vmatprep.mubr.bf16.mxu0 0
  %1469 = vmatmul.mubr.bf16.gmra.mrb[0].mxu0 %v1362
  %v1470 = vpop.f32.mrb[0].mxu0
  %v1471 = vadd.f32 %v94, %v1470
  %v1472 = vpop.f32.mrb[0].mxu0
  %v1473 = vpop.f32.mrb[0].mxu0
  %v1474 = vadd.f32 %v94, %v1473
  %v1475 = vpop.f32.mrb[0].mxu0
  %1476 = vmatprep.mubr.bf16.mxu0 0
  %1477 = vmatmul.mubr.bf16.gmra.mrb[0].mxu0 %v1365
  %v1478 = vpop.f32.mrb[0].mxu0
  %v1479 = vadd.f32 %v94, %v1478
  %v1480 = vpop.f32.mrb[0].mxu0
  %v1481 = vpop.f32.mrb[0].mxu0
  %v1482 = vadd.f32 %v94, %v1481
  %v1483 = vpop.f32.mrb[0].mxu0
  %1484 = vmatprep.mubr.bf16.mxu0 0
  %1485 = vmatmul.mubr.bf16.gmra.mrb[0].mxu0 %v1368
  %v1486 = vpop.f32.mrb[0].mxu0
  %v1487 = vadd.f32 %v94, %v1486
  %v1488 = vpop.f32.mrb[0].mxu0
  %v1489 = vpop.f32.mrb[0].mxu0
  %v1490 = vadd.f32 %v94, %v1489
  %v1491 = vpop.f32.mrb[0].mxu0
  %1492 = vmatprep.mubr.bf16.mxu0 0
  %1493 = vmatmul.mubr.bf16.gmra.mrb[0].mxu0 %v1371
  %v1494 = vpop.f32.mrb[0].mxu0
  %v1495 = vadd.f32 %v94, %v1494
  %v1496 = vpop.f32.mrb[0].mxu0
  %v1497 = vpop.f32.mrb[0].mxu0
  %v1498 = vadd.f32 %v94, %v1497
  %v1499 = vpop.f32.mrb[0].mxu0
  %1500 = vmatprep.mubr.bf16.mxu0 0
  %1501 = vmatmul.mubr.bf16.gmra.mrb[0].mxu0 %v1374
  %v1502 = vpop.f32.mrb[0].mxu0
  %v1503 = vadd.f32 %v94, %v1502
  %v1504 = vpop.f32.mrb[0].mxu0
  %v1505 = vpop.f32.mrb[0].mxu0
  %v1506 = vadd.f32 %v94, %v1505
  %v1507 = vpop.f32.mrb[0].mxu0
  %1508 = vmatprep.mubr.bf16.mxu0 0
  %1509 = vmatmul.mubr.bf16.gmra.mrb[0].mxu0 %v1377
  %v1510 = vpop.f32.mrb[0].mxu0
  %v1511 = vadd.f32 %v94, %v1510
  %v1512 = vpop.f32.mrb[0].mxu0
  %v1513 = vpop.f32.mrb[0].mxu0
  %v1514 = vadd.f32 %v94, %v1513
  %v1515 = vpop.f32.mrb[0].mxu0
  %1516 = vmatprep.mubr.bf16.mxu0 0
  %1517 = vmatmul.mubr.bf16.gmra.mrb[0].mxu0 %v1380
  %v1518 = vpop.f32.mrb[0].mxu0
  %v1519 = vadd.f32 %v94, %v1518
  %v1520 = vpop.f32.mrb[0].mxu0
  %v1521 = vpop.f32.mrb[0].mxu0
  %v1522 = vadd.f32 %v94, %v1521
  %v1523 = vpop.f32.mrb[0].mxu0
  %1524 = vmatprep.mubr.bf16.mxu0 0
  %1525 = vmatmul.mubr.bf16.gmra.mrb[0].mxu0 %v1383
  %v1526 = vpop.f32.mrb[0].mxu0
  %v1527 = vadd.f32 %v94, %v1526
  %v1528 = vpop.f32.mrb[0].mxu0
  %v1529 = vpop.f32.mrb[0].mxu0
  %v1530 = vadd.f32 %v94, %v1529
  %v1531 = vpop.f32.mrb[0].mxu0
  %1532 = vmatprep.mubr.bf16.mxu0 0
  %1533 = vmatmul.mubr.bf16.gmra.mrb[0].mxu0 %v1386
  %v1534 = vpop.f32.mrb[0].mxu0
  %v1535 = vadd.f32 %v94, %v1534
  %v1536 = vpop.f32.mrb[0].mxu0
  %v1537 = vpop.f32.mrb[0].mxu0
  %v1538 = vadd.f32 %v94, %v1537
  %v1539 = vpop.f32.mrb[0].mxu0
  %1540 = vmatprep.mubr.bf16.mxu0 0
  %1541 = vmatmul.mubr.bf16.gmra.mrb[0].mxu0 %v1389
  %v1542 = vpop.f32.mrb[0].mxu0
  %v1543 = vadd.f32 %v94, %v1542
  %v1544 = vpop.f32.mrb[0].mxu0
  %v1545 = vpop.f32.mrb[0].mxu0
  %v1546 = vadd.f32 %v94, %v1545
  %v1547 = vpop.f32.mrb[0].mxu0
  %1548 = vmatprep.mubr.bf16.mxu0 0
  %1549 = vmatmul.mubr.bf16.gmra.mrb[0].mxu0 %v1392
  %v1550 = vpop.f32.mrb[0].mxu0
  %v1551 = vadd.f32 %v94, %v1550
  %v1552 = vpop.f32.mrb[0].mxu0
  %v1553 = vpop.f32.mrb[0].mxu0
  %v1554 = vadd.f32 %v94, %v1553
  %v1555 = vpop.f32.mrb[0].mxu0
  %1556 = vmatprep.mubr.bf16.mxu0 0
  %1557 = vmatmul.mubr.bf16.gmra.mrb[0].mxu0 %v1395
  %v1558 = vpop.f32.mrb[0].mxu0
  %v1559 = vadd.f32 %v94, %v1558
  %v1560 = vpop.f32.mrb[0].mxu0
  %v1561 = vpop.f32.mrb[0].mxu0
  %v1562 = vadd.f32 %v94, %v1561
  %v1563 = vpop.f32.mrb[0].mxu0
  %1564 = vmatprep.mubr.bf16.mxu0 0
  %1565 = vmatmul.mubr.bf16.gmra.mrb[0].mxu0 %v1398
  %v1566 = vpop.f32.mrb[0].mxu0
  %v1567 = vadd.f32 %v94, %v1566
  %v1568 = vpop.f32.mrb[0].mxu0
  %v1569 = vpop.f32.mrb[0].mxu0
  %v1570 = vadd.f32 %v94, %v1569
  %v1571 = vpop.f32.mrb[0].mxu0
  %1572 = vmatprep.mubr.bf16.mxu0 0
  %1573 = vmatmul.mubr.bf16.gmra.mrb[0].mxu0 %v1401
  %v1574 = vpop.f32.mrb[0].mxu0
  %v1575 = vadd.f32 %v94, %v1574
  %v1576 = vpop.f32.mrb[0].mxu0
  %v1577 = vpop.f32.mrb[0].mxu0
  %v1578 = vadd.f32 %v94, %v1577
  %v1579 = vpop.f32.mrb[0].mxu0
  %1580 = vmatprep.mubr.bf16.mxu0 0
  %1581 = vmatmul.mubr.bf16.gmra.mrb[0].mxu0 %v1404
  %v1582 = vpop.f32.mrb[0].mxu0
  %v1583 = vadd.f32 %v94, %v1582
  %v1584 = vpop.f32.mrb[0].mxu0
  %v1585 = vpop.f32.mrb[0].mxu0
  %v1586 = vadd.f32 %v94, %v1585
  %v1587 = vpop.f32.mrb[0].mxu0
  %1588 = vmatprep.mubr.bf16.mxu0 0
  %1589 = vmatmul.mubr.bf16.gmra.mrb[0].mxu0 %v1407
  %v1590 = vpop.f32.mrb[0].mxu0
  %v1591 = vadd.f32 %v94, %v1590
  %v1592 = vpop.f32.mrb[0].mxu0
  %v1593 = vpop.f32.mrb[0].mxu0
  %v1594 = vadd.f32 %v94, %v1593
  %v1595 = vpop.f32.mrb[0].mxu0
  %1596 = vmatprep.mubr.bf16.mxu0 0
  %1597 = vmatmul.mubr.bf16.gmra.mrb[0].mxu0 %v1410
  %v1598 = vpop.f32.mrb[0].mxu0
  %v1599 = vadd.f32 %v94, %v1598
  %v1600 = vpop.f32.mrb[0].mxu0
  %v1601 = vpop.f32.mrb[0].mxu0
  %v1602 = vadd.f32 %v94, %v1601
  %v1603 = vpop.f32.mrb[0].mxu0
  %1604 = vmatprep.mubr.bf16.mxu0 0
  %1605 = vmatmul.mubr.bf16.gmra.mrb[0].mxu0 %v1413
  %v1606 = vpop.f32.mrb[0].mxu0
  %v1607 = vadd.f32 %v94, %v1606
  %v1608 = vpop.f32.mrb[0].mxu0
  %v1609 = vpop.f32.mrb[0].mxu0
  %v1610 = vadd.f32 %v94, %v1609
  %v1611 = vpop.f32.mrb[0].mxu0
  %1612 = vmatprep.mubr.bf16.mxu0 0
  %1613 = vmatmul.mubr.bf16.gmra.mrb[0].mxu0 %v1416
  %v1614 = vpop.f32.mrb[0].mxu0
  %v1615 = vadd.f32 %v94, %v1614
  %v1616 = vpop.f32.mrb[0].mxu0
  %v1617 = vpop.f32.mrb[0].mxu0
  %v1618 = vadd.f32 %v94, %v1617
  %v1619 = vpop.f32.mrb[0].mxu0
  %1620 = vmatprep.mubr.bf16.mxu0 0
  %1621 = vmatmul.mubr.bf16.gmra.mrb[0].mxu0 %v1419
  %v1622 = vpop.f32.mrb[0].mxu0
  %v1623 = vadd.f32 %v94, %v1622
  %v1624 = vpop.f32.mrb[0].mxu0
  %v1625 = vpop.f32.mrb[0].mxu0
  %v1626 = vadd.f32 %v94, %v1625
  %v1627 = vpop.f32.mrb[0].mxu0
  %1628 = vmatprep.mubr.bf16.mxu0 0
  %1629 = vmatmul.mubr.bf16.gmra.mrb[0].mxu0 %v1422
  %v1630 = vpop.f32.mrb[0].mxu0
  %v1631 = vadd.f32 %v94, %v1630
  %v1632 = vpop.f32.mrb[0].mxu0
  %v1633 = vpop.f32.mrb[0].mxu0
  %v1634 = vadd.f32 %v94, %v1633
  %v1635 = vpop.f32.mrb[0].mxu0
  %1636 = vmatprep.mubr.bf16.mxu0 0
  %1637 = vmatmul.mubr.bf16.gmra.mrb[0].mxu0 %v1425
  %v1638 = vpop.f32.mrb[0].mxu0
  %v1639 = vadd.f32 %v94, %v1638
  %v1640 = vpop.f32.mrb[0].mxu0
  %v1641 = vpop.f32.mrb[0].mxu0
  %v1642 = vadd.f32 %v94, %v1641
  %v1643 = vpop.f32.mrb[0].mxu0
  %1644 = vmatprep.mubr.bf16.mxu0 0
  %1645 = vmatmul.mubr.bf16.gmra.mrb[0].mxu0 %v1428
  %v1646 = vpop.f32.mrb[0].mxu0
  %v1647 = vadd.f32 %v94, %v1646
  %v1648 = vpop.f32.mrb[0].mxu0
  %v1649 = vpop.f32.mrb[0].mxu0
  %v1650 = vadd.f32 %v94, %v1649
  %v1651 = vpop.f32.mrb[0].mxu0
  %1652 = vmatprep.mubr.bf16.mxu0 0
  %1653 = vmatmul.mubr.bf16.gmra.mrb[0].mxu0 %v1431
  %v1654 = vpop.f32.mrb[0].mxu0
  %v1655 = vadd.f32 %v94, %v1654
  %v1656 = vpop.f32.mrb[0].mxu0
  %v1657 = vpop.f32.mrb[0].mxu0
  %v1658 = vadd.f32 %v94, %v1657
  %v1659 = vpop.f32.mrb[0].mxu0
  %1660 = vmatprep.mubr.bf16.mxu0 0
  %1661 = vmatmul.mubr.bf16.gmra.mrb[0].mxu0 %v1434
  %v1662 = vpop.f32.mrb[0].mxu0
  %v1663 = vadd.f32 %v94, %v1662
  %v1664 = vpop.f32.mrb[0].mxu0
  %v1665 = vpop.f32.mrb[0].mxu0
  %v1666 = vpop.f32.mrb[0].mxu0
  %1667 = vdwg.mxu0
  %v1668 = vmax.f32 %v1471, 0.0
  %v1669 = vmax.f32 %v1474, 0.0
  %v1670 = vmax.f32 %v1479, 0.0
  %v1671 = vmax.f32 %v1482, 0.0
  %v1672 = vmax.f32 %v1487, 0.0
  %v1673 = vmax.f32 %v1490, 0.0
  %v1674 = vmax.f32 %v1495, 0.0
  %v1675 = vmax.f32 %v1498, 0.0
  %v1676 = vmax.f32 %v1503, 0.0
  %v1677 = vmax.f32 %v1506, 0.0
  %v1678 = vmax.f32 %v1511, 0.0
  %v1679 = vmax.f32 %v1514, 0.0
  %v1680 = vmax.f32 %v1519, 0.0
  %v1681 = vmax.f32 %v1522, 0.0
  %v1682 = vmax.f32 %v1527, 0.0
  %v1683 = vmax.f32 %v1530, 0.0
  %v1684 = vmax.f32 %v1535, 0.0
  %v1685 = vmax.f32 %v1538, 0.0
  %v1686 = vmax.f32 %v1543, 0.0
  %v1687 = vmax.f32 %v1546, 0.0
  %v1688 = vmax.f32 %v1551, 0.0
  %v1689 = vmax.f32 %v1554, 0.0
  %v1690 = vmax.f32 %v1559, 0.0
  %v1691 = vmax.f32 %v1562, 0.0
  %v1692 = vmax.f32 %v1567, 0.0
  %v1693 = vmax.f32 %v1570, 0.0
  %v1694 = vmax.f32 %v1575, 0.0
  %v1695 = vmax.f32 %v1578, 0.0
  %v1696 = vmax.f32 %v1583, 0.0
  %v1697 = vmax.f32 %v1586, 0.0
  %v1698 = vmax.f32 %v1591, 0.0
  %v1699 = vmax.f32 %v1594, 0.0
  %v1700 = vmax.f32 %v1599, 0.0
  %v1701 = vmax.f32 %v1602, 0.0
  %v1702 = vmax.f32 %v1607, 0.0
  %v1703 = vmax.f32 %v1610, 0.0
  %v1704 = vmax.f32 %v1615, 0.0
  %v1705 = vmax.f32 %v1618, 0.0
  %v1706 = vmax.f32 %v1623, 0.0
  %v1707 = vmax.f32 %v1626, 0.0
  %v1708 = vmax.f32 %v1631, 0.0
  %v1709 = vmax.f32 %v1634, 0.0
  %v1710 = vmax.f32 %v1639, 0.0
  %v1711 = vmax.f32 %v1642, 0.0
  %v1712 = vmax.f32 %v1647, 0.0
  %v1713 = vmax.f32 %v1650, 0.0
  %v1714 = vmax.f32 %v1655, 0.0
  %v1715 = vmax.f32 %v1658, 0.0
  %v1716 = vmax.f32 %v1663, 0.0
  %v1717 = vld [vmem:[%s3] sm:$0xf]
  %v1718 = vld [vmem:[%s3 + $0x4] sm:$0xf]
  %v1719 = vld [vmem:[%s3 + $0x8] sm:$0xf]
  %v1720 = vld [vmem:[%s3 + $0xc] sm:$0xf]
  %v1721 = vld [vmem:[%s3 + $0x10] sm:$0xf]
  %v1722 = vld [vmem:[%s3 + $0x14] sm:$0xf]
  %v1723 = vld [vmem:[%s3 + $0x18] sm:$0xf]
  %v1724 = vld [vmem:[%s3 + $0x1c] sm:$0xf]
  %v1725 = vld [vmem:[%s3 + $0x20] sm:$0xf]
  %v1726 = vld [vmem:[%s3 + $0x24] sm:$0xf]
  %v1727 = vld [vmem:[%s3 + $0x28] sm:$0xf]
  %v1728 = vld [vmem:[%s3 + $0x2c] sm:$0xf]
  %v1729 = vld [vmem:[%s3 + $0x30] sm:$0xf]
  %v1730 = vld [vmem:[%s3 + $0x34] sm:$0xf]
  %v1731 = vld [vmem:[%s3 + $0x38] sm:$0xf]
  %v1732 = vld [vmem:[%s3 + $0x3c] sm:$0xf]
  %v1733 = vld [vmem:[%s3 + $0x40] sm:$0xf]
  %v1734 = vld [vmem:[%s3 + $0x44] sm:$0xf]
  %v1735 = vld [vmem:[%s3 + $0x48] sm:$0xf]
  %v1736 = vld [vmem:[%s3 + $0x4c] sm:$0xf]
  %v1737 = vld [vmem:[%s3 + $0x50] sm:$0xf]
  %v1738 = vld [vmem:[%s3 + $0x54] sm:$0xf]
  %v1739 = vld [vmem:[%s3 + $0x58] sm:$0xf]
  %v1740 = vld [vmem:[%s3 + $0x5c] sm:$0xf]
  %v1741 = vld [vmem:[%s3 + $0x60] sm:$0xf]
  %v1742 = vld [vmem:[%s3 + $0x64] sm:$0xf]
  %v1743 = vld [vmem:[%s3 + $0x68] sm:$0xf]
  %v1744 = vld [vmem:[%s3 + $0x6c] sm:$0xf]
  %v1745 = vld [vmem:[%s3 + $0x70] sm:$0xf]
  %v1746 = vld [vmem:[%s3 + $0x74] sm:$0xf]
  %v1747 = vld [vmem:[%s3 + $0x78] sm:$0xf]
  %v1748 = vld [vmem:[%s3 + $0x7c] sm:$0xf]
  %v1749 = vld [vmem:[%s3 + $0x80] sm:$0xf]
  %v1750 = vld [vmem:[%s3 + $0x84] sm:$0xf]
  %v1751 = vld [vmem:[%s3 + $0x88] sm:$0xf]
  %v1752 = vld [vmem:[%s3 + $0x8c] sm:$0xf]
  %v1753 = vld [vmem:[%s3 + $0x90] sm:$0xf]
  %v1754 = vld [vmem:[%s3 + $0x94] sm:$0xf]
  %v1755 = vld [vmem:[%s3 + $0x98] sm:$0xf]
  %v1756 = vld [vmem:[%s3 + $0x9c] sm:$0xf]
  %v1757 = vld [vmem:[%s3 + $0xa0] sm:$0xf]
  %v1758 = vld [vmem:[%s3 + $0xa4] sm:$0xf]
  %v1759 = vld [vmem:[%s3 + $0xa8] sm:$0xf]
  %v1760 = vld [vmem:[%s3 + $0xac] sm:$0xf]
  %v1761 = vld [vmem:[%s3 + $0xb0] sm:$0xf]
  %v1762 = vld [vmem:[%s3 + $0xb4] sm:$0xf]
  %v1763 = vld [vmem:[%s3 + $0xb8] sm:$0xf]
  %v1764 = vld [vmem:[%s3 + $0xbc] sm:$0xf]
  %v1765 = vld [vmem:[%s3 + $0xc0] sm:$0xf]
  %v1815 = vunpack.c.l.b16 %v1717
  %v1816 = vunpack.c.l.b16 %v1718
  %v1817 = vunpack.c.l.b16 %v1719
  %v1818 = vunpack.c.l.b16 %v1720
  %v1819 = vunpack.c.l.b16 %v1721
  %v1820 = vunpack.c.l.b16 %v1722
  %v1821 = vunpack.c.l.b16 %v1723
  %v1822 = vunpack.c.l.b16 %v1724
  %v1823 = vunpack.c.l.b16 %v1725
  %v1824 = vunpack.c.l.b16 %v1726
  %v1825 = vunpack.c.l.b16 %v1727
  %v1826 = vunpack.c.l.b16 %v1728
  %v1827 = vunpack.c.l.b16 %v1729
  %v1828 = vunpack.c.l.b16 %v1730
  %v1829 = vunpack.c.l.b16 %v1731
  %v1830 = vunpack.c.l.b16 %v1732
  %v1831 = vunpack.c.l.b16 %v1733
  %v1832 = vunpack.c.l.b16 %v1734
  %v1833 = vunpack.c.l.b16 %v1735
  %v1834 = vunpack.c.l.b16 %v1736
  %v1835 = vunpack.c.l.b16 %v1737
  %v1836 = vunpack.c.l.b16 %v1738
  %v1837 = vunpack.c.l.b16 %v1739
  %v1838 = vunpack.c.l.b16 %v1740
  %v1839 = vunpack.c.l.b16 %v1741
  %v1840 = vunpack.c.l.b16 %v1742
  %v1841 = vunpack.c.l.b16 %v1743
  %v1842 = vunpack.c.l.b16 %v1744
  %v1843 = vunpack.c.l.b16 %v1745
  %v1844 = vunpack.c.l.b16 %v1746
  %v1845 = vunpack.c.l.b16 %v1747
  %v1846 = vunpack.c.l.b16 %v1748
  %v1847 = vunpack.c.l.b16 %v1749
  %v1848 = vunpack.c.l.b16 %v1750
  %v1849 = vunpack.c.l.b16 %v1751
  %v1850 = vunpack.c.l.b16 %v1752
  %v1851 = vunpack.c.l.b16 %v1753
  %v1852 = vunpack.c.l.b16 %v1754
  %v1853 = vunpack.c.l.b16 %v1755
  %v1854 = vunpack.c.l.b16 %v1756
  %v1855 = vunpack.c.l.b16 %v1757
  %v1856 = vunpack.c.l.b16 %v1758
  %v1857 = vunpack.c.l.b16 %v1759
  %v1858 = vunpack.c.l.b16 %v1760
  %v1859 = vunpack.c.l.b16 %v1761
  %v1860 = vunpack.c.l.b16 %v1762
  %v1861 = vunpack.c.l.b16 %v1763
  %v1862 = vunpack.c.l.b16 %v1764
  %v1863 = vunpack.c.l.b16 %v1765
  %v1864 = vpack.c.b16 %v1816, %v1815
  %v1865 = vpack.c.b16 %v1818, %v1817
  %v1866 = vpack.c.b16 %v1820, %v1819
  %v1867 = vpack.c.b16 %v1822, %v1821
  %v1868 = vpack.c.b16 %v1824, %v1823
  %v1869 = vpack.c.b16 %v1826, %v1825
  %v1870 = vpack.c.b16 %v1828, %v1827
  %v1871 = vpack.c.b16 %v1830, %v1829
  %v1872 = vpack.c.b16 %v1832, %v1831
  %v1873 = vpack.c.b16 %v1834, %v1833
  %v1874 = vpack.c.b16 %v1836, %v1835
  %v1875 = vpack.c.b16 %v1838, %v1837
  %v1876 = vpack.c.b16 %v1840, %v1839
  %v1877 = vpack.c.b16 %v1842, %v1841
  %v1878 = vpack.c.b16 %v1844, %v1843
  %v1879 = vpack.c.b16 %v1846, %v1845
  %v1880 = vpack.c.b16 %v1848, %v1847
  %v1881 = vpack.c.b16 %v1850, %v1849
  %v1882 = vpack.c.b16 %v1852, %v1851
  %v1883 = vpack.c.b16 %v1854, %v1853
  %v1884 = vpack.c.b16 %v1856, %v1855
  %v1885 = vpack.c.b16 %v1858, %v1857
  %v1886 = vpack.c.b16 %v1860, %v1859
  %v1887 = vpack.c.b16 %v1862, %v1861
  %v1888 = vpack.c.b16 %v1863, %v1863
  %v1890 = vsel %vm248, %v1864, 0
  %v1893 = vsel %vm248, %v1865, 0
  %v1896 = vsel %vm248, %v1866, 0
  %v1899 = vsel %vm248, %v1867, 0
  %v1902 = vsel %vm248, %v1868, 0
  %v1905 = vsel %vm248, %v1869, 0
  %v1908 = vsel %vm248, %v1870, 0
  %v1911 = vsel %vm248, %v1871, 0
  %v1914 = vsel %vm248, %v1872, 0
  %v1917 = vsel %vm248, %v1873, 0
  %v1920 = vsel %vm248, %v1874, 0
  %v1923 = vsel %vm248, %v1875, 0
  %v1926 = vsel %vm248, %v1876, 0
  %v1929 = vsel %vm248, %v1877, 0
  %v1932 = vsel %vm248, %v1878, 0
  %v1935 = vsel %vm248, %v1879, 0
  %v1938 = vsel %vm248, %v1880, 0
  %v1941 = vsel %vm248, %v1881, 0
  %v1944 = vsel %vm248, %v1882, 0
  %v1947 = vsel %vm248, %v1883, 0
  %v1950 = vsel %vm248, %v1884, 0
  %v1953 = vsel %vm248, %v1885, 0
  %v1956 = vsel %vm248, %v1886, 0
  %v1959 = vsel %vm248, %v1887, 0
  %v1962 = vsel %vm248, %v1888, 0
  %1964 = vmatprep.subr.bf16.mxu0 0
  %1965 = vmatpush1.bf16.msra.mxu0 %v239
  %1966 = vmatprep.subr.bf16.mxu0 0
  %1967 = vmatpush1.bf16.msra.mxu0 %v240
  %1968 = vmatprep.subr.bf16.mxu0 0
  %1969 = vmatpush1.bf16.msra.mxu0 %v241
  %1970 = vmatprep.subr.bf16.mxu0 0
  %1971 = vmatpush1.bf16.msra.mxu0 %v242
  %1972 = vmatprep.subr.bf16.mxu0 0
  %1973 = vmatpush1.bf16.msra.mxu0 %v329
  %1974 = vmatprep.subr.bf16.mxu0 0
  %1975 = vmatpush1.bf16.msra.mxu0 0
  %1976 = vmatprep.subr.bf16.mxu0 0
  %1977 = vmatpush1.bf16.msra.mxu0 0
  %1978 = vmatprep.subr.bf16.mxu0 0
  %1979 = vmatpush1.bf16.msra.mxu0 0
  %1980 = vmatprep.subr.bf16.mxu0 0
  %1981 = vmatpush1.bf16.msra.mxu0 0
  %1982 = vmatprep.subr.bf16.mxu0 0
  %1983 = vmatpush1.bf16.msra.mxu0 0
  %1984 = vmatprep.subr.bf16.mxu0 0
  %1985 = vmatpush1.bf16.msra.mxu0 0
  %1986 = vmatprep.subr.bf16.mxu0 0
  %1987 = vmatpush1.bf16.msra.mxu0 0
  %1988 = vmatprep.subr.bf16.mxu0 0
  %1989 = vmatpush1.bf16.msra.mxu0 0
  %1990 = vmatprep.subr.bf16.mxu0 0
  %1991 = vmatpush1.bf16.msra.mxu0 0
  %1992 = vmatprep.subr.bf16.mxu0 0
  %1993 = vmatpush1.bf16.msra.mxu0 0
  %1994 = vmatprep.subr.bf16.mxu0 0
  %1995 = vmatpush1.bf16.msra.mxu0 0
  %1996 = vmatprep.mubr.bf16.mxu0 0
  %1997 = vmatmul.mubr.bf16.gmra.mrb[0].mxu0 %v1890
  %v1998 = vpop.f32.mrb[0].mxu0
  %v1999 = vadd.f32 %v94, %v1998
  %v2000 = vpop.f32.mrb[0].mxu0
  %v2001 = vpop.f32.mrb[0].mxu0
  %v2002 = vadd.f32 %v94, %v2001
  %v2003 = vpop.f32.mrb[0].mxu0
  %2004 = vmatprep.mubr.bf16.mxu0 0
  %2005 = vmatmul.mubr.bf16.gmra.mrb[0].mxu0 %v1893
  %v2006 = vpop.f32.mrb[0].mxu0
  %v2007 = vadd.f32 %v94, %v2006
  %v2008 = vpop.f32.mrb[0].mxu0
  %v2009 = vpop.f32.mrb[0].mxu0
  %v2010 = vadd.f32 %v94, %v2009
  %v2011 = vpop.f32.mrb[0].mxu0
  %2012 = vmatprep.mubr.bf16.mxu0 0
  %2013 = vmatmul.mubr.bf16.gmra.mrb[0].mxu0 %v1896
  %v2014 = vpop.f32.mrb[0].mxu0
  %v2015 = vadd.f32 %v94, %v2014
  %v2016 = vpop.f32.mrb[0].mxu0
  %v2017 = vpop.f32.mrb[0].mxu0
  %v2018 = vadd.f32 %v94, %v2017
  %v2019 = vpop.f32.mrb[0].mxu0
  %2020 = vmatprep.mubr.bf16.mxu0 0
  %2021 = vmatmul.mubr.bf16.gmra.mrb[0].mxu0 %v1899
  %v2022 = vpop.f32.mrb[0].mxu0
  %v2023 = vadd.f32 %v94, %v2022
  %v2024 = vpop.f32.mrb[0].mxu0
  %v2025 = vpop.f32.mrb[0].mxu0
  %v2026 = vadd.f32 %v94, %v2025
  %v2027 = vpop.f32.mrb[0].mxu0
  %2028 = vmatprep.mubr.bf16.mxu0 0
  %2029 = vmatmul.mubr.bf16.gmra.mrb[0].mxu0 %v1902
  %v2030 = vpop.f32.mrb[0].mxu0
  %v2031 = vadd.f32 %v94, %v2030
  %v2032 = vpop.f32.mrb[0].mxu0
  %v2033 = vpop.f32.mrb[0].mxu0
  %v2034 = vadd.f32 %v94, %v2033
  %v2035 = vpop.f32.mrb[0].mxu0
  %2036 = vmatprep.mubr.bf16.mxu0 0
  %2037 = vmatmul.mubr.bf16.gmra.mrb[0].mxu0 %v1905
  %v2038 = vpop.f32.mrb[0].mxu0
  %v2039 = vadd.f32 %v94, %v2038
  %v2040 = vpop.f32.mrb[0].mxu0
  %v2041 = vpop.f32.mrb[0].mxu0
  %v2042 = vadd.f32 %v94, %v2041
  %v2043 = vpop.f32.mrb[0].mxu0
  %2044 = vmatprep.mubr.bf16.mxu0 0
  %2045 = vmatmul.mubr.bf16.gmra.mrb[0].mxu0 %v1908
  %v2046 = vpop.f32.mrb[0].mxu0
  %v2047 = vadd.f32 %v94, %v2046
  %v2048 = vpop.f32.mrb[0].mxu0
  %v2049 = vpop.f32.mrb[0].mxu0
  %v2050 = vadd.f32 %v94, %v2049
  %v2051 = vpop.f32.mrb[0].mxu0
  %2052 = vmatprep.mubr.bf16.mxu0 0
  %2053 = vmatmul.mubr.bf16.gmra.mrb[0].mxu0 %v1911
  %v2054 = vpop.f32.mrb[0].mxu0
  %v2055 = vadd.f32 %v94, %v2054
  %v2056 = vpop.f32.mrb[0].mxu0
  %v2057 = vpop.f32.mrb[0].mxu0
  %v2058 = vadd.f32 %v94, %v2057
  %v2059 = vpop.f32.mrb[0].mxu0
  %2060 = vmatprep.mubr.bf16.mxu0 0
  %2061 = vmatmul.mubr.bf16.gmra.mrb[0].mxu0 %v1914
  %v2062 = vpop.f32.mrb[0].mxu0
  %v2063 = vadd.f32 %v94, %v2062
  %v2064 = vpop.f32.mrb[0].mxu0
  %v2065 = vpop.f32.mrb[0].mxu0
  %v2066 = vadd.f32 %v94, %v2065
  %v2067 = vpop.f32.mrb[0].mxu0
  %2068 = vmatprep.mubr.bf16.mxu0 0
  %2069 = vmatmul.mubr.bf16.gmra.mrb[0].mxu0 %v1917
  %v2070 = vpop.f32.mrb[0].mxu0
  %v2071 = vadd.f32 %v94, %v2070
  %v2072 = vpop.f32.mrb[0].mxu0
  %v2073 = vpop.f32.mrb[0].mxu0
  %v2074 = vadd.f32 %v94, %v2073
  %v2075 = vpop.f32.mrb[0].mxu0
  %2076 = vmatprep.mubr.bf16.mxu0 0
  %2077 = vmatmul.mubr.bf16.gmra.mrb[0].mxu0 %v1920
  %v2078 = vpop.f32.mrb[0].mxu0
  %v2079 = vadd.f32 %v94, %v2078
  %v2080 = vpop.f32.mrb[0].mxu0
  %v2081 = vpop.f32.mrb[0].mxu0
  %v2082 = vadd.f32 %v94, %v2081
  %v2083 = vpop.f32.mrb[0].mxu0
  %2084 = vmatprep.mubr.bf16.mxu0 0
  %2085 = vmatmul.mubr.bf16.gmra.mrb[0].mxu0 %v1923
  %v2086 = vpop.f32.mrb[0].mxu0
  %v2087 = vadd.f32 %v94, %v2086
  %v2088 = vpop.f32.mrb[0].mxu0
  %v2089 = vpop.f32.mrb[0].mxu0
  %v2090 = vadd.f32 %v94, %v2089
  %v2091 = vpop.f32.mrb[0].mxu0
  %2092 = vmatprep.mubr.bf16.mxu0 0
  %2093 = vmatmul.mubr.bf16.gmra.mrb[0].mxu0 %v1926
  %v2094 = vpop.f32.mrb[0].mxu0
  %v2095 = vadd.f32 %v94, %v2094
  %v2096 = vpop.f32.mrb[0].mxu0
  %v2097 = vpop.f32.mrb[0].mxu0
  %v2098 = vadd.f32 %v94, %v2097
  %v2099 = vpop.f32.mrb[0].mxu0
  %2100 = vmatprep.mubr.bf16.mxu0 0
  %2101 = vmatmul.mubr.bf16.gmra.mrb[0].mxu0 %v1929
  %v2102 = vpop.f32.mrb[0].mxu0
  %v2103 = vadd.f32 %v94, %v2102
  %v2104 = vpop.f32.mrb[0].mxu0
  %v2105 = vpop.f32.mrb[0].mxu0
  %v2106 = vadd.f32 %v94, %v2105
  %v2107 = vpop.f32.mrb[0].mxu0
  %2108 = vmatprep.mubr.bf16.mxu0 0
  %2109 = vmatmul.mubr.bf16.gmra.mrb[0].mxu0 %v1932
  %v2110 = vpop.f32.mrb[0].mxu0
  %v2111 = vadd.f32 %v94, %v2110
  %v2112 = vpop.f32.mrb[0].mxu0
  %v2113 = vpop.f32.mrb[0].mxu0
  %v2114 = vadd.f32 %v94, %v2113
  %v2115 = vpop.f32.mrb[0].mxu0
  %2116 = vmatprep.mubr.bf16.mxu0 0
  %2117 = vmatmul.mubr.bf16.gmra.mrb[0].mxu0 %v1935
  %v2118 = vpop.f32.mrb[0].mxu0
  %v2119 = vadd.f32 %v94, %v2118
  %v2120 = vpop.f32.mrb[0].mxu0
  %v2121 = vpop.f32.mrb[0].mxu0
  %v2122 = vadd.f32 %v94, %v2121
  %v2123 = vpop.f32.mrb[0].mxu0
  %2124 = vmatprep.mubr.bf16.mxu0 0
  %2125 = vmatmul.mubr.bf16.gmra.mrb[0].mxu0 %v1938
  %v2126 = vpop.f32.mrb[0].mxu0
  %v2127 = vadd.f32 %v94, %v2126
  %v2128 = vpop.f32.mrb[0].mxu0
  %v2129 = vpop.f32.mrb[0].mxu0
  %v2130 = vadd.f32 %v94, %v2129
  %v2131 = vpop.f32.mrb[0].mxu0
  %2132 = vmatprep.mubr.bf16.mxu0 0
  %2133 = vmatmul.mubr.bf16.gmra.mrb[0].mxu0 %v1941
  %v2134 = vpop.f32.mrb[0].mxu0
  %v2135 = vadd.f32 %v94, %v2134
  %v2136 = vpop.f32.mrb[0].mxu0
  %v2137 = vpop.f32.mrb[0].mxu0
  %v2138 = vadd.f32 %v94, %v2137
  %v2139 = vpop.f32.mrb[0].mxu0
  %2140 = vmatprep.mubr.bf16.mxu0 0
  %2141 = vmatmul.mubr.bf16.gmra.mrb[0].mxu0 %v1944
  %v2142 = vpop.f32.mrb[0].mxu0
  %v2143 = vadd.f32 %v94, %v2142
  %v2144 = vpop.f32.mrb[0].mxu0
  %v2145 = vpop.f32.mrb[0].mxu0
  %v2146 = vadd.f32 %v94, %v2145
  %v2147 = vpop.f32.mrb[0].mxu0
  %2148 = vmatprep.mubr.bf16.mxu0 0
  %2149 = vmatmul.mubr.bf16.gmra.mrb[0].mxu0 %v1947
  %v2150 = vpop.f32.mrb[0].mxu0
  %v2151 = vadd.f32 %v94, %v2150
  %v2152 = vpop.f32.mrb[0].mxu0
  %v2153 = vpop.f32.mrb[0].mxu0
  %v2154 = vadd.f32 %v94, %v2153
  %v2155 = vpop.f32.mrb[0].mxu0
  %2156 = vmatprep.mubr.bf16.mxu0 0
  %2157 = vmatmul.mubr.bf16.gmra.mrb[0].mxu0 %v1950
  %v2158 = vpop.f32.mrb[0].mxu0
  %v2159 = vadd.f32 %v94, %v2158
  %v2160 = vpop.f32.mrb[0].mxu0
  %v2161 = vpop.f32.mrb[0].mxu0
  %v2162 = vadd.f32 %v94, %v2161
  %v2163 = vpop.f32.mrb[0].mxu0
  %2164 = vmatprep.mubr.bf16.mxu0 0
  %2165 = vmatmul.mubr.bf16.gmra.mrb[0].mxu0 %v1953
  %v2166 = vpop.f32.mrb[0].mxu0
  %v2167 = vadd.f32 %v94, %v2166
  %v2168 = vpop.f32.mrb[0].mxu0
  %v2169 = vpop.f32.mrb[0].mxu0
  %v2170 = vadd.f32 %v94, %v2169
  %v2171 = vpop.f32.mrb[0].mxu0
  %2172 = vmatprep.mubr.bf16.mxu0 0
  %2173 = vmatmul.mubr.bf16.gmra.mrb[0].mxu0 %v1956
  %v2174 = vpop.f32.mrb[0].mxu0
  %v2175 = vadd.f32 %v94, %v2174
  %v2176 = vpop.f32.mrb[0].mxu0
  %v2177 = vpop.f32.mrb[0].mxu0
  %v2178 = vadd.f32 %v94, %v2177
  %v2179 = vpop.f32.mrb[0].mxu0
  %2180 = vmatprep.mubr.bf16.mxu0 0
  %2181 = vmatmul.mubr.bf16.gmra.mrb[0].mxu0 %v1959
  %v2182 = vpop.f32.mrb[0].mxu0
  %v2183 = vadd.f32 %v94, %v2182
  %v2184 = vpop.f32.mrb[0].mxu0
  %v2185 = vpop.f32.mrb[0].mxu0
  %v2186 = vadd.f32 %v94, %v2185
  %v2187 = vpop.f32.mrb[0].mxu0
  %2188 = vmatprep.mubr.bf16.mxu0 0
  %2189 = vmatmul.mubr.bf16.gmra.mrb[0].mxu0 %v1962
  %v2190 = vpop.f32.mrb[0].mxu0
  %v2191 = vadd.f32 %v94, %v2190
  %v2192 = vpop.f32.mrb[0].mxu0
  %v2193 = vpop.f32.mrb[0].mxu0
  %v2194 = vpop.f32.mrb[0].mxu0
  %2195 = vdwg.mxu0
  %v2196 = vmax.f32 %v1999, 0.0
  %v2197 = vmax.f32 %v2002, 0.0
  %v2198 = vmax.f32 %v2007, 0.0
  %v2199 = vmax.f32 %v2010, 0.0
  %v2200 = vmax.f32 %v2015, 0.0
  %v2201 = vmax.f32 %v2018, 0.0
  %v2202 = vmax.f32 %v2023, 0.0
  %v2203 = vmax.f32 %v2026, 0.0
  %v2204 = vmax.f32 %v2031, 0.0
  %v2205 = vmax.f32 %v2034, 0.0
  %v2206 = vmax.f32 %v2039, 0.0
  %v2207 = vmax.f32 %v2042, 0.0
  %v2208 = vmax.f32 %v2047, 0.0
  %v2209 = vmax.f32 %v2050, 0.0
  %v2210 = vmax.f32 %v2055, 0.0
  %v2211 = vmax.f32 %v2058, 0.0
  %v2212 = vmax.f32 %v2063, 0.0
  %v2213 = vmax.f32 %v2066, 0.0
  %v2214 = vmax.f32 %v2071, 0.0
  %v2215 = vmax.f32 %v2074, 0.0
  %v2216 = vmax.f32 %v2079, 0.0
  %v2217 = vmax.f32 %v2082, 0.0
  %v2218 = vmax.f32 %v2087, 0.0
  %v2219 = vmax.f32 %v2090, 0.0
  %v2220 = vmax.f32 %v2095, 0.0
  %v2221 = vmax.f32 %v2098, 0.0
  %v2222 = vmax.f32 %v2103, 0.0
  %v2223 = vmax.f32 %v2106, 0.0
  %v2224 = vmax.f32 %v2111, 0.0
  %v2225 = vmax.f32 %v2114, 0.0
  %v2226 = vmax.f32 %v2119, 0.0
  %v2227 = vmax.f32 %v2122, 0.0
  %v2228 = vmax.f32 %v2127, 0.0
  %v2229 = vmax.f32 %v2130, 0.0
  %v2230 = vmax.f32 %v2135, 0.0
  %v2231 = vmax.f32 %v2138, 0.0
  %v2232 = vmax.f32 %v2143, 0.0
  %v2233 = vmax.f32 %v2146, 0.0
  %v2234 = vmax.f32 %v2151, 0.0
  %v2235 = vmax.f32 %v2154, 0.0
  %v2236 = vmax.f32 %v2159, 0.0
  %v2237 = vmax.f32 %v2162, 0.0
  %v2238 = vmax.f32 %v2167, 0.0
  %v2239 = vmax.f32 %v2170, 0.0
  %v2240 = vmax.f32 %v2175, 0.0
  %v2241 = vmax.f32 %v2178, 0.0
  %v2242 = vmax.f32 %v2183, 0.0
  %v2243 = vmax.f32 %v2186, 0.0
  %v2244 = vmax.f32 %v2191, 0.0
  %v2245 = vmax.f32 %v1668, %v2196
  %v2246 = vmax.f32 %v1669, %v2197
  %v2247 = vmax.f32 %v1670, %v2198
  %v2248 = vmax.f32 %v1671, %v2199
  %v2249 = vmax.f32 %v1672, %v2200
  %v2250 = vmax.f32 %v1673, %v2201
  %v2251 = vmax.f32 %v1674, %v2202
  %v2252 = vmax.f32 %v1675, %v2203
  %v2253 = vmax.f32 %v1676, %v2204
  %v2254 = vmax.f32 %v1677, %v2205
  %v2255 = vmax.f32 %v1678, %v2206
  %v2256 = vmax.f32 %v1679, %v2207
  %v2257 = vmax.f32 %v1680, %v2208
  %v2258 = vmax.f32 %v1681, %v2209
  %v2259 = vmax.f32 %v1682, %v2210
  %v2260 = vmax.f32 %v1683, %v2211
  %v2261 = vmax.f32 %v1684, %v2212
  %v2262 = vmax.f32 %v1685, %v2213
  %v2263 = vmax.f32 %v1686, %v2214
  %v2264 = vmax.f32 %v1687, %v2215
  %v2265 = vmax.f32 %v1688, %v2216
  %v2266 = vmax.f32 %v1689, %v2217
  %v2267 = vmax.f32 %v1690, %v2218
  %v2268 = vmax.f32 %v1691, %v2219
  %v2269 = vmax.f32 %v1692, %v2220
  %v2270 = vmax.f32 %v1693, %v2221
  %v2271 = vmax.f32 %v1694, %v2222
  %v2272 = vmax.f32 %v1695, %v2223
  %v2273 = vmax.f32 %v1696, %v2224
  %v2274 = vmax.f32 %v1697, %v2225
  %v2275 = vmax.f32 %v1698, %v2226
  %v2276 = vmax.f32 %v1699, %v2227
  %v2277 = vmax.f32 %v1700, %v2228
  %v2278 = vmax.f32 %v1701, %v2229
  %v2279 = vmax.f32 %v1702, %v2230
  %v2280 = vmax.f32 %v1703, %v2231
  %v2281 = vmax.f32 %v1704, %v2232
  %v2282 = vmax.f32 %v1705, %v2233
  %v2283 = vmax.f32 %v1706, %v2234
  %v2284 = vmax.f32 %v1707, %v2235
  %v2285 = vmax.f32 %v1708, %v2236
  %v2286 = vmax.f32 %v1709, %v2237
  %v2287 = vmax.f32 %v1710, %v2238
  %v2288 = vmax.f32 %v1711, %v2239
  %v2289 = vmax.f32 %v1712, %v2240
  %v2290 = vmax.f32 %v1713, %v2241
  %v2291 = vmax.f32 %v1714, %v2242
  %v2292 = vmax.f32 %v1715, %v2243
  %v2293 = vmax.f32 %v1716, %v2244
  %v2294 = vmax.f32 %v1140, %v2245
  %v2295 = vmax.f32 %v1141, %v2246
  %v2296 = vmax.f32 %v1142, %v2247
  %v2297 = vmax.f32 %v1143, %v2248
  %v2298 = vmax.f32 %v1144, %v2249
  %v2299 = vmax.f32 %v1145, %v2250
  %v2300 = vmax.f32 %v1146, %v2251
  %v2301 = vmax.f32 %v1147, %v2252
  %v2302 = vmax.f32 %v1148, %v2253
  %v2303 = vmax.f32 %v1149, %v2254
  %v2304 = vmax.f32 %v1150, %v2255
  %v2305 = vmax.f32 %v1151, %v2256
  %v2306 = vmax.f32 %v1152, %v2257
  %v2307 = vmax.f32 %v1153, %v2258
  %v2308 = vmax.f32 %v1154, %v2259
  %v2309 = vmax.f32 %v1155, %v2260
  %v2310 = vmax.f32 %v1156, %v2261
  %v2311 = vmax.f32 %v1157, %v2262
  %v2312 = vmax.f32 %v1158, %v2263
  %v2313 = vmax.f32 %v1159, %v2264
  %v2314 = vmax.f32 %v1160, %v2265
  %v2315 = vmax.f32 %v1161, %v2266
  %v2316 = vmax.f32 %v1162, %v2267
  %v2317 = vmax.f32 %v1163, %v2268
  %v2318 = vmax.f32 %v1164, %v2269
  %v2319 = vmax.f32 %v1165, %v2270
  %v2320 = vmax.f32 %v1166, %v2271
  %v2321 = vmax.f32 %v1167, %v2272
  %v2322 = vmax.f32 %v1168, %v2273
  %v2323 = vmax.f32 %v1169, %v2274
  %v2324 = vmax.f32 %v1170, %v2275
  %v2325 = vmax.f32 %v1171, %v2276
  %v2326 = vmax.f32 %v1172, %v2277
  %v2327 = vmax.f32 %v1173, %v2278
  %v2328 = vmax.f32 %v1174, %v2279
  %v2329 = vmax.f32 %v1175, %v2280
  %v2330 = vmax.f32 %v1176, %v2281
  %v2331 = vmax.f32 %v1177, %v2282
  %v2332 = vmax.f32 %v1178, %v2283
  %v2333 = vmax.f32 %v1179, %v2284
  %v2334 = vmax.f32 %v1180, %v2285
  %v2335 = vmax.f32 %v1181, %v2286
  %v2336 = vmax.f32 %v1182, %v2287
  %v2337 = vmax.f32 %v1183, %v2288
  %v2338 = vmax.f32 %v1184, %v2289
  %v2339 = vmax.f32 %v1185, %v2290
  %v2340 = vmax.f32 %v1186, %v2291
  %v2341 = vmax.f32 %v1187, %v2292
  %v2342 = vmax.f32 %v1188, %v2293
  %v2343 = vld [vmem:[%s6] sm:$0x1]
  %v2345 = vlaneseq
  %v2346 = vshrl.u32 %v2345, 7
  %v2347 = vsub.s32 0, %v2346
  %v2348 = vrot.slane %v2343, %v2347
  %v2350 = vmul.f32 %v2294, %v2348
  %v2351 = vmul.f32 %v2295, %v2348
  %v2352 = vmul.f32 %v2296, %v2348
  %v2353 = vmul.f32 %v2297, %v2348
  %v2354 = vmul.f32 %v2298, %v2348
  %v2355 = vmul.f32 %v2299, %v2348
  %v2356 = vmul.f32 %v2300, %v2348
  %v2357 = vmul.f32 %v2301, %v2348
  %v2358 = vmul.f32 %v2302, %v2348
  %v2359 = vmul.f32 %v2303, %v2348
  %v2360 = vmul.f32 %v2304, %v2348
  %v2361 = vmul.f32 %v2305, %v2348
  %v2362 = vmul.f32 %v2306, %v2348
  %v2363 = vmul.f32 %v2307, %v2348
  %v2364 = vmul.f32 %v2308, %v2348
  %v2365 = vmul.f32 %v2309, %v2348
  %v2366 = vmul.f32 %v2310, %v2348
  %v2367 = vmul.f32 %v2311, %v2348
  %v2368 = vmul.f32 %v2312, %v2348
  %v2369 = vmul.f32 %v2313, %v2348
  %v2370 = vmul.f32 %v2314, %v2348
  %v2371 = vmul.f32 %v2315, %v2348
  %v2372 = vmul.f32 %v2316, %v2348
  %v2373 = vmul.f32 %v2317, %v2348
  %v2374 = vmul.f32 %v2318, %v2348
  %v2375 = vmul.f32 %v2319, %v2348
  %v2376 = vmul.f32 %v2320, %v2348
  %v2377 = vmul.f32 %v2321, %v2348
  %v2378 = vmul.f32 %v2322, %v2348
  %v2379 = vmul.f32 %v2323, %v2348
  %v2380 = vmul.f32 %v2324, %v2348
  %v2381 = vmul.f32 %v2325, %v2348
  %v2382 = vmul.f32 %v2326, %v2348
  %v2383 = vmul.f32 %v2327, %v2348
  %v2384 = vmul.f32 %v2328, %v2348
  %v2385 = vmul.f32 %v2329, %v2348
  %v2386 = vmul.f32 %v2330, %v2348
  %v2387 = vmul.f32 %v2331, %v2348
  %v2388 = vmul.f32 %v2332, %v2348
  %v2389 = vmul.f32 %v2333, %v2348
  %v2390 = vmul.f32 %v2334, %v2348
  %v2391 = vmul.f32 %v2335, %v2348
  %v2392 = vmul.f32 %v2336, %v2348
  %v2393 = vmul.f32 %v2337, %v2348
  %v2394 = vmul.f32 %v2338, %v2348
  %v2395 = vmul.f32 %v2339, %v2348
  %v2396 = vmul.f32 %v2340, %v2348
  %v2397 = vmul.f32 %v2341, %v2348
  %v2398 = vmul.f32 %v2342, %v2348
  %v2399 = vld [vmem:[%s7] sm:$0x1]
  %v2401 = vlaneseq
  %v2402 = vshrl.u32 %v2401, 7
  %v2403 = vsub.s32 0, %v2402
  %v2404 = vrot.slane %v2399, %v2403
  %v2406 = vadd.f32 %v2350, %v2404
  %v2407 = vadd.f32 %v2351, %v2404
  %v2408 = vadd.f32 %v2352, %v2404
  %v2409 = vadd.f32 %v2353, %v2404
  %v2410 = vadd.f32 %v2354, %v2404
  %v2411 = vadd.f32 %v2355, %v2404
  %v2412 = vadd.f32 %v2356, %v2404
  %v2413 = vadd.f32 %v2357, %v2404
  %v2414 = vadd.f32 %v2358, %v2404
  %v2415 = vadd.f32 %v2359, %v2404
  %v2416 = vadd.f32 %v2360, %v2404
  %v2417 = vadd.f32 %v2361, %v2404
  %v2418 = vadd.f32 %v2362, %v2404
  %v2419 = vadd.f32 %v2363, %v2404
  %v2420 = vadd.f32 %v2364, %v2404
  %v2421 = vadd.f32 %v2365, %v2404
  %v2422 = vadd.f32 %v2366, %v2404
  %v2423 = vadd.f32 %v2367, %v2404
  %v2424 = vadd.f32 %v2368, %v2404
  %v2425 = vadd.f32 %v2369, %v2404
  %v2426 = vadd.f32 %v2370, %v2404
  %v2427 = vadd.f32 %v2371, %v2404
  %v2428 = vadd.f32 %v2372, %v2404
  %v2429 = vadd.f32 %v2373, %v2404
  %v2430 = vadd.f32 %v2374, %v2404
  %v2431 = vadd.f32 %v2375, %v2404
  %v2432 = vadd.f32 %v2376, %v2404
  %v2433 = vadd.f32 %v2377, %v2404
  %v2434 = vadd.f32 %v2378, %v2404
  %v2435 = vadd.f32 %v2379, %v2404
  %v2436 = vadd.f32 %v2380, %v2404
  %v2437 = vadd.f32 %v2381, %v2404
  %v2438 = vadd.f32 %v2382, %v2404
  %v2439 = vadd.f32 %v2383, %v2404
  %v2440 = vadd.f32 %v2384, %v2404
  %v2441 = vadd.f32 %v2385, %v2404
  %v2442 = vadd.f32 %v2386, %v2404
  %v2443 = vadd.f32 %v2387, %v2404
  %v2444 = vadd.f32 %v2388, %v2404
  %v2445 = vadd.f32 %v2389, %v2404
  %v2446 = vadd.f32 %v2390, %v2404
  %v2447 = vadd.f32 %v2391, %v2404
  %v2448 = vadd.f32 %v2392, %v2404
  %v2449 = vadd.f32 %v2393, %v2404
  %v2450 = vadd.f32 %v2394, %v2404
  %v2451 = vadd.f32 %v2395, %v2404
  %v2452 = vadd.f32 %v2396, %v2404
  %v2453 = vadd.f32 %v2397, %v2404
  %v2454 = vadd.f32 %v2398, %v2404
  %v2455 = vpack.c.bf16 %v2407, %v2406
  %v2456 = vpack.c.bf16 %v2409, %v2408
  %v2457 = vpack.c.bf16 %v2411, %v2410
  %v2458 = vpack.c.bf16 %v2413, %v2412
  %v2459 = vpack.c.bf16 %v2415, %v2414
  %v2460 = vpack.c.bf16 %v2417, %v2416
  %v2461 = vpack.c.bf16 %v2419, %v2418
  %v2462 = vpack.c.bf16 %v2421, %v2420
  %v2463 = vpack.c.bf16 %v2423, %v2422
  %v2464 = vpack.c.bf16 %v2425, %v2424
  %v2465 = vpack.c.bf16 %v2427, %v2426
  %v2466 = vpack.c.bf16 %v2429, %v2428
  %v2467 = vpack.c.bf16 %v2431, %v2430
  %v2468 = vpack.c.bf16 %v2433, %v2432
  %v2469 = vpack.c.bf16 %v2435, %v2434
  %v2470 = vpack.c.bf16 %v2437, %v2436
  %v2471 = vpack.c.bf16 %v2439, %v2438
  %v2472 = vpack.c.bf16 %v2441, %v2440
  %v2473 = vpack.c.bf16 %v2443, %v2442
  %v2474 = vpack.c.bf16 %v2445, %v2444
  %v2475 = vpack.c.bf16 %v2447, %v2446
  %v2476 = vpack.c.bf16 %v2449, %v2448
  %v2477 = vpack.c.bf16 %v2451, %v2450
  %v2478 = vpack.c.bf16 %v2453, %v2452
  %v2479 = vpack.c.bf16 %v2454, %v2454
  %v2505 = vunpack.c.l.b16 %v2455
  %v2506 = vunpack.c.h.b16 %v2455
  %v2507 = vunpack.c.l.b16 %v2456
  %v2508 = vunpack.c.h.b16 %v2456
  %v2509 = vunpack.c.l.b16 %v2457
  %v2510 = vunpack.c.h.b16 %v2457
  %v2511 = vunpack.c.l.b16 %v2458
  %v2512 = vunpack.c.h.b16 %v2458
  %v2513 = vunpack.c.l.b16 %v2459
  %v2514 = vunpack.c.h.b16 %v2459
  %v2515 = vunpack.c.l.b16 %v2460
  %v2516 = vunpack.c.h.b16 %v2460
  %v2517 = vunpack.c.l.b16 %v2461
  %v2518 = vunpack.c.h.b16 %v2461
  %v2519 = vunpack.c.l.b16 %v2462
  %v2520 = vunpack.c.h.b16 %v2462
  %v2521 = vunpack.c.l.b16 %v2463
  %v2522 = vunpack.c.h.b16 %v2463
  %v2523 = vunpack.c.l.b16 %v2464
  %v2524 = vunpack.c.h.b16 %v2464
  %v2525 = vunpack.c.l.b16 %v2465
  %v2526 = vunpack.c.h.b16 %v2465
  %v2527 = vunpack.c.l.b16 %v2466
  %v2528 = vunpack.c.h.b16 %v2466
  %v2529 = vunpack.c.l.b16 %v2467
  %v2530 = vunpack.c.h.b16 %v2467
  %v2531 = vunpack.c.l.b16 %v2468
  %v2532 = vunpack.c.h.b16 %v2468
  %v2533 = vunpack.c.l.b16 %v2469
  %v2534 = vunpack.c.h.b16 %v2469
  %v2535 = vunpack.c.l.b16 %v2470
  %v2536 = vunpack.c.h.b16 %v2470
  %v2537 = vunpack.c.l.b16 %v2471
  %v2538 = vunpack.c.h.b16 %v2471
  %v2539 = vunpack.c.l.b16 %v2472
  %v2540 = vunpack.c.h.b16 %v2472
  %v2541 = vunpack.c.l.b16 %v2473
  %v2542 = vunpack.c.h.b16 %v2473
  %v2543 = vunpack.c.l.b16 %v2474
  %v2544 = vunpack.c.h.b16 %v2474
  %v2545 = vunpack.c.l.b16 %v2475
  %v2546 = vunpack.c.h.b16 %v2475
  %v2547 = vunpack.c.l.b16 %v2476
  %v2548 = vunpack.c.h.b16 %v2476
  %v2549 = vunpack.c.l.b16 %v2477
  %v2550 = vunpack.c.h.b16 %v2477
  %v2551 = vunpack.c.l.b16 %v2478
  %v2552 = vunpack.c.h.b16 %v2478
  %v2553 = vunpack.c.l.b16 %v2479
  %v2554 = vpack.c.b16 %v2505, %v2505
  %v2555 = vpack.c.b16 %v2506, %v2506
  %v2556 = vpack.c.b16 %v2507, %v2507
  %v2557 = vpack.c.b16 %v2508, %v2508
  %v2558 = vpack.c.b16 %v2509, %v2509
  %v2559 = vpack.c.b16 %v2510, %v2510
  %v2560 = vpack.c.b16 %v2511, %v2511
  %v2561 = vpack.c.b16 %v2512, %v2512
  %v2562 = vpack.c.b16 %v2513, %v2513
  %v2563 = vpack.c.b16 %v2514, %v2514
  %v2564 = vpack.c.b16 %v2515, %v2515
  %v2565 = vpack.c.b16 %v2516, %v2516
  %v2566 = vpack.c.b16 %v2517, %v2517
  %v2567 = vpack.c.b16 %v2518, %v2518
  %v2568 = vpack.c.b16 %v2519, %v2519
  %v2569 = vpack.c.b16 %v2520, %v2520
  %v2570 = vpack.c.b16 %v2521, %v2521
  %v2571 = vpack.c.b16 %v2522, %v2522
  %v2572 = vpack.c.b16 %v2523, %v2523
  %v2573 = vpack.c.b16 %v2524, %v2524
  %v2574 = vpack.c.b16 %v2525, %v2525
  %v2575 = vpack.c.b16 %v2526, %v2526
  %v2576 = vpack.c.b16 %v2527, %v2527
  %v2577 = vpack.c.b16 %v2528, %v2528
  %v2578 = vpack.c.b16 %v2529, %v2529
  %v2579 = vpack.c.b16 %v2530, %v2530
  %v2580 = vpack.c.b16 %v2531, %v2531
  %v2581 = vpack.c.b16 %v2532, %v2532
  %v2582 = vpack.c.b16 %v2533, %v2533
  %v2583 = vpack.c.b16 %v2534, %v2534
  %v2584 = vpack.c.b16 %v2535, %v2535
  %v2585 = vpack.c.b16 %v2536, %v2536
  %v2586 = vpack.c.b16 %v2537, %v2537
  %v2587 = vpack.c.b16 %v2538, %v2538
  %v2588 = vpack.c.b16 %v2539, %v2539
  %v2589 = vpack.c.b16 %v2540, %v2540
  %v2590 = vpack.c.b16 %v2541, %v2541
  %v2591 = vpack.c.b16 %v2542, %v2542
  %v2592 = vpack.c.b16 %v2543, %v2543
  %v2593 = vpack.c.b16 %v2544, %v2544
  %v2594 = vpack.c.b16 %v2545, %v2545
  %v2595 = vpack.c.b16 %v2546, %v2546
  %v2596 = vpack.c.b16 %v2547, %v2547
  %v2597 = vpack.c.b16 %v2548, %v2548
  %v2598 = vpack.c.b16 %v2549, %v2549
  %v2599 = vpack.c.b16 %v2550, %v2550
  %v2600 = vpack.c.b16 %v2551, %v2551
  %v2601 = vpack.c.b16 %v2552, %v2552
  %v2602 = vpack.c.b16 %v2553, %v2553
  %2652 = vst [vmem:[%s8] sm:$0xf] %v2554
  %2653 = vst [vmem:[%s8 + $0x4] sm:$0xf] %v2555
  %2654 = vst [vmem:[%s8 + $0x8] sm:$0xf] %v2556
  %2655 = vst [vmem:[%s8 + $0xc] sm:$0xf] %v2557
  %2656 = vst [vmem:[%s8 + $0x10] sm:$0xf] %v2558
  %2657 = vst [vmem:[%s8 + $0x14] sm:$0xf] %v2559
  %2658 = vst [vmem:[%s8 + $0x18] sm:$0xf] %v2560
  %2659 = vst [vmem:[%s8 + $0x1c] sm:$0xf] %v2561
  %2660 = vst [vmem:[%s8 + $0x20] sm:$0xf] %v2562
  %2661 = vst [vmem:[%s8 + $0x24] sm:$0xf] %v2563
  %2662 = vst [vmem:[%s8 + $0x28] sm:$0xf] %v2564
  %2663 = vst [vmem:[%s8 + $0x2c] sm:$0xf] %v2565
  %2664 = vst [vmem:[%s8 + $0x30] sm:$0xf] %v2566
  %2665 = vst [vmem:[%s8 + $0x34] sm:$0xf] %v2567
  %2666 = vst [vmem:[%s8 + $0x38] sm:$0xf] %v2568
  %2667 = vst [vmem:[%s8 + $0x3c] sm:$0xf] %v2569
  %2668 = vst [vmem:[%s8 + $0x40] sm:$0xf] %v2570
  %2669 = vst [vmem:[%s8 + $0x44] sm:$0xf] %v2571
  %2670 = vst [vmem:[%s8 + $0x48] sm:$0xf] %v2572
  %2671 = vst [vmem:[%s8 + $0x4c] sm:$0xf] %v2573
  %2672 = vst [vmem:[%s8 + $0x50] sm:$0xf] %v2574
  %2673 = vst [vmem:[%s8 + $0x54] sm:$0xf] %v2575
  %2674 = vst [vmem:[%s8 + $0x58] sm:$0xf] %v2576
  %2675 = vst [vmem:[%s8 + $0x5c] sm:$0xf] %v2577
  %2676 = vst [vmem:[%s8 + $0x60] sm:$0xf] %v2578
  %2677 = vst [vmem:[%s8 + $0x64] sm:$0xf] %v2579
  %2678 = vst [vmem:[%s8 + $0x68] sm:$0xf] %v2580
  %2679 = vst [vmem:[%s8 + $0x6c] sm:$0xf] %v2581
  %2680 = vst [vmem:[%s8 + $0x70] sm:$0xf] %v2582
  %2681 = vst [vmem:[%s8 + $0x74] sm:$0xf] %v2583
  %2682 = vst [vmem:[%s8 + $0x78] sm:$0xf] %v2584
  %2683 = vst [vmem:[%s8 + $0x7c] sm:$0xf] %v2585
  %2684 = vst [vmem:[%s8 + $0x80] sm:$0xf] %v2586
  %2685 = vst [vmem:[%s8 + $0x84] sm:$0xf] %v2587
  %2686 = vst [vmem:[%s8 + $0x88] sm:$0xf] %v2588
  %2687 = vst [vmem:[%s8 + $0x8c] sm:$0xf] %v2589
  %2688 = vst [vmem:[%s8 + $0x90] sm:$0xf] %v2590
  %2689 = vst [vmem:[%s8 + $0x94] sm:$0xf] %v2591
  %2690 = vst [vmem:[%s8 + $0x98] sm:$0xf] %v2592
  %2691 = vst [vmem:[%s8 + $0x9c] sm:$0xf] %v2593
  %2692 = vst [vmem:[%s8 + $0xa0] sm:$0xf] %v2594
  %2693 = vst [vmem:[%s8 + $0xa4] sm:$0xf] %v2595
  %2694 = vst [vmem:[%s8 + $0xa8] sm:$0xf] %v2596
  %2695 = vst [vmem:[%s8 + $0xac] sm:$0xf] %v2597
  %2696 = vst [vmem:[%s8 + $0xb0] sm:$0xf] %v2598
  %2697 = vst [vmem:[%s8 + $0xb4] sm:$0xf] %v2599
  %2698 = vst [vmem:[%s8 + $0xb8] sm:$0xf] %v2600
  %2699 = vst [vmem:[%s8 + $0xbc] sm:$0xf] %v2601
  %2700 = vst [vmem:[%s8 + $0xc0] sm:$0xf] %v2602
  // Predicated region
  $region34: #{cnn_forward.4} parent=0 // pred_check
    _
  $region35: #{cnn_forward.4} parent=0 // pred_check_branch
    %2702 = sbr.rel (0) target = $region37
  $region36: #{cnn_forward.4} parent=0 // pred_region
    _
  $region37: #{cnn_forward.4} parent=0 // pred_fallthru
    _
  // Predicated region
  $region38: #{cnn_forward.4} parent=0 // pred_check
    _
  $region39: #{cnn_forward.4} parent=0 // pred_check_branch
    %2704 = sbr.rel (0) target = $region41
  $region40: #{cnn_forward.4} parent=0 // pred_region
    _
  $region41: #{cnn_forward.4} parent=0 // pred_fallthru
    _

// kernel: cnn_forward.7
$region0: #{cnn_forward.7}
  #allocation0 [shape = 'u32[]', space=smem, size = 0x4, offset = 0x4, fixed_abs, tag = 'smem constant byte address 0x4 - core index']
  #allocation1 [shape = 'u32[144,128]{1,0:T(1,128)}', space=vmem, size = 0x12000, scoped, tag = 'internal scratch']
  %s0 = inlined_call_operand.vmem [shape: bf16[2,1024], index: 0, kind: input, shape index: {}]
  %s1 = inlined_call_operand.vmem [shape: bf16[1024,128], index: 1, kind: input, shape index: {}]
  %s2 = inlined_call_operand.vmem [shape: f32[1,128], index: 2, kind: input, shape index: {}]
  %s3 = inlined_call_operand.vmem [shape: bf16[128,64], index: 3, kind: input, shape index: {}]
  %s4 = inlined_call_operand.vmem [shape: f32[1,64], index: 4, kind: input, shape index: {}]
  %s5 = inlined_call_operand.vmem [shape: bf16[64,32], index: 5, kind: input, shape index: {}]
  %s6 = inlined_call_operand.vmem [shape: f32[1,32], index: 6, kind: input, shape index: {}]
  %s7 = inlined_call_operand.vmem [shape: bf16[32,2], index: 7, kind: input, shape index: {}]
  %s8 = inlined_call_operand.vmem [shape: f32[1,2], index: 8, kind: input, shape index: {}]
  %s9 = inlined_call_operand.hbm [shape: f32[2,2], index: 9, kind: output, shape index: {}]
  %s10 = sld [smem:[#allocation0]]
  $region46: #{cnn_forward.7} parent=0
    _
  %s12 = ssub.s32 1, %s10
  %s13 = scalar_select 0, %s12, %s10
  $region1: #{cnn_forward.7} parent=0
    #allocation2 [shape = 'u8[1024]{0}', space=vmem, size = 0x400, scoped, tag = 'output window, operand 0, single buffered']
    #allocation3 [shape = 's32[1]{0}', space=sflag, size = 0x4, scoped, tag = 'scoped memory for cnn_forward.7']
    %14 = vsyncpa [#allocation3], 0
    // Predicated region
    $region2: #{cnn_forward.7} parent=1 // pred_check
      _
    $region3: #{cnn_forward.7} parent=1 // pred_check_branch
      %16 = sbr.rel (0) target = $region5
    $region4: #{cnn_forward.7} parent=1 // pred_region
      _
    $region5: #{cnn_forward.7} parent=1 // pred_fallthru
      _
    // Predicated region
    $region6: #{cnn_forward.7} parent=1 // pred_check
      _
    $region7: #{cnn_forward.7} parent=1 // pred_check_branch
      %18 = sbr.rel (0) target = $region9
    $region8: #{cnn_forward.7} parent=1 // pred_region
      _
    $region9: #{cnn_forward.7} parent=1 // pred_fallthru
      _
    // Predicated region
    $region10: #{cnn_forward.7} parent=1 // pred_check
      _
    $region11: #{cnn_forward.7} parent=1 // pred_check_branch
      %20 = sbr.rel (0) target = $region13
    $region12: #{cnn_forward.7} parent=1 // pred_region
      _
    $region13: #{cnn_forward.7} parent=1 // pred_fallthru
      _
    // Predicated region
    $region14: #{cnn_forward.7} parent=1 // pred_check
      _
    $region15: #{cnn_forward.7} parent=1 // pred_check_branch
      %22 = sbr.rel (0) target = $region17
    $region16: #{cnn_forward.7} parent=1 // pred_region
      _
    $region17: #{cnn_forward.7} parent=1 // pred_fallthru
      _
    // Predicated region
    $region18: #{cnn_forward.7} parent=1 // pred_check
      _
    $region19: #{cnn_forward.7} parent=1 // pred_check_branch
      %24 = sbr.rel (0) target = $region21
    $region20: #{cnn_forward.7} parent=1 // pred_region
      _
    $region21: #{cnn_forward.7} parent=1 // pred_fallthru
      _
    // Predicated region
    $region22: #{cnn_forward.7} parent=1 // pred_check
      _
    $region23: #{cnn_forward.7} parent=1 // pred_check_branch
      %26 = sbr.rel (0) target = $region25
    $region24: #{cnn_forward.7} parent=1 // pred_region
      _
    $region25: #{cnn_forward.7} parent=1 // pred_fallthru
      _
    // Predicated region
    $region26: #{cnn_forward.7} parent=1 // pred_check
      _
    $region27: #{cnn_forward.7} parent=1 // pred_check_branch
      %28 = sbr.rel (0) target = $region29
    $region28: #{cnn_forward.7} parent=1 // pred_region
      _
    $region29: #{cnn_forward.7} parent=1 // pred_fallthru
      _
    // Predicated region
    $region30: #{cnn_forward.7} parent=1 // pred_check
      _
    $region31: #{cnn_forward.7} parent=1 // pred_check_branch
      %30 = sbr.rel (0) target = $region33
    $region32: #{cnn_forward.7} parent=1 // pred_region
      _
    $region33: #{cnn_forward.7} parent=1 // pred_fallthru
      _
    // Predicated region
    $region34: #{cnn_forward.7} parent=1 // pred_check
      _
    $region35: #{cnn_forward.7} parent=1 // pred_check_branch
      %32 = sbr.rel (0) target = $region37
    $region36: #{cnn_forward.7} parent=1 // pred_region
      _
    $region37: #{cnn_forward.7} parent=1 // pred_fallthru
      _
    %v34 = vld [vmem:[%s0] sm:$0xff]
    %v35 = vld [vmem:[%s1] sm:$0xf]
    %v36 = vld [vmem:[%s1 + $0x4] sm:$0xf]
    %v37 = vld [vmem:[%s1 + $0x8] sm:$0xf]
    %v38 = vld [vmem:[%s1 + $0xc] sm:$0xf]
    %v39 = vld [vmem:[%s1 + $0x10] sm:$0xf]
    %v40 = vld [vmem:[%s1 + $0x14] sm:$0xf]
    %v41 = vld [vmem:[%s1 + $0x18] sm:$0xf]
    %v42 = vld [vmem:[%s1 + $0x1c] sm:$0xf]
    %v43 = vld [vmem:[%s1 + $0x20] sm:$0xf]
    %v44 = vld [vmem:[%s1 + $0x24] sm:$0xf]
    %v45 = vld [vmem:[%s1 + $0x28] sm:$0xf]
    %v46 = vld [vmem:[%s1 + $0x2c] sm:$0xf]
    %v47 = vld [vmem:[%s1 + $0x30] sm:$0xf]
    %v48 = vld [vmem:[%s1 + $0x34] sm:$0xf]
    %v49 = vld [vmem:[%s1 + $0x38] sm:$0xf]
    %v50 = vld [vmem:[%s1 + $0x3c] sm:$0xf]
    %v51 = vld [vmem:[%s1 + $0x40] sm:$0xf]
    %v52 = vld [vmem:[%s1 + $0x44] sm:$0xf]
    %v53 = vld [vmem:[%s1 + $0x48] sm:$0xf]
    %v54 = vld [vmem:[%s1 + $0x4c] sm:$0xf]
    %v55 = vld [vmem:[%s1 + $0x50] sm:$0xf]
    %v56 = vld [vmem:[%s1 + $0x54] sm:$0xf]
    %v57 = vld [vmem:[%s1 + $0x58] sm:$0xf]
    %v58 = vld [vmem:[%s1 + $0x5c] sm:$0xf]
    %v59 = vld [vmem:[%s1 + $0x60] sm:$0xf]
    %v60 = vld [vmem:[%s1 + $0x64] sm:$0xf]
    %v61 = vld [vmem:[%s1 + $0x68] sm:$0xf]
    %v62 = vld [vmem:[%s1 + $0x6c] sm:$0xf]
    %v63 = vld [vmem:[%s1 + $0x70] sm:$0xf]
    %v64 = vld [vmem:[%s1 + $0x74] sm:$0xf]
    %v65 = vld [vmem:[%s1 + $0x78] sm:$0xf]
    %v66 = vld [vmem:[%s1 + $0x7c] sm:$0xf]
    %v67 = vld [vmem:[%s1 + $0x80] sm:$0xf]
    %v68 = vld [vmem:[%s1 + $0x84] sm:$0xf]
    %v69 = vld [vmem:[%s1 + $0x88] sm:$0xf]
    %v70 = vld [vmem:[%s1 + $0x8c] sm:$0xf]
    %v71 = vld [vmem:[%s1 + $0x90] sm:$0xf]
    %v72 = vld [vmem:[%s1 + $0x94] sm:$0xf]
    %v73 = vld [vmem:[%s1 + $0x98] sm:$0xf]
    %v74 = vld [vmem:[%s1 + $0x9c] sm:$0xf]
    %v75 = vld [vmem:[%s1 + $0xa0] sm:$0xf]
    %v76 = vld [vmem:[%s1 + $0xa4] sm:$0xf]
    %v77 = vld [vmem:[%s1 + $0xa8] sm:$0xf]
    %v78 = vld [vmem:[%s1 + $0xac] sm:$0xf]
    %v79 = vld [vmem:[%s1 + $0xb0] sm:$0xf]
    %v80 = vld [vmem:[%s1 + $0xb4] sm:$0xf]
    %v81 = vld [vmem:[%s1 + $0xb8] sm:$0xf]
    %v82 = vld [vmem:[%s1 + $0xbc] sm:$0xf]
    %v83 = vld [vmem:[%s1 + $0xc0] sm:$0xf]
    %v84 = vld [vmem:[%s1 + $0xc4] sm:$0xf]
    %v85 = vld [vmem:[%s1 + $0xc8] sm:$0xf]
    %v86 = vld [vmem:[%s1 + $0xcc] sm:$0xf]
    %v87 = vld [vmem:[%s1 + $0xd0] sm:$0xf]
    %v88 = vld [vmem:[%s1 + $0xd4] sm:$0xf]
    %v89 = vld [vmem:[%s1 + $0xd8] sm:$0xf]
    %v90 = vld [vmem:[%s1 + $0xdc] sm:$0xf]
    %v91 = vld [vmem:[%s1 + $0xe0] sm:$0xf]
    %v92 = vld [vmem:[%s1 + $0xe4] sm:$0xf]
    %v93 = vld [vmem:[%s1 + $0xe8] sm:$0xf]
    %v94 = vld [vmem:[%s1 + $0xec] sm:$0xf]
    %v95 = vld [vmem:[%s1 + $0xf0] sm:$0xf]
    %v96 = vld [vmem:[%s1 + $0xf4] sm:$0xf]
    %v97 = vld [vmem:[%s1 + $0xf8] sm:$0xf]
    %v98 = vld [vmem:[%s1 + $0xfc] sm:$0xf]
    %v99 = vld [vmem:[%s1 + $0x100] sm:$0xf]
    %v100 = vld [vmem:[%s1 + $0x104] sm:$0xf]
    %v101 = vld [vmem:[%s1 + $0x108] sm:$0xf]
    %v102 = vld [vmem:[%s1 + $0x10c] sm:$0xf]
    %v103 = vld [vmem:[%s1 + $0x110] sm:$0xf]
    %v104 = vld [vmem:[%s1 + $0x114] sm:$0xf]
    %v105 = vld [vmem:[%s1 + $0x118] sm:$0xf]
    %v106 = vld [vmem:[%s1 + $0x11c] sm:$0xf]
    %v107 = vld [vmem:[%s1 + $0x120] sm:$0xf]
    %v108 = vld [vmem:[%s1 + $0x124] sm:$0xf]
    %v109 = vld [vmem:[%s1 + $0x128] sm:$0xf]
    %v110 = vld [vmem:[%s1 + $0x12c] sm:$0xf]
    %v111 = vld [vmem:[%s1 + $0x130] sm:$0xf]
    %v112 = vld [vmem:[%s1 + $0x134] sm:$0xf]
    %v113 = vld [vmem:[%s1 + $0x138] sm:$0xf]
    %v114 = vld [vmem:[%s1 + $0x13c] sm:$0xf]
    %v115 = vld [vmem:[%s1 + $0x140] sm:$0xf]
    %v116 = vld [vmem:[%s1 + $0x144] sm:$0xf]
    %v117 = vld [vmem:[%s1 + $0x148] sm:$0xf]
    %v118 = vld [vmem:[%s1 + $0x14c] sm:$0xf]
    %v119 = vld [vmem:[%s1 + $0x150] sm:$0xf]
    %v120 = vld [vmem:[%s1 + $0x154] sm:$0xf]
    %v121 = vld [vmem:[%s1 + $0x158] sm:$0xf]
    %v122 = vld [vmem:[%s1 + $0x15c] sm:$0xf]
    %v123 = vld [vmem:[%s1 + $0x160] sm:$0xf]
    %v124 = vld [vmem:[%s1 + $0x164] sm:$0xf]
    %v125 = vld [vmem:[%s1 + $0x168] sm:$0xf]
    %v126 = vld [vmem:[%s1 + $0x16c] sm:$0xf]
    %v127 = vld [vmem:[%s1 + $0x170] sm:$0xf]
    %v128 = vld [vmem:[%s1 + $0x174] sm:$0xf]
    %v129 = vld [vmem:[%s1 + $0x178] sm:$0xf]
    %v130 = vld [vmem:[%s1 + $0x17c] sm:$0xf]
    %v131 = vld [vmem:[%s1 + $0x180] sm:$0xf]
    %v132 = vld [vmem:[%s1 + $0x184] sm:$0xf]
    %v133 = vld [vmem:[%s1 + $0x188] sm:$0xf]
    %v134 = vld [vmem:[%s1 + $0x18c] sm:$0xf]
    %v135 = vld [vmem:[%s1 + $0x190] sm:$0xf]
    %v136 = vld [vmem:[%s1 + $0x194] sm:$0xf]
    %v137 = vld [vmem:[%s1 + $0x198] sm:$0xf]
    %v138 = vld [vmem:[%s1 + $0x19c] sm:$0xf]
    %v139 = vld [vmem:[%s1 + $0x1a0] sm:$0xf]
    %v140 = vld [vmem:[%s1 + $0x1a4] sm:$0xf]
    %v141 = vld [vmem:[%s1 + $0x1a8] sm:$0xf]
    %v142 = vld [vmem:[%s1 + $0x1ac] sm:$0xf]
    %v143 = vld [vmem:[%s1 + $0x1b0] sm:$0xf]
    %v144 = vld [vmem:[%s1 + $0x1b4] sm:$0xf]
    %v145 = vld [vmem:[%s1 + $0x1b8] sm:$0xf]
    %v146 = vld [vmem:[%s1 + $0x1bc] sm:$0xf]
    %v147 = vld [vmem:[%s1 + $0x1c0] sm:$0xf]
    %v148 = vld [vmem:[%s1 + $0x1c4] sm:$0xf]
    %v149 = vld [vmem:[%s1 + $0x1c8] sm:$0xf]
    %v150 = vld [vmem:[%s1 + $0x1cc] sm:$0xf]
    %v151 = vld [vmem:[%s1 + $0x1d0] sm:$0xf]
    %v152 = vld [vmem:[%s1 + $0x1d4] sm:$0xf]
    %v153 = vld [vmem:[%s1 + $0x1d8] sm:$0xf]
    %v154 = vld [vmem:[%s1 + $0x1dc] sm:$0xf]
    %v155 = vld [vmem:[%s1 + $0x1e0] sm:$0xf]
    %v156 = vld [vmem:[%s1 + $0x1e4] sm:$0xf]
    %v157 = vld [vmem:[%s1 + $0x1e8] sm:$0xf]
    %v158 = vld [vmem:[%s1 + $0x1ec] sm:$0xf]
    %v159 = vld [vmem:[%s1 + $0x1f0] sm:$0xf]
    %v160 = vld [vmem:[%s1 + $0x1f4] sm:$0xf]
    %v161 = vld [vmem:[%s1 + $0x1f8] sm:$0xf]
    %v162 = vld [vmem:[%s1 + $0x1fc] sm:$0xf]
    %v163 = vld [vmem:[%s2] sm:$0x1]
    %v165 = vlaneseq
    %v166 = vshrl.u32 %v165, 7
    %v167 = vsub.s32 0, %v166
    %v168 = vrot.slane %v163, %v167
    %v171 = vcombine.high %v34, %v34
    %v173 = vunpack.c.l.s4 1966171168
    %v174 = vunpack.c.0.s8 %v173
    %v175 = vlaneseq
    %v176 = vshrl.u32 %v175, 7
    %v177 = vsub.s32 %v174, %v176
    %v178 = vrot.slane %v34, %v177
    %v180 = vunpack.c.l.s4 1966171168
    %v181 = vunpack.c.0.s8 %v180
    %v182 = vlaneseq
    %v183 = vshrl.u32 %v182, 7
    %v184 = vsub.s32 %v181, %v183
    %v185 = vrot.slane %v171, %v184
    %v186 = vcombine.high %v178, %v178
    %v187 = vcombine.high %v185, %v185
    %v189 = vunpack.c.l.s4 1966171168
    %v190 = vunpack.c.0.s8 %v189
    %v191 = vlaneseq
    %v192 = vshrl.u32 %v191, 7
    %v193 = vsub.s32 %v190, %v192
    %v194 = vrot.slane %v178, %v193
    %v196 = vunpack.c.l.s4 1966171168
    %v197 = vunpack.c.0.s8 %v196
    %v198 = vlaneseq
    %v199 = vshrl.u32 %v198, 7
    %v200 = vsub.s32 %v197, %v199
    %v201 = vrot.slane %v185, %v200
    %v203 = vunpack.c.l.s4 1966171168
    %v204 = vunpack.c.0.s8 %v203
    %v205 = vlaneseq
    %v206 = vshrl.u32 %v205, 7
    %v207 = vsub.s32 %v204, %v206
    %v208 = vrot.slane %v186, %v207
    %v210 = vunpack.c.l.s4 1966171168
    %v211 = vunpack.c.0.s8 %v210
    %v212 = vlaneseq
    %v213 = vshrl.u32 %v212, 7
    %v214 = vsub.s32 %v211, %v213
    %v215 = vrot.slane %v187, %v214
    %v216 = vcombine.high %v194, %v194
    %v217 = vcombine.high %v201, %v201
    %v218 = vcombine.high %v208, %v208
    %v219 = vcombine.high %v215, %v215
    %v356 = vunpack.c.l.b16 %v35
    %v357 = vunpack.c.l.b16 %v36
    %v358 = vunpack.c.l.b16 %v37
    %v359 = vunpack.c.l.b16 %v38
    %v360 = vunpack.c.l.b16 %v39
    %v361 = vunpack.c.l.b16 %v40
    %v362 = vunpack.c.l.b16 %v41
    %v363 = vunpack.c.l.b16 %v42
    %v364 = vunpack.c.l.b16 %v43
    %v365 = vunpack.c.l.b16 %v44
    %v366 = vunpack.c.l.b16 %v45
    %v367 = vunpack.c.l.b16 %v46
    %v368 = vunpack.c.l.b16 %v47
    %v369 = vunpack.c.l.b16 %v48
    %v370 = vunpack.c.l.b16 %v49
    %v371 = vunpack.c.l.b16 %v50
    %v372 = vunpack.c.l.b16 %v51
    %v373 = vunpack.c.l.b16 %v52
    %v374 = vunpack.c.l.b16 %v53
    %v375 = vunpack.c.l.b16 %v54
    %v376 = vunpack.c.l.b16 %v55
    %v377 = vunpack.c.l.b16 %v56
    %v378 = vunpack.c.l.b16 %v57
    %v379 = vunpack.c.l.b16 %v58
    %v380 = vunpack.c.l.b16 %v59
    %v381 = vunpack.c.l.b16 %v60
    %v382 = vunpack.c.l.b16 %v61
    %v383 = vunpack.c.l.b16 %v62
    %v384 = vunpack.c.l.b16 %v63
    %v385 = vunpack.c.l.b16 %v64
    %v386 = vunpack.c.l.b16 %v65
    %v387 = vunpack.c.l.b16 %v66
    %v388 = vunpack.c.l.b16 %v67
    %v389 = vunpack.c.l.b16 %v68
    %v390 = vunpack.c.l.b16 %v69
    %v391 = vunpack.c.l.b16 %v70
    %v392 = vunpack.c.l.b16 %v71
    %v393 = vunpack.c.l.b16 %v72
    %v394 = vunpack.c.l.b16 %v73
    %v395 = vunpack.c.l.b16 %v74
    %v396 = vunpack.c.l.b16 %v75
    %v397 = vunpack.c.l.b16 %v76
    %v398 = vunpack.c.l.b16 %v77
    %v399 = vunpack.c.l.b16 %v78
    %v400 = vunpack.c.l.b16 %v79
    %v401 = vunpack.c.l.b16 %v80
    %v402 = vunpack.c.l.b16 %v81
    %v403 = vunpack.c.l.b16 %v82
    %v404 = vunpack.c.l.b16 %v83
    %v405 = vunpack.c.l.b16 %v84
    %v406 = vunpack.c.l.b16 %v85
    %v407 = vunpack.c.l.b16 %v86
    %v408 = vunpack.c.l.b16 %v87
    %v409 = vunpack.c.l.b16 %v88
    %v410 = vunpack.c.l.b16 %v89
    %v411 = vunpack.c.l.b16 %v90
    %v412 = vunpack.c.l.b16 %v91
    %v413 = vunpack.c.l.b16 %v92
    %v414 = vunpack.c.l.b16 %v93
    %v415 = vunpack.c.l.b16 %v94
    %v416 = vunpack.c.l.b16 %v95
    %v417 = vunpack.c.l.b16 %v96
    %v418 = vunpack.c.l.b16 %v97
    %v419 = vunpack.c.l.b16 %v98
    %v420 = vunpack.c.l.b16 %v99
    %v421 = vunpack.c.l.b16 %v100
    %v422 = vunpack.c.l.b16 %v101
    %v423 = vunpack.c.l.b16 %v102
    %v424 = vunpack.c.l.b16 %v103
    %v425 = vunpack.c.l.b16 %v104
    %v426 = vunpack.c.l.b16 %v105
    %v427 = vunpack.c.l.b16 %v106
    %v428 = vunpack.c.l.b16 %v107
    %v429 = vunpack.c.l.b16 %v108
    %v430 = vunpack.c.l.b16 %v109
    %v431 = vunpack.c.l.b16 %v110
    %v432 = vunpack.c.l.b16 %v111
    %v433 = vunpack.c.l.b16 %v112
    %v434 = vunpack.c.l.b16 %v113
    %v435 = vunpack.c.l.b16 %v114
    %v436 = vunpack.c.l.b16 %v115
    %v437 = vunpack.c.l.b16 %v116
    %v438 = vunpack.c.l.b16 %v117
    %v439 = vunpack.c.l.b16 %v118
    %v440 = vunpack.c.l.b16 %v119
    %v441 = vunpack.c.l.b16 %v120
    %v442 = vunpack.c.l.b16 %v121
    %v443 = vunpack.c.l.b16 %v122
    %v444 = vunpack.c.l.b16 %v123
    %v445 = vunpack.c.l.b16 %v124
    %v446 = vunpack.c.l.b16 %v125
    %v447 = vunpack.c.l.b16 %v126
    %v448 = vunpack.c.l.b16 %v127
    %v449 = vunpack.c.l.b16 %v128
    %v450 = vunpack.c.l.b16 %v129
    %v451 = vunpack.c.l.b16 %v130
    %v452 = vunpack.c.l.b16 %v131
    %v453 = vunpack.c.l.b16 %v132
    %v454 = vunpack.c.l.b16 %v133
    %v455 = vunpack.c.l.b16 %v134
    %v456 = vunpack.c.l.b16 %v135
    %v457 = vunpack.c.l.b16 %v136
    %v458 = vunpack.c.l.b16 %v137
    %v459 = vunpack.c.l.b16 %v138
    %v460 = vunpack.c.l.b16 %v139
    %v461 = vunpack.c.l.b16 %v140
    %v462 = vunpack.c.l.b16 %v141
    %v463 = vunpack.c.l.b16 %v142
    %v464 = vunpack.c.l.b16 %v143
    %v465 = vunpack.c.l.b16 %v144
    %v466 = vunpack.c.l.b16 %v145
    %v467 = vunpack.c.l.b16 %v146
    %v468 = vunpack.c.l.b16 %v147
    %v469 = vunpack.c.l.b16 %v148
    %v470 = vunpack.c.l.b16 %v149
    %v471 = vunpack.c.l.b16 %v150
    %v472 = vunpack.c.l.b16 %v151
    %v473 = vunpack.c.l.b16 %v152
    %v474 = vunpack.c.l.b16 %v153
    %v475 = vunpack.c.l.b16 %v154
    %v476 = vunpack.c.l.b16 %v155
    %v477 = vunpack.c.l.b16 %v156
    %v478 = vunpack.c.l.b16 %v157
    %v479 = vunpack.c.l.b16 %v158
    %v480 = vunpack.c.l.b16 %v159
    %v481 = vunpack.c.l.b16 %v160
    %v482 = vunpack.c.l.b16 %v161
    %v483 = vunpack.c.l.b16 %v162
    %v484 = vpack.c.b16 %v357, %v356
    %v485 = vpack.c.b16 %v359, %v358
    %v486 = vpack.c.b16 %v361, %v360
    %v487 = vpack.c.b16 %v363, %v362
    %v488 = vpack.c.b16 %v365, %v364
    %v489 = vpack.c.b16 %v367, %v366
    %v490 = vpack.c.b16 %v369, %v368
    %v491 = vpack.c.b16 %v371, %v370
    %v492 = vpack.c.b16 %v373, %v372
    %v493 = vpack.c.b16 %v375, %v374
    %v494 = vpack.c.b16 %v377, %v376
    %v495 = vpack.c.b16 %v379, %v378
    %v496 = vpack.c.b16 %v381, %v380
    %v497 = vpack.c.b16 %v383, %v382
    %v498 = vpack.c.b16 %v385, %v384
    %v499 = vpack.c.b16 %v387, %v386
    %v500 = vpack.c.b16 %v389, %v388
    %v501 = vpack.c.b16 %v391, %v390
    %v502 = vpack.c.b16 %v393, %v392
    %v503 = vpack.c.b16 %v395, %v394
    %v504 = vpack.c.b16 %v397, %v396
    %v505 = vpack.c.b16 %v399, %v398
    %v506 = vpack.c.b16 %v401, %v400
    %v507 = vpack.c.b16 %v403, %v402
    %v508 = vpack.c.b16 %v405, %v404
    %v509 = vpack.c.b16 %v407, %v406
    %v510 = vpack.c.b16 %v409, %v408
    %v511 = vpack.c.b16 %v411, %v410
    %v512 = vpack.c.b16 %v413, %v412
    %v513 = vpack.c.b16 %v415, %v414
    %v514 = vpack.c.b16 %v417, %v416
    %v515 = vpack.c.b16 %v419, %v418
    %v516 = vpack.c.b16 %v421, %v420
    %v517 = vpack.c.b16 %v423, %v422
    %v518 = vpack.c.b16 %v425, %v424
    %v519 = vpack.c.b16 %v427, %v426
    %v520 = vpack.c.b16 %v429, %v428
    %v521 = vpack.c.b16 %v431, %v430
    %v522 = vpack.c.b16 %v433, %v432
    %v523 = vpack.c.b16 %v435, %v434
    %v524 = vpack.c.b16 %v437, %v436
    %v525 = vpack.c.b16 %v439, %v438
    %v526 = vpack.c.b16 %v441, %v440
    %v527 = vpack.c.b16 %v443, %v442
    %v528 = vpack.c.b16 %v445, %v444
    %v529 = vpack.c.b16 %v447, %v446
    %v530 = vpack.c.b16 %v449, %v448
    %v531 = vpack.c.b16 %v451, %v450
    %v532 = vpack.c.b16 %v453, %v452
    %v533 = vpack.c.b16 %v455, %v454
    %v534 = vpack.c.b16 %v457, %v456
    %v535 = vpack.c.b16 %v459, %v458
    %v536 = vpack.c.b16 %v461, %v460
    %v537 = vpack.c.b16 %v463, %v462
    %v538 = vpack.c.b16 %v465, %v464
    %v539 = vpack.c.b16 %v467, %v466
    %v540 = vpack.c.b16 %v469, %v468
    %v541 = vpack.c.b16 %v471, %v470
    %v542 = vpack.c.b16 %v473, %v472
    %v543 = vpack.c.b16 %v475, %v474
    %v544 = vpack.c.b16 %v477, %v476
    %v545 = vpack.c.b16 %v479, %v478
    %v546 = vpack.c.b16 %v481, %v480
    %v547 = vpack.c.b16 %v483, %v482
    %612 = vmatprep.subr.bf16.mxu0 0
    %613 = vmatpush1.bf16.msra.mxu0 %v484
    %614 = vmatprep.subr.bf16.mxu0 0
    %615 = vmatpush1.bf16.msra.mxu0 %v485
    %616 = vmatprep.subr.bf16.mxu0 0
    %617 = vmatpush1.bf16.msra.mxu0 %v486
    %618 = vmatprep.subr.bf16.mxu0 0
    %619 = vmatpush1.bf16.msra.mxu0 %v487
    %620 = vmatprep.subr.bf16.mxu0 0
    %621 = vmatpush1.bf16.msra.mxu0 %v488
    %622 = vmatprep.subr.bf16.mxu0 0
    %623 = vmatpush1.bf16.msra.mxu0 %v489
    %624 = vmatprep.subr.bf16.mxu0 0
    %625 = vmatpush1.bf16.msra.mxu0 %v490
    %626 = vmatprep.subr.bf16.mxu0 0
    %627 = vmatpush1.bf16.msra.mxu0 %v491
    %628 = vmatprep.subr.bf16.mxu0 0
    %629 = vmatpush1.bf16.msra.mxu0 %v492
    %630 = vmatprep.subr.bf16.mxu0 0
    %631 = vmatpush1.bf16.msra.mxu0 %v493
    %632 = vmatprep.subr.bf16.mxu0 0
    %633 = vmatpush1.bf16.msra.mxu0 %v494
    %634 = vmatprep.subr.bf16.mxu0 0
    %635 = vmatpush1.bf16.msra.mxu0 %v495
    %636 = vmatprep.subr.bf16.mxu0 0
    %637 = vmatpush1.bf16.msra.mxu0 %v496
    %638 = vmatprep.subr.bf16.mxu0 0
    %639 = vmatpush1.bf16.msra.mxu0 %v497
    %640 = vmatprep.subr.bf16.mxu0 0
    %641 = vmatpush1.bf16.msra.mxu0 %v498
    %642 = vmatprep.subr.bf16.mxu0 0
    %643 = vmatpush1.bf16.msra.mxu0 %v499
    %644 = vmatprep.mubr.bf16.mxu0 %v208
    %645 = vmatmul.mubr.bf16.gmra.mrb[0].mxu0 %v194
    %v646 = vpop.f32.mrb[0].mxu0
    %v647 = vadd.f32 %v168, %v646
    %v648 = vpop.f32.mrb[0].mxu0
    %v649 = vpop.f32.mrb[0].mxu0
    %v650 = vpop.f32.mrb[0].mxu0
    %651 = vdwg.mxu0
    %652 = vmatprep.subr.bf16.mxu0 0
    %653 = vmatpush1.bf16.msra.mxu0 %v500
    %654 = vmatprep.subr.bf16.mxu0 0
    %655 = vmatpush1.bf16.msra.mxu0 %v501
    %656 = vmatprep.subr.bf16.mxu0 0
    %657 = vmatpush1.bf16.msra.mxu0 %v502
    %658 = vmatprep.subr.bf16.mxu0 0
    %659 = vmatpush1.bf16.msra.mxu0 %v503
    %660 = vmatprep.subr.bf16.mxu0 0
    %661 = vmatpush1.bf16.msra.mxu0 %v504
    %662 = vmatprep.subr.bf16.mxu0 0
    %663 = vmatpush1.bf16.msra.mxu0 %v505
    %664 = vmatprep.subr.bf16.mxu0 0
    %665 = vmatpush1.bf16.msra.mxu0 %v506
    %666 = vmatprep.subr.bf16.mxu0 0
    %667 = vmatpush1.bf16.msra.mxu0 %v507
    %668 = vmatprep.subr.bf16.mxu0 0
    %669 = vmatpush1.bf16.msra.mxu0 %v508
    %670 = vmatprep.subr.bf16.mxu0 0
    %671 = vmatpush1.bf16.msra.mxu0 %v509
    %672 = vmatprep.subr.bf16.mxu0 0
    %673 = vmatpush1.bf16.msra.mxu0 %v510
    %674 = vmatprep.subr.bf16.mxu0 0
    %675 = vmatpush1.bf16.msra.mxu0 %v511
    %676 = vmatprep.subr.bf16.mxu0 0
    %677 = vmatpush1.bf16.msra.mxu0 %v512
    %678 = vmatprep.subr.bf16.mxu0 0
    %679 = vmatpush1.bf16.msra.mxu0 %v513
    %680 = vmatprep.subr.bf16.mxu0 0
    %681 = vmatpush1.bf16.msra.mxu0 %v514
    %682 = vmatprep.subr.bf16.mxu0 0
    %683 = vmatpush1.bf16.msra.mxu0 %v515
    %684 = vmatprep.mubr.bf16.mxu0 %v218
    %685 = vmatmul.mubr.bf16.gmra.mrb[0].mxu0 %v216
    %v686 = vpop.f32.mrb[0].mxu0
    %v687 = vadd.f32 %v647, %v686
    %v688 = vpop.f32.mrb[0].mxu0
    %v689 = vpop.f32.mrb[0].mxu0
    %v690 = vpop.f32.mrb[0].mxu0
    %691 = vdwg.mxu0
    %692 = vmatprep.subr.bf16.mxu0 0
    %693 = vmatpush1.bf16.msra.mxu0 %v516
    %694 = vmatprep.subr.bf16.mxu0 0
    %695 = vmatpush1.bf16.msra.mxu0 %v517
    %696 = vmatprep.subr.bf16.mxu0 0
    %697 = vmatpush1.bf16.msra.mxu0 %v518
    %698 = vmatprep.subr.bf16.mxu0 0
    %699 = vmatpush1.bf16.msra.mxu0 %v519
    %700 = vmatprep.subr.bf16.mxu0 0
    %701 = vmatpush1.bf16.msra.mxu0 %v520
    %702 = vmatprep.subr.bf16.mxu0 0
    %703 = vmatpush1.bf16.msra.mxu0 %v521
    %704 = vmatprep.subr.bf16.mxu0 0
    %705 = vmatpush1.bf16.msra.mxu0 %v522
    %706 = vmatprep.subr.bf16.mxu0 0
    %707 = vmatpush1.bf16.msra.mxu0 %v523
    %708 = vmatprep.subr.bf16.mxu0 0
    %709 = vmatpush1.bf16.msra.mxu0 %v524
    %710 = vmatprep.subr.bf16.mxu0 0
    %711 = vmatpush1.bf16.msra.mxu0 %v525
    %712 = vmatprep.subr.bf16.mxu0 0
    %713 = vmatpush1.bf16.msra.mxu0 %v526
    %714 = vmatprep.subr.bf16.mxu0 0
    %715 = vmatpush1.bf16.msra.mxu0 %v527
    %716 = vmatprep.subr.bf16.mxu0 0
    %717 = vmatpush1.bf16.msra.mxu0 %v528
    %718 = vmatprep.subr.bf16.mxu0 0
    %719 = vmatpush1.bf16.msra.mxu0 %v529
    %720 = vmatprep.subr.bf16.mxu0 0
    %721 = vmatpush1.bf16.msra.mxu0 %v530
    %722 = vmatprep.subr.bf16.mxu0 0
    %723 = vmatpush1.bf16.msra.mxu0 %v531
    %724 = vmatprep.mubr.bf16.mxu0 %v215
    %725 = vmatmul.mubr.bf16.gmra.mrb[0].mxu0 %v201
    %v726 = vpop.f32.mrb[0].mxu0
    %v727 = vadd.f32 %v687, %v726
    %v728 = vpop.f32.mrb[0].mxu0
    %v729 = vpop.f32.mrb[0].mxu0
    %v730 = vpop.f32.mrb[0].mxu0
    %731 = vdwg.mxu0
    %732 = vmatprep.subr.bf16.mxu0 0
    %733 = vmatpush1.bf16.msra.mxu0 %v532
    %734 = vmatprep.subr.bf16.mxu0 0
    %735 = vmatpush1.bf16.msra.mxu0 %v533
    %736 = vmatprep.subr.bf16.mxu0 0
    %737 = vmatpush1.bf16.msra.mxu0 %v534
    %738 = vmatprep.subr.bf16.mxu0 0
    %739 = vmatpush1.bf16.msra.mxu0 %v535
    %740 = vmatprep.subr.bf16.mxu0 0
    %741 = vmatpush1.bf16.msra.mxu0 %v536
    %742 = vmatprep.subr.bf16.mxu0 0
    %743 = vmatpush1.bf16.msra.mxu0 %v537
    %744 = vmatprep.subr.bf16.mxu0 0
    %745 = vmatpush1.bf16.msra.mxu0 %v538
    %746 = vmatprep.subr.bf16.mxu0 0
    %747 = vmatpush1.bf16.msra.mxu0 %v539
    %748 = vmatprep.subr.bf16.mxu0 0
    %749 = vmatpush1.bf16.msra.mxu0 %v540
    %750 = vmatprep.subr.bf16.mxu0 0
    %751 = vmatpush1.bf16.msra.mxu0 %v541
    %752 = vmatprep.subr.bf16.mxu0 0
    %753 = vmatpush1.bf16.msra.mxu0 %v542
    %754 = vmatprep.subr.bf16.mxu0 0
    %755 = vmatpush1.bf16.msra.mxu0 %v543
    %756 = vmatprep.subr.bf16.mxu0 0
    %757 = vmatpush1.bf16.msra.mxu0 %v544
    %758 = vmatprep.subr.bf16.mxu0 0
    %759 = vmatpush1.bf16.msra.mxu0 %v545
    %760 = vmatprep.subr.bf16.mxu0 0
    %761 = vmatpush1.bf16.msra.mxu0 %v546
    %762 = vmatprep.subr.bf16.mxu0 0
    %763 = vmatpush1.bf16.msra.mxu0 %v547
    %764 = vmatprep.mubr.bf16.mxu0 %v219
    %765 = vmatmul.mubr.bf16.gmra.mrb[0].mxu0 %v217
    %v766 = vpop.f32.mrb[0].mxu0
    %v767 = vadd.f32 %v727, %v766
    %v768 = vpop.f32.mrb[0].mxu0
    %v769 = vpop.f32.mrb[0].mxu0
    %v770 = vpop.f32.mrb[0].mxu0
    %771 = vdwg.mxu0
    %v772 = vmax.f32 %v767, 0.0
    %v773 = vpack.c.bf16 %v772, %v772
    %v774 = vld [vmem:[%s3] sm:$0xf]
    %v775 = vld [vmem:[%s3 + $0x4] sm:$0xf]
    %v776 = vld [vmem:[%s3 + $0x8] sm:$0xf]
    %v777 = vld [vmem:[%s3 + $0xc] sm:$0xf]
    %v778 = vld [vmem:[%s3 + $0x10] sm:$0xf]
    %v779 = vld [vmem:[%s3 + $0x14] sm:$0xf]
    %v780 = vld [vmem:[%s3 + $0x18] sm:$0xf]
    %v781 = vld [vmem:[%s3 + $0x1c] sm:$0xf]
    %v782 = vld [vmem:[%s3 + $0x20] sm:$0xf]
    %v783 = vld [vmem:[%s3 + $0x24] sm:$0xf]
    %v784 = vld [vmem:[%s3 + $0x28] sm:$0xf]
    %v785 = vld [vmem:[%s3 + $0x2c] sm:$0xf]
    %v786 = vld [vmem:[%s3 + $0x30] sm:$0xf]
    %v787 = vld [vmem:[%s3 + $0x34] sm:$0xf]
    %v788 = vld [vmem:[%s3 + $0x38] sm:$0xf]
    %v789 = vld [vmem:[%s3 + $0x3c] sm:$0xf]
    %v790 = vld [vmem:[%s4] sm:$0x1]
    %v792 = vlaneseq
    %v793 = vshrl.u32 %v792, 7
    %v794 = vsub.s32 0, %v793
    %v795 = vrot.slane %v790, %v794
    %v813 = vunpack.c.l.b16 %v774
    %v814 = vunpack.c.l.b16 %v775
    %v815 = vunpack.c.l.b16 %v776
    %v816 = vunpack.c.l.b16 %v777
    %v817 = vunpack.c.l.b16 %v778
    %v818 = vunpack.c.l.b16 %v779
    %v819 = vunpack.c.l.b16 %v780
    %v820 = vunpack.c.l.b16 %v781
    %v821 = vunpack.c.l.b16 %v782
    %v822 = vunpack.c.l.b16 %v783
    %v823 = vunpack.c.l.b16 %v784
    %v824 = vunpack.c.l.b16 %v785
    %v825 = vunpack.c.l.b16 %v786
    %v826 = vunpack.c.l.b16 %v787
    %v827 = vunpack.c.l.b16 %v788
    %v828 = vunpack.c.l.b16 %v789
    %v829 = vpack.c.b16 %v814, %v813
    %v830 = vpack.c.b16 %v816, %v815
    %v831 = vpack.c.b16 %v818, %v817
    %v832 = vpack.c.b16 %v820, %v819
    %v833 = vpack.c.b16 %v822, %v821
    %v834 = vpack.c.b16 %v824, %v823
    %v835 = vpack.c.b16 %v826, %v825
    %v836 = vpack.c.b16 %v828, %v827
    %845 = vmatprep.subr.bf16.mxu0 0
    %846 = vmatpush1.bf16.msra.mxu0 %v829
    %847 = vmatprep.subr.bf16.mxu0 0
    %848 = vmatpush1.bf16.msra.mxu0 %v830
    %849 = vmatprep.subr.bf16.mxu0 0
    %850 = vmatpush1.bf16.msra.mxu0 %v831
    %851 = vmatprep.subr.bf16.mxu0 0
    %852 = vmatpush1.bf16.msra.mxu0 %v832
    %853 = vmatprep.subr.bf16.mxu0 0
    %854 = vmatpush1.bf16.msra.mxu0 %v833
    %855 = vmatprep.subr.bf16.mxu0 0
    %856 = vmatpush1.bf16.msra.mxu0 %v834
    %857 = vmatprep.subr.bf16.mxu0 0
    %858 = vmatpush1.bf16.msra.mxu0 %v835
    %859 = vmatprep.subr.bf16.mxu0 0
    %860 = vmatpush1.bf16.msra.mxu0 %v836
    %861 = vmatprep.subr.bf16.mxu0 0
    %862 = vmatpush1.bf16.msra.mxu0 0
    %863 = vmatprep.subr.bf16.mxu0 0
    %864 = vmatpush1.bf16.msra.mxu0 0
    %865 = vmatprep.subr.bf16.mxu0 0
    %866 = vmatpush1.bf16.msra.mxu0 0
    %867 = vmatprep.subr.bf16.mxu0 0
    %868 = vmatpush1.bf16.msra.mxu0 0
    %869 = vmatprep.subr.bf16.mxu0 0
    %870 = vmatpush1.bf16.msra.mxu0 0
    %871 = vmatprep.subr.bf16.mxu0 0
    %872 = vmatpush1.bf16.msra.mxu0 0
    %873 = vmatprep.subr.bf16.mxu0 0
    %874 = vmatpush1.bf16.msra.mxu0 0
    %875 = vmatprep.subr.bf16.mxu0 0
    %876 = vmatpush1.bf16.msra.mxu0 0
    %877 = vmatprep.mubr.bf16.mxu0 0
    %878 = vmatmul.mubr.bf16.gmra.mrb[0].mxu0 %v773
    %v879 = vpop.f32.mrb[0].mxu0
    %v880 = vadd.f32 %v795, %v879
    %v881 = vpop.f32.mrb[0].mxu0
    %v882 = vpop.f32.mrb[0].mxu0
    %v883 = vpop.f32.mrb[0].mxu0
    %884 = vdwg.mxu0
    %v885 = vmax.f32 %v880, 0.0
    %v886 = vpack.c.bf16 %v885, %v885
    %v887 = vld [vmem:[%s5] sm:$0xf]
    %v888 = vld [vmem:[%s5 + $0x4] sm:$0xf]
    %v889 = vld [vmem:[%s5 + $0x8] sm:$0xf]
    %v890 = vld [vmem:[%s5 + $0xc] sm:$0xf]
    %v891 = vld [vmem:[%s5 + $0x10] sm:$0xf]
    %v892 = vld [vmem:[%s5 + $0x14] sm:$0xf]
    %v893 = vld [vmem:[%s5 + $0x18] sm:$0xf]
    %v894 = vld [vmem:[%s5 + $0x1c] sm:$0xf]
    %v895 = vld [vmem:[%s6] sm:$0x1]
    %v897 = vlaneseq
    %v898 = vshrl.u32 %v897, 7
    %v899 = vsub.s32 0, %v898
    %v900 = vrot.slane %v895, %v899
    %v910 = vunpack.c.l.b16 %v887
    %v911 = vunpack.c.l.b16 %v888
    %v912 = vunpack.c.l.b16 %v889
    %v913 = vunpack.c.l.b16 %v890
    %v914 = vunpack.c.l.b16 %v891
    %v915 = vunpack.c.l.b16 %v892
    %v916 = vunpack.c.l.b16 %v893
    %v917 = vunpack.c.l.b16 %v894
    %v918 = vpack.c.b16 %v911, %v910
    %v919 = vpack.c.b16 %v913, %v912
    %v920 = vpack.c.b16 %v915, %v914
    %v921 = vpack.c.b16 %v917, %v916
    %vm926 = vcmask 523264
    %v928 = vsel %vm926, %v886, 0
    %930 = vmatprep.subr.bf16.mxu0 0
    %931 = vmatpush1.bf16.msra.mxu0 %v918
    %932 = vmatprep.subr.bf16.mxu0 0
    %933 = vmatpush1.bf16.msra.mxu0 %v919
    %934 = vmatprep.subr.bf16.mxu0 0
    %935 = vmatpush1.bf16.msra.mxu0 %v920
    %936 = vmatprep.subr.bf16.mxu0 0
    %937 = vmatpush1.bf16.msra.mxu0 %v921
    %938 = vmatprep.subr.bf16.mxu0 0
    %939 = vmatpush1.bf16.msra.mxu0 0
    %940 = vmatprep.subr.bf16.mxu0 0
    %941 = vmatpush1.bf16.msra.mxu0 0
    %942 = vmatprep.subr.bf16.mxu0 0
    %943 = vmatpush1.bf16.msra.mxu0 0
    %944 = vmatprep.subr.bf16.mxu0 0
    %945 = vmatpush1.bf16.msra.mxu0 0
    %946 = vmatprep.subr.bf16.mxu0 0
    %947 = vmatpush1.bf16.msra.mxu0 0
    %948 = vmatprep.subr.bf16.mxu0 0
    %949 = vmatpush1.bf16.msra.mxu0 0
    %950 = vmatprep.subr.bf16.mxu0 0
    %951 = vmatpush1.bf16.msra.mxu0 0
    %952 = vmatprep.subr.bf16.mxu0 0
    %953 = vmatpush1.bf16.msra.mxu0 0
    %954 = vmatprep.subr.bf16.mxu0 0
    %955 = vmatpush1.bf16.msra.mxu0 0
    %956 = vmatprep.subr.bf16.mxu0 0
    %957 = vmatpush1.bf16.msra.mxu0 0
    %958 = vmatprep.subr.bf16.mxu0 0
    %959 = vmatpush1.bf16.msra.mxu0 0
    %960 = vmatprep.subr.bf16.mxu0 0
    %961 = vmatpush1.bf16.msra.mxu0 0
    %962 = vmatprep.mubr.bf16.mxu0 0
    %963 = vmatmul.mubr.bf16.gmra.mrb[0].mxu0 %v928
    %v964 = vpop.f32.mrb[0].mxu0
    %v965 = vadd.f32 %v900, %v964
    %v966 = vpop.f32.mrb[0].mxu0
    %v967 = vpop.f32.mrb[0].mxu0
    %v968 = vpop.f32.mrb[0].mxu0
    %969 = vdwg.mxu0
    %v970 = vmax.f32 %v965, 0.0
    %v971 = vpack.c.bf16 %v970, %v970
    %v972 = vld [vmem:[%s7] sm:$0xf]
    %v973 = vld [vmem:[%s7 + $0x4] sm:$0xf]
    %v974 = vld [vmem:[%s7 + $0x8] sm:$0xf]
    %v975 = vld [vmem:[%s7 + $0xc] sm:$0xf]
    %v976 = vld [vmem:[%s8] sm:$0x1]
    %v978 = vlaneseq
    %v979 = vshrl.u32 %v978, 7
    %v980 = vsub.s32 0, %v979
    %v981 = vrot.slane %v976, %v980
    %v987 = vunpack.c.l.b16 %v972
    %v988 = vunpack.c.l.b16 %v973
    %v989 = vunpack.c.l.b16 %v974
    %v990 = vunpack.c.l.b16 %v975
    %v991 = vpack.c.b16 %v988, %v987
    %v992 = vpack.c.b16 %v990, %v989
    %vm995 = vcmask 261120
    %v997 = vsel %vm995, %v971, 0
    %999 = vmatprep.subr.bf16.mxu0 0
    %1000 = vmatpush1.bf16.msra.mxu0 %v991
    %1001 = vmatprep.subr.bf16.mxu0 0
    %1002 = vmatpush1.bf16.msra.mxu0 %v992
    %1003 = vmatprep.subr.bf16.mxu0 0
    %1004 = vmatpush1.bf16.msra.mxu0 0
    %1005 = vmatprep.subr.bf16.mxu0 0
    %1006 = vmatpush1.bf16.msra.mxu0 0
    %1007 = vmatprep.subr.bf16.mxu0 0
    %1008 = vmatpush1.bf16.msra.mxu0 0
    %1009 = vmatprep.subr.bf16.mxu0 0
    %1010 = vmatpush1.bf16.msra.mxu0 0
    %1011 = vmatprep.subr.bf16.mxu0 0
    %1012 = vmatpush1.bf16.msra.mxu0 0
    %1013 = vmatprep.subr.bf16.mxu0 0
    %1014 = vmatpush1.bf16.msra.mxu0 0
    %1015 = vmatprep.subr.bf16.mxu0 0
    %1016 = vmatpush1.bf16.msra.mxu0 0
    %1017 = vmatprep.subr.bf16.mxu0 0
    %1018 = vmatpush1.bf16.msra.mxu0 0
    %1019 = vmatprep.subr.bf16.mxu0 0
    %1020 = vmatpush1.bf16.msra.mxu0 0
    %1021 = vmatprep.subr.bf16.mxu0 0
    %1022 = vmatpush1.bf16.msra.mxu0 0
    %1023 = vmatprep.subr.bf16.mxu0 0
    %1024 = vmatpush1.bf16.msra.mxu0 0
    %1025 = vmatprep.subr.bf16.mxu0 0
    %1026 = vmatpush1.bf16.msra.mxu0 0
    %1027 = vmatprep.subr.bf16.mxu0 0
    %1028 = vmatpush1.bf16.msra.mxu0 0
    %1029 = vmatprep.subr.bf16.mxu0 0
    %1030 = vmatpush1.bf16.msra.mxu0 0
    %1031 = vmatprep.mubr.bf16.mxu0 0
    %1032 = vmatmul.mubr.bf16.gmra.mrb[0].mxu0 %v997
    %v1033 = vpop.f32.mrb[0].mxu0
    %v1034 = vadd.f32 %v981, %v1033
    %v1035 = vpop.f32.mrb[0].mxu0
    %v1036 = vpop.f32.mrb[0].mxu0
    %v1037 = vpop.f32.mrb[0].mxu0
    %1038 = vdwg.mxu0
    %vm1039 = vcmask 9216
    %1040 = vst.msk [vmem:[#allocation2] sm:$0x3] %vm1039, %v1034
    // Predicated region
    $region38: #{cnn_forward.7} parent=1 // pred_check
      _
    $region39: #{cnn_forward.7} parent=1 // pred_check_branch
      %1042 = sbr.rel (0) target = $region41
    $region40: #{cnn_forward.7} parent=1 // pred_region
      %s1044 = ssub.s32 32, 32
      %1045 = vsyncadd [#allocation3], %s1044
      %s1047 = sshll.u32 [#allocation2], 4
      %s1048 = int_to_ptr.vmem [resolvable:$true] %s1047
      %1050 = dma.vmem_to_hbm [thread:$0]  %s1048, 32, %s9, [#allocation3]
    $region41: #{cnn_forward.7} parent=1 // pred_fallthru
      _
    // Predicated region
    $region42: #{cnn_forward.7} parent=1 // pred_check
      _
    $region43: #{cnn_forward.7} parent=1 // pred_check_branch
      %1052 = sbr.rel (0) target = $region45
    $region44: #{cnn_forward.7} parent=1 // pred_region
      %1053 = dma.done [#allocation3], 32
    $region45: #{cnn_forward.7} parent=1 // pred_fallthru
      _
    %1054 = vsyncpa [#allocation3], 1

// kernel: cnn_forward.6
$region0: #{cnn_forward.6}
  #allocation0 [shape = 'u32[]', space=smem, size = 0x4, offset = 0x4, fixed_abs, tag = 'smem constant byte address 0x4 - core index']
  #allocation1 [shape = 'u32[144,128]{1,0:T(1,128)}', space=vmem, size = 0x12000, scoped, tag = 'internal scratch']
  %s0 = inlined_call_operand.vmem [shape: bf16[8,512], index: 0, kind: input, shape index: {}]
  %s1 = inlined_call_operand.vmem [shape: bf16[8,512], index: 1, kind: input, shape index: {}]
  %s2 = inlined_call_operand.vmem [shape: bf16[8,512], index: 2, kind: input, shape index: {}]
  %s3 = inlined_call_operand.vmem [shape: bf16[8,512], index: 3, kind: input, shape index: {}]
  %s4 = inlined_call_operand.vmem [shape: bf16[512,256], index: 4, kind: input, shape index: {}]
  %s5 = inlined_call_operand.vmem [shape: f32[1,256], index: 5, kind: input, shape index: {}]
  %s6 = inlined_call_operand.vmem [shape: f32[1,256], index: 6, kind: input, shape index: {}]
  %s7 = inlined_call_operand.vmem [shape: f32[1,256], index: 7, kind: input, shape index: {}]
  %s8 = inlined_call_operand.vmem [shape: bf16[8,256], index: 8, kind: output, shape index: {}]
  %s9 = sld [smem:[#allocation0]]
  $region42: #{cnn_forward.6} parent=0
    _
  %s11 = ssub.s32 1, %s9
  %s12 = scalar_select 0, %s11, %s9
  // Predicated region
  $region2: #{cnn_forward.6} parent=0 // pred_check
    _
  $region3: #{cnn_forward.6} parent=0 // pred_check_branch
    %14 = sbr.rel (0) target = $region5
  $region4: #{cnn_forward.6} parent=0 // pred_region
    _
  $region5: #{cnn_forward.6} parent=0 // pred_fallthru
    _
  // Predicated region
  $region6: #{cnn_forward.6} parent=0 // pred_check
    _
  $region7: #{cnn_forward.6} parent=0 // pred_check_branch
    %16 = sbr.rel (0) target = $region9
  $region8: #{cnn_forward.6} parent=0 // pred_region
    _
  $region9: #{cnn_forward.6} parent=0 // pred_fallthru
    _
  // Predicated region
  $region10: #{cnn_forward.6} parent=0 // pred_check
    _
  $region11: #{cnn_forward.6} parent=0 // pred_check_branch
    %18 = sbr.rel (0) target = $region13
  $region12: #{cnn_forward.6} parent=0 // pred_region
    _
  $region13: #{cnn_forward.6} parent=0 // pred_fallthru
    _
  // Predicated region
  $region14: #{cnn_forward.6} parent=0 // pred_check
    _
  $region15: #{cnn_forward.6} parent=0 // pred_check_branch
    %20 = sbr.rel (0) target = $region17
  $region16: #{cnn_forward.6} parent=0 // pred_region
    _
  $region17: #{cnn_forward.6} parent=0 // pred_fallthru
    _
  // Predicated region
  $region18: #{cnn_forward.6} parent=0 // pred_check
    _
  $region19: #{cnn_forward.6} parent=0 // pred_check_branch
    %22 = sbr.rel (0) target = $region21
  $region20: #{cnn_forward.6} parent=0 // pred_region
    _
  $region21: #{cnn_forward.6} parent=0 // pred_fallthru
    _
  // Predicated region
  $region22: #{cnn_forward.6} parent=0 // pred_check
    _
  $region23: #{cnn_forward.6} parent=0 // pred_check_branch
    %24 = sbr.rel (0) target = $region25
  $region24: #{cnn_forward.6} parent=0 // pred_region
    _
  $region25: #{cnn_forward.6} parent=0 // pred_fallthru
    _
  // Predicated region
  $region26: #{cnn_forward.6} parent=0 // pred_check
    _
  $region27: #{cnn_forward.6} parent=0 // pred_check_branch
    %26 = sbr.rel (0) target = $region29
  $region28: #{cnn_forward.6} parent=0 // pred_region
    _
  $region29: #{cnn_forward.6} parent=0 // pred_fallthru
    _
  // Predicated region
  $region30: #{cnn_forward.6} parent=0 // pred_check
    _
  $region31: #{cnn_forward.6} parent=0 // pred_check_branch
    %28 = sbr.rel (0) target = $region33
  $region32: #{cnn_forward.6} parent=0 // pred_region
    _
  $region33: #{cnn_forward.6} parent=0 // pred_fallthru
    _
  %v29 = vld [vmem:[%s4] sm:$0xff]
  %v30 = vld [vmem:[%s4 + $0x8] sm:$0xff]
  %v31 = vld [vmem:[%s4 + $0x10] sm:$0xff]
  %v32 = vld [vmem:[%s4 + $0x18] sm:$0xff]
  %v33 = vld [vmem:[%s4 + $0x20] sm:$0xff]
  %v34 = vld [vmem:[%s4 + $0x28] sm:$0xff]
  %v35 = vld [vmem:[%s4 + $0x30] sm:$0xff]
  %v36 = vld [vmem:[%s4 + $0x38] sm:$0xff]
  %v37 = vld [vmem:[%s4 + $0x40] sm:$0xff]
  %v38 = vld [vmem:[%s4 + $0x48] sm:$0xff]
  %v39 = vld [vmem:[%s4 + $0x50] sm:$0xff]
  %v40 = vld [vmem:[%s4 + $0x58] sm:$0xff]
  %v41 = vld [vmem:[%s4 + $0x60] sm:$0xff]
  %v42 = vld [vmem:[%s4 + $0x68] sm:$0xff]
  %v43 = vld [vmem:[%s4 + $0x70] sm:$0xff]
  %v44 = vld [vmem:[%s4 + $0x78] sm:$0xff]
  %v45 = vld [vmem:[%s4 + $0x80] sm:$0xff]
  %v46 = vld [vmem:[%s4 + $0x88] sm:$0xff]
  %v47 = vld [vmem:[%s4 + $0x90] sm:$0xff]
  %v48 = vld [vmem:[%s4 + $0x98] sm:$0xff]
  %v49 = vld [vmem:[%s4 + $0xa0] sm:$0xff]
  %v50 = vld [vmem:[%s4 + $0xa8] sm:$0xff]
  %v51 = vld [vmem:[%s4 + $0xb0] sm:$0xff]
  %v52 = vld [vmem:[%s4 + $0xb8] sm:$0xff]
  %v53 = vld [vmem:[%s4 + $0xc0] sm:$0xff]
  %v54 = vld [vmem:[%s4 + $0xc8] sm:$0xff]
  %v55 = vld [vmem:[%s4 + $0xd0] sm:$0xff]
  %v56 = vld [vmem:[%s4 + $0xd8] sm:$0xff]
  %v57 = vld [vmem:[%s4 + $0xe0] sm:$0xff]
  %v58 = vld [vmem:[%s4 + $0xe8] sm:$0xff]
  %v59 = vld [vmem:[%s4 + $0xf0] sm:$0xff]
  %v60 = vld [vmem:[%s4 + $0xf8] sm:$0xff]
  %v61 = vld [vmem:[%s4 + $0x100] sm:$0xff]
  %v62 = vld [vmem:[%s4 + $0x108] sm:$0xff]
  %v63 = vld [vmem:[%s4 + $0x110] sm:$0xff]
  %v64 = vld [vmem:[%s4 + $0x118] sm:$0xff]
  %v65 = vld [vmem:[%s4 + $0x120] sm:$0xff]
  %v66 = vld [vmem:[%s4 + $0x128] sm:$0xff]
  %v67 = vld [vmem:[%s4 + $0x130] sm:$0xff]
  %v68 = vld [vmem:[%s4 + $0x138] sm:$0xff]
  %v69 = vld [vmem:[%s4 + $0x140] sm:$0xff]
  %v70 = vld [vmem:[%s4 + $0x148] sm:$0xff]
  %v71 = vld [vmem:[%s4 + $0x150] sm:$0xff]
  %v72 = vld [vmem:[%s4 + $0x158] sm:$0xff]
  %v73 = vld [vmem:[%s4 + $0x160] sm:$0xff]
  %v74 = vld [vmem:[%s4 + $0x168] sm:$0xff]
  %v75 = vld [vmem:[%s4 + $0x170] sm:$0xff]
  %v76 = vld [vmem:[%s4 + $0x178] sm:$0xff]
  %v77 = vld [vmem:[%s4 + $0x180] sm:$0xff]
  %v78 = vld [vmem:[%s4 + $0x188] sm:$0xff]
  %v79 = vld [vmem:[%s4 + $0x190] sm:$0xff]
  %v80 = vld [vmem:[%s4 + $0x198] sm:$0xff]
  %v81 = vld [vmem:[%s4 + $0x1a0] sm:$0xff]
  %v82 = vld [vmem:[%s4 + $0x1a8] sm:$0xff]
  %v83 = vld [vmem:[%s4 + $0x1b0] sm:$0xff]
  %v84 = vld [vmem:[%s4 + $0x1b8] sm:$0xff]
  %v85 = vld [vmem:[%s4 + $0x1c0] sm:$0xff]
  %v86 = vld [vmem:[%s4 + $0x1c8] sm:$0xff]
  %v87 = vld [vmem:[%s4 + $0x1d0] sm:$0xff]
  %v88 = vld [vmem:[%s4 + $0x1d8] sm:$0xff]
  %v89 = vld [vmem:[%s4 + $0x1e0] sm:$0xff]
  %v90 = vld [vmem:[%s4 + $0x1e8] sm:$0xff]
  %v91 = vld [vmem:[%s4 + $0x1f0] sm:$0xff]
  %v92 = vld [vmem:[%s4 + $0x1f8] sm:$0xff]
  %v93 = vld [vmem:[%s5] sm:$0x3]
  %v94 = vld [vmem:[%s0] sm:$0xff]
  %v95 = vld [vmem:[%s0 + $0x8] sm:$0xff]
  %v97 = vlaneseq
  %v98 = vshrl.u32 %v97, 7
  %v99 = vsub.s32 0, %v98
  %v100 = vrot.slane %v93, %v99
  %v101 = vlaneseq
  %v102 = vshrl.u32 %v101, 7
  %v103 = vsub.s32 1, %v102
  %v104 = vrot.slane %v93, %v103
  %v109 = vunpack.c.l.b16 %v94
  %v110 = vunpack.c.h.b16 %v94
  %v111 = vunpack.c.l.b16 %v95
  %v112 = vunpack.c.h.b16 %v95
  %v113 = vpack.c.b16 %v109, %v109
  %v114 = vpack.c.b16 %v110, %v110
  %v115 = vpack.c.b16 %v111, %v111
  %v116 = vpack.c.b16 %v112, %v112
  %v185 = vunpack.c.l.b16 %v29
  %v186 = vunpack.c.h.b16 %v29
  %v187 = vunpack.c.l.b16 %v30
  %v188 = vunpack.c.h.b16 %v30
  %v189 = vunpack.c.l.b16 %v31
  %v190 = vunpack.c.h.b16 %v31
  %v191 = vunpack.c.l.b16 %v32
  %v192 = vunpack.c.h.b16 %v32
  %v193 = vunpack.c.l.b16 %v33
  %v194 = vunpack.c.h.b16 %v33
  %v195 = vunpack.c.l.b16 %v34
  %v196 = vunpack.c.h.b16 %v34
  %v197 = vunpack.c.l.b16 %v35
  %v198 = vunpack.c.h.b16 %v35
  %v199 = vunpack.c.l.b16 %v36
  %v200 = vunpack.c.h.b16 %v36
  %v201 = vunpack.c.l.b16 %v37
  %v202 = vunpack.c.h.b16 %v37
  %v203 = vunpack.c.l.b16 %v38
  %v204 = vunpack.c.h.b16 %v38
  %v205 = vunpack.c.l.b16 %v39
  %v206 = vunpack.c.h.b16 %v39
  %v207 = vunpack.c.l.b16 %v40
  %v208 = vunpack.c.h.b16 %v40
  %v209 = vunpack.c.l.b16 %v41
  %v210 = vunpack.c.h.b16 %v41
  %v211 = vunpack.c.l.b16 %v42
  %v212 = vunpack.c.h.b16 %v42
  %v213 = vunpack.c.l.b16 %v43
  %v214 = vunpack.c.h.b16 %v43
  %v215 = vunpack.c.l.b16 %v44
  %v216 = vunpack.c.h.b16 %v44
  %v217 = vunpack.c.l.b16 %v45
  %v218 = vunpack.c.h.b16 %v45
  %v219 = vunpack.c.l.b16 %v46
  %v220 = vunpack.c.h.b16 %v46
  %v221 = vunpack.c.l.b16 %v47
  %v222 = vunpack.c.h.b16 %v47
  %v223 = vunpack.c.l.b16 %v48
  %v224 = vunpack.c.h.b16 %v48
  %v225 = vunpack.c.l.b16 %v49
  %v226 = vunpack.c.h.b16 %v49
  %v227 = vunpack.c.l.b16 %v50
  %v228 = vunpack.c.h.b16 %v50
  %v229 = vunpack.c.l.b16 %v51
  %v230 = vunpack.c.h.b16 %v51
  %v231 = vunpack.c.l.b16 %v52
  %v232 = vunpack.c.h.b16 %v52
  %v233 = vunpack.c.l.b16 %v53
  %v234 = vunpack.c.h.b16 %v53
  %v235 = vunpack.c.l.b16 %v54
  %v236 = vunpack.c.h.b16 %v54
  %v237 = vunpack.c.l.b16 %v55
  %v238 = vunpack.c.h.b16 %v55
  %v239 = vunpack.c.l.b16 %v56
  %v240 = vunpack.c.h.b16 %v56
  %v241 = vunpack.c.l.b16 %v57
  %v242 = vunpack.c.h.b16 %v57
  %v243 = vunpack.c.l.b16 %v58
  %v244 = vunpack.c.h.b16 %v58
  %v245 = vunpack.c.l.b16 %v59
  %v246 = vunpack.c.h.b16 %v59
  %v247 = vunpack.c.l.b16 %v60
  %v248 = vunpack.c.h.b16 %v60
  %v249 = vunpack.c.l.b16 %v61
  %v250 = vunpack.c.h.b16 %v61
  %v251 = vunpack.c.l.b16 %v62
  %v252 = vunpack.c.h.b16 %v62
  %v253 = vunpack.c.l.b16 %v63
  %v254 = vunpack.c.h.b16 %v63
  %v255 = vunpack.c.l.b16 %v64
  %v256 = vunpack.c.h.b16 %v64
  %v257 = vunpack.c.l.b16 %v65
  %v258 = vunpack.c.h.b16 %v65
  %v259 = vunpack.c.l.b16 %v66
  %v260 = vunpack.c.h.b16 %v66
  %v261 = vunpack.c.l.b16 %v67
  %v262 = vunpack.c.h.b16 %v67
  %v263 = vunpack.c.l.b16 %v68
  %v264 = vunpack.c.h.b16 %v68
  %v265 = vunpack.c.l.b16 %v69
  %v266 = vunpack.c.h.b16 %v69
  %v267 = vunpack.c.l.b16 %v70
  %v268 = vunpack.c.h.b16 %v70
  %v269 = vunpack.c.l.b16 %v71
  %v270 = vunpack.c.h.b16 %v71
  %v271 = vunpack.c.l.b16 %v72
  %v272 = vunpack.c.h.b16 %v72
  %v273 = vunpack.c.l.b16 %v73
  %v274 = vunpack.c.h.b16 %v73
  %v275 = vunpack.c.l.b16 %v74
  %v276 = vunpack.c.h.b16 %v74
  %v277 = vunpack.c.l.b16 %v75
  %v278 = vunpack.c.h.b16 %v75
  %v279 = vunpack.c.l.b16 %v76
  %v280 = vunpack.c.h.b16 %v76
  %v281 = vunpack.c.l.b16 %v77
  %v282 = vunpack.c.h.b16 %v77
  %v283 = vunpack.c.l.b16 %v78
  %v284 = vunpack.c.h.b16 %v78
  %v285 = vunpack.c.l.b16 %v79
  %v286 = vunpack.c.h.b16 %v79
  %v287 = vunpack.c.l.b16 %v80
  %v288 = vunpack.c.h.b16 %v80
  %v289 = vunpack.c.l.b16 %v81
  %v290 = vunpack.c.h.b16 %v81
  %v291 = vunpack.c.l.b16 %v82
  %v292 = vunpack.c.h.b16 %v82
  %v293 = vunpack.c.l.b16 %v83
  %v294 = vunpack.c.h.b16 %v83
  %v295 = vunpack.c.l.b16 %v84
  %v296 = vunpack.c.h.b16 %v84
  %v297 = vunpack.c.l.b16 %v85
  %v298 = vunpack.c.h.b16 %v85
  %v299 = vunpack.c.l.b16 %v86
  %v300 = vunpack.c.h.b16 %v86
  %v301 = vunpack.c.l.b16 %v87
  %v302 = vunpack.c.h.b16 %v87
  %v303 = vunpack.c.l.b16 %v88
  %v304 = vunpack.c.h.b16 %v88
  %v305 = vunpack.c.l.b16 %v89
  %v306 = vunpack.c.h.b16 %v89
  %v307 = vunpack.c.l.b16 %v90
  %v308 = vunpack.c.h.b16 %v90
  %v309 = vunpack.c.l.b16 %v91
  %v310 = vunpack.c.h.b16 %v91
  %v311 = vunpack.c.l.b16 %v92
  %v312 = vunpack.c.h.b16 %v92
  %v313 = vpack.c.b16 %v187, %v185
  %v314 = vpack.c.b16 %v188, %v186
  %v315 = vpack.c.b16 %v191, %v189
  %v316 = vpack.c.b16 %v192, %v190
  %v317 = vpack.c.b16 %v195, %v193
  %v318 = vpack.c.b16 %v196, %v194
  %v319 = vpack.c.b16 %v199, %v197
  %v320 = vpack.c.b16 %v200, %v198
  %v321 = vpack.c.b16 %v203, %v201
  %v322 = vpack.c.b16 %v204, %v202
  %v323 = vpack.c.b16 %v207, %v205
  %v324 = vpack.c.b16 %v208, %v206
  %v325 = vpack.c.b16 %v211, %v209
  %v326 = vpack.c.b16 %v212, %v210
  %v327 = vpack.c.b16 %v215, %v213
  %v328 = vpack.c.b16 %v216, %v214
  %v329 = vpack.c.b16 %v219, %v217
  %v330 = vpack.c.b16 %v220, %v218
  %v331 = vpack.c.b16 %v223, %v221
  %v332 = vpack.c.b16 %v224, %v222
  %v333 = vpack.c.b16 %v227, %v225
  %v334 = vpack.c.b16 %v228, %v226
  %v335 = vpack.c.b16 %v231, %v229
  %v336 = vpack.c.b16 %v232, %v230
  %v337 = vpack.c.b16 %v235, %v233
  %v338 = vpack.c.b16 %v236, %v234
  %v339 = vpack.c.b16 %v239, %v237
  %v340 = vpack.c.b16 %v240, %v238
  %v341 = vpack.c.b16 %v243, %v241
  %v342 = vpack.c.b16 %v244, %v242
  %v343 = vpack.c.b16 %v247, %v245
  %v344 = vpack.c.b16 %v248, %v246
  %v345 = vpack.c.b16 %v251, %v249
  %v346 = vpack.c.b16 %v252, %v250
  %v347 = vpack.c.b16 %v255, %v253
  %v348 = vpack.c.b16 %v256, %v254
  %v349 = vpack.c.b16 %v259, %v257
  %v350 = vpack.c.b16 %v260, %v258
  %v351 = vpack.c.b16 %v263, %v261
  %v352 = vpack.c.b16 %v264, %v262
  %v353 = vpack.c.b16 %v267, %v265
  %v354 = vpack.c.b16 %v268, %v266
  %v355 = vpack.c.b16 %v271, %v269
  %v356 = vpack.c.b16 %v272, %v270
  %v357 = vpack.c.b16 %v275, %v273
  %v358 = vpack.c.b16 %v276, %v274
  %v359 = vpack.c.b16 %v279, %v277
  %v360 = vpack.c.b16 %v280, %v278
  %v361 = vpack.c.b16 %v283, %v281
  %v362 = vpack.c.b16 %v284, %v282
  %v363 = vpack.c.b16 %v287, %v285
  %v364 = vpack.c.b16 %v288, %v286
  %v365 = vpack.c.b16 %v291, %v289
  %v366 = vpack.c.b16 %v292, %v290
  %v367 = vpack.c.b16 %v295, %v293
  %v368 = vpack.c.b16 %v296, %v294
  %v369 = vpack.c.b16 %v299, %v297
  %v370 = vpack.c.b16 %v300, %v298
  %v371 = vpack.c.b16 %v303, %v301
  %v372 = vpack.c.b16 %v304, %v302
  %v373 = vpack.c.b16 %v307, %v305
  %v374 = vpack.c.b16 %v308, %v306
  %v375 = vpack.c.b16 %v311, %v309
  %v376 = vpack.c.b16 %v312, %v310
  %441 = vmatprep.subr.bf16.mxu0 %v314
  %442 = vmatpush1.bf16.msra.mxu0 %v313
  %443 = vmatprep.subr.bf16.mxu0 %v316
  %444 = vmatpush1.bf16.msra.mxu0 %v315
  %445 = vmatprep.subr.bf16.mxu0 %v318
  %446 = vmatpush1.bf16.msra.mxu0 %v317
  %447 = vmatprep.subr.bf16.mxu0 %v320
  %448 = vmatpush1.bf16.msra.mxu0 %v319
  %449 = vmatprep.subr.bf16.mxu0 %v322
  %450 = vmatpush1.bf16.msra.mxu0 %v321
  %451 = vmatprep.subr.bf16.mxu0 %v324
  %452 = vmatpush1.bf16.msra.mxu0 %v323
  %453 = vmatprep.subr.bf16.mxu0 %v326
  %454 = vmatpush1.bf16.msra.mxu0 %v325
  %455 = vmatprep.subr.bf16.mxu0 %v328
  %456 = vmatpush1.bf16.msra.mxu0 %v327
  %457 = vmatprep.subr.bf16.mxu0 %v330
  %458 = vmatpush1.bf16.msra.mxu0 %v329
  %459 = vmatprep.subr.bf16.mxu0 %v332
  %460 = vmatpush1.bf16.msra.mxu0 %v331
  %461 = vmatprep.subr.bf16.mxu0 %v334
  %462 = vmatpush1.bf16.msra.mxu0 %v333
  %463 = vmatprep.subr.bf16.mxu0 %v336
  %464 = vmatpush1.bf16.msra.mxu0 %v335
  %465 = vmatprep.subr.bf16.mxu0 %v338
  %466 = vmatpush1.bf16.msra.mxu0 %v337
  %467 = vmatprep.subr.bf16.mxu0 %v340
  %468 = vmatpush1.bf16.msra.mxu0 %v339
  %469 = vmatprep.subr.bf16.mxu0 %v342
  %470 = vmatpush1.bf16.msra.mxu0 %v341
  %471 = vmatprep.subr.bf16.mxu0 %v344
  %472 = vmatpush1.bf16.msra.mxu0 %v343
  %473 = vmatprep.mubr.bf16.mxu0 %v114
  %474 = vmatmul.mubr.bf16.gmra.mrb[0].mxu0 %v113
  %v475 = vpop.f32.mrb[0].mxu0
  %v476 = vadd.f32 %v100, %v475
  %v477 = vpop.f32.mrb[0].mxu0
  %v478 = vadd.f32 %v104, %v477
  %v479 = vpop.f32.mrb[0].mxu0
  %v480 = vpop.f32.mrb[0].mxu0
  %481 = vdwg.mxu0
  %482 = vmatprep.subr.bf16.mxu0 %v346
  %483 = vmatpush1.bf16.msra.mxu0 %v345
  %484 = vmatprep.subr.bf16.mxu0 %v348
  %485 = vmatpush1.bf16.msra.mxu0 %v347
  %486 = vmatprep.subr.bf16.mxu0 %v350
  %487 = vmatpush1.bf16.msra.mxu0 %v349
  %488 = vmatprep.subr.bf16.mxu0 %v352
  %489 = vmatpush1.bf16.msra.mxu0 %v351
  %490 = vmatprep.subr.bf16.mxu0 %v354
  %491 = vmatpush1.bf16.msra.mxu0 %v353
  %492 = vmatprep.subr.bf16.mxu0 %v356
  %493 = vmatpush1.bf16.msra.mxu0 %v355
  %494 = vmatprep.subr.bf16.mxu0 %v358
  %495 = vmatpush1.bf16.msra.mxu0 %v357
  %496 = vmatprep.subr.bf16.mxu0 %v360
  %497 = vmatpush1.bf16.msra.mxu0 %v359
  %498 = vmatprep.subr.bf16.mxu0 %v362
  %499 = vmatpush1.bf16.msra.mxu0 %v361
  %500 = vmatprep.subr.bf16.mxu0 %v364
  %501 = vmatpush1.bf16.msra.mxu0 %v363
  %502 = vmatprep.subr.bf16.mxu0 %v366
  %503 = vmatpush1.bf16.msra.mxu0 %v365
  %504 = vmatprep.subr.bf16.mxu0 %v368
  %505 = vmatpush1.bf16.msra.mxu0 %v367
  %506 = vmatprep.subr.bf16.mxu0 %v370
  %507 = vmatpush1.bf16.msra.mxu0 %v369
  %508 = vmatprep.subr.bf16.mxu0 %v372
  %509 = vmatpush1.bf16.msra.mxu0 %v371
  %510 = vmatprep.subr.bf16.mxu0 %v374
  %511 = vmatpush1.bf16.msra.mxu0 %v373
  %512 = vmatprep.subr.bf16.mxu0 %v376
  %513 = vmatpush1.bf16.msra.mxu0 %v375
  %514 = vmatprep.mubr.bf16.mxu0 %v116
  %515 = vmatmul.mubr.bf16.gmra.mrb[0].mxu0 %v115
  %v516 = vpop.f32.mrb[0].mxu0
  %v517 = vadd.f32 %v476, %v516
  %v518 = vpop.f32.mrb[0].mxu0
  %v519 = vadd.f32 %v478, %v518
  %v520 = vpop.f32.mrb[0].mxu0
  %v521 = vpop.f32.mrb[0].mxu0
  %522 = vdwg.mxu0
  %v523 = vmax.f32 %v517, 0.0
  %v524 = vmax.f32 %v519, 0.0
  %v525 = vld [vmem:[%s1] sm:$0xff]
  %v526 = vld [vmem:[%s1 + $0x8] sm:$0xff]
  %v529 = vunpack.c.l.b16 %v525
  %v530 = vunpack.c.h.b16 %v525
  %v531 = vunpack.c.l.b16 %v526
  %v532 = vunpack.c.h.b16 %v526
  %v533 = vpack.c.b16 %v529, %v529
  %v534 = vpack.c.b16 %v530, %v530
  %v535 = vpack.c.b16 %v531, %v531
  %v536 = vpack.c.b16 %v532, %v532
  %541 = vmatprep.subr.bf16.mxu0 %v314
  %542 = vmatpush1.bf16.msra.mxu0 %v313
  %543 = vmatprep.subr.bf16.mxu0 %v316
  %544 = vmatpush1.bf16.msra.mxu0 %v315
  %545 = vmatprep.subr.bf16.mxu0 %v318
  %546 = vmatpush1.bf16.msra.mxu0 %v317
  %547 = vmatprep.subr.bf16.mxu0 %v320
  %548 = vmatpush1.bf16.msra.mxu0 %v319
  %549 = vmatprep.subr.bf16.mxu0 %v322
  %550 = vmatpush1.bf16.msra.mxu0 %v321
  %551 = vmatprep.subr.bf16.mxu0 %v324
  %552 = vmatpush1.bf16.msra.mxu0 %v323
  %553 = vmatprep.subr.bf16.mxu0 %v326
  %554 = vmatpush1.bf16.msra.mxu0 %v325
  %555 = vmatprep.subr.bf16.mxu0 %v328
  %556 = vmatpush1.bf16.msra.mxu0 %v327
  %557 = vmatprep.subr.bf16.mxu0 %v330
  %558 = vmatpush1.bf16.msra.mxu0 %v329
  %559 = vmatprep.subr.bf16.mxu0 %v332
  %560 = vmatpush1.bf16.msra.mxu0 %v331
  %561 = vmatprep.subr.bf16.mxu0 %v334
  %562 = vmatpush1.bf16.msra.mxu0 %v333
  %563 = vmatprep.subr.bf16.mxu0 %v336
  %564 = vmatpush1.bf16.msra.mxu0 %v335
  %565 = vmatprep.subr.bf16.mxu0 %v338
  %566 = vmatpush1.bf16.msra.mxu0 %v337
  %567 = vmatprep.subr.bf16.mxu0 %v340
  %568 = vmatpush1.bf16.msra.mxu0 %v339
  %569 = vmatprep.subr.bf16.mxu0 %v342
  %570 = vmatpush1.bf16.msra.mxu0 %v341
  %571 = vmatprep.subr.bf16.mxu0 %v344
  %572 = vmatpush1.bf16.msra.mxu0 %v343
  %573 = vmatprep.mubr.bf16.mxu0 %v534
  %574 = vmatmul.mubr.bf16.gmra.mrb[0].mxu0 %v533
  %v575 = vpop.f32.mrb[0].mxu0
  %v576 = vadd.f32 %v100, %v575
  %v577 = vpop.f32.mrb[0].mxu0
  %v578 = vadd.f32 %v104, %v577
  %v579 = vpop.f32.mrb[0].mxu0
  %v580 = vpop.f32.mrb[0].mxu0
  %581 = vdwg.mxu0
  %582 = vmatprep.subr.bf16.mxu0 %v346
  %583 = vmatpush1.bf16.msra.mxu0 %v345
  %584 = vmatprep.subr.bf16.mxu0 %v348
  %585 = vmatpush1.bf16.msra.mxu0 %v347
  %586 = vmatprep.subr.bf16.mxu0 %v350
  %587 = vmatpush1.bf16.msra.mxu0 %v349
  %588 = vmatprep.subr.bf16.mxu0 %v352
  %589 = vmatpush1.bf16.msra.mxu0 %v351
  %590 = vmatprep.subr.bf16.mxu0 %v354
  %591 = vmatpush1.bf16.msra.mxu0 %v353
  %592 = vmatprep.subr.bf16.mxu0 %v356
  %593 = vmatpush1.bf16.msra.mxu0 %v355
  %594 = vmatprep.subr.bf16.mxu0 %v358
  %595 = vmatpush1.bf16.msra.mxu0 %v357
  %596 = vmatprep.subr.bf16.mxu0 %v360
  %597 = vmatpush1.bf16.msra.mxu0 %v359
  %598 = vmatprep.subr.bf16.mxu0 %v362
  %599 = vmatpush1.bf16.msra.mxu0 %v361
  %600 = vmatprep.subr.bf16.mxu0 %v364
  %601 = vmatpush1.bf16.msra.mxu0 %v363
  %602 = vmatprep.subr.bf16.mxu0 %v366
  %603 = vmatpush1.bf16.msra.mxu0 %v365
  %604 = vmatprep.subr.bf16.mxu0 %v368
  %605 = vmatpush1.bf16.msra.mxu0 %v367
  %606 = vmatprep.subr.bf16.mxu0 %v370
  %607 = vmatpush1.bf16.msra.mxu0 %v369
  %608 = vmatprep.subr.bf16.mxu0 %v372
  %609 = vmatpush1.bf16.msra.mxu0 %v371
  %610 = vmatprep.subr.bf16.mxu0 %v374
  %611 = vmatpush1.bf16.msra.mxu0 %v373
  %612 = vmatprep.subr.bf16.mxu0 %v376
  %613 = vmatpush1.bf16.msra.mxu0 %v375
  %614 = vmatprep.mubr.bf16.mxu0 %v536
  %615 = vmatmul.mubr.bf16.gmra.mrb[0].mxu0 %v535
  %v616 = vpop.f32.mrb[0].mxu0
  %v617 = vadd.f32 %v576, %v616
  %v618 = vpop.f32.mrb[0].mxu0
  %v619 = vadd.f32 %v578, %v618
  %v620 = vpop.f32.mrb[0].mxu0
  %v621 = vpop.f32.mrb[0].mxu0
  %622 = vdwg.mxu0
  %v623 = vmax.f32 %v617, 0.0
  %v624 = vmax.f32 %v619, 0.0
  %v625 = vmax.f32 %v523, %v623
  %v626 = vmax.f32 %v524, %v624
  %v627 = vld [vmem:[%s2] sm:$0xff]
  %v628 = vld [vmem:[%s2 + $0x8] sm:$0xff]
  %v631 = vunpack.c.l.b16 %v627
  %v632 = vunpack.c.h.b16 %v627
  %v633 = vunpack.c.l.b16 %v628
  %v634 = vunpack.c.h.b16 %v628
  %v635 = vpack.c.b16 %v631, %v631
  %v636 = vpack.c.b16 %v632, %v632
  %v637 = vpack.c.b16 %v633, %v633
  %v638 = vpack.c.b16 %v634, %v634
  %643 = vmatprep.subr.bf16.mxu0 %v314
  %644 = vmatpush1.bf16.msra.mxu0 %v313
  %645 = vmatprep.subr.bf16.mxu0 %v316
  %646 = vmatpush1.bf16.msra.mxu0 %v315
  %647 = vmatprep.subr.bf16.mxu0 %v318
  %648 = vmatpush1.bf16.msra.mxu0 %v317
  %649 = vmatprep.subr.bf16.mxu0 %v320
  %650 = vmatpush1.bf16.msra.mxu0 %v319
  %651 = vmatprep.subr.bf16.mxu0 %v322
  %652 = vmatpush1.bf16.msra.mxu0 %v321
  %653 = vmatprep.subr.bf16.mxu0 %v324
  %654 = vmatpush1.bf16.msra.mxu0 %v323
  %655 = vmatprep.subr.bf16.mxu0 %v326
  %656 = vmatpush1.bf16.msra.mxu0 %v325
  %657 = vmatprep.subr.bf16.mxu0 %v328
  %658 = vmatpush1.bf16.msra.mxu0 %v327
  %659 = vmatprep.subr.bf16.mxu0 %v330
  %660 = vmatpush1.bf16.msra.mxu0 %v329
  %661 = vmatprep.subr.bf16.mxu0 %v332
  %662 = vmatpush1.bf16.msra.mxu0 %v331
  %663 = vmatprep.subr.bf16.mxu0 %v334
  %664 = vmatpush1.bf16.msra.mxu0 %v333
  %665 = vmatprep.subr.bf16.mxu0 %v336
  %666 = vmatpush1.bf16.msra.mxu0 %v335
  %667 = vmatprep.subr.bf16.mxu0 %v338
  %668 = vmatpush1.bf16.msra.mxu0 %v337
  %669 = vmatprep.subr.bf16.mxu0 %v340
  %670 = vmatpush1.bf16.msra.mxu0 %v339
  %671 = vmatprep.subr.bf16.mxu0 %v342
  %672 = vmatpush1.bf16.msra.mxu0 %v341
  %673 = vmatprep.subr.bf16.mxu0 %v344
  %674 = vmatpush1.bf16.msra.mxu0 %v343
  %675 = vmatprep.mubr.bf16.mxu0 %v636
  %676 = vmatmul.mubr.bf16.gmra.mrb[0].mxu0 %v635
  %v677 = vpop.f32.mrb[0].mxu0
  %v678 = vadd.f32 %v100, %v677
  %v679 = vpop.f32.mrb[0].mxu0
  %v680 = vadd.f32 %v104, %v679
  %v681 = vpop.f32.mrb[0].mxu0
  %v682 = vpop.f32.mrb[0].mxu0
  %683 = vdwg.mxu0
  %684 = vmatprep.subr.bf16.mxu0 %v346
  %685 = vmatpush1.bf16.msra.mxu0 %v345
  %686 = vmatprep.subr.bf16.mxu0 %v348
  %687 = vmatpush1.bf16.msra.mxu0 %v347
  %688 = vmatprep.subr.bf16.mxu0 %v350
  %689 = vmatpush1.bf16.msra.mxu0 %v349
  %690 = vmatprep.subr.bf16.mxu0 %v352
  %691 = vmatpush1.bf16.msra.mxu0 %v351
  %692 = vmatprep.subr.bf16.mxu0 %v354
  %693 = vmatpush1.bf16.msra.mxu0 %v353
  %694 = vmatprep.subr.bf16.mxu0 %v356
  %695 = vmatpush1.bf16.msra.mxu0 %v355
  %696 = vmatprep.subr.bf16.mxu0 %v358
  %697 = vmatpush1.bf16.msra.mxu0 %v357
  %698 = vmatprep.subr.bf16.mxu0 %v360
  %699 = vmatpush1.bf16.msra.mxu0 %v359
  %700 = vmatprep.subr.bf16.mxu0 %v362
  %701 = vmatpush1.bf16.msra.mxu0 %v361
  %702 = vmatprep.subr.bf16.mxu0 %v364
  %703 = vmatpush1.bf16.msra.mxu0 %v363
  %704 = vmatprep.subr.bf16.mxu0 %v366
  %705 = vmatpush1.bf16.msra.mxu0 %v365
  %706 = vmatprep.subr.bf16.mxu0 %v368
  %707 = vmatpush1.bf16.msra.mxu0 %v367
  %708 = vmatprep.subr.bf16.mxu0 %v370
  %709 = vmatpush1.bf16.msra.mxu0 %v369
  %710 = vmatprep.subr.bf16.mxu0 %v372
  %711 = vmatpush1.bf16.msra.mxu0 %v371
  %712 = vmatprep.subr.bf16.mxu0 %v374
  %713 = vmatpush1.bf16.msra.mxu0 %v373
  %714 = vmatprep.subr.bf16.mxu0 %v376
  %715 = vmatpush1.bf16.msra.mxu0 %v375
  %716 = vmatprep.mubr.bf16.mxu0 %v638
  %717 = vmatmul.mubr.bf16.gmra.mrb[0].mxu0 %v637
  %v718 = vpop.f32.mrb[0].mxu0
  %v719 = vadd.f32 %v678, %v718
  %v720 = vpop.f32.mrb[0].mxu0
  %v721 = vadd.f32 %v680, %v720
  %v722 = vpop.f32.mrb[0].mxu0
  %v723 = vpop.f32.mrb[0].mxu0
  %724 = vdwg.mxu0
  %v725 = vmax.f32 %v719, 0.0
  %v726 = vmax.f32 %v721, 0.0
  %v727 = vld [vmem:[%s3] sm:$0xff]
  %v728 = vld [vmem:[%s3 + $0x8] sm:$0xff]
  %v731 = vunpack.c.l.b16 %v727
  %v732 = vunpack.c.h.b16 %v727
  %v733 = vunpack.c.l.b16 %v728
  %v734 = vunpack.c.h.b16 %v728
  %v735 = vpack.c.b16 %v731, %v731
  %v736 = vpack.c.b16 %v732, %v732
  %v737 = vpack.c.b16 %v733, %v733
  %v738 = vpack.c.b16 %v734, %v734
  %743 = vmatprep.subr.bf16.mxu0 %v314
  %744 = vmatpush1.bf16.msra.mxu0 %v313
  %745 = vmatprep.subr.bf16.mxu0 %v316
  %746 = vmatpush1.bf16.msra.mxu0 %v315
  %747 = vmatprep.subr.bf16.mxu0 %v318
  %748 = vmatpush1.bf16.msra.mxu0 %v317
  %749 = vmatprep.subr.bf16.mxu0 %v320
  %750 = vmatpush1.bf16.msra.mxu0 %v319
  %751 = vmatprep.subr.bf16.mxu0 %v322
  %752 = vmatpush1.bf16.msra.mxu0 %v321
  %753 = vmatprep.subr.bf16.mxu0 %v324
  %754 = vmatpush1.bf16.msra.mxu0 %v323
  %755 = vmatprep.subr.bf16.mxu0 %v326
  %756 = vmatpush1.bf16.msra.mxu0 %v325
  %757 = vmatprep.subr.bf16.mxu0 %v328
  %758 = vmatpush1.bf16.msra.mxu0 %v327
  %759 = vmatprep.subr.bf16.mxu0 %v330
  %760 = vmatpush1.bf16.msra.mxu0 %v329
  %761 = vmatprep.subr.bf16.mxu0 %v332
  %762 = vmatpush1.bf16.msra.mxu0 %v331
  %763 = vmatprep.subr.bf16.mxu0 %v334
  %764 = vmatpush1.bf16.msra.mxu0 %v333
  %765 = vmatprep.subr.bf16.mxu0 %v336
  %766 = vmatpush1.bf16.msra.mxu0 %v335
  %767 = vmatprep.subr.bf16.mxu0 %v338
  %768 = vmatpush1.bf16.msra.mxu0 %v337
  %769 = vmatprep.subr.bf16.mxu0 %v340
  %770 = vmatpush1.bf16.msra.mxu0 %v339
  %771 = vmatprep.subr.bf16.mxu0 %v342
  %772 = vmatpush1.bf16.msra.mxu0 %v341
  %773 = vmatprep.subr.bf16.mxu0 %v344
  %774 = vmatpush1.bf16.msra.mxu0 %v343
  %775 = vmatprep.mubr.bf16.mxu0 %v736
  %776 = vmatmul.mubr.bf16.gmra.mrb[0].mxu0 %v735
  %v777 = vpop.f32.mrb[0].mxu0
  %v778 = vadd.f32 %v100, %v777
  %v779 = vpop.f32.mrb[0].mxu0
  %v780 = vadd.f32 %v104, %v779
  %v781 = vpop.f32.mrb[0].mxu0
  %v782 = vpop.f32.mrb[0].mxu0
  %783 = vdwg.mxu0
  %784 = vmatprep.subr.bf16.mxu0 %v346
  %785 = vmatpush1.bf16.msra.mxu0 %v345
  %786 = vmatprep.subr.bf16.mxu0 %v348
  %787 = vmatpush1.bf16.msra.mxu0 %v347
  %788 = vmatprep.subr.bf16.mxu0 %v350
  %789 = vmatpush1.bf16.msra.mxu0 %v349
  %790 = vmatprep.subr.bf16.mxu0 %v352
  %791 = vmatpush1.bf16.msra.mxu0 %v351
  %792 = vmatprep.subr.bf16.mxu0 %v354
  %793 = vmatpush1.bf16.msra.mxu0 %v353
  %794 = vmatprep.subr.bf16.mxu0 %v356
  %795 = vmatpush1.bf16.msra.mxu0 %v355
  %796 = vmatprep.subr.bf16.mxu0 %v358
  %797 = vmatpush1.bf16.msra.mxu0 %v357
  %798 = vmatprep.subr.bf16.mxu0 %v360
  %799 = vmatpush1.bf16.msra.mxu0 %v359
  %800 = vmatprep.subr.bf16.mxu0 %v362
  %801 = vmatpush1.bf16.msra.mxu0 %v361
  %802 = vmatprep.subr.bf16.mxu0 %v364
  %803 = vmatpush1.bf16.msra.mxu0 %v363
  %804 = vmatprep.subr.bf16.mxu0 %v366
  %805 = vmatpush1.bf16.msra.mxu0 %v365
  %806 = vmatprep.subr.bf16.mxu0 %v368
  %807 = vmatpush1.bf16.msra.mxu0 %v367
  %808 = vmatprep.subr.bf16.mxu0 %v370
  %809 = vmatpush1.bf16.msra.mxu0 %v369
  %810 = vmatprep.subr.bf16.mxu0 %v372
  %811 = vmatpush1.bf16.msra.mxu0 %v371
  %812 = vmatprep.subr.bf16.mxu0 %v374
  %813 = vmatpush1.bf16.msra.mxu0 %v373
  %814 = vmatprep.subr.bf16.mxu0 %v376
  %815 = vmatpush1.bf16.msra.mxu0 %v375
  %816 = vmatprep.mubr.bf16.mxu0 %v738
  %817 = vmatmul.mubr.bf16.gmra.mrb[0].mxu0 %v737
  %v818 = vpop.f32.mrb[0].mxu0
  %v819 = vadd.f32 %v778, %v818
  %v820 = vpop.f32.mrb[0].mxu0
  %v821 = vadd.f32 %v780, %v820
  %v822 = vpop.f32.mrb[0].mxu0
  %v823 = vpop.f32.mrb[0].mxu0
  %824 = vdwg.mxu0
  %v825 = vmax.f32 %v819, 0.0
  %v826 = vmax.f32 %v821, 0.0
  %v827 = vmax.f32 %v725, %v825
  %v828 = vmax.f32 %v726, %v826
  %v829 = vmax.f32 %v625, %v827
  %v830 = vmax.f32 %v626, %v828
  %v831 = vld [vmem:[%s6] sm:$0x3]
  %v833 = vlaneseq
  %v834 = vshrl.u32 %v833, 7
  %v835 = vsub.s32 0, %v834
  %v836 = vrot.slane %v831, %v835
  %v837 = vlaneseq
  %v838 = vshrl.u32 %v837, 7
  %v839 = vsub.s32 1, %v838
  %v840 = vrot.slane %v831, %v839
  %v843 = vmul.f32 %v829, %v836
  %v844 = vmul.f32 %v830, %v840
  %v845 = vld [vmem:[%s7] sm:$0x3]
  %v847 = vlaneseq
  %v848 = vshrl.u32 %v847, 7
  %v849 = vsub.s32 0, %v848
  %v850 = vrot.slane %v845, %v849
  %v851 = vlaneseq
  %v852 = vshrl.u32 %v851, 7
  %v853 = vsub.s32 1, %v852
  %v854 = vrot.slane %v845, %v853
  %v857 = vadd.f32 %v843, %v850
  %v858 = vadd.f32 %v844, %v854
  %v859 = vpack.c.bf16 %v857, %v857
  %v860 = vpack.c.bf16 %v858, %v858
  %v863 = vunpack.c.l.b16 %v859
  %v864 = vunpack.c.l.b16 %v860
  %v865 = vpack.c.b16 %v864, %v863
  %867 = vst [vmem:[%s8] sm:$0xff] %v865
  // Predicated region
  $region34: #{cnn_forward.6} parent=0 // pred_check
    _
  $region35: #{cnn_forward.6} parent=0 // pred_check_branch
    %869 = sbr.rel (0) target = $region37
  $region36: #{cnn_forward.6} parent=0 // pred_region
    _
  $region37: #{cnn_forward.6} parent=0 // pred_fallthru
    _
  // Predicated region
  $region38: #{cnn_forward.6} parent=0 // pred_check
    _
  $region39: #{cnn_forward.6} parent=0 // pred_check_branch
    %871 = sbr.rel (0) target = $region41
  $region40: #{cnn_forward.6} parent=0 // pred_region
    _
  $region41: #{cnn_forward.6} parent=0 // pred_fallthru
    _

// kernel: cnn_forward.5
$region0: #{cnn_forward.5}
  #allocation0 [shape = 'u32[]', space=smem, size = 0x4, offset = 0x4, fixed_abs, tag = 'smem constant byte address 0x4 - core index']
  #allocation1 [shape = 'u32[144,128]{1,0:T(1,128)}', space=vmem, size = 0x12000, scoped, tag = 'internal scratch']
  %s0 = inlined_call_operand.vmem [shape: bf16[50,1600], index: 0, kind: input, shape index: {}]
  %s1 = inlined_call_operand.vmem [shape: bf16[50,1600], index: 1, kind: input, shape index: {}]
  %s2 = inlined_call_operand.vmem [shape: bf16[50,1600], index: 2, kind: input, shape index: {}]
  %s3 = inlined_call_operand.vmem [shape: bf16[50,1600], index: 3, kind: input, shape index: {}]
  %s4 = inlined_call_operand.vmem [shape: bf16[1600,128], index: 4, kind: input, shape index: {}]
  %s5 = inlined_call_operand.vmem [shape: f32[1,128], index: 5, kind: input, shape index: {}]
  %s6 = inlined_call_operand.vmem [shape: f32[1,128], index: 6, kind: input, shape index: {}]
  %s7 = inlined_call_operand.vmem [shape: f32[1,128], index: 7, kind: input, shape index: {}]
  %s8 = inlined_call_operand.vmem [shape: bf16[50,128], index: 8, kind: output, shape index: {}]
  %s9 = sld [smem:[#allocation0]]
  $region42: #{cnn_forward.5} parent=0
    _
  %s11 = ssub.s32 1, %s9
  %s12 = scalar_select 0, %s11, %s9
  // Predicated region
  $region2: #{cnn_forward.5} parent=0 // pred_check
    _
  $region3: #{cnn_forward.5} parent=0 // pred_check_branch
    %14 = sbr.rel (0) target = $region5
  $region4: #{cnn_forward.5} parent=0 // pred_region
    _
  $region5: #{cnn_forward.5} parent=0 // pred_fallthru
    _
  // Predicated region
  $region6: #{cnn_forward.5} parent=0 // pred_check
    _
  $region7: #{cnn_forward.5} parent=0 // pred_check_branch
    %16 = sbr.rel (0) target = $region9
  $region8: #{cnn_forward.5} parent=0 // pred_region
    _
  $region9: #{cnn_forward.5} parent=0 // pred_fallthru
    _
  // Predicated region
  $region10: #{cnn_forward.5} parent=0 // pred_check
    _
  $region11: #{cnn_forward.5} parent=0 // pred_check_branch
    %18 = sbr.rel (0) target = $region13
  $region12: #{cnn_forward.5} parent=0 // pred_region
    _
  $region13: #{cnn_forward.5} parent=0 // pred_fallthru
    _
  // Predicated region
  $region14: #{cnn_forward.5} parent=0 // pred_check
    _
  $region15: #{cnn_forward.5} parent=0 // pred_check_branch
    %20 = sbr.rel (0) target = $region17
  $region16: #{cnn_forward.5} parent=0 // pred_region
    _
  $region17: #{cnn_forward.5} parent=0 // pred_fallthru
    _
  // Predicated region
  $region18: #{cnn_forward.5} parent=0 // pred_check
    _
  $region19: #{cnn_forward.5} parent=0 // pred_check_branch
    %22 = sbr.rel (0) target = $region21
  $region20: #{cnn_forward.5} parent=0 // pred_region
    _
  $region21: #{cnn_forward.5} parent=0 // pred_fallthru
    _
  // Predicated region
  $region22: #{cnn_forward.5} parent=0 // pred_check
    _
  $region23: #{cnn_forward.5} parent=0 // pred_check_branch
    %24 = sbr.rel (0) target = $region25
  $region24: #{cnn_forward.5} parent=0 // pred_region
    _
  $region25: #{cnn_forward.5} parent=0 // pred_fallthru
    _
  // Predicated region
  $region26: #{cnn_forward.5} parent=0 // pred_check
    _
  $region27: #{cnn_forward.5} parent=0 // pred_check_branch
    %26 = sbr.rel (0) target = $region29
  $region28: #{cnn_forward.5} parent=0 // pred_region
    _
  $region29: #{cnn_forward.5} parent=0 // pred_fallthru
    _
  // Predicated region
  $region30: #{cnn_forward.5} parent=0 // pred_check
    _
  $region31: #{cnn_forward.5} parent=0 // pred_check_branch
    %28 = sbr.rel (0) target = $region33
  $region32: #{cnn_forward.5} parent=0 // pred_region
    _
  $region33: #{cnn_forward.5} parent=0 // pred_fallthru
    _
  %v30 = vld [vmem:[%s4] sm:$0xf]
  %v31 = vld [vmem:[%s4 + $0x4] sm:$0xf]
  %v32 = vld [vmem:[%s4 + $0x8] sm:$0xf]
  %v33 = vld [vmem:[%s4 + $0xc] sm:$0xf]
  %v34 = vld [vmem:[%s4 + $0x10] sm:$0xf]
  %v35 = vld [vmem:[%s4 + $0x14] sm:$0xf]
  %v36 = vld [vmem:[%s4 + $0x18] sm:$0xf]
  %v37 = vld [vmem:[%s4 + $0x1c] sm:$0xf]
  %v38 = vld [vmem:[%s4 + $0x20] sm:$0xf]
  %v39 = vld [vmem:[%s4 + $0x24] sm:$0xf]
  %v40 = vld [vmem:[%s4 + $0x28] sm:$0xf]
  %v41 = vld [vmem:[%s4 + $0x2c] sm:$0xf]
  %v42 = vld [vmem:[%s4 + $0x30] sm:$0xf]
  %v43 = vld [vmem:[%s4 + $0x34] sm:$0xf]
  %v44 = vld [vmem:[%s4 + $0x38] sm:$0xf]
  %v45 = vld [vmem:[%s4 + $0x3c] sm:$0xf]
  %v46 = vld [vmem:[%s4 + $0x40] sm:$0xf]
  %v47 = vld [vmem:[%s4 + $0x44] sm:$0xf]
  %v48 = vld [vmem:[%s4 + $0x48] sm:$0xf]
  %v49 = vld [vmem:[%s4 + $0x4c] sm:$0xf]
  %v50 = vld [vmem:[%s4 + $0x50] sm:$0xf]
  %v51 = vld [vmem:[%s4 + $0x54] sm:$0xf]
  %v52 = vld [vmem:[%s4 + $0x58] sm:$0xf]
  %v53 = vld [vmem:[%s4 + $0x5c] sm:$0xf]
  %v54 = vld [vmem:[%s4 + $0x60] sm:$0xf]
  %v55 = vld [vmem:[%s4 + $0x64] sm:$0xf]
  %v56 = vld [vmem:[%s4 + $0x68] sm:$0xf]
  %v57 = vld [vmem:[%s4 + $0x6c] sm:$0xf]
  %v58 = vld [vmem:[%s4 + $0x70] sm:$0xf]
  %v59 = vld [vmem:[%s4 + $0x74] sm:$0xf]
  %v60 = vld [vmem:[%s4 + $0x78] sm:$0xf]
  %v61 = vld [vmem:[%s4 + $0x7c] sm:$0xf]
  %v62 = vld [vmem:[%s4 + $0x80] sm:$0xf]
  %v63 = vld [vmem:[%s4 + $0x84] sm:$0xf]
  %v64 = vld [vmem:[%s4 + $0x88] sm:$0xf]
  %v65 = vld [vmem:[%s4 + $0x8c] sm:$0xf]
  %v66 = vld [vmem:[%s4 + $0x90] sm:$0xf]
  %v67 = vld [vmem:[%s4 + $0x94] sm:$0xf]
  %v68 = vld [vmem:[%s4 + $0x98] sm:$0xf]
  %v69 = vld [vmem:[%s4 + $0x9c] sm:$0xf]
  %v70 = vld [vmem:[%s4 + $0xa0] sm:$0xf]
  %v71 = vld [vmem:[%s4 + $0xa4] sm:$0xf]
  %v72 = vld [vmem:[%s4 + $0xa8] sm:$0xf]
  %v73 = vld [vmem:[%s4 + $0xac] sm:$0xf]
  %v74 = vld [vmem:[%s4 + $0xb0] sm:$0xf]
  %v75 = vld [vmem:[%s4 + $0xb4] sm:$0xf]
  %v76 = vld [vmem:[%s4 + $0xb8] sm:$0xf]
  %v77 = vld [vmem:[%s4 + $0xbc] sm:$0xf]
  %v78 = vld [vmem:[%s4 + $0xc0] sm:$0xf]
  %v79 = vld [vmem:[%s4 + $0xc4] sm:$0xf]
  %v80 = vld [vmem:[%s4 + $0xc8] sm:$0xf]
  %v81 = vld [vmem:[%s4 + $0xcc] sm:$0xf]
  %v82 = vld [vmem:[%s4 + $0xd0] sm:$0xf]
  %v83 = vld [vmem:[%s4 + $0xd4] sm:$0xf]
  %v84 = vld [vmem:[%s4 + $0xd8] sm:$0xf]
  %v85 = vld [vmem:[%s4 + $0xdc] sm:$0xf]
  %v86 = vld [vmem:[%s4 + $0xe0] sm:$0xf]
  %v87 = vld [vmem:[%s4 + $0xe4] sm:$0xf]
  %v88 = vld [vmem:[%s4 + $0xe8] sm:$0xf]
  %v89 = vld [vmem:[%s4 + $0xec] sm:$0xf]
  %v90 = vld [vmem:[%s4 + $0xf0] sm:$0xf]
  %v91 = vld [vmem:[%s4 + $0xf4] sm:$0xf]
  %v92 = vld [vmem:[%s4 + $0xf8] sm:$0xf]
  %v93 = vld [vmem:[%s4 + $0xfc] sm:$0xf]
  %v94 = vld [vmem:[%s4 + $0x100] sm:$0xf]
  %v95 = vld [vmem:[%s4 + $0x104] sm:$0xf]
  %v96 = vld [vmem:[%s4 + $0x108] sm:$0xf]
  %v97 = vld [vmem:[%s4 + $0x10c] sm:$0xf]
  %v98 = vld [vmem:[%s4 + $0x110] sm:$0xf]
  %v99 = vld [vmem:[%s4 + $0x114] sm:$0xf]
  %v100 = vld [vmem:[%s4 + $0x118] sm:$0xf]
  %v101 = vld [vmem:[%s4 + $0x11c] sm:$0xf]
  %v102 = vld [vmem:[%s4 + $0x120] sm:$0xf]
  %v103 = vld [vmem:[%s4 + $0x124] sm:$0xf]
  %v104 = vld [vmem:[%s4 + $0x128] sm:$0xf]
  %v105 = vld [vmem:[%s4 + $0x12c] sm:$0xf]
  %v106 = vld [vmem:[%s4 + $0x130] sm:$0xf]
  %v107 = vld [vmem:[%s4 + $0x134] sm:$0xf]
  %v108 = vld [vmem:[%s4 + $0x138] sm:$0xf]
  %v109 = vld [vmem:[%s4 + $0x13c] sm:$0xf]
  %v110 = vld [vmem:[%s4 + $0x140] sm:$0xf]
  %v111 = vld [vmem:[%s4 + $0x144] sm:$0xf]
  %v112 = vld [vmem:[%s4 + $0x148] sm:$0xf]
  %v113 = vld [vmem:[%s4 + $0x14c] sm:$0xf]
  %v114 = vld [vmem:[%s4 + $0x150] sm:$0xf]
  %v115 = vld [vmem:[%s4 + $0x154] sm:$0xf]
  %v116 = vld [vmem:[%s4 + $0x158] sm:$0xf]
  %v117 = vld [vmem:[%s4 + $0x15c] sm:$0xf]
  %v118 = vld [vmem:[%s4 + $0x160] sm:$0xf]
  %v119 = vld [vmem:[%s4 + $0x164] sm:$0xf]
  %v120 = vld [vmem:[%s4 + $0x168] sm:$0xf]
  %v121 = vld [vmem:[%s4 + $0x16c] sm:$0xf]
  %v122 = vld [vmem:[%s4 + $0x170] sm:$0xf]
  %v123 = vld [vmem:[%s4 + $0x174] sm:$0xf]
  %v124 = vld [vmem:[%s4 + $0x178] sm:$0xf]
  %v125 = vld [vmem:[%s4 + $0x17c] sm:$0xf]
  %v126 = vld [vmem:[%s4 + $0x180] sm:$0xf]
  %v127 = vld [vmem:[%s4 + $0x184] sm:$0xf]
  %v128 = vld [vmem:[%s4 + $0x188] sm:$0xf]
  %v129 = vld [vmem:[%s4 + $0x18c] sm:$0xf]
  %v130 = vld [vmem:[%s4 + $0x190] sm:$0xf]
  %v131 = vld [vmem:[%s4 + $0x194] sm:$0xf]
  %v132 = vld [vmem:[%s4 + $0x198] sm:$0xf]
  %v133 = vld [vmem:[%s4 + $0x19c] sm:$0xf]
  %v134 = vld [vmem:[%s4 + $0x1a0] sm:$0xf]
  %v135 = vld [vmem:[%s4 + $0x1a4] sm:$0xf]
  %v136 = vld [vmem:[%s4 + $0x1a8] sm:$0xf]
  %v137 = vld [vmem:[%s4 + $0x1ac] sm:$0xf]
  %v138 = vld [vmem:[%s4 + $0x1b0] sm:$0xf]
  %v139 = vld [vmem:[%s4 + $0x1b4] sm:$0xf]
  %v140 = vld [vmem:[%s4 + $0x1b8] sm:$0xf]
  %v141 = vld [vmem:[%s4 + $0x1bc] sm:$0xf]
  %v142 = vld [vmem:[%s4 + $0x1c0] sm:$0xf]
  %v143 = vld [vmem:[%s4 + $0x1c4] sm:$0xf]
  %v144 = vld [vmem:[%s4 + $0x1c8] sm:$0xf]
  %v145 = vld [vmem:[%s4 + $0x1cc] sm:$0xf]
  %v146 = vld [vmem:[%s4 + $0x1d0] sm:$0xf]
  %v147 = vld [vmem:[%s4 + $0x1d4] sm:$0xf]
  %v148 = vld [vmem:[%s4 + $0x1d8] sm:$0xf]
  %v149 = vld [vmem:[%s4 + $0x1dc] sm:$0xf]
  %v150 = vld [vmem:[%s4 + $0x1e0] sm:$0xf]
  %v151 = vld [vmem:[%s4 + $0x1e4] sm:$0xf]
  %v152 = vld [vmem:[%s4 + $0x1e8] sm:$0xf]
  %v153 = vld [vmem:[%s4 + $0x1ec] sm:$0xf]
  %v154 = vld [vmem:[%s4 + $0x1f0] sm:$0xf]
  %v155 = vld [vmem:[%s4 + $0x1f4] sm:$0xf]
  %v156 = vld [vmem:[%s4 + $0x1f8] sm:$0xf]
  %v157 = vld [vmem:[%s4 + $0x1fc] sm:$0xf]
  %v158 = vld [vmem:[%s4 + $0x200] sm:$0xf]
  %v159 = vld [vmem:[%s4 + $0x204] sm:$0xf]
  %v160 = vld [vmem:[%s4 + $0x208] sm:$0xf]
  %v161 = vld [vmem:[%s4 + $0x20c] sm:$0xf]
  %v162 = vld [vmem:[%s4 + $0x210] sm:$0xf]
  %v163 = vld [vmem:[%s4 + $0x214] sm:$0xf]
  %v164 = vld [vmem:[%s4 + $0x218] sm:$0xf]
  %v165 = vld [vmem:[%s4 + $0x21c] sm:$0xf]
  %v166 = vld [vmem:[%s4 + $0x220] sm:$0xf]
  %v167 = vld [vmem:[%s4 + $0x224] sm:$0xf]
  %v168 = vld [vmem:[%s4 + $0x228] sm:$0xf]
  %v169 = vld [vmem:[%s4 + $0x22c] sm:$0xf]
  %v170 = vld [vmem:[%s4 + $0x230] sm:$0xf]
  %v171 = vld [vmem:[%s4 + $0x234] sm:$0xf]
  %v172 = vld [vmem:[%s4 + $0x238] sm:$0xf]
  %v173 = vld [vmem:[%s4 + $0x23c] sm:$0xf]
  %v174 = vld [vmem:[%s4 + $0x240] sm:$0xf]
  %v175 = vld [vmem:[%s4 + $0x244] sm:$0xf]
  %v176 = vld [vmem:[%s4 + $0x248] sm:$0xf]
  %v177 = vld [vmem:[%s4 + $0x24c] sm:$0xf]
  %v178 = vld [vmem:[%s4 + $0x250] sm:$0xf]
  %v179 = vld [vmem:[%s4 + $0x254] sm:$0xf]
  %v180 = vld [vmem:[%s4 + $0x258] sm:$0xf]
  %v181 = vld [vmem:[%s4 + $0x25c] sm:$0xf]
  %v182 = vld [vmem:[%s4 + $0x260] sm:$0xf]
  %v183 = vld [vmem:[%s4 + $0x264] sm:$0xf]
  %v184 = vld [vmem:[%s4 + $0x268] sm:$0xf]
  %v185 = vld [vmem:[%s4 + $0x26c] sm:$0xf]
  %v186 = vld [vmem:[%s4 + $0x270] sm:$0xf]
  %v187 = vld [vmem:[%s4 + $0x274] sm:$0xf]
  %v188 = vld [vmem:[%s4 + $0x278] sm:$0xf]
  %v189 = vld [vmem:[%s4 + $0x27c] sm:$0xf]
  %v190 = vld [vmem:[%s4 + $0x280] sm:$0xf]
  %v191 = vld [vmem:[%s4 + $0x284] sm:$0xf]
  %v192 = vld [vmem:[%s4 + $0x288] sm:$0xf]
  %v193 = vld [vmem:[%s4 + $0x28c] sm:$0xf]
  %v194 = vld [vmem:[%s4 + $0x290] sm:$0xf]
  %v195 = vld [vmem:[%s4 + $0x294] sm:$0xf]
  %v196 = vld [vmem:[%s4 + $0x298] sm:$0xf]
  %v197 = vld [vmem:[%s4 + $0x29c] sm:$0xf]
  %v198 = vld [vmem:[%s4 + $0x2a0] sm:$0xf]
  %v199 = vld [vmem:[%s4 + $0x2a4] sm:$0xf]
  %v200 = vld [vmem:[%s4 + $0x2a8] sm:$0xf]
  %v201 = vld [vmem:[%s4 + $0x2ac] sm:$0xf]
  %v202 = vld [vmem:[%s4 + $0x2b0] sm:$0xf]
  %v203 = vld [vmem:[%s4 + $0x2b4] sm:$0xf]
  %v204 = vld [vmem:[%s4 + $0x2b8] sm:$0xf]
  %v205 = vld [vmem:[%s4 + $0x2bc] sm:$0xf]
  %v206 = vld [vmem:[%s4 + $0x2c0] sm:$0xf]
  %v207 = vld [vmem:[%s4 + $0x2c4] sm:$0xf]
  %v208 = vld [vmem:[%s4 + $0x2c8] sm:$0xf]
  %v209 = vld [vmem:[%s4 + $0x2cc] sm:$0xf]
  %v210 = vld [vmem:[%s4 + $0x2d0] sm:$0xf]
  %v211 = vld [vmem:[%s4 + $0x2d4] sm:$0xf]
  %v212 = vld [vmem:[%s4 + $0x2d8] sm:$0xf]
  %v213 = vld [vmem:[%s4 + $0x2dc] sm:$0xf]
  %v214 = vld [vmem:[%s4 + $0x2e0] sm:$0xf]
  %v215 = vld [vmem:[%s4 + $0x2e4] sm:$0xf]
  %v216 = vld [vmem:[%s4 + $0x2e8] sm:$0xf]
  %v217 = vld [vmem:[%s4 + $0x2ec] sm:$0xf]
  %v218 = vld [vmem:[%s4 + $0x2f0] sm:$0xf]
  %v219 = vld [vmem:[%s4 + $0x2f4] sm:$0xf]
  %v220 = vld [vmem:[%s4 + $0x2f8] sm:$0xf]
  %v221 = vld [vmem:[%s4 + $0x2fc] sm:$0xf]
  %v222 = vld [vmem:[%s4 + $0x300] sm:$0xf]
  %v223 = vld [vmem:[%s4 + $0x304] sm:$0xf]
  %v224 = vld [vmem:[%s4 + $0x308] sm:$0xf]
  %v225 = vld [vmem:[%s4 + $0x30c] sm:$0xf]
  %v226 = vld [vmem:[%s4 + $0x310] sm:$0xf]
  %v227 = vld [vmem:[%s4 + $0x314] sm:$0xf]
  %v228 = vld [vmem:[%s4 + $0x318] sm:$0xf]
  %v229 = vld [vmem:[%s4 + $0x31c] sm:$0xf]
  %v230 = vld [vmem:[%s5] sm:$0x1]
  %v231 = vld [vmem:[%s0] sm:$0xff]
  %v232 = vld [vmem:[%s0 + $0x8] sm:$0xff]
  %v233 = vld [vmem:[%s0 + $0x10] sm:$0xff]
  %v234 = vld [vmem:[%s0 + $0x18] sm:$0xff]
  %v235 = vld [vmem:[%s0 + $0x20] sm:$0xff]
  %v236 = vld [vmem:[%s0 + $0x28] sm:$0xff]
  %v237 = vld [vmem:[%s0 + $0x30] sm:$0xf]
  %v238 = vld [vmem:[%s0 + $0x34] sm:$0xff]
  %v239 = vld [vmem:[%s0 + $0x3c] sm:$0xff]
  %v240 = vld [vmem:[%s0 + $0x44] sm:$0xff]
  %v241 = vld [vmem:[%s0 + $0x4c] sm:$0xff]
  %v242 = vld [vmem:[%s0 + $0x54] sm:$0xff]
  %v243 = vld [vmem:[%s0 + $0x5c] sm:$0xff]
  %v244 = vld [vmem:[%s0 + $0x64] sm:$0xf]
  %v245 = vld [vmem:[%s0 + $0x68] sm:$0xff]
  %v246 = vld [vmem:[%s0 + $0x70] sm:$0xff]
  %v247 = vld [vmem:[%s0 + $0x78] sm:$0xff]
  %v248 = vld [vmem:[%s0 + $0x80] sm:$0xff]
  %v249 = vld [vmem:[%s0 + $0x88] sm:$0xff]
  %v250 = vld [vmem:[%s0 + $0x90] sm:$0xff]
  %v251 = vld [vmem:[%s0 + $0x98] sm:$0xf]
  %v252 = vld [vmem:[%s0 + $0x9c] sm:$0xff]
  %v253 = vld [vmem:[%s0 + $0xa4] sm:$0xff]
  %v254 = vld [vmem:[%s0 + $0xac] sm:$0xff]
  %v255 = vld [vmem:[%s0 + $0xb4] sm:$0xff]
  %v256 = vld [vmem:[%s0 + $0xbc] sm:$0xff]
  %v257 = vld [vmem:[%s0 + $0xc4] sm:$0xff]
  %v258 = vld [vmem:[%s0 + $0xcc] sm:$0xf]
  %v259 = vld [vmem:[%s0 + $0xd0] sm:$0xff]
  %v260 = vld [vmem:[%s0 + $0xd8] sm:$0xff]
  %v261 = vld [vmem:[%s0 + $0xe0] sm:$0xff]
  %v262 = vld [vmem:[%s0 + $0xe8] sm:$0xff]
  %v263 = vld [vmem:[%s0 + $0xf0] sm:$0xff]
  %v264 = vld [vmem:[%s0 + $0xf8] sm:$0xff]
  %v265 = vld [vmem:[%s0 + $0x100] sm:$0xf]
  %v266 = vld [vmem:[%s0 + $0x104] sm:$0xff]
  %v267 = vld [vmem:[%s0 + $0x10c] sm:$0xff]
  %v268 = vld [vmem:[%s0 + $0x114] sm:$0xff]
  %v269 = vld [vmem:[%s0 + $0x11c] sm:$0xff]
  %v270 = vld [vmem:[%s0 + $0x124] sm:$0xff]
  %v271 = vld [vmem:[%s0 + $0x12c] sm:$0xff]
  %v272 = vld [vmem:[%s0 + $0x134] sm:$0xf]
  %v273 = vld [vmem:[%s0 + $0x138] sm:$0x11]
  %v274 = vld [vmem:[%s0 + $0x140] sm:$0x11]
  %v275 = vld [vmem:[%s0 + $0x148] sm:$0x11]
  %v276 = vld [vmem:[%s0 + $0x150] sm:$0x11]
  %v277 = vld [vmem:[%s0 + $0x158] sm:$0x11]
  %v278 = vld [vmem:[%s0 + $0x160] sm:$0x11]
  %v279 = vld [vmem:[%s0 + $0x168] sm:$0x1]
  %v281 = vlaneseq
  %v282 = vshrl.u32 %v281, 7
  %v283 = vsub.s32 0, %v282
  %v284 = vrot.slane %v230, %v283
  %v335 = vunpack.c.l.b16 %v231
  %v336 = vunpack.c.h.b16 %v231
  %v337 = vunpack.c.l.b16 %v232
  %v338 = vunpack.c.h.b16 %v232
  %v339 = vunpack.c.l.b16 %v233
  %v340 = vunpack.c.h.b16 %v233
  %v341 = vunpack.c.l.b16 %v234
  %v342 = vunpack.c.h.b16 %v234
  %v343 = vunpack.c.l.b16 %v235
  %v344 = vunpack.c.h.b16 %v235
  %v345 = vunpack.c.l.b16 %v236
  %v346 = vunpack.c.h.b16 %v236
  %v347 = vunpack.c.l.b16 %v237
  %v348 = vunpack.c.l.b16 %v238
  %v349 = vunpack.c.h.b16 %v238
  %v350 = vunpack.c.l.b16 %v239
  %v351 = vunpack.c.h.b16 %v239
  %v352 = vunpack.c.l.b16 %v240
  %v353 = vunpack.c.h.b16 %v240
  %v354 = vunpack.c.l.b16 %v241
  %v355 = vunpack.c.h.b16 %v241
  %v356 = vunpack.c.l.b16 %v242
  %v357 = vunpack.c.h.b16 %v242
  %v358 = vunpack.c.l.b16 %v243
  %v359 = vunpack.c.h.b16 %v243
  %v360 = vunpack.c.l.b16 %v244
  %v361 = vunpack.c.l.b16 %v245
  %v362 = vunpack.c.h.b16 %v245
  %v363 = vunpack.c.l.b16 %v246
  %v364 = vunpack.c.h.b16 %v246
  %v365 = vunpack.c.l.b16 %v247
  %v366 = vunpack.c.h.b16 %v247
  %v367 = vunpack.c.l.b16 %v248
  %v368 = vunpack.c.h.b16 %v248
  %v369 = vunpack.c.l.b16 %v249
  %v370 = vunpack.c.h.b16 %v249
  %v371 = vunpack.c.l.b16 %v250
  %v372 = vunpack.c.h.b16 %v250
  %v373 = vunpack.c.l.b16 %v251
  %v374 = vunpack.c.l.b16 %v252
  %v375 = vunpack.c.h.b16 %v252
  %v376 = vunpack.c.l.b16 %v253
  %v377 = vunpack.c.h.b16 %v253
  %v378 = vunpack.c.l.b16 %v254
  %v379 = vunpack.c.h.b16 %v254
  %v380 = vunpack.c.l.b16 %v255
  %v381 = vunpack.c.h.b16 %v255
  %v382 = vunpack.c.l.b16 %v256
  %v383 = vunpack.c.h.b16 %v256
  %v384 = vunpack.c.l.b16 %v257
  %v385 = vunpack.c.h.b16 %v257
  %v386 = vunpack.c.l.b16 %v258
  %v387 = vunpack.c.l.b16 %v259
  %v388 = vunpack.c.h.b16 %v259
  %v389 = vunpack.c.l.b16 %v260
  %v390 = vunpack.c.h.b16 %v260
  %v391 = vunpack.c.l.b16 %v261
  %v392 = vunpack.c.h.b16 %v261
  %v393 = vunpack.c.l.b16 %v262
  %v394 = vunpack.c.h.b16 %v262
  %v395 = vunpack.c.l.b16 %v263
  %v396 = vunpack.c.h.b16 %v263
  %v397 = vunpack.c.l.b16 %v264
  %v398 = vunpack.c.h.b16 %v264
  %v399 = vunpack.c.l.b16 %v265
  %v400 = vunpack.c.l.b16 %v266
  %v401 = vunpack.c.h.b16 %v266
  %v402 = vunpack.c.l.b16 %v267
  %v403 = vunpack.c.h.b16 %v267
  %v404 = vunpack.c.l.b16 %v268
  %v405 = vunpack.c.h.b16 %v268
  %v406 = vunpack.c.l.b16 %v269
  %v407 = vunpack.c.h.b16 %v269
  %v408 = vunpack.c.l.b16 %v270
  %v409 = vunpack.c.h.b16 %v270
  %v410 = vunpack.c.l.b16 %v271
  %v411 = vunpack.c.h.b16 %v271
  %v412 = vunpack.c.l.b16 %v272
  %v413 = vunpack.c.l.b16 %v273
  %v414 = vunpack.c.h.b16 %v273
  %v415 = vunpack.c.l.b16 %v274
  %v416 = vunpack.c.h.b16 %v274
  %v417 = vunpack.c.l.b16 %v275
  %v418 = vunpack.c.h.b16 %v275
  %v419 = vunpack.c.l.b16 %v276
  %v420 = vunpack.c.h.b16 %v276
  %v421 = vunpack.c.l.b16 %v277
  %v422 = vunpack.c.h.b16 %v277
  %v423 = vunpack.c.l.b16 %v278
  %v424 = vunpack.c.h.b16 %v278
  %v425 = vunpack.c.l.b16 %v279
  %v426 = vpack.c.b16 %v348, %v335
  %v427 = vpack.c.b16 %v349, %v336
  %v428 = vpack.c.b16 %v350, %v337
  %v429 = vpack.c.b16 %v351, %v338
  %v430 = vpack.c.b16 %v352, %v339
  %v431 = vpack.c.b16 %v353, %v340
  %v432 = vpack.c.b16 %v354, %v341
  %v433 = vpack.c.b16 %v355, %v342
  %v434 = vpack.c.b16 %v356, %v343
  %v435 = vpack.c.b16 %v357, %v344
  %v436 = vpack.c.b16 %v358, %v345
  %v437 = vpack.c.b16 %v359, %v346
  %v438 = vpack.c.b16 %v360, %v347
  %v439 = vpack.c.b16 %v374, %v361
  %v440 = vpack.c.b16 %v375, %v362
  %v441 = vpack.c.b16 %v376, %v363
  %v442 = vpack.c.b16 %v377, %v364
  %v443 = vpack.c.b16 %v378, %v365
  %v444 = vpack.c.b16 %v379, %v366
  %v445 = vpack.c.b16 %v380, %v367
  %v446 = vpack.c.b16 %v381, %v368
  %v447 = vpack.c.b16 %v382, %v369
  %v448 = vpack.c.b16 %v383, %v370
  %v449 = vpack.c.b16 %v384, %v371
  %v450 = vpack.c.b16 %v385, %v372
  %v451 = vpack.c.b16 %v386, %v373
  %v452 = vpack.c.b16 %v400, %v387
  %v453 = vpack.c.b16 %v401, %v388
  %v454 = vpack.c.b16 %v402, %v389
  %v455 = vpack.c.b16 %v403, %v390
  %v456 = vpack.c.b16 %v404, %v391
  %v457 = vpack.c.b16 %v405, %v392
  %v458 = vpack.c.b16 %v406, %v393
  %v459 = vpack.c.b16 %v407, %v394
  %v460 = vpack.c.b16 %v408, %v395
  %v461 = vpack.c.b16 %v409, %v396
  %v462 = vpack.c.b16 %v410, %v397
  %v463 = vpack.c.b16 %v411, %v398
  %v464 = vpack.c.b16 %v412, %v399
  %v465 = vpack.c.b16 %v413, %v413
  %v466 = vpack.c.b16 %v414, %v414
  %v467 = vpack.c.b16 %v415, %v415
  %v468 = vpack.c.b16 %v416, %v416
  %v469 = vpack.c.b16 %v417, %v417
  %v470 = vpack.c.b16 %v418, %v418
  %v471 = vpack.c.b16 %v419, %v419
  %v472 = vpack.c.b16 %v420, %v420
  %v473 = vpack.c.b16 %v421, %v421
  %v474 = vpack.c.b16 %v422, %v422
  %v475 = vpack.c.b16 %v423, %v423
  %v476 = vpack.c.b16 %v424, %v424
  %v477 = vpack.c.b16 %v425, %v425
  %v726 = vunpack.c.l.b16 %v30
  %v727 = vunpack.c.l.b16 %v31
  %v728 = vunpack.c.l.b16 %v32
  %v729 = vunpack.c.l.b16 %v33
  %v730 = vunpack.c.l.b16 %v34
  %v731 = vunpack.c.l.b16 %v35
  %v732 = vunpack.c.l.b16 %v36
  %v733 = vunpack.c.l.b16 %v37
  %v734 = vunpack.c.l.b16 %v38
  %v735 = vunpack.c.l.b16 %v39
  %v736 = vunpack.c.l.b16 %v40
  %v737 = vunpack.c.l.b16 %v41
  %v738 = vunpack.c.l.b16 %v42
  %v739 = vunpack.c.l.b16 %v43
  %v740 = vunpack.c.l.b16 %v44
  %v741 = vunpack.c.l.b16 %v45
  %v742 = vunpack.c.l.b16 %v46
  %v743 = vunpack.c.l.b16 %v47
  %v744 = vunpack.c.l.b16 %v48
  %v745 = vunpack.c.l.b16 %v49
  %v746 = vunpack.c.l.b16 %v50
  %v747 = vunpack.c.l.b16 %v51
  %v748 = vunpack.c.l.b16 %v52
  %v749 = vunpack.c.l.b16 %v53
  %v750 = vunpack.c.l.b16 %v54
  %v751 = vunpack.c.l.b16 %v55
  %v752 = vunpack.c.l.b16 %v56
  %v753 = vunpack.c.l.b16 %v57
  %v754 = vunpack.c.l.b16 %v58
  %v755 = vunpack.c.l.b16 %v59
  %v756 = vunpack.c.l.b16 %v60
  %v757 = vunpack.c.l.b16 %v61
  %v758 = vunpack.c.l.b16 %v62
  %v759 = vunpack.c.l.b16 %v63
  %v760 = vunpack.c.l.b16 %v64
  %v761 = vunpack.c.l.b16 %v65
  %v762 = vunpack.c.l.b16 %v66
  %v763 = vunpack.c.l.b16 %v67
  %v764 = vunpack.c.l.b16 %v68
  %v765 = vunpack.c.l.b16 %v69
  %v766 = vunpack.c.l.b16 %v70
  %v767 = vunpack.c.l.b16 %v71
  %v768 = vunpack.c.l.b16 %v72
  %v769 = vunpack.c.l.b16 %v73
  %v770 = vunpack.c.l.b16 %v74
  %v771 = vunpack.c.l.b16 %v75
  %v772 = vunpack.c.l.b16 %v76
  %v773 = vunpack.c.l.b16 %v77
  %v774 = vunpack.c.l.b16 %v78
  %v775 = vunpack.c.l.b16 %v79
  %v776 = vunpack.c.l.b16 %v80
  %v777 = vunpack.c.l.b16 %v81
  %v778 = vunpack.c.l.b16 %v82
  %v779 = vunpack.c.l.b16 %v83
  %v780 = vunpack.c.l.b16 %v84
  %v781 = vunpack.c.l.b16 %v85
  %v782 = vunpack.c.l.b16 %v86
  %v783 = vunpack.c.l.b16 %v87
  %v784 = vunpack.c.l.b16 %v88
  %v785 = vunpack.c.l.b16 %v89
  %v786 = vunpack.c.l.b16 %v90
  %v787 = vunpack.c.l.b16 %v91
  %v788 = vunpack.c.l.b16 %v92
  %v789 = vunpack.c.l.b16 %v93
  %v790 = vunpack.c.l.b16 %v94
  %v791 = vunpack.c.l.b16 %v95
  %v792 = vunpack.c.l.b16 %v96
  %v793 = vunpack.c.l.b16 %v97
  %v794 = vunpack.c.l.b16 %v98
  %v795 = vunpack.c.l.b16 %v99
  %v796 = vunpack.c.l.b16 %v100
  %v797 = vunpack.c.l.b16 %v101
  %v798 = vunpack.c.l.b16 %v102
  %v799 = vunpack.c.l.b16 %v103
  %v800 = vunpack.c.l.b16 %v104
  %v801 = vunpack.c.l.b16 %v105
  %v802 = vunpack.c.l.b16 %v106
  %v803 = vunpack.c.l.b16 %v107
  %v804 = vunpack.c.l.b16 %v108
  %v805 = vunpack.c.l.b16 %v109
  %v806 = vunpack.c.l.b16 %v110
  %v807 = vunpack.c.l.b16 %v111
  %v808 = vunpack.c.l.b16 %v112
  %v809 = vunpack.c.l.b16 %v113
  %v810 = vunpack.c.l.b16 %v114
  %v811 = vunpack.c.l.b16 %v115
  %v812 = vunpack.c.l.b16 %v116
  %v813 = vunpack.c.l.b16 %v117
  %v814 = vunpack.c.l.b16 %v118
  %v815 = vunpack.c.l.b16 %v119
  %v816 = vunpack.c.l.b16 %v120
  %v817 = vunpack.c.l.b16 %v121
  %v818 = vunpack.c.l.b16 %v122
  %v819 = vunpack.c.l.b16 %v123
  %v820 = vunpack.c.l.b16 %v124
  %v821 = vunpack.c.l.b16 %v125
  %v822 = vunpack.c.l.b16 %v126
  %v823 = vunpack.c.l.b16 %v127
  %v824 = vunpack.c.l.b16 %v128
  %v825 = vunpack.c.l.b16 %v129
  %v826 = vunpack.c.l.b16 %v130
  %v827 = vunpack.c.l.b16 %v131
  %v828 = vunpack.c.l.b16 %v132
  %v829 = vunpack.c.l.b16 %v133
  %v830 = vunpack.c.l.b16 %v134
  %v831 = vunpack.c.l.b16 %v135
  %v832 = vunpack.c.l.b16 %v136
  %v833 = vunpack.c.l.b16 %v137
  %v834 = vunpack.c.l.b16 %v138
  %v835 = vunpack.c.l.b16 %v139
  %v836 = vunpack.c.l.b16 %v140
  %v837 = vunpack.c.l.b16 %v141
  %v838 = vunpack.c.l.b16 %v142
  %v839 = vunpack.c.l.b16 %v143
  %v840 = vunpack.c.l.b16 %v144
  %v841 = vunpack.c.l.b16 %v145
  %v842 = vunpack.c.l.b16 %v146
  %v843 = vunpack.c.l.b16 %v147
  %v844 = vunpack.c.l.b16 %v148
  %v845 = vunpack.c.l.b16 %v149
  %v846 = vunpack.c.l.b16 %v150
  %v847 = vunpack.c.l.b16 %v151
  %v848 = vunpack.c.l.b16 %v152
  %v849 = vunpack.c.l.b16 %v153
  %v850 = vunpack.c.l.b16 %v154
  %v851 = vunpack.c.l.b16 %v155
  %v852 = vunpack.c.l.b16 %v156
  %v853 = vunpack.c.l.b16 %v157
  %v854 = vunpack.c.l.b16 %v158
  %v855 = vunpack.c.l.b16 %v159
  %v856 = vunpack.c.l.b16 %v160
  %v857 = vunpack.c.l.b16 %v161
  %v858 = vunpack.c.l.b16 %v162
  %v859 = vunpack.c.l.b16 %v163
  %v860 = vunpack.c.l.b16 %v164
  %v861 = vunpack.c.l.b16 %v165
  %v862 = vunpack.c.l.b16 %v166
  %v863 = vunpack.c.l.b16 %v167
  %v864 = vunpack.c.l.b16 %v168
  %v865 = vunpack.c.l.b16 %v169
  %v866 = vunpack.c.l.b16 %v170
  %v867 = vunpack.c.l.b16 %v171
  %v868 = vunpack.c.l.b16 %v172
  %v869 = vunpack.c.l.b16 %v173
  %v870 = vunpack.c.l.b16 %v174
  %v871 = vunpack.c.l.b16 %v175
  %v872 = vunpack.c.l.b16 %v176
  %v873 = vunpack.c.l.b16 %v177
  %v874 = vunpack.c.l.b16 %v178
  %v875 = vunpack.c.l.b16 %v179
  %v876 = vunpack.c.l.b16 %v180
  %v877 = vunpack.c.l.b16 %v181
  %v878 = vunpack.c.l.b16 %v182
  %v879 = vunpack.c.l.b16 %v183
  %v880 = vunpack.c.l.b16 %v184
  %v881 = vunpack.c.l.b16 %v185
  %v882 = vunpack.c.l.b16 %v186
  %v883 = vunpack.c.l.b16 %v187
  %v884 = vunpack.c.l.b16 %v188
  %v885 = vunpack.c.l.b16 %v189
  %v886 = vunpack.c.l.b16 %v190
  %v887 = vunpack.c.l.b16 %v191
  %v888 = vunpack.c.l.b16 %v192
  %v889 = vunpack.c.l.b16 %v193
  %v890 = vunpack.c.l.b16 %v194
  %v891 = vunpack.c.l.b16 %v195
  %v892 = vunpack.c.l.b16 %v196
  %v893 = vunpack.c.l.b16 %v197
  %v894 = vunpack.c.l.b16 %v198
  %v895 = vunpack.c.l.b16 %v199
  %v896 = vunpack.c.l.b16 %v200
  %v897 = vunpack.c.l.b16 %v201
  %v898 = vunpack.c.l.b16 %v202
  %v899 = vunpack.c.l.b16 %v203
  %v900 = vunpack.c.l.b16 %v204
  %v901 = vunpack.c.l.b16 %v205
  %v902 = vunpack.c.l.b16 %v206
  %v903 = vunpack.c.l.b16 %v207
  %v904 = vunpack.c.l.b16 %v208
  %v905 = vunpack.c.l.b16 %v209
  %v906 = vunpack.c.l.b16 %v210
  %v907 = vunpack.c.l.b16 %v211
  %v908 = vunpack.c.l.b16 %v212
  %v909 = vunpack.c.l.b16 %v213
  %v910 = vunpack.c.l.b16 %v214
  %v911 = vunpack.c.l.b16 %v215
  %v912 = vunpack.c.l.b16 %v216
  %v913 = vunpack.c.l.b16 %v217
  %v914 = vunpack.c.l.b16 %v218
  %v915 = vunpack.c.l.b16 %v219
  %v916 = vunpack.c.l.b16 %v220
  %v917 = vunpack.c.l.b16 %v221
  %v918 = vunpack.c.l.b16 %v222
  %v919 = vunpack.c.l.b16 %v223
  %v920 = vunpack.c.l.b16 %v224
  %v921 = vunpack.c.l.b16 %v225
  %v922 = vunpack.c.l.b16 %v226
  %v923 = vunpack.c.l.b16 %v227
  %v924 = vunpack.c.l.b16 %v228
  %v925 = vunpack.c.l.b16 %v229
  %v926 = vpack.c.b16 %v727, %v726
  %v927 = vpack.c.b16 %v729, %v728
  %v928 = vpack.c.b16 %v731, %v730
  %v929 = vpack.c.b16 %v733, %v732
  %v930 = vpack.c.b16 %v735, %v734
  %v931 = vpack.c.b16 %v737, %v736
  %v932 = vpack.c.b16 %v739, %v738
  %v933 = vpack.c.b16 %v741, %v740
  %v934 = vpack.c.b16 %v743, %v742
  %v935 = vpack.c.b16 %v745, %v744
  %v936 = vpack.c.b16 %v747, %v746
  %v937 = vpack.c.b16 %v749, %v748
  %v938 = vpack.c.b16 %v751, %v750
  %v939 = vpack.c.b16 %v753, %v752
  %v940 = vpack.c.b16 %v755, %v754
  %v941 = vpack.c.b16 %v757, %v756
  %v942 = vpack.c.b16 %v759, %v758
  %v943 = vpack.c.b16 %v761, %v760
  %v944 = vpack.c.b16 %v763, %v762
  %v945 = vpack.c.b16 %v765, %v764
  %v946 = vpack.c.b16 %v767, %v766
  %v947 = vpack.c.b16 %v769, %v768
  %v948 = vpack.c.b16 %v771, %v770
  %v949 = vpack.c.b16 %v773, %v772
  %v950 = vpack.c.b16 %v775, %v774
  %v951 = vpack.c.b16 %v777, %v776
  %v952 = vpack.c.b16 %v779, %v778
  %v953 = vpack.c.b16 %v781, %v780
  %v954 = vpack.c.b16 %v783, %v782
  %v955 = vpack.c.b16 %v785, %v784
  %v956 = vpack.c.b16 %v787, %v786
  %v957 = vpack.c.b16 %v789, %v788
  %v958 = vpack.c.b16 %v791, %v790
  %v959 = vpack.c.b16 %v793, %v792
  %v960 = vpack.c.b16 %v795, %v794
  %v961 = vpack.c.b16 %v797, %v796
  %v962 = vpack.c.b16 %v799, %v798
  %v963 = vpack.c.b16 %v801, %v800
  %v964 = vpack.c.b16 %v803, %v802
  %v965 = vpack.c.b16 %v805, %v804
  %v966 = vpack.c.b16 %v807, %v806
  %v967 = vpack.c.b16 %v809, %v808
  %v968 = vpack.c.b16 %v811, %v810
  %v969 = vpack.c.b16 %v813, %v812
  %v970 = vpack.c.b16 %v815, %v814
  %v971 = vpack.c.b16 %v817, %v816
  %v972 = vpack.c.b16 %v819, %v818
  %v973 = vpack.c.b16 %v821, %v820
  %v974 = vpack.c.b16 %v823, %v822
  %v975 = vpack.c.b16 %v825, %v824
  %v976 = vpack.c.b16 %v827, %v826
  %v977 = vpack.c.b16 %v829, %v828
  %v978 = vpack.c.b16 %v831, %v830
  %v979 = vpack.c.b16 %v833, %v832
  %v980 = vpack.c.b16 %v835, %v834
  %v981 = vpack.c.b16 %v837, %v836
  %v982 = vpack.c.b16 %v839, %v838
  %v983 = vpack.c.b16 %v841, %v840
  %v984 = vpack.c.b16 %v843, %v842
  %v985 = vpack.c.b16 %v845, %v844
  %v986 = vpack.c.b16 %v847, %v846
  %v987 = vpack.c.b16 %v849, %v848
  %v988 = vpack.c.b16 %v851, %v850
  %v989 = vpack.c.b16 %v853, %v852
  %v990 = vpack.c.b16 %v855, %v854
  %v991 = vpack.c.b16 %v857, %v856
  %v992 = vpack.c.b16 %v859, %v858
  %v993 = vpack.c.b16 %v861, %v860
  %v994 = vpack.c.b16 %v863, %v862
  %v995 = vpack.c.b16 %v865, %v864
  %v996 = vpack.c.b16 %v867, %v866
  %v997 = vpack.c.b16 %v869, %v868
  %v998 = vpack.c.b16 %v871, %v870
  %v999 = vpack.c.b16 %v873, %v872
  %v1000 = vpack.c.b16 %v875, %v874
  %v1001 = vpack.c.b16 %v877, %v876
  %v1002 = vpack.c.b16 %v879, %v878
  %v1003 = vpack.c.b16 %v881, %v880
  %v1004 = vpack.c.b16 %v883, %v882
  %v1005 = vpack.c.b16 %v885, %v884
  %v1006 = vpack.c.b16 %v887, %v886
  %v1007 = vpack.c.b16 %v889, %v888
  %v1008 = vpack.c.b16 %v891, %v890
  %v1009 = vpack.c.b16 %v893, %v892
  %v1010 = vpack.c.b16 %v895, %v894
  %v1011 = vpack.c.b16 %v897, %v896
  %v1012 = vpack.c.b16 %v899, %v898
  %v1013 = vpack.c.b16 %v901, %v900
  %v1014 = vpack.c.b16 %v903, %v902
  %v1015 = vpack.c.b16 %v905, %v904
  %v1016 = vpack.c.b16 %v907, %v906
  %v1017 = vpack.c.b16 %v909, %v908
  %v1018 = vpack.c.b16 %v911, %v910
  %v1019 = vpack.c.b16 %v913, %v912
  %v1020 = vpack.c.b16 %v915, %v914
  %v1021 = vpack.c.b16 %v917, %v916
  %v1022 = vpack.c.b16 %v919, %v918
  %v1023 = vpack.c.b16 %v921, %v920
  %v1024 = vpack.c.b16 %v923, %v922
  %v1025 = vpack.c.b16 %v925, %v924
  %vm1126 = vcmask 523264
  %v1128 = vsel %vm1126, %v438, 0
  %v1131 = vsel %vm1126, %v451, 0
  %v1134 = vsel %vm1126, %v464, 0
  %v1137 = vsel %vm1126, %v477, 0
  %1139 = vmatprep.subr.bf16.mxu0 0
  %1140 = vmatpush1.bf16.msra.mxu0 %v926
  %1141 = vmatprep.subr.bf16.mxu0 0
  %1142 = vmatpush1.bf16.msra.mxu0 %v927
  %1143 = vmatprep.subr.bf16.mxu0 0
  %1144 = vmatpush1.bf16.msra.mxu0 %v928
  %1145 = vmatprep.subr.bf16.mxu0 0
  %1146 = vmatpush1.bf16.msra.mxu0 %v929
  %1147 = vmatprep.subr.bf16.mxu0 0
  %1148 = vmatpush1.bf16.msra.mxu0 %v930
  %1149 = vmatprep.subr.bf16.mxu0 0
  %1150 = vmatpush1.bf16.msra.mxu0 %v931
  %1151 = vmatprep.subr.bf16.mxu0 0
  %1152 = vmatpush1.bf16.msra.mxu0 %v932
  %1153 = vmatprep.subr.bf16.mxu0 0
  %1154 = vmatpush1.bf16.msra.mxu0 %v933
  %1155 = vmatprep.subr.bf16.mxu0 0
  %1156 = vmatpush1.bf16.msra.mxu0 %v934
  %1157 = vmatprep.subr.bf16.mxu0 0
  %1158 = vmatpush1.bf16.msra.mxu0 %v935
  %1159 = vmatprep.subr.bf16.mxu0 0
  %1160 = vmatpush1.bf16.msra.mxu0 %v936
  %1161 = vmatprep.subr.bf16.mxu0 0
  %1162 = vmatpush1.bf16.msra.mxu0 %v937
  %1163 = vmatprep.subr.bf16.mxu0 0
  %1164 = vmatpush1.bf16.msra.mxu0 %v938
  %1165 = vmatprep.subr.bf16.mxu0 0
  %1166 = vmatpush1.bf16.msra.mxu0 %v939
  %1167 = vmatprep.subr.bf16.mxu0 0
  %1168 = vmatpush1.bf16.msra.mxu0 %v940
  %1169 = vmatprep.subr.bf16.mxu0 0
  %1170 = vmatpush1.bf16.msra.mxu0 %v941
  %1171 = vmatprep.mubr.bf16.mxu0 %v427
  %1172 = vmatmul.mubr.bf16.gmra.mrb[0].mxu0 %v426
  %v1173 = vpop.f32.mrb[0].mxu0
  %v1174 = vadd.f32 %v284, %v1173
  %v1175 = vpop.f32.mrb[0].mxu0
  %v1176 = vpop.f32.mrb[0].mxu0
  %v1177 = vadd.f32 %v284, %v1176
  %v1178 = vpop.f32.mrb[0].mxu0
  %1179 = vmatprep.mubr.bf16.mxu0 %v440
  %1180 = vmatmul.mubr.bf16.gmra.mrb[0].mxu0 %v439
  %v1181 = vpop.f32.mrb[0].mxu0
  %v1182 = vadd.f32 %v284, %v1181
  %v1183 = vpop.f32.mrb[0].mxu0
  %v1184 = vpop.f32.mrb[0].mxu0
  %v1185 = vadd.f32 %v284, %v1184
  %v1186 = vpop.f32.mrb[0].mxu0
  %1187 = vmatprep.mubr.bf16.mxu0 %v453
  %1188 = vmatmul.mubr.bf16.gmra.mrb[0].mxu0 %v452
  %v1189 = vpop.f32.mrb[0].mxu0
  %v1190 = vadd.f32 %v284, %v1189
  %v1191 = vpop.f32.mrb[0].mxu0
  %v1192 = vpop.f32.mrb[0].mxu0
  %v1193 = vadd.f32 %v284, %v1192
  %v1194 = vpop.f32.mrb[0].mxu0
  %1195 = vmatprep.mubr.bf16.mxu0 %v466
  %1196 = vmatmul.mubr.bf16.gmra.mrb[0].mxu0 %v465
  %v1197 = vpop.f32.mrb[0].mxu0
  %v1198 = vadd.f32 %v284, %v1197
  %v1199 = vpop.f32.mrb[0].mxu0
  %v1200 = vpop.f32.mrb[0].mxu0
  %v1201 = vpop.f32.mrb[0].mxu0
  %1202 = vdwg.mxu0
  %1203 = vmatprep.subr.bf16.mxu0 0
  %1204 = vmatpush1.bf16.msra.mxu0 %v942
  %1205 = vmatprep.subr.bf16.mxu0 0
  %1206 = vmatpush1.bf16.msra.mxu0 %v943
  %1207 = vmatprep.subr.bf16.mxu0 0
  %1208 = vmatpush1.bf16.msra.mxu0 %v944
  %1209 = vmatprep.subr.bf16.mxu0 0
  %1210 = vmatpush1.bf16.msra.mxu0 %v945
  %1211 = vmatprep.subr.bf16.mxu0 0
  %1212 = vmatpush1.bf16.msra.mxu0 %v946
  %1213 = vmatprep.subr.bf16.mxu0 0
  %1214 = vmatpush1.bf16.msra.mxu0 %v947
  %1215 = vmatprep.subr.bf16.mxu0 0
  %1216 = vmatpush1.bf16.msra.mxu0 %v948
  %1217 = vmatprep.subr.bf16.mxu0 0
  %1218 = vmatpush1.bf16.msra.mxu0 %v949
  %1219 = vmatprep.subr.bf16.mxu0 0
  %1220 = vmatpush1.bf16.msra.mxu0 %v950
  %1221 = vmatprep.subr.bf16.mxu0 0
  %1222 = vmatpush1.bf16.msra.mxu0 %v951
  %1223 = vmatprep.subr.bf16.mxu0 0
  %1224 = vmatpush1.bf16.msra.mxu0 %v952
  %1225 = vmatprep.subr.bf16.mxu0 0
  %1226 = vmatpush1.bf16.msra.mxu0 %v953
  %1227 = vmatprep.subr.bf16.mxu0 0
  %1228 = vmatpush1.bf16.msra.mxu0 %v954
  %1229 = vmatprep.subr.bf16.mxu0 0
  %1230 = vmatpush1.bf16.msra.mxu0 %v955
  %1231 = vmatprep.subr.bf16.mxu0 0
  %1232 = vmatpush1.bf16.msra.mxu0 %v956
  %1233 = vmatprep.subr.bf16.mxu0 0
  %1234 = vmatpush1.bf16.msra.mxu0 %v957
  %1235 = vmatprep.mubr.bf16.mxu0 %v429
  %1236 = vmatmul.mubr.bf16.gmra.mrb[0].mxu0 %v428
  %v1237 = vpop.f32.mrb[0].mxu0
  %v1238 = vadd.f32 %v1174, %v1237
  %v1239 = vpop.f32.mrb[0].mxu0
  %v1240 = vpop.f32.mrb[0].mxu0
  %v1241 = vadd.f32 %v1177, %v1240
  %v1242 = vpop.f32.mrb[0].mxu0
  %1243 = vmatprep.mubr.bf16.mxu0 %v442
  %1244 = vmatmul.mubr.bf16.gmra.mrb[0].mxu0 %v441
  %v1245 = vpop.f32.mrb[0].mxu0
  %v1246 = vadd.f32 %v1182, %v1245
  %v1247 = vpop.f32.mrb[0].mxu0
  %v1248 = vpop.f32.mrb[0].mxu0
  %v1249 = vadd.f32 %v1185, %v1248
  %v1250 = vpop.f32.mrb[0].mxu0
  %1251 = vmatprep.mubr.bf16.mxu0 %v455
  %1252 = vmatmul.mubr.bf16.gmra.mrb[0].mxu0 %v454
  %v1253 = vpop.f32.mrb[0].mxu0
  %v1254 = vadd.f32 %v1190, %v1253
  %v1255 = vpop.f32.mrb[0].mxu0
  %v1256 = vpop.f32.mrb[0].mxu0
  %v1257 = vadd.f32 %v1193, %v1256
  %v1258 = vpop.f32.mrb[0].mxu0
  %1259 = vmatprep.mubr.bf16.mxu0 %v468
  %1260 = vmatmul.mubr.bf16.gmra.mrb[0].mxu0 %v467
  %v1261 = vpop.f32.mrb[0].mxu0
  %v1262 = vadd.f32 %v1198, %v1261
  %v1263 = vpop.f32.mrb[0].mxu0
  %v1264 = vpop.f32.mrb[0].mxu0
  %v1265 = vpop.f32.mrb[0].mxu0
  %1266 = vdwg.mxu0
  %1267 = vmatprep.subr.bf16.mxu0 0
  %1268 = vmatpush1.bf16.msra.mxu0 %v958
  %1269 = vmatprep.subr.bf16.mxu0 0
  %1270 = vmatpush1.bf16.msra.mxu0 %v959
  %1271 = vmatprep.subr.bf16.mxu0 0
  %1272 = vmatpush1.bf16.msra.mxu0 %v960
  %1273 = vmatprep.subr.bf16.mxu0 0
  %1274 = vmatpush1.bf16.msra.mxu0 %v961
  %1275 = vmatprep.subr.bf16.mxu0 0
  %1276 = vmatpush1.bf16.msra.mxu0 %v962
  %1277 = vmatprep.subr.bf16.mxu0 0
  %1278 = vmatpush1.bf16.msra.mxu0 %v963
  %1279 = vmatprep.subr.bf16.mxu0 0
  %1280 = vmatpush1.bf16.msra.mxu0 %v964
  %1281 = vmatprep.subr.bf16.mxu0 0
  %1282 = vmatpush1.bf16.msra.mxu0 %v965
  %1283 = vmatprep.subr.bf16.mxu0 0
  %1284 = vmatpush1.bf16.msra.mxu0 %v966
  %1285 = vmatprep.subr.bf16.mxu0 0
  %1286 = vmatpush1.bf16.msra.mxu0 %v967
  %1287 = vmatprep.subr.bf16.mxu0 0
  %1288 = vmatpush1.bf16.msra.mxu0 %v968
  %1289 = vmatprep.subr.bf16.mxu0 0
  %1290 = vmatpush1.bf16.msra.mxu0 %v969
  %1291 = vmatprep.subr.bf16.mxu0 0
  %1292 = vmatpush1.bf16.msra.mxu0 %v970
  %1293 = vmatprep.subr.bf16.mxu0 0
  %1294 = vmatpush1.bf16.msra.mxu0 %v971
  %1295 = vmatprep.subr.bf16.mxu0 0
  %1296 = vmatpush1.bf16.msra.mxu0 %v972
  %1297 = vmatprep.subr.bf16.mxu0 0
  %1298 = vmatpush1.bf16.msra.mxu0 %v973
  %1299 = vmatprep.mubr.bf16.mxu0 %v431
  %1300 = vmatmul.mubr.bf16.gmra.mrb[0].mxu0 %v430
  %v1301 = vpop.f32.mrb[0].mxu0
  %v1302 = vadd.f32 %v1238, %v1301
  %v1303 = vpop.f32.mrb[0].mxu0
  %v1304 = vpop.f32.mrb[0].mxu0
  %v1305 = vadd.f32 %v1241, %v1304
  %v1306 = vpop.f32.mrb[0].mxu0
  %1307 = vmatprep.mubr.bf16.mxu0 %v444
  %1308 = vmatmul.mubr.bf16.gmra.mrb[0].mxu0 %v443
  %v1309 = vpop.f32.mrb[0].mxu0
  %v1310 = vadd.f32 %v1246, %v1309
  %v1311 = vpop.f32.mrb[0].mxu0
  %v1312 = vpop.f32.mrb[0].mxu0
  %v1313 = vadd.f32 %v1249, %v1312
  %v1314 = vpop.f32.mrb[0].mxu0
  %1315 = vmatprep.mubr.bf16.mxu0 %v457
  %1316 = vmatmul.mubr.bf16.gmra.mrb[0].mxu0 %v456
  %v1317 = vpop.f32.mrb[0].mxu0
  %v1318 = vadd.f32 %v1254, %v1317
  %v1319 = vpop.f32.mrb[0].mxu0
  %v1320 = vpop.f32.mrb[0].mxu0
  %v1321 = vadd.f32 %v1257, %v1320
  %v1322 = vpop.f32.mrb[0].mxu0
  %1323 = vmatprep.mubr.bf16.mxu0 %v470
  %1324 = vmatmul.mubr.bf16.gmra.mrb[0].mxu0 %v469
  %v1325 = vpop.f32.mrb[0].mxu0
  %v1326 = vadd.f32 %v1262, %v1325
  %v1327 = vpop.f32.mrb[0].mxu0
  %v1328 = vpop.f32.mrb[0].mxu0
  %v1329 = vpop.f32.mrb[0].mxu0
  %1330 = vdwg.mxu0
  %1331 = vmatprep.subr.bf16.mxu0 0
  %1332 = vmatpush1.bf16.msra.mxu0 %v974
  %1333 = vmatprep.subr.bf16.mxu0 0
  %1334 = vmatpush1.bf16.msra.mxu0 %v975
  %1335 = vmatprep.subr.bf16.mxu0 0
  %1336 = vmatpush1.bf16.msra.mxu0 %v976
  %1337 = vmatprep.subr.bf16.mxu0 0
  %1338 = vmatpush1.bf16.msra.mxu0 %v977
  %1339 = vmatprep.subr.bf16.mxu0 0
  %1340 = vmatpush1.bf16.msra.mxu0 %v978
  %1341 = vmatprep.subr.bf16.mxu0 0
  %1342 = vmatpush1.bf16.msra.mxu0 %v979
  %1343 = vmatprep.subr.bf16.mxu0 0
  %1344 = vmatpush1.bf16.msra.mxu0 %v980
  %1345 = vmatprep.subr.bf16.mxu0 0
  %1346 = vmatpush1.bf16.msra.mxu0 %v981
  %1347 = vmatprep.subr.bf16.mxu0 0
  %1348 = vmatpush1.bf16.msra.mxu0 %v982
  %1349 = vmatprep.subr.bf16.mxu0 0
  %1350 = vmatpush1.bf16.msra.mxu0 %v983
  %1351 = vmatprep.subr.bf16.mxu0 0
  %1352 = vmatpush1.bf16.msra.mxu0 %v984
  %1353 = vmatprep.subr.bf16.mxu0 0
  %1354 = vmatpush1.bf16.msra.mxu0 %v985
  %1355 = vmatprep.subr.bf16.mxu0 0
  %1356 = vmatpush1.bf16.msra.mxu0 %v986
  %1357 = vmatprep.subr.bf16.mxu0 0
  %1358 = vmatpush1.bf16.msra.mxu0 %v987
  %1359 = vmatprep.subr.bf16.mxu0 0
  %1360 = vmatpush1.bf16.msra.mxu0 %v988
  %1361 = vmatprep.subr.bf16.mxu0 0
  %1362 = vmatpush1.bf16.msra.mxu0 %v989
  %1363 = vmatprep.mubr.bf16.mxu0 %v433
  %1364 = vmatmul.mubr.bf16.gmra.mrb[0].mxu0 %v432
  %v1365 = vpop.f32.mrb[0].mxu0
  %v1366 = vadd.f32 %v1302, %v1365
  %v1367 = vpop.f32.mrb[0].mxu0
  %v1368 = vpop.f32.mrb[0].mxu0
  %v1369 = vadd.f32 %v1305, %v1368
  %v1370 = vpop.f32.mrb[0].mxu0
  %1371 = vmatprep.mubr.bf16.mxu0 %v446
  %1372 = vmatmul.mubr.bf16.gmra.mrb[0].mxu0 %v445
  %v1373 = vpop.f32.mrb[0].mxu0
  %v1374 = vadd.f32 %v1310, %v1373
  %v1375 = vpop.f32.mrb[0].mxu0
  %v1376 = vpop.f32.mrb[0].mxu0
  %v1377 = vadd.f32 %v1313, %v1376
  %v1378 = vpop.f32.mrb[0].mxu0
  %1379 = vmatprep.mubr.bf16.mxu0 %v459
  %1380 = vmatmul.mubr.bf16.gmra.mrb[0].mxu0 %v458
  %v1381 = vpop.f32.mrb[0].mxu0
  %v1382 = vadd.f32 %v1318, %v1381
  %v1383 = vpop.f32.mrb[0].mxu0
  %v1384 = vpop.f32.mrb[0].mxu0
  %v1385 = vadd.f32 %v1321, %v1384
  %v1386 = vpop.f32.mrb[0].mxu0
  %1387 = vmatprep.mubr.bf16.mxu0 %v472
  %1388 = vmatmul.mubr.bf16.gmra.mrb[0].mxu0 %v471
  %v1389 = vpop.f32.mrb[0].mxu0
  %v1390 = vadd.f32 %v1326, %v1389
  %v1391 = vpop.f32.mrb[0].mxu0
  %v1392 = vpop.f32.mrb[0].mxu0
  %v1393 = vpop.f32.mrb[0].mxu0
  %1394 = vdwg.mxu0
  %1395 = vmatprep.subr.bf16.mxu0 0
  %1396 = vmatpush1.bf16.msra.mxu0 %v990
  %1397 = vmatprep.subr.bf16.mxu0 0
  %1398 = vmatpush1.bf16.msra.mxu0 %v991
  %1399 = vmatprep.subr.bf16.mxu0 0
  %1400 = vmatpush1.bf16.msra.mxu0 %v992
  %1401 = vmatprep.subr.bf16.mxu0 0
  %1402 = vmatpush1.bf16.msra.mxu0 %v993
  %1403 = vmatprep.subr.bf16.mxu0 0
  %1404 = vmatpush1.bf16.msra.mxu0 %v994
  %1405 = vmatprep.subr.bf16.mxu0 0
  %1406 = vmatpush1.bf16.msra.mxu0 %v995
  %1407 = vmatprep.subr.bf16.mxu0 0
  %1408 = vmatpush1.bf16.msra.mxu0 %v996
  %1409 = vmatprep.subr.bf16.mxu0 0
  %1410 = vmatpush1.bf16.msra.mxu0 %v997
  %1411 = vmatprep.subr.bf16.mxu0 0
  %1412 = vmatpush1.bf16.msra.mxu0 %v998
  %1413 = vmatprep.subr.bf16.mxu0 0
  %1414 = vmatpush1.bf16.msra.mxu0 %v999
  %1415 = vmatprep.subr.bf16.mxu0 0
  %1416 = vmatpush1.bf16.msra.mxu0 %v1000
  %1417 = vmatprep.subr.bf16.mxu0 0
  %1418 = vmatpush1.bf16.msra.mxu0 %v1001
  %1419 = vmatprep.subr.bf16.mxu0 0
  %1420 = vmatpush1.bf16.msra.mxu0 %v1002
  %1421 = vmatprep.subr.bf16.mxu0 0
  %1422 = vmatpush1.bf16.msra.mxu0 %v1003
  %1423 = vmatprep.subr.bf16.mxu0 0
  %1424 = vmatpush1.bf16.msra.mxu0 %v1004
  %1425 = vmatprep.subr.bf16.mxu0 0
  %1426 = vmatpush1.bf16.msra.mxu0 %v1005
  %1427 = vmatprep.mubr.bf16.mxu0 %v435
  %1428 = vmatmul.mubr.bf16.gmra.mrb[0].mxu0 %v434
  %v1429 = vpop.f32.mrb[0].mxu0
  %v1430 = vadd.f32 %v1366, %v1429
  %v1431 = vpop.f32.mrb[0].mxu0
  %v1432 = vpop.f32.mrb[0].mxu0
  %v1433 = vadd.f32 %v1369, %v1432
  %v1434 = vpop.f32.mrb[0].mxu0
  %1435 = vmatprep.mubr.bf16.mxu0 %v448
  %1436 = vmatmul.mubr.bf16.gmra.mrb[0].mxu0 %v447
  %v1437 = vpop.f32.mrb[0].mxu0
  %v1438 = vadd.f32 %v1374, %v1437
  %v1439 = vpop.f32.mrb[0].mxu0
  %v1440 = vpop.f32.mrb[0].mxu0
  %v1441 = vadd.f32 %v1377, %v1440
  %v1442 = vpop.f32.mrb[0].mxu0
  %1443 = vmatprep.mubr.bf16.mxu0 %v461
  %1444 = vmatmul.mubr.bf16.gmra.mrb[0].mxu0 %v460
  %v1445 = vpop.f32.mrb[0].mxu0
  %v1446 = vadd.f32 %v1382, %v1445
  %v1447 = vpop.f32.mrb[0].mxu0
  %v1448 = vpop.f32.mrb[0].mxu0
  %v1449 = vadd.f32 %v1385, %v1448
  %v1450 = vpop.f32.mrb[0].mxu0
  %1451 = vmatprep.mubr.bf16.mxu0 %v474
  %1452 = vmatmul.mubr.bf16.gmra.mrb[0].mxu0 %v473
  %v1453 = vpop.f32.mrb[0].mxu0
  %v1454 = vadd.f32 %v1390, %v1453
  %v1455 = vpop.f32.mrb[0].mxu0
  %v1456 = vpop.f32.mrb[0].mxu0
  %v1457 = vpop.f32.mrb[0].mxu0
  %1458 = vdwg.mxu0
  %1459 = vmatprep.subr.bf16.mxu0 0
  %1460 = vmatpush1.bf16.msra.mxu0 %v1006
  %1461 = vmatprep.subr.bf16.mxu0 0
  %1462 = vmatpush1.bf16.msra.mxu0 %v1007
  %1463 = vmatprep.subr.bf16.mxu0 0
  %1464 = vmatpush1.bf16.msra.mxu0 %v1008
  %1465 = vmatprep.subr.bf16.mxu0 0
  %1466 = vmatpush1.bf16.msra.mxu0 %v1009
  %1467 = vmatprep.subr.bf16.mxu0 0
  %1468 = vmatpush1.bf16.msra.mxu0 %v1010
  %1469 = vmatprep.subr.bf16.mxu0 0
  %1470 = vmatpush1.bf16.msra.mxu0 %v1011
  %1471 = vmatprep.subr.bf16.mxu0 0
  %1472 = vmatpush1.bf16.msra.mxu0 %v1012
  %1473 = vmatprep.subr.bf16.mxu0 0
  %1474 = vmatpush1.bf16.msra.mxu0 %v1013
  %1475 = vmatprep.subr.bf16.mxu0 0
  %1476 = vmatpush1.bf16.msra.mxu0 %v1014
  %1477 = vmatprep.subr.bf16.mxu0 0
  %1478 = vmatpush1.bf16.msra.mxu0 %v1015
  %1479 = vmatprep.subr.bf16.mxu0 0
  %1480 = vmatpush1.bf16.msra.mxu0 %v1016
  %1481 = vmatprep.subr.bf16.mxu0 0
  %1482 = vmatpush1.bf16.msra.mxu0 %v1017
  %1483 = vmatprep.subr.bf16.mxu0 0
  %1484 = vmatpush1.bf16.msra.mxu0 %v1018
  %1485 = vmatprep.subr.bf16.mxu0 0
  %1486 = vmatpush1.bf16.msra.mxu0 %v1019
  %1487 = vmatprep.subr.bf16.mxu0 0
  %1488 = vmatpush1.bf16.msra.mxu0 %v1020
  %1489 = vmatprep.subr.bf16.mxu0 0
  %1490 = vmatpush1.bf16.msra.mxu0 %v1021
  %1491 = vmatprep.mubr.bf16.mxu0 %v437
  %1492 = vmatmul.mubr.bf16.gmra.mrb[0].mxu0 %v436
  %v1493 = vpop.f32.mrb[0].mxu0
  %v1494 = vadd.f32 %v1430, %v1493
  %v1495 = vpop.f32.mrb[0].mxu0
  %v1496 = vpop.f32.mrb[0].mxu0
  %v1497 = vadd.f32 %v1433, %v1496
  %v1498 = vpop.f32.mrb[0].mxu0
  %1499 = vmatprep.mubr.bf16.mxu0 %v450
  %1500 = vmatmul.mubr.bf16.gmra.mrb[0].mxu0 %v449
  %v1501 = vpop.f32.mrb[0].mxu0
  %v1502 = vadd.f32 %v1438, %v1501
  %v1503 = vpop.f32.mrb[0].mxu0
  %v1504 = vpop.f32.mrb[0].mxu0
  %v1505 = vadd.f32 %v1441, %v1504
  %v1506 = vpop.f32.mrb[0].mxu0
  %1507 = vmatprep.mubr.bf16.mxu0 %v463
  %1508 = vmatmul.mubr.bf16.gmra.mrb[0].mxu0 %v462
  %v1509 = vpop.f32.mrb[0].mxu0
  %v1510 = vadd.f32 %v1446, %v1509
  %v1511 = vpop.f32.mrb[0].mxu0
  %v1512 = vpop.f32.mrb[0].mxu0
  %v1513 = vadd.f32 %v1449, %v1512
  %v1514 = vpop.f32.mrb[0].mxu0
  %1515 = vmatprep.mubr.bf16.mxu0 %v476
  %1516 = vmatmul.mubr.bf16.gmra.mrb[0].mxu0 %v475
  %v1517 = vpop.f32.mrb[0].mxu0
  %v1518 = vadd.f32 %v1454, %v1517
  %v1519 = vpop.f32.mrb[0].mxu0
  %v1520 = vpop.f32.mrb[0].mxu0
  %v1521 = vpop.f32.mrb[0].mxu0
  %1522 = vdwg.mxu0
  %1523 = vmatprep.subr.bf16.mxu0 0
  %1524 = vmatpush1.bf16.msra.mxu0 %v1022
  %1525 = vmatprep.subr.bf16.mxu0 0
  %1526 = vmatpush1.bf16.msra.mxu0 %v1023
  %1527 = vmatprep.subr.bf16.mxu0 0
  %1528 = vmatpush1.bf16.msra.mxu0 %v1024
  %1529 = vmatprep.subr.bf16.mxu0 0
  %1530 = vmatpush1.bf16.msra.mxu0 %v1025
  %1531 = vmatprep.subr.bf16.mxu0 0
  %1532 = vmatpush1.bf16.msra.mxu0 0
  %1533 = vmatprep.subr.bf16.mxu0 0
  %1534 = vmatpush1.bf16.msra.mxu0 0
  %1535 = vmatprep.subr.bf16.mxu0 0
  %1536 = vmatpush1.bf16.msra.mxu0 0
  %1537 = vmatprep.subr.bf16.mxu0 0
  %1538 = vmatpush1.bf16.msra.mxu0 0
  %1539 = vmatprep.subr.bf16.mxu0 0
  %1540 = vmatpush1.bf16.msra.mxu0 0
  %1541 = vmatprep.subr.bf16.mxu0 0
  %1542 = vmatpush1.bf16.msra.mxu0 0
  %1543 = vmatprep.subr.bf16.mxu0 0
  %1544 = vmatpush1.bf16.msra.mxu0 0
  %1545 = vmatprep.subr.bf16.mxu0 0
  %1546 = vmatpush1.bf16.msra.mxu0 0
  %1547 = vmatprep.subr.bf16.mxu0 0
  %1548 = vmatpush1.bf16.msra.mxu0 0
  %1549 = vmatprep.subr.bf16.mxu0 0
  %1550 = vmatpush1.bf16.msra.mxu0 0
  %1551 = vmatprep.subr.bf16.mxu0 0
  %1552 = vmatpush1.bf16.msra.mxu0 0
  %1553 = vmatprep.subr.bf16.mxu0 0
  %1554 = vmatpush1.bf16.msra.mxu0 0
  %1555 = vmatprep.mubr.bf16.mxu0 0
  %1556 = vmatmul.mubr.bf16.gmra.mrb[0].mxu0 %v1128
  %v1557 = vpop.f32.mrb[0].mxu0
  %v1558 = vadd.f32 %v1494, %v1557
  %v1559 = vpop.f32.mrb[0].mxu0
  %v1560 = vpop.f32.mrb[0].mxu0
  %v1561 = vadd.f32 %v1497, %v1560
  %v1562 = vpop.f32.mrb[0].mxu0
  %1563 = vmatprep.mubr.bf16.mxu0 0
  %1564 = vmatmul.mubr.bf16.gmra.mrb[0].mxu0 %v1131
  %v1565 = vpop.f32.mrb[0].mxu0
  %v1566 = vadd.f32 %v1502, %v1565
  %v1567 = vpop.f32.mrb[0].mxu0
  %v1568 = vpop.f32.mrb[0].mxu0
  %v1569 = vadd.f32 %v1505, %v1568
  %v1570 = vpop.f32.mrb[0].mxu0
  %1571 = vmatprep.mubr.bf16.mxu0 0
  %1572 = vmatmul.mubr.bf16.gmra.mrb[0].mxu0 %v1134
  %v1573 = vpop.f32.mrb[0].mxu0
  %v1574 = vadd.f32 %v1510, %v1573
  %v1575 = vpop.f32.mrb[0].mxu0
  %v1576 = vpop.f32.mrb[0].mxu0
  %v1577 = vadd.f32 %v1513, %v1576
  %v1578 = vpop.f32.mrb[0].mxu0
  %1579 = vmatprep.mubr.bf16.mxu0 0
  %1580 = vmatmul.mubr.bf16.gmra.mrb[0].mxu0 %v1137
  %v1581 = vpop.f32.mrb[0].mxu0
  %v1582 = vadd.f32 %v1518, %v1581
  %v1583 = vpop.f32.mrb[0].mxu0
  %v1584 = vpop.f32.mrb[0].mxu0
  %v1585 = vpop.f32.mrb[0].mxu0
  %1586 = vdwg.mxu0
  %v1587 = vmax.f32 %v1558, 0.0
  %v1588 = vmax.f32 %v1561, 0.0
  %v1589 = vmax.f32 %v1566, 0.0
  %v1590 = vmax.f32 %v1569, 0.0
  %v1591 = vmax.f32 %v1574, 0.0
  %v1592 = vmax.f32 %v1577, 0.0
  %v1593 = vmax.f32 %v1582, 0.0
  %v1594 = vld [vmem:[%s1] sm:$0xff]
  %v1595 = vld [vmem:[%s1 + $0x8] sm:$0xff]
  %v1596 = vld [vmem:[%s1 + $0x10] sm:$0xff]
  %v1597 = vld [vmem:[%s1 + $0x18] sm:$0xff]
  %v1598 = vld [vmem:[%s1 + $0x20] sm:$0xff]
  %v1599 = vld [vmem:[%s1 + $0x28] sm:$0xff]
  %v1600 = vld [vmem:[%s1 + $0x30] sm:$0xf]
  %v1601 = vld [vmem:[%s1 + $0x34] sm:$0xff]
  %v1602 = vld [vmem:[%s1 + $0x3c] sm:$0xff]
  %v1603 = vld [vmem:[%s1 + $0x44] sm:$0xff]
  %v1604 = vld [vmem:[%s1 + $0x4c] sm:$0xff]
  %v1605 = vld [vmem:[%s1 + $0x54] sm:$0xff]
  %v1606 = vld [vmem:[%s1 + $0x5c] sm:$0xff]
  %v1607 = vld [vmem:[%s1 + $0x64] sm:$0xf]
  %v1608 = vld [vmem:[%s1 + $0x68] sm:$0xff]
  %v1609 = vld [vmem:[%s1 + $0x70] sm:$0xff]
  %v1610 = vld [vmem:[%s1 + $0x78] sm:$0xff]
  %v1611 = vld [vmem:[%s1 + $0x80] sm:$0xff]
  %v1612 = vld [vmem:[%s1 + $0x88] sm:$0xff]
  %v1613 = vld [vmem:[%s1 + $0x90] sm:$0xff]
  %v1614 = vld [vmem:[%s1 + $0x98] sm:$0xf]
  %v1615 = vld [vmem:[%s1 + $0x9c] sm:$0xff]
  %v1616 = vld [vmem:[%s1 + $0xa4] sm:$0xff]
  %v1617 = vld [vmem:[%s1 + $0xac] sm:$0xff]
  %v1618 = vld [vmem:[%s1 + $0xb4] sm:$0xff]
  %v1619 = vld [vmem:[%s1 + $0xbc] sm:$0xff]
  %v1620 = vld [vmem:[%s1 + $0xc4] sm:$0xff]
  %v1621 = vld [vmem:[%s1 + $0xcc] sm:$0xf]
  %v1622 = vld [vmem:[%s1 + $0xd0] sm:$0xff]
  %v1623 = vld [vmem:[%s1 + $0xd8] sm:$0xff]
  %v1624 = vld [vmem:[%s1 + $0xe0] sm:$0xff]
  %v1625 = vld [vmem:[%s1 + $0xe8] sm:$0xff]
  %v1626 = vld [vmem:[%s1 + $0xf0] sm:$0xff]
  %v1627 = vld [vmem:[%s1 + $0xf8] sm:$0xff]
  %v1628 = vld [vmem:[%s1 + $0x100] sm:$0xf]
  %v1629 = vld [vmem:[%s1 + $0x104] sm:$0xff]
  %v1630 = vld [vmem:[%s1 + $0x10c] sm:$0xff]
  %v1631 = vld [vmem:[%s1 + $0x114] sm:$0xff]
  %v1632 = vld [vmem:[%s1 + $0x11c] sm:$0xff]
  %v1633 = vld [vmem:[%s1 + $0x124] sm:$0xff]
  %v1634 = vld [vmem:[%s1 + $0x12c] sm:$0xff]
  %v1635 = vld [vmem:[%s1 + $0x134] sm:$0xf]
  %v1636 = vld [vmem:[%s1 + $0x138] sm:$0x11]
  %v1637 = vld [vmem:[%s1 + $0x140] sm:$0x11]
  %v1638 = vld [vmem:[%s1 + $0x148] sm:$0x11]
  %v1639 = vld [vmem:[%s1 + $0x150] sm:$0x11]
  %v1640 = vld [vmem:[%s1 + $0x158] sm:$0x11]
  %v1641 = vld [vmem:[%s1 + $0x160] sm:$0x11]
  %v1642 = vld [vmem:[%s1 + $0x168] sm:$0x1]
  %v1692 = vunpack.c.l.b16 %v1594
  %v1693 = vunpack.c.h.b16 %v1594
  %v1694 = vunpack.c.l.b16 %v1595
  %v1695 = vunpack.c.h.b16 %v1595
  %v1696 = vunpack.c.l.b16 %v1596
  %v1697 = vunpack.c.h.b16 %v1596
  %v1698 = vunpack.c.l.b16 %v1597
  %v1699 = vunpack.c.h.b16 %v1597
  %v1700 = vunpack.c.l.b16 %v1598
  %v1701 = vunpack.c.h.b16 %v1598
  %v1702 = vunpack.c.l.b16 %v1599
  %v1703 = vunpack.c.h.b16 %v1599
  %v1704 = vunpack.c.l.b16 %v1600
  %v1705 = vunpack.c.l.b16 %v1601
  %v1706 = vunpack.c.h.b16 %v1601
  %v1707 = vunpack.c.l.b16 %v1602
  %v1708 = vunpack.c.h.b16 %v1602
  %v1709 = vunpack.c.l.b16 %v1603
  %v1710 = vunpack.c.h.b16 %v1603
  %v1711 = vunpack.c.l.b16 %v1604
  %v1712 = vunpack.c.h.b16 %v1604
  %v1713 = vunpack.c.l.b16 %v1605
  %v1714 = vunpack.c.h.b16 %v1605
  %v1715 = vunpack.c.l.b16 %v1606
  %v1716 = vunpack.c.h.b16 %v1606
  %v1717 = vunpack.c.l.b16 %v1607
  %v1718 = vunpack.c.l.b16 %v1608
  %v1719 = vunpack.c.h.b16 %v1608
  %v1720 = vunpack.c.l.b16 %v1609
  %v1721 = vunpack.c.h.b16 %v1609
  %v1722 = vunpack.c.l.b16 %v1610
  %v1723 = vunpack.c.h.b16 %v1610
  %v1724 = vunpack.c.l.b16 %v1611
  %v1725 = vunpack.c.h.b16 %v1611
  %v1726 = vunpack.c.l.b16 %v1612
  %v1727 = vunpack.c.h.b16 %v1612
  %v1728 = vunpack.c.l.b16 %v1613
  %v1729 = vunpack.c.h.b16 %v1613
  %v1730 = vunpack.c.l.b16 %v1614
  %v1731 = vunpack.c.l.b16 %v1615
  %v1732 = vunpack.c.h.b16 %v1615
  %v1733 = vunpack.c.l.b16 %v1616
  %v1734 = vunpack.c.h.b16 %v1616
  %v1735 = vunpack.c.l.b16 %v1617
  %v1736 = vunpack.c.h.b16 %v1617
  %v1737 = vunpack.c.l.b16 %v1618
  %v1738 = vunpack.c.h.b16 %v1618
  %v1739 = vunpack.c.l.b16 %v1619
  %v1740 = vunpack.c.h.b16 %v1619
  %v1741 = vunpack.c.l.b16 %v1620
  %v1742 = vunpack.c.h.b16 %v1620
  %v1743 = vunpack.c.l.b16 %v1621
  %v1744 = vunpack.c.l.b16 %v1622
  %v1745 = vunpack.c.h.b16 %v1622
  %v1746 = vunpack.c.l.b16 %v1623
  %v1747 = vunpack.c.h.b16 %v1623
  %v1748 = vunpack.c.l.b16 %v1624
  %v1749 = vunpack.c.h.b16 %v1624
  %v1750 = vunpack.c.l.b16 %v1625
  %v1751 = vunpack.c.h.b16 %v1625
  %v1752 = vunpack.c.l.b16 %v1626
  %v1753 = vunpack.c.h.b16 %v1626
  %v1754 = vunpack.c.l.b16 %v1627
  %v1755 = vunpack.c.h.b16 %v1627
  %v1756 = vunpack.c.l.b16 %v1628
  %v1757 = vunpack.c.l.b16 %v1629
  %v1758 = vunpack.c.h.b16 %v1629
  %v1759 = vunpack.c.l.b16 %v1630
  %v1760 = vunpack.c.h.b16 %v1630
  %v1761 = vunpack.c.l.b16 %v1631
  %v1762 = vunpack.c.h.b16 %v1631
  %v1763 = vunpack.c.l.b16 %v1632
  %v1764 = vunpack.c.h.b16 %v1632
  %v1765 = vunpack.c.l.b16 %v1633
  %v1766 = vunpack.c.h.b16 %v1633
  %v1767 = vunpack.c.l.b16 %v1634
  %v1768 = vunpack.c.h.b16 %v1634
  %v1769 = vunpack.c.l.b16 %v1635
  %v1770 = vunpack.c.l.b16 %v1636
  %v1771 = vunpack.c.h.b16 %v1636
  %v1772 = vunpack.c.l.b16 %v1637
  %v1773 = vunpack.c.h.b16 %v1637
  %v1774 = vunpack.c.l.b16 %v1638
  %v1775 = vunpack.c.h.b16 %v1638
  %v1776 = vunpack.c.l.b16 %v1639
  %v1777 = vunpack.c.h.b16 %v1639
  %v1778 = vunpack.c.l.b16 %v1640
  %v1779 = vunpack.c.h.b16 %v1640
  %v1780 = vunpack.c.l.b16 %v1641
  %v1781 = vunpack.c.h.b16 %v1641
  %v1782 = vunpack.c.l.b16 %v1642
  %v1783 = vpack.c.b16 %v1705, %v1692
  %v1784 = vpack.c.b16 %v1706, %v1693
  %v1785 = vpack.c.b16 %v1707, %v1694
  %v1786 = vpack.c.b16 %v1708, %v1695
  %v1787 = vpack.c.b16 %v1709, %v1696
  %v1788 = vpack.c.b16 %v1710, %v1697
  %v1789 = vpack.c.b16 %v1711, %v1698
  %v1790 = vpack.c.b16 %v1712, %v1699
  %v1791 = vpack.c.b16 %v1713, %v1700
  %v1792 = vpack.c.b16 %v1714, %v1701
  %v1793 = vpack.c.b16 %v1715, %v1702
  %v1794 = vpack.c.b16 %v1716, %v1703
  %v1795 = vpack.c.b16 %v1717, %v1704
  %v1796 = vpack.c.b16 %v1731, %v1718
  %v1797 = vpack.c.b16 %v1732, %v1719
  %v1798 = vpack.c.b16 %v1733, %v1720
  %v1799 = vpack.c.b16 %v1734, %v1721
  %v1800 = vpack.c.b16 %v1735, %v1722
  %v1801 = vpack.c.b16 %v1736, %v1723
  %v1802 = vpack.c.b16 %v1737, %v1724
  %v1803 = vpack.c.b16 %v1738, %v1725
  %v1804 = vpack.c.b16 %v1739, %v1726
  %v1805 = vpack.c.b16 %v1740, %v1727
  %v1806 = vpack.c.b16 %v1741, %v1728
  %v1807 = vpack.c.b16 %v1742, %v1729
  %v1808 = vpack.c.b16 %v1743, %v1730
  %v1809 = vpack.c.b16 %v1757, %v1744
  %v1810 = vpack.c.b16 %v1758, %v1745
  %v1811 = vpack.c.b16 %v1759, %v1746
  %v1812 = vpack.c.b16 %v1760, %v1747
  %v1813 = vpack.c.b16 %v1761, %v1748
  %v1814 = vpack.c.b16 %v1762, %v1749
  %v1815 = vpack.c.b16 %v1763, %v1750
  %v1816 = vpack.c.b16 %v1764, %v1751
  %v1817 = vpack.c.b16 %v1765, %v1752
  %v1818 = vpack.c.b16 %v1766, %v1753
  %v1819 = vpack.c.b16 %v1767, %v1754
  %v1820 = vpack.c.b16 %v1768, %v1755
  %v1821 = vpack.c.b16 %v1769, %v1756
  %v1822 = vpack.c.b16 %v1770, %v1770
  %v1823 = vpack.c.b16 %v1771, %v1771
  %v1824 = vpack.c.b16 %v1772, %v1772
  %v1825 = vpack.c.b16 %v1773, %v1773
  %v1826 = vpack.c.b16 %v1774, %v1774
  %v1827 = vpack.c.b16 %v1775, %v1775
  %v1828 = vpack.c.b16 %v1776, %v1776
  %v1829 = vpack.c.b16 %v1777, %v1777
  %v1830 = vpack.c.b16 %v1778, %v1778
  %v1831 = vpack.c.b16 %v1779, %v1779
  %v1832 = vpack.c.b16 %v1780, %v1780
  %v1833 = vpack.c.b16 %v1781, %v1781
  %v1834 = vpack.c.b16 %v1782, %v1782
  %v1884 = vsel %vm1126, %v1795, 0
  %v1887 = vsel %vm1126, %v1808, 0
  %v1890 = vsel %vm1126, %v1821, 0
  %v1893 = vsel %vm1126, %v1834, 0
  %1895 = vmatprep.subr.bf16.mxu0 0
  %1896 = vmatpush1.bf16.msra.mxu0 %v926
  %1897 = vmatprep.subr.bf16.mxu0 0
  %1898 = vmatpush1.bf16.msra.mxu0 %v927
  %1899 = vmatprep.subr.bf16.mxu0 0
  %1900 = vmatpush1.bf16.msra.mxu0 %v928
  %1901 = vmatprep.subr.bf16.mxu0 0
  %1902 = vmatpush1.bf16.msra.mxu0 %v929
  %1903 = vmatprep.subr.bf16.mxu0 0
  %1904 = vmatpush1.bf16.msra.mxu0 %v930
  %1905 = vmatprep.subr.bf16.mxu0 0
  %1906 = vmatpush1.bf16.msra.mxu0 %v931
  %1907 = vmatprep.subr.bf16.mxu0 0
  %1908 = vmatpush1.bf16.msra.mxu0 %v932
  %1909 = vmatprep.subr.bf16.mxu0 0
  %1910 = vmatpush1.bf16.msra.mxu0 %v933
  %1911 = vmatprep.subr.bf16.mxu0 0
  %1912 = vmatpush1.bf16.msra.mxu0 %v934
  %1913 = vmatprep.subr.bf16.mxu0 0
  %1914 = vmatpush1.bf16.msra.mxu0 %v935
  %1915 = vmatprep.subr.bf16.mxu0 0
  %1916 = vmatpush1.bf16.msra.mxu0 %v936
  %1917 = vmatprep.subr.bf16.mxu0 0
  %1918 = vmatpush1.bf16.msra.mxu0 %v937
  %1919 = vmatprep.subr.bf16.mxu0 0
  %1920 = vmatpush1.bf16.msra.mxu0 %v938
  %1921 = vmatprep.subr.bf16.mxu0 0
  %1922 = vmatpush1.bf16.msra.mxu0 %v939
  %1923 = vmatprep.subr.bf16.mxu0 0
  %1924 = vmatpush1.bf16.msra.mxu0 %v940
  %1925 = vmatprep.subr.bf16.mxu0 0
  %1926 = vmatpush1.bf16.msra.mxu0 %v941
  %1927 = vmatprep.mubr.bf16.mxu0 %v1784
  %1928 = vmatmul.mubr.bf16.gmra.mrb[0].mxu0 %v1783
  %v1929 = vpop.f32.mrb[0].mxu0
  %v1930 = vadd.f32 %v284, %v1929
  %v1931 = vpop.f32.mrb[0].mxu0
  %v1932 = vpop.f32.mrb[0].mxu0
  %v1933 = vadd.f32 %v284, %v1932
  %v1934 = vpop.f32.mrb[0].mxu0
  %1935 = vmatprep.mubr.bf16.mxu0 %v1797
  %1936 = vmatmul.mubr.bf16.gmra.mrb[0].mxu0 %v1796
  %v1937 = vpop.f32.mrb[0].mxu0
  %v1938 = vadd.f32 %v284, %v1937
  %v1939 = vpop.f32.mrb[0].mxu0
  %v1940 = vpop.f32.mrb[0].mxu0
  %v1941 = vadd.f32 %v284, %v1940
  %v1942 = vpop.f32.mrb[0].mxu0
  %1943 = vmatprep.mubr.bf16.mxu0 %v1810
  %1944 = vmatmul.mubr.bf16.gmra.mrb[0].mxu0 %v1809
  %v1945 = vpop.f32.mrb[0].mxu0
  %v1946 = vadd.f32 %v284, %v1945
  %v1947 = vpop.f32.mrb[0].mxu0
  %v1948 = vpop.f32.mrb[0].mxu0
  %v1949 = vadd.f32 %v284, %v1948
  %v1950 = vpop.f32.mrb[0].mxu0
  %1951 = vmatprep.mubr.bf16.mxu0 %v1823
  %1952 = vmatmul.mubr.bf16.gmra.mrb[0].mxu0 %v1822
  %v1953 = vpop.f32.mrb[0].mxu0
  %v1954 = vadd.f32 %v284, %v1953
  %v1955 = vpop.f32.mrb[0].mxu0
  %v1956 = vpop.f32.mrb[0].mxu0
  %v1957 = vpop.f32.mrb[0].mxu0
  %1958 = vdwg.mxu0
  %1959 = vmatprep.subr.bf16.mxu0 0
  %1960 = vmatpush1.bf16.msra.mxu0 %v942
  %1961 = vmatprep.subr.bf16.mxu0 0
  %1962 = vmatpush1.bf16.msra.mxu0 %v943
  %1963 = vmatprep.subr.bf16.mxu0 0
  %1964 = vmatpush1.bf16.msra.mxu0 %v944
  %1965 = vmatprep.subr.bf16.mxu0 0
  %1966 = vmatpush1.bf16.msra.mxu0 %v945
  %1967 = vmatprep.subr.bf16.mxu0 0
  %1968 = vmatpush1.bf16.msra.mxu0 %v946
  %1969 = vmatprep.subr.bf16.mxu0 0
  %1970 = vmatpush1.bf16.msra.mxu0 %v947
  %1971 = vmatprep.subr.bf16.mxu0 0
  %1972 = vmatpush1.bf16.msra.mxu0 %v948
  %1973 = vmatprep.subr.bf16.mxu0 0
  %1974 = vmatpush1.bf16.msra.mxu0 %v949
  %1975 = vmatprep.subr.bf16.mxu0 0
  %1976 = vmatpush1.bf16.msra.mxu0 %v950
  %1977 = vmatprep.subr.bf16.mxu0 0
  %1978 = vmatpush1.bf16.msra.mxu0 %v951
  %1979 = vmatprep.subr.bf16.mxu0 0
  %1980 = vmatpush1.bf16.msra.mxu0 %v952
  %1981 = vmatprep.subr.bf16.mxu0 0
  %1982 = vmatpush1.bf16.msra.mxu0 %v953
  %1983 = vmatprep.subr.bf16.mxu0 0
  %1984 = vmatpush1.bf16.msra.mxu0 %v954
  %1985 = vmatprep.subr.bf16.mxu0 0
  %1986 = vmatpush1.bf16.msra.mxu0 %v955
  %1987 = vmatprep.subr.bf16.mxu0 0
  %1988 = vmatpush1.bf16.msra.mxu0 %v956
  %1989 = vmatprep.subr.bf16.mxu0 0
  %1990 = vmatpush1.bf16.msra.mxu0 %v957
  %1991 = vmatprep.mubr.bf16.mxu0 %v1786
  %1992 = vmatmul.mubr.bf16.gmra.mrb[0].mxu0 %v1785
  %v1993 = vpop.f32.mrb[0].mxu0
  %v1994 = vadd.f32 %v1930, %v1993
  %v1995 = vpop.f32.mrb[0].mxu0
  %v1996 = vpop.f32.mrb[0].mxu0
  %v1997 = vadd.f32 %v1933, %v1996
  %v1998 = vpop.f32.mrb[0].mxu0
  %1999 = vmatprep.mubr.bf16.mxu0 %v1799
  %2000 = vmatmul.mubr.bf16.gmra.mrb[0].mxu0 %v1798
  %v2001 = vpop.f32.mrb[0].mxu0
  %v2002 = vadd.f32 %v1938, %v2001
  %v2003 = vpop.f32.mrb[0].mxu0
  %v2004 = vpop.f32.mrb[0].mxu0
  %v2005 = vadd.f32 %v1941, %v2004
  %v2006 = vpop.f32.mrb[0].mxu0
  %2007 = vmatprep.mubr.bf16.mxu0 %v1812
  %2008 = vmatmul.mubr.bf16.gmra.mrb[0].mxu0 %v1811
  %v2009 = vpop.f32.mrb[0].mxu0
  %v2010 = vadd.f32 %v1946, %v2009
  %v2011 = vpop.f32.mrb[0].mxu0
  %v2012 = vpop.f32.mrb[0].mxu0
  %v2013 = vadd.f32 %v1949, %v2012
  %v2014 = vpop.f32.mrb[0].mxu0
  %2015 = vmatprep.mubr.bf16.mxu0 %v1825
  %2016 = vmatmul.mubr.bf16.gmra.mrb[0].mxu0 %v1824
  %v2017 = vpop.f32.mrb[0].mxu0
  %v2018 = vadd.f32 %v1954, %v2017
  %v2019 = vpop.f32.mrb[0].mxu0
  %v2020 = vpop.f32.mrb[0].mxu0
  %v2021 = vpop.f32.mrb[0].mxu0
  %2022 = vdwg.mxu0
  %2023 = vmatprep.subr.bf16.mxu0 0
  %2024 = vmatpush1.bf16.msra.mxu0 %v958
  %2025 = vmatprep.subr.bf16.mxu0 0
  %2026 = vmatpush1.bf16.msra.mxu0 %v959
  %2027 = vmatprep.subr.bf16.mxu0 0
  %2028 = vmatpush1.bf16.msra.mxu0 %v960
  %2029 = vmatprep.subr.bf16.mxu0 0
  %2030 = vmatpush1.bf16.msra.mxu0 %v961
  %2031 = vmatprep.subr.bf16.mxu0 0
  %2032 = vmatpush1.bf16.msra.mxu0 %v962
  %2033 = vmatprep.subr.bf16.mxu0 0
  %2034 = vmatpush1.bf16.msra.mxu0 %v963
  %2035 = vmatprep.subr.bf16.mxu0 0
  %2036 = vmatpush1.bf16.msra.mxu0 %v964
  %2037 = vmatprep.subr.bf16.mxu0 0
  %2038 = vmatpush1.bf16.msra.mxu0 %v965
  %2039 = vmatprep.subr.bf16.mxu0 0
  %2040 = vmatpush1.bf16.msra.mxu0 %v966
  %2041 = vmatprep.subr.bf16.mxu0 0
  %2042 = vmatpush1.bf16.msra.mxu0 %v967
  %2043 = vmatprep.subr.bf16.mxu0 0
  %2044 = vmatpush1.bf16.msra.mxu0 %v968
  %2045 = vmatprep.subr.bf16.mxu0 0
  %2046 = vmatpush1.bf16.msra.mxu0 %v969
  %2047 = vmatprep.subr.bf16.mxu0 0
  %2048 = vmatpush1.bf16.msra.mxu0 %v970
  %2049 = vmatprep.subr.bf16.mxu0 0
  %2050 = vmatpush1.bf16.msra.mxu0 %v971
  %2051 = vmatprep.subr.bf16.mxu0 0
  %2052 = vmatpush1.bf16.msra.mxu0 %v972
  %2053 = vmatprep.subr.bf16.mxu0 0
  %2054 = vmatpush1.bf16.msra.mxu0 %v973
  %2055 = vmatprep.mubr.bf16.mxu0 %v1788
  %2056 = vmatmul.mubr.bf16.gmra.mrb[0].mxu0 %v1787
  %v2057 = vpop.f32.mrb[0].mxu0
  %v2058 = vadd.f32 %v1994, %v2057
  %v2059 = vpop.f32.mrb[0].mxu0
  %v2060 = vpop.f32.mrb[0].mxu0
  %v2061 = vadd.f32 %v1997, %v2060
  %v2062 = vpop.f32.mrb[0].mxu0
  %2063 = vmatprep.mubr.bf16.mxu0 %v1801
  %2064 = vmatmul.mubr.bf16.gmra.mrb[0].mxu0 %v1800
  %v2065 = vpop.f32.mrb[0].mxu0
  %v2066 = vadd.f32 %v2002, %v2065
  %v2067 = vpop.f32.mrb[0].mxu0
  %v2068 = vpop.f32.mrb[0].mxu0
  %v2069 = vadd.f32 %v2005, %v2068
  %v2070 = vpop.f32.mrb[0].mxu0
  %2071 = vmatprep.mubr.bf16.mxu0 %v1814
  %2072 = vmatmul.mubr.bf16.gmra.mrb[0].mxu0 %v1813
  %v2073 = vpop.f32.mrb[0].mxu0
  %v2074 = vadd.f32 %v2010, %v2073
  %v2075 = vpop.f32.mrb[0].mxu0
  %v2076 = vpop.f32.mrb[0].mxu0
  %v2077 = vadd.f32 %v2013, %v2076
  %v2078 = vpop.f32.mrb[0].mxu0
  %2079 = vmatprep.mubr.bf16.mxu0 %v1827
  %2080 = vmatmul.mubr.bf16.gmra.mrb[0].mxu0 %v1826
  %v2081 = vpop.f32.mrb[0].mxu0
  %v2082 = vadd.f32 %v2018, %v2081
  %v2083 = vpop.f32.mrb[0].mxu0
  %v2084 = vpop.f32.mrb[0].mxu0
  %v2085 = vpop.f32.mrb[0].mxu0
  %2086 = vdwg.mxu0
  %2087 = vmatprep.subr.bf16.mxu0 0
  %2088 = vmatpush1.bf16.msra.mxu0 %v974
  %2089 = vmatprep.subr.bf16.mxu0 0
  %2090 = vmatpush1.bf16.msra.mxu0 %v975
  %2091 = vmatprep.subr.bf16.mxu0 0
  %2092 = vmatpush1.bf16.msra.mxu0 %v976
  %2093 = vmatprep.subr.bf16.mxu0 0
  %2094 = vmatpush1.bf16.msra.mxu0 %v977
  %2095 = vmatprep.subr.bf16.mxu0 0
  %2096 = vmatpush1.bf16.msra.mxu0 %v978
  %2097 = vmatprep.subr.bf16.mxu0 0
  %2098 = vmatpush1.bf16.msra.mxu0 %v979
  %2099 = vmatprep.subr.bf16.mxu0 0
  %2100 = vmatpush1.bf16.msra.mxu0 %v980
  %2101 = vmatprep.subr.bf16.mxu0 0
  %2102 = vmatpush1.bf16.msra.mxu0 %v981
  %2103 = vmatprep.subr.bf16.mxu0 0
  %2104 = vmatpush1.bf16.msra.mxu0 %v982
  %2105 = vmatprep.subr.bf16.mxu0 0
  %2106 = vmatpush1.bf16.msra.mxu0 %v983
  %2107 = vmatprep.subr.bf16.mxu0 0
  %2108 = vmatpush1.bf16.msra.mxu0 %v984
  %2109 = vmatprep.subr.bf16.mxu0 0
  %2110 = vmatpush1.bf16.msra.mxu0 %v985
  %2111 = vmatprep.subr.bf16.mxu0 0
  %2112 = vmatpush1.bf16.msra.mxu0 %v986
  %2113 = vmatprep.subr.bf16.mxu0 0
  %2114 = vmatpush1.bf16.msra.mxu0 %v987
  %2115 = vmatprep.subr.bf16.mxu0 0
  %2116 = vmatpush1.bf16.msra.mxu0 %v988
  %2117 = vmatprep.subr.bf16.mxu0 0
  %2118 = vmatpush1.bf16.msra.mxu0 %v989
  %2119 = vmatprep.mubr.bf16.mxu0 %v1790
  %2120 = vmatmul.mubr.bf16.gmra.mrb[0].mxu0 %v1789
  %v2121 = vpop.f32.mrb[0].mxu0
  %v2122 = vadd.f32 %v2058, %v2121
  %v2123 = vpop.f32.mrb[0].mxu0
  %v2124 = vpop.f32.mrb[0].mxu0
  %v2125 = vadd.f32 %v2061, %v2124
  %v2126 = vpop.f32.mrb[0].mxu0
  %2127 = vmatprep.mubr.bf16.mxu0 %v1803
  %2128 = vmatmul.mubr.bf16.gmra.mrb[0].mxu0 %v1802
  %v2129 = vpop.f32.mrb[0].mxu0
  %v2130 = vadd.f32 %v2066, %v2129
  %v2131 = vpop.f32.mrb[0].mxu0
  %v2132 = vpop.f32.mrb[0].mxu0
  %v2133 = vadd.f32 %v2069, %v2132
  %v2134 = vpop.f32.mrb[0].mxu0
  %2135 = vmatprep.mubr.bf16.mxu0 %v1816
  %2136 = vmatmul.mubr.bf16.gmra.mrb[0].mxu0 %v1815
  %v2137 = vpop.f32.mrb[0].mxu0
  %v2138 = vadd.f32 %v2074, %v2137
  %v2139 = vpop.f32.mrb[0].mxu0
  %v2140 = vpop.f32.mrb[0].mxu0
  %v2141 = vadd.f32 %v2077, %v2140
  %v2142 = vpop.f32.mrb[0].mxu0
  %2143 = vmatprep.mubr.bf16.mxu0 %v1829
  %2144 = vmatmul.mubr.bf16.gmra.mrb[0].mxu0 %v1828
  %v2145 = vpop.f32.mrb[0].mxu0
  %v2146 = vadd.f32 %v2082, %v2145
  %v2147 = vpop.f32.mrb[0].mxu0
  %v2148 = vpop.f32.mrb[0].mxu0
  %v2149 = vpop.f32.mrb[0].mxu0
  %2150 = vdwg.mxu0
  %2151 = vmatprep.subr.bf16.mxu0 0
  %2152 = vmatpush1.bf16.msra.mxu0 %v990
  %2153 = vmatprep.subr.bf16.mxu0 0
  %2154 = vmatpush1.bf16.msra.mxu0 %v991
  %2155 = vmatprep.subr.bf16.mxu0 0
  %2156 = vmatpush1.bf16.msra.mxu0 %v992
  %2157 = vmatprep.subr.bf16.mxu0 0
  %2158 = vmatpush1.bf16.msra.mxu0 %v993
  %2159 = vmatprep.subr.bf16.mxu0 0
  %2160 = vmatpush1.bf16.msra.mxu0 %v994
  %2161 = vmatprep.subr.bf16.mxu0 0
  %2162 = vmatpush1.bf16.msra.mxu0 %v995
  %2163 = vmatprep.subr.bf16.mxu0 0
  %2164 = vmatpush1.bf16.msra.mxu0 %v996
  %2165 = vmatprep.subr.bf16.mxu0 0
  %2166 = vmatpush1.bf16.msra.mxu0 %v997
  %2167 = vmatprep.subr.bf16.mxu0 0
  %2168 = vmatpush1.bf16.msra.mxu0 %v998
  %2169 = vmatprep.subr.bf16.mxu0 0
  %2170 = vmatpush1.bf16.msra.mxu0 %v999
  %2171 = vmatprep.subr.bf16.mxu0 0
  %2172 = vmatpush1.bf16.msra.mxu0 %v1000
  %2173 = vmatprep.subr.bf16.mxu0 0
  %2174 = vmatpush1.bf16.msra.mxu0 %v1001
  %2175 = vmatprep.subr.bf16.mxu0 0
  %2176 = vmatpush1.bf16.msra.mxu0 %v1002
  %2177 = vmatprep.subr.bf16.mxu0 0
  %2178 = vmatpush1.bf16.msra.mxu0 %v1003
  %2179 = vmatprep.subr.bf16.mxu0 0
  %2180 = vmatpush1.bf16.msra.mxu0 %v1004
  %2181 = vmatprep.subr.bf16.mxu0 0
  %2182 = vmatpush1.bf16.msra.mxu0 %v1005
  %2183 = vmatprep.mubr.bf16.mxu0 %v1792
  %2184 = vmatmul.mubr.bf16.gmra.mrb[0].mxu0 %v1791
  %v2185 = vpop.f32.mrb[0].mxu0
  %v2186 = vadd.f32 %v2122, %v2185
  %v2187 = vpop.f32.mrb[0].mxu0
  %v2188 = vpop.f32.mrb[0].mxu0
  %v2189 = vadd.f32 %v2125, %v2188
  %v2190 = vpop.f32.mrb[0].mxu0
  %2191 = vmatprep.mubr.bf16.mxu0 %v1805
  %2192 = vmatmul.mubr.bf16.gmra.mrb[0].mxu0 %v1804
  %v2193 = vpop.f32.mrb[0].mxu0
  %v2194 = vadd.f32 %v2130, %v2193
  %v2195 = vpop.f32.mrb[0].mxu0
  %v2196 = vpop.f32.mrb[0].mxu0
  %v2197 = vadd.f32 %v2133, %v2196
  %v2198 = vpop.f32.mrb[0].mxu0
  %2199 = vmatprep.mubr.bf16.mxu0 %v1818
  %2200 = vmatmul.mubr.bf16.gmra.mrb[0].mxu0 %v1817
  %v2201 = vpop.f32.mrb[0].mxu0
  %v2202 = vadd.f32 %v2138, %v2201
  %v2203 = vpop.f32.mrb[0].mxu0
  %v2204 = vpop.f32.mrb[0].mxu0
  %v2205 = vadd.f32 %v2141, %v2204
  %v2206 = vpop.f32.mrb[0].mxu0
  %2207 = vmatprep.mubr.bf16.mxu0 %v1831
  %2208 = vmatmul.mubr.bf16.gmra.mrb[0].mxu0 %v1830
  %v2209 = vpop.f32.mrb[0].mxu0
  %v2210 = vadd.f32 %v2146, %v2209
  %v2211 = vpop.f32.mrb[0].mxu0
  %v2212 = vpop.f32.mrb[0].mxu0
  %v2213 = vpop.f32.mrb[0].mxu0
  %2214 = vdwg.mxu0
  %2215 = vmatprep.subr.bf16.mxu0 0
  %2216 = vmatpush1.bf16.msra.mxu0 %v1006
  %2217 = vmatprep.subr.bf16.mxu0 0
  %2218 = vmatpush1.bf16.msra.mxu0 %v1007
  %2219 = vmatprep.subr.bf16.mxu0 0
  %2220 = vmatpush1.bf16.msra.mxu0 %v1008
  %2221 = vmatprep.subr.bf16.mxu0 0
  %2222 = vmatpush1.bf16.msra.mxu0 %v1009
  %2223 = vmatprep.subr.bf16.mxu0 0
  %2224 = vmatpush1.bf16.msra.mxu0 %v1010
  %2225 = vmatprep.subr.bf16.mxu0 0
  %2226 = vmatpush1.bf16.msra.mxu0 %v1011
  %2227 = vmatprep.subr.bf16.mxu0 0
  %2228 = vmatpush1.bf16.msra.mxu0 %v1012
  %2229 = vmatprep.subr.bf16.mxu0 0
  %2230 = vmatpush1.bf16.msra.mxu0 %v1013
  %2231 = vmatprep.subr.bf16.mxu0 0
  %2232 = vmatpush1.bf16.msra.mxu0 %v1014
  %2233 = vmatprep.subr.bf16.mxu0 0
  %2234 = vmatpush1.bf16.msra.mxu0 %v1015
  %2235 = vmatprep.subr.bf16.mxu0 0
  %2236 = vmatpush1.bf16.msra.mxu0 %v1016
  %2237 = vmatprep.subr.bf16.mxu0 0
  %2238 = vmatpush1.bf16.msra.mxu0 %v1017
  %2239 = vmatprep.subr.bf16.mxu0 0
  %2240 = vmatpush1.bf16.msra.mxu0 %v1018
  %2241 = vmatprep.subr.bf16.mxu0 0
  %2242 = vmatpush1.bf16.msra.mxu0 %v1019
  %2243 = vmatprep.subr.bf16.mxu0 0
  %2244 = vmatpush1.bf16.msra.mxu0 %v1020
  %2245 = vmatprep.subr.bf16.mxu0 0
  %2246 = vmatpush1.bf16.msra.mxu0 %v1021
  %2247 = vmatprep.mubr.bf16.mxu0 %v1794
  %2248 = vmatmul.mubr.bf16.gmra.mrb[0].mxu0 %v1793
  %v2249 = vpop.f32.mrb[0].mxu0
  %v2250 = vadd.f32 %v2186, %v2249
  %v2251 = vpop.f32.mrb[0].mxu0
  %v2252 = vpop.f32.mrb[0].mxu0
  %v2253 = vadd.f32 %v2189, %v2252
  %v2254 = vpop.f32.mrb[0].mxu0
  %2255 = vmatprep.mubr.bf16.mxu0 %v1807
  %2256 = vmatmul.mubr.bf16.gmra.mrb[0].mxu0 %v1806
  %v2257 = vpop.f32.mrb[0].mxu0
  %v2258 = vadd.f32 %v2194, %v2257
  %v2259 = vpop.f32.mrb[0].mxu0
  %v2260 = vpop.f32.mrb[0].mxu0
  %v2261 = vadd.f32 %v2197, %v2260
  %v2262 = vpop.f32.mrb[0].mxu0
  %2263 = vmatprep.mubr.bf16.mxu0 %v1820
  %2264 = vmatmul.mubr.bf16.gmra.mrb[0].mxu0 %v1819
  %v2265 = vpop.f32.mrb[0].mxu0
  %v2266 = vadd.f32 %v2202, %v2265
  %v2267 = vpop.f32.mrb[0].mxu0
  %v2268 = vpop.f32.mrb[0].mxu0
  %v2269 = vadd.f32 %v2205, %v2268
  %v2270 = vpop.f32.mrb[0].mxu0
  %2271 = vmatprep.mubr.bf16.mxu0 %v1833
  %2272 = vmatmul.mubr.bf16.gmra.mrb[0].mxu0 %v1832
  %v2273 = vpop.f32.mrb[0].mxu0
  %v2274 = vadd.f32 %v2210, %v2273
  %v2275 = vpop.f32.mrb[0].mxu0
  %v2276 = vpop.f32.mrb[0].mxu0
  %v2277 = vpop.f32.mrb[0].mxu0
  %2278 = vdwg.mxu0
  %2279 = vmatprep.subr.bf16.mxu0 0
  %2280 = vmatpush1.bf16.msra.mxu0 %v1022
  %2281 = vmatprep.subr.bf16.mxu0 0
  %2282 = vmatpush1.bf16.msra.mxu0 %v1023
  %2283 = vmatprep.subr.bf16.mxu0 0
  %2284 = vmatpush1.bf16.msra.mxu0 %v1024
  %2285 = vmatprep.subr.bf16.mxu0 0
  %2286 = vmatpush1.bf16.msra.mxu0 %v1025
  %2287 = vmatprep.subr.bf16.mxu0 0
  %2288 = vmatpush1.bf16.msra.mxu0 0
  %2289 = vmatprep.subr.bf16.mxu0 0
  %2290 = vmatpush1.bf16.msra.mxu0 0
  %2291 = vmatprep.subr.bf16.mxu0 0
  %2292 = vmatpush1.bf16.msra.mxu0 0
  %2293 = vmatprep.subr.bf16.mxu0 0
  %2294 = vmatpush1.bf16.msra.mxu0 0
  %2295 = vmatprep.subr.bf16.mxu0 0
  %2296 = vmatpush1.bf16.msra.mxu0 0
  %2297 = vmatprep.subr.bf16.mxu0 0
  %2298 = vmatpush1.bf16.msra.mxu0 0
  %2299 = vmatprep.subr.bf16.mxu0 0
  %2300 = vmatpush1.bf16.msra.mxu0 0
  %2301 = vmatprep.subr.bf16.mxu0 0
  %2302 = vmatpush1.bf16.msra.mxu0 0
  %2303 = vmatprep.subr.bf16.mxu0 0
  %2304 = vmatpush1.bf16.msra.mxu0 0
  %2305 = vmatprep.subr.bf16.mxu0 0
  %2306 = vmatpush1.bf16.msra.mxu0 0
  %2307 = vmatprep.subr.bf16.mxu0 0
  %2308 = vmatpush1.bf16.msra.mxu0 0
  %2309 = vmatprep.subr.bf16.mxu0 0
  %2310 = vmatpush1.bf16.msra.mxu0 0
  %2311 = vmatprep.mubr.bf16.mxu0 0
  %2312 = vmatmul.mubr.bf16.gmra.mrb[0].mxu0 %v1884
  %v2313 = vpop.f32.mrb[0].mxu0
  %v2314 = vadd.f32 %v2250, %v2313
  %v2315 = vpop.f32.mrb[0].mxu0
  %v2316 = vpop.f32.mrb[0].mxu0
  %v2317 = vadd.f32 %v2253, %v2316
  %v2318 = vpop.f32.mrb[0].mxu0
  %2319 = vmatprep.mubr.bf16.mxu0 0
  %2320 = vmatmul.mubr.bf16.gmra.mrb[0].mxu0 %v1887
  %v2321 = vpop.f32.mrb[0].mxu0
  %v2322 = vadd.f32 %v2258, %v2321
  %v2323 = vpop.f32.mrb[0].mxu0
  %v2324 = vpop.f32.mrb[0].mxu0
  %v2325 = vadd.f32 %v2261, %v2324
  %v2326 = vpop.f32.mrb[0].mxu0
  %2327 = vmatprep.mubr.bf16.mxu0 0
  %2328 = vmatmul.mubr.bf16.gmra.mrb[0].mxu0 %v1890
  %v2329 = vpop.f32.mrb[0].mxu0
  %v2330 = vadd.f32 %v2266, %v2329
  %v2331 = vpop.f32.mrb[0].mxu0
  %v2332 = vpop.f32.mrb[0].mxu0
  %v2333 = vadd.f32 %v2269, %v2332
  %v2334 = vpop.f32.mrb[0].mxu0
  %2335 = vmatprep.mubr.bf16.mxu0 0
  %2336 = vmatmul.mubr.bf16.gmra.mrb[0].mxu0 %v1893
  %v2337 = vpop.f32.mrb[0].mxu0
  %v2338 = vadd.f32 %v2274, %v2337
  %v2339 = vpop.f32.mrb[0].mxu0
  %v2340 = vpop.f32.mrb[0].mxu0
  %v2341 = vpop.f32.mrb[0].mxu0
  %2342 = vdwg.mxu0
  %v2343 = vmax.f32 %v2314, 0.0
  %v2344 = vmax.f32 %v2317, 0.0
  %v2345 = vmax.f32 %v2322, 0.0
  %v2346 = vmax.f32 %v2325, 0.0
  %v2347 = vmax.f32 %v2330, 0.0
  %v2348 = vmax.f32 %v2333, 0.0
  %v2349 = vmax.f32 %v2338, 0.0
  %v2350 = vmax.f32 %v1587, %v2343
  %v2351 = vmax.f32 %v1588, %v2344
  %v2352 = vmax.f32 %v1589, %v2345
  %v2353 = vmax.f32 %v1590, %v2346
  %v2354 = vmax.f32 %v1591, %v2347
  %v2355 = vmax.f32 %v1592, %v2348
  %v2356 = vmax.f32 %v1593, %v2349
  %v2357 = vld [vmem:[%s2] sm:$0xff]
  %v2358 = vld [vmem:[%s2 + $0x8] sm:$0xff]
  %v2359 = vld [vmem:[%s2 + $0x10] sm:$0xff]
  %v2360 = vld [vmem:[%s2 + $0x18] sm:$0xff]
  %v2361 = vld [vmem:[%s2 + $0x20] sm:$0xff]
  %v2362 = vld [vmem:[%s2 + $0x28] sm:$0xff]
  %v2363 = vld [vmem:[%s2 + $0x30] sm:$0xf]
  %v2364 = vld [vmem:[%s2 + $0x34] sm:$0xff]
  %v2365 = vld [vmem:[%s2 + $0x3c] sm:$0xff]
  %v2366 = vld [vmem:[%s2 + $0x44] sm:$0xff]
  %v2367 = vld [vmem:[%s2 + $0x4c] sm:$0xff]
  %v2368 = vld [vmem:[%s2 + $0x54] sm:$0xff]
  %v2369 = vld [vmem:[%s2 + $0x5c] sm:$0xff]
  %v2370 = vld [vmem:[%s2 + $0x64] sm:$0xf]
  %v2371 = vld [vmem:[%s2 + $0x68] sm:$0xff]
  %v2372 = vld [vmem:[%s2 + $0x70] sm:$0xff]
  %v2373 = vld [vmem:[%s2 + $0x78] sm:$0xff]
  %v2374 = vld [vmem:[%s2 + $0x80] sm:$0xff]
  %v2375 = vld [vmem:[%s2 + $0x88] sm:$0xff]
  %v2376 = vld [vmem:[%s2 + $0x90] sm:$0xff]
  %v2377 = vld [vmem:[%s2 + $0x98] sm:$0xf]
  %v2378 = vld [vmem:[%s2 + $0x9c] sm:$0xff]
  %v2379 = vld [vmem:[%s2 + $0xa4] sm:$0xff]
  %v2380 = vld [vmem:[%s2 + $0xac] sm:$0xff]
  %v2381 = vld [vmem:[%s2 + $0xb4] sm:$0xff]
  %v2382 = vld [vmem:[%s2 + $0xbc] sm:$0xff]
  %v2383 = vld [vmem:[%s2 + $0xc4] sm:$0xff]
  %v2384 = vld [vmem:[%s2 + $0xcc] sm:$0xf]
  %v2385 = vld [vmem:[%s2 + $0xd0] sm:$0xff]
  %v2386 = vld [vmem:[%s2 + $0xd8] sm:$0xff]
  %v2387 = vld [vmem:[%s2 + $0xe0] sm:$0xff]
  %v2388 = vld [vmem:[%s2 + $0xe8] sm:$0xff]
  %v2389 = vld [vmem:[%s2 + $0xf0] sm:$0xff]
  %v2390 = vld [vmem:[%s2 + $0xf8] sm:$0xff]
  %v2391 = vld [vmem:[%s2 + $0x100] sm:$0xf]
  %v2392 = vld [vmem:[%s2 + $0x104] sm:$0xff]
  %v2393 = vld [vmem:[%s2 + $0x10c] sm:$0xff]
  %v2394 = vld [vmem:[%s2 + $0x114] sm:$0xff]
  %v2395 = vld [vmem:[%s2 + $0x11c] sm:$0xff]
  %v2396 = vld [vmem:[%s2 + $0x124] sm:$0xff]
  %v2397 = vld [vmem:[%s2 + $0x12c] sm:$0xff]
  %v2398 = vld [vmem:[%s2 + $0x134] sm:$0xf]
  %v2399 = vld [vmem:[%s2 + $0x138] sm:$0x11]
  %v2400 = vld [vmem:[%s2 + $0x140] sm:$0x11]
  %v2401 = vld [vmem:[%s2 + $0x148] sm:$0x11]
  %v2402 = vld [vmem:[%s2 + $0x150] sm:$0x11]
  %v2403 = vld [vmem:[%s2 + $0x158] sm:$0x11]
  %v2404 = vld [vmem:[%s2 + $0x160] sm:$0x11]
  %v2405 = vld [vmem:[%s2 + $0x168] sm:$0x1]
  %v2455 = vunpack.c.l.b16 %v2357
  %v2456 = vunpack.c.h.b16 %v2357
  %v2457 = vunpack.c.l.b16 %v2358
  %v2458 = vunpack.c.h.b16 %v2358
  %v2459 = vunpack.c.l.b16 %v2359
  %v2460 = vunpack.c.h.b16 %v2359
  %v2461 = vunpack.c.l.b16 %v2360
  %v2462 = vunpack.c.h.b16 %v2360
  %v2463 = vunpack.c.l.b16 %v2361
  %v2464 = vunpack.c.h.b16 %v2361
  %v2465 = vunpack.c.l.b16 %v2362
  %v2466 = vunpack.c.h.b16 %v2362
  %v2467 = vunpack.c.l.b16 %v2363
  %v2468 = vunpack.c.l.b16 %v2364
  %v2469 = vunpack.c.h.b16 %v2364
  %v2470 = vunpack.c.l.b16 %v2365
  %v2471 = vunpack.c.h.b16 %v2365
  %v2472 = vunpack.c.l.b16 %v2366
  %v2473 = vunpack.c.h.b16 %v2366
  %v2474 = vunpack.c.l.b16 %v2367
  %v2475 = vunpack.c.h.b16 %v2367
  %v2476 = vunpack.c.l.b16 %v2368
  %v2477 = vunpack.c.h.b16 %v2368
  %v2478 = vunpack.c.l.b16 %v2369
  %v2479 = vunpack.c.h.b16 %v2369
  %v2480 = vunpack.c.l.b16 %v2370
  %v2481 = vunpack.c.l.b16 %v2371
  %v2482 = vunpack.c.h.b16 %v2371
  %v2483 = vunpack.c.l.b16 %v2372
  %v2484 = vunpack.c.h.b16 %v2372
  %v2485 = vunpack.c.l.b16 %v2373
  %v2486 = vunpack.c.h.b16 %v2373
  %v2487 = vunpack.c.l.b16 %v2374
  %v2488 = vunpack.c.h.b16 %v2374
  %v2489 = vunpack.c.l.b16 %v2375
  %v2490 = vunpack.c.h.b16 %v2375
  %v2491 = vunpack.c.l.b16 %v2376
  %v2492 = vunpack.c.h.b16 %v2376
  %v2493 = vunpack.c.l.b16 %v2377
  %v2494 = vunpack.c.l.b16 %v2378
  %v2495 = vunpack.c.h.b16 %v2378
  %v2496 = vunpack.c.l.b16 %v2379
  %v2497 = vunpack.c.h.b16 %v2379
  %v2498 = vunpack.c.l.b16 %v2380
  %v2499 = vunpack.c.h.b16 %v2380
  %v2500 = vunpack.c.l.b16 %v2381
  %v2501 = vunpack.c.h.b16 %v2381
  %v2502 = vunpack.c.l.b16 %v2382
  %v2503 = vunpack.c.h.b16 %v2382
  %v2504 = vunpack.c.l.b16 %v2383
  %v2505 = vunpack.c.h.b16 %v2383
  %v2506 = vunpack.c.l.b16 %v2384
  %v2507 = vunpack.c.l.b16 %v2385
  %v2508 = vunpack.c.h.b16 %v2385
  %v2509 = vunpack.c.l.b16 %v2386
  %v2510 = vunpack.c.h.b16 %v2386
  %v2511 = vunpack.c.l.b16 %v2387
  %v2512 = vunpack.c.h.b16 %v2387
  %v2513 = vunpack.c.l.b16 %v2388
  %v2514 = vunpack.c.h.b16 %v2388
  %v2515 = vunpack.c.l.b16 %v2389
  %v2516 = vunpack.c.h.b16 %v2389
  %v2517 = vunpack.c.l.b16 %v2390
  %v2518 = vunpack.c.h.b16 %v2390
  %v2519 = vunpack.c.l.b16 %v2391
  %v2520 = vunpack.c.l.b16 %v2392
  %v2521 = vunpack.c.h.b16 %v2392
  %v2522 = vunpack.c.l.b16 %v2393
  %v2523 = vunpack.c.h.b16 %v2393
  %v2524 = vunpack.c.l.b16 %v2394
  %v2525 = vunpack.c.h.b16 %v2394
  %v2526 = vunpack.c.l.b16 %v2395
  %v2527 = vunpack.c.h.b16 %v2395
  %v2528 = vunpack.c.l.b16 %v2396
  %v2529 = vunpack.c.h.b16 %v2396
  %v2530 = vunpack.c.l.b16 %v2397
  %v2531 = vunpack.c.h.b16 %v2397
  %v2532 = vunpack.c.l.b16 %v2398
  %v2533 = vunpack.c.l.b16 %v2399
  %v2534 = vunpack.c.h.b16 %v2399
  %v2535 = vunpack.c.l.b16 %v2400
  %v2536 = vunpack.c.h.b16 %v2400
  %v2537 = vunpack.c.l.b16 %v2401
  %v2538 = vunpack.c.h.b16 %v2401
  %v2539 = vunpack.c.l.b16 %v2402
  %v2540 = vunpack.c.h.b16 %v2402
  %v2541 = vunpack.c.l.b16 %v2403
  %v2542 = vunpack.c.h.b16 %v2403
  %v2543 = vunpack.c.l.b16 %v2404
  %v2544 = vunpack.c.h.b16 %v2404
  %v2545 = vunpack.c.l.b16 %v2405
  %v2546 = vpack.c.b16 %v2468, %v2455
  %v2547 = vpack.c.b16 %v2469, %v2456
  %v2548 = vpack.c.b16 %v2470, %v2457
  %v2549 = vpack.c.b16 %v2471, %v2458
  %v2550 = vpack.c.b16 %v2472, %v2459
  %v2551 = vpack.c.b16 %v2473, %v2460
  %v2552 = vpack.c.b16 %v2474, %v2461
  %v2553 = vpack.c.b16 %v2475, %v2462
  %v2554 = vpack.c.b16 %v2476, %v2463
  %v2555 = vpack.c.b16 %v2477, %v2464
  %v2556 = vpack.c.b16 %v2478, %v2465
  %v2557 = vpack.c.b16 %v2479, %v2466
  %v2558 = vpack.c.b16 %v2480, %v2467
  %v2559 = vpack.c.b16 %v2494, %v2481
  %v2560 = vpack.c.b16 %v2495, %v2482
  %v2561 = vpack.c.b16 %v2496, %v2483
  %v2562 = vpack.c.b16 %v2497, %v2484
  %v2563 = vpack.c.b16 %v2498, %v2485
  %v2564 = vpack.c.b16 %v2499, %v2486
  %v2565 = vpack.c.b16 %v2500, %v2487
  %v2566 = vpack.c.b16 %v2501, %v2488
  %v2567 = vpack.c.b16 %v2502, %v2489
  %v2568 = vpack.c.b16 %v2503, %v2490
  %v2569 = vpack.c.b16 %v2504, %v2491
  %v2570 = vpack.c.b16 %v2505, %v2492
  %v2571 = vpack.c.b16 %v2506, %v2493
  %v2572 = vpack.c.b16 %v2520, %v2507
  %v2573 = vpack.c.b16 %v2521, %v2508
  %v2574 = vpack.c.b16 %v2522, %v2509
  %v2575 = vpack.c.b16 %v2523, %v2510
  %v2576 = vpack.c.b16 %v2524, %v2511
  %v2577 = vpack.c.b16 %v2525, %v2512
  %v2578 = vpack.c.b16 %v2526, %v2513
  %v2579 = vpack.c.b16 %v2527, %v2514
  %v2580 = vpack.c.b16 %v2528, %v2515
  %v2581 = vpack.c.b16 %v2529, %v2516
  %v2582 = vpack.c.b16 %v2530, %v2517
  %v2583 = vpack.c.b16 %v2531, %v2518
  %v2584 = vpack.c.b16 %v2532, %v2519
  %v2585 = vpack.c.b16 %v2533, %v2533
  %v2586 = vpack.c.b16 %v2534, %v2534
  %v2587 = vpack.c.b16 %v2535, %v2535
  %v2588 = vpack.c.b16 %v2536, %v2536
  %v2589 = vpack.c.b16 %v2537, %v2537
  %v2590 = vpack.c.b16 %v2538, %v2538
  %v2591 = vpack.c.b16 %v2539, %v2539
  %v2592 = vpack.c.b16 %v2540, %v2540
  %v2593 = vpack.c.b16 %v2541, %v2541
  %v2594 = vpack.c.b16 %v2542, %v2542
  %v2595 = vpack.c.b16 %v2543, %v2543
  %v2596 = vpack.c.b16 %v2544, %v2544
  %v2597 = vpack.c.b16 %v2545, %v2545
  %v2647 = vsel %vm1126, %v2558, 0
  %v2650 = vsel %vm1126, %v2571, 0
  %v2653 = vsel %vm1126, %v2584, 0
  %v2656 = vsel %vm1126, %v2597, 0
  %2658 = vmatprep.subr.bf16.mxu0 0
  %2659 = vmatpush1.bf16.msra.mxu0 %v926
  %2660 = vmatprep.subr.bf16.mxu0 0
  %2661 = vmatpush1.bf16.msra.mxu0 %v927
  %2662 = vmatprep.subr.bf16.mxu0 0
  %2663 = vmatpush1.bf16.msra.mxu0 %v928
  %2664 = vmatprep.subr.bf16.mxu0 0
  %2665 = vmatpush1.bf16.msra.mxu0 %v929
  %2666 = vmatprep.subr.bf16.mxu0 0
  %2667 = vmatpush1.bf16.msra.mxu0 %v930
  %2668 = vmatprep.subr.bf16.mxu0 0
  %2669 = vmatpush1.bf16.msra.mxu0 %v931
  %2670 = vmatprep.subr.bf16.mxu0 0
  %2671 = vmatpush1.bf16.msra.mxu0 %v932
  %2672 = vmatprep.subr.bf16.mxu0 0
  %2673 = vmatpush1.bf16.msra.mxu0 %v933
  %2674 = vmatprep.subr.bf16.mxu0 0
  %2675 = vmatpush1.bf16.msra.mxu0 %v934
  %2676 = vmatprep.subr.bf16.mxu0 0
  %2677 = vmatpush1.bf16.msra.mxu0 %v935
  %2678 = vmatprep.subr.bf16.mxu0 0
  %2679 = vmatpush1.bf16.msra.mxu0 %v936
  %2680 = vmatprep.subr.bf16.mxu0 0
  %2681 = vmatpush1.bf16.msra.mxu0 %v937
  %2682 = vmatprep.subr.bf16.mxu0 0
  %2683 = vmatpush1.bf16.msra.mxu0 %v938
  %2684 = vmatprep.subr.bf16.mxu0 0
  %2685 = vmatpush1.bf16.msra.mxu0 %v939
  %2686 = vmatprep.subr.bf16.mxu0 0
  %2687 = vmatpush1.bf16.msra.mxu0 %v940
  %2688 = vmatprep.subr.bf16.mxu0 0
  %2689 = vmatpush1.bf16.msra.mxu0 %v941
  %2690 = vmatprep.mubr.bf16.mxu0 %v2547
  %2691 = vmatmul.mubr.bf16.gmra.mrb[0].mxu0 %v2546
  %v2692 = vpop.f32.mrb[0].mxu0
  %v2693 = vadd.f32 %v284, %v2692
  %v2694 = vpop.f32.mrb[0].mxu0
  %v2695 = vpop.f32.mrb[0].mxu0
  %v2696 = vadd.f32 %v284, %v2695
  %v2697 = vpop.f32.mrb[0].mxu0
  %2698 = vmatprep.mubr.bf16.mxu0 %v2560
  %2699 = vmatmul.mubr.bf16.gmra.mrb[0].mxu0 %v2559
  %v2700 = vpop.f32.mrb[0].mxu0
  %v2701 = vadd.f32 %v284, %v2700
  %v2702 = vpop.f32.mrb[0].mxu0
  %v2703 = vpop.f32.mrb[0].mxu0
  %v2704 = vadd.f32 %v284, %v2703
  %v2705 = vpop.f32.mrb[0].mxu0
  %2706 = vmatprep.mubr.bf16.mxu0 %v2573
  %2707 = vmatmul.mubr.bf16.gmra.mrb[0].mxu0 %v2572
  %v2708 = vpop.f32.mrb[0].mxu0
  %v2709 = vadd.f32 %v284, %v2708
  %v2710 = vpop.f32.mrb[0].mxu0
  %v2711 = vpop.f32.mrb[0].mxu0
  %v2712 = vadd.f32 %v284, %v2711
  %v2713 = vpop.f32.mrb[0].mxu0
  %2714 = vmatprep.mubr.bf16.mxu0 %v2586
  %2715 = vmatmul.mubr.bf16.gmra.mrb[0].mxu0 %v2585
  %v2716 = vpop.f32.mrb[0].mxu0
  %v2717 = vadd.f32 %v284, %v2716
  %v2718 = vpop.f32.mrb[0].mxu0
  %v2719 = vpop.f32.mrb[0].mxu0
  %v2720 = vpop.f32.mrb[0].mxu0
  %2721 = vdwg.mxu0
  %2722 = vmatprep.subr.bf16.mxu0 0
  %2723 = vmatpush1.bf16.msra.mxu0 %v942
  %2724 = vmatprep.subr.bf16.mxu0 0
  %2725 = vmatpush1.bf16.msra.mxu0 %v943
  %2726 = vmatprep.subr.bf16.mxu0 0
  %2727 = vmatpush1.bf16.msra.mxu0 %v944
  %2728 = vmatprep.subr.bf16.mxu0 0
  %2729 = vmatpush1.bf16.msra.mxu0 %v945
  %2730 = vmatprep.subr.bf16.mxu0 0
  %2731 = vmatpush1.bf16.msra.mxu0 %v946
  %2732 = vmatprep.subr.bf16.mxu0 0
  %2733 = vmatpush1.bf16.msra.mxu0 %v947
  %2734 = vmatprep.subr.bf16.mxu0 0
  %2735 = vmatpush1.bf16.msra.mxu0 %v948
  %2736 = vmatprep.subr.bf16.mxu0 0
  %2737 = vmatpush1.bf16.msra.mxu0 %v949
  %2738 = vmatprep.subr.bf16.mxu0 0
  %2739 = vmatpush1.bf16.msra.mxu0 %v950
  %2740 = vmatprep.subr.bf16.mxu0 0
  %2741 = vmatpush1.bf16.msra.mxu0 %v951
  %2742 = vmatprep.subr.bf16.mxu0 0
  %2743 = vmatpush1.bf16.msra.mxu0 %v952
  %2744 = vmatprep.subr.bf16.mxu0 0
  %2745 = vmatpush1.bf16.msra.mxu0 %v953
  %2746 = vmatprep.subr.bf16.mxu0 0
  %2747 = vmatpush1.bf16.msra.mxu0 %v954
  %2748 = vmatprep.subr.bf16.mxu0 0
  %2749 = vmatpush1.bf16.msra.mxu0 %v955
  %2750 = vmatprep.subr.bf16.mxu0 0
  %2751 = vmatpush1.bf16.msra.mxu0 %v956
  %2752 = vmatprep.subr.bf16.mxu0 0
  %2753 = vmatpush1.bf16.msra.mxu0 %v957
  %2754 = vmatprep.mubr.bf16.mxu0 %v2549
  %2755 = vmatmul.mubr.bf16.gmra.mrb[0].mxu0 %v2548
  %v2756 = vpop.f32.mrb[0].mxu0
  %v2757 = vadd.f32 %v2693, %v2756
  %v2758 = vpop.f32.mrb[0].mxu0
  %v2759 = vpop.f32.mrb[0].mxu0
  %v2760 = vadd.f32 %v2696, %v2759
  %v2761 = vpop.f32.mrb[0].mxu0
  %2762 = vmatprep.mubr.bf16.mxu0 %v2562
  %2763 = vmatmul.mubr.bf16.gmra.mrb[0].mxu0 %v2561
  %v2764 = vpop.f32.mrb[0].mxu0
  %v2765 = vadd.f32 %v2701, %v2764
  %v2766 = vpop.f32.mrb[0].mxu0
  %v2767 = vpop.f32.mrb[0].mxu0
  %v2768 = vadd.f32 %v2704, %v2767
  %v2769 = vpop.f32.mrb[0].mxu0
  %2770 = vmatprep.mubr.bf16.mxu0 %v2575
  %2771 = vmatmul.mubr.bf16.gmra.mrb[0].mxu0 %v2574
  %v2772 = vpop.f32.mrb[0].mxu0
  %v2773 = vadd.f32 %v2709, %v2772
  %v2774 = vpop.f32.mrb[0].mxu0
  %v2775 = vpop.f32.mrb[0].mxu0
  %v2776 = vadd.f32 %v2712, %v2775
  %v2777 = vpop.f32.mrb[0].mxu0
  %2778 = vmatprep.mubr.bf16.mxu0 %v2588
  %2779 = vmatmul.mubr.bf16.gmra.mrb[0].mxu0 %v2587
  %v2780 = vpop.f32.mrb[0].mxu0
  %v2781 = vadd.f32 %v2717, %v2780
  %v2782 = vpop.f32.mrb[0].mxu0
  %v2783 = vpop.f32.mrb[0].mxu0
  %v2784 = vpop.f32.mrb[0].mxu0
  %2785 = vdwg.mxu0
  %2786 = vmatprep.subr.bf16.mxu0 0
  %2787 = vmatpush1.bf16.msra.mxu0 %v958
  %2788 = vmatprep.subr.bf16.mxu0 0
  %2789 = vmatpush1.bf16.msra.mxu0 %v959
  %2790 = vmatprep.subr.bf16.mxu0 0
  %2791 = vmatpush1.bf16.msra.mxu0 %v960
  %2792 = vmatprep.subr.bf16.mxu0 0
  %2793 = vmatpush1.bf16.msra.mxu0 %v961
  %2794 = vmatprep.subr.bf16.mxu0 0
  %2795 = vmatpush1.bf16.msra.mxu0 %v962
  %2796 = vmatprep.subr.bf16.mxu0 0
  %2797 = vmatpush1.bf16.msra.mxu0 %v963
  %2798 = vmatprep.subr.bf16.mxu0 0
  %2799 = vmatpush1.bf16.msra.mxu0 %v964
  %2800 = vmatprep.subr.bf16.mxu0 0
  %2801 = vmatpush1.bf16.msra.mxu0 %v965
  %2802 = vmatprep.subr.bf16.mxu0 0
  %2803 = vmatpush1.bf16.msra.mxu0 %v966
  %2804 = vmatprep.subr.bf16.mxu0 0
  %2805 = vmatpush1.bf16.msra.mxu0 %v967
  %2806 = vmatprep.subr.bf16.mxu0 0
  %2807 = vmatpush1.bf16.msra.mxu0 %v968
  %2808 = vmatprep.subr.bf16.mxu0 0
  %2809 = vmatpush1.bf16.msra.mxu0 %v969
  %2810 = vmatprep.subr.bf16.mxu0 0
  %2811 = vmatpush1.bf16.msra.mxu0 %v970
  %2812 = vmatprep.subr.bf16.mxu0 0
  %2813 = vmatpush1.bf16.msra.mxu0 %v971
  %2814 = vmatprep.subr.bf16.mxu0 0
  %2815 = vmatpush1.bf16.msra.mxu0 %v972
  %2816 = vmatprep.subr.bf16.mxu0 0
  %2817 = vmatpush1.bf16.msra.mxu0 %v973
  %2818 = vmatprep.mubr.bf16.mxu0 %v2551
  %2819 = vmatmul.mubr.bf16.gmra.mrb[0].mxu0 %v2550
  %v2820 = vpop.f32.mrb[0].mxu0
  %v2821 = vadd.f32 %v2757, %v2820
  %v2822 = vpop.f32.mrb[0].mxu0
  %v2823 = vpop.f32.mrb[0].mxu0
  %v2824 = vadd.f32 %v2760, %v2823
  %v2825 = vpop.f32.mrb[0].mxu0
  %2826 = vmatprep.mubr.bf16.mxu0 %v2564
  %2827 = vmatmul.mubr.bf16.gmra.mrb[0].mxu0 %v2563
  %v2828 = vpop.f32.mrb[0].mxu0
  %v2829 = vadd.f32 %v2765, %v2828
  %v2830 = vpop.f32.mrb[0].mxu0
  %v2831 = vpop.f32.mrb[0].mxu0
  %v2832 = vadd.f32 %v2768, %v2831
  %v2833 = vpop.f32.mrb[0].mxu0
  %2834 = vmatprep.mubr.bf16.mxu0 %v2577
  %2835 = vmatmul.mubr.bf16.gmra.mrb[0].mxu0 %v2576
  %v2836 = vpop.f32.mrb[0].mxu0
  %v2837 = vadd.f32 %v2773, %v2836
  %v2838 = vpop.f32.mrb[0].mxu0
  %v2839 = vpop.f32.mrb[0].mxu0
  %v2840 = vadd.f32 %v2776, %v2839
  %v2841 = vpop.f32.mrb[0].mxu0
  %2842 = vmatprep.mubr.bf16.mxu0 %v2590
  %2843 = vmatmul.mubr.bf16.gmra.mrb[0].mxu0 %v2589
  %v2844 = vpop.f32.mrb[0].mxu0
  %v2845 = vadd.f32 %v2781, %v2844
  %v2846 = vpop.f32.mrb[0].mxu0
  %v2847 = vpop.f32.mrb[0].mxu0
  %v2848 = vpop.f32.mrb[0].mxu0
  %2849 = vdwg.mxu0
  %2850 = vmatprep.subr.bf16.mxu0 0
  %2851 = vmatpush1.bf16.msra.mxu0 %v974
  %2852 = vmatprep.subr.bf16.mxu0 0
  %2853 = vmatpush1.bf16.msra.mxu0 %v975
  %2854 = vmatprep.subr.bf16.mxu0 0
  %2855 = vmatpush1.bf16.msra.mxu0 %v976
  %2856 = vmatprep.subr.bf16.mxu0 0
  %2857 = vmatpush1.bf16.msra.mxu0 %v977
  %2858 = vmatprep.subr.bf16.mxu0 0
  %2859 = vmatpush1.bf16.msra.mxu0 %v978
  %2860 = vmatprep.subr.bf16.mxu0 0
  %2861 = vmatpush1.bf16.msra.mxu0 %v979
  %2862 = vmatprep.subr.bf16.mxu0 0
  %2863 = vmatpush1.bf16.msra.mxu0 %v980
  %2864 = vmatprep.subr.bf16.mxu0 0
  %2865 = vmatpush1.bf16.msra.mxu0 %v981
  %2866 = vmatprep.subr.bf16.mxu0 0
  %2867 = vmatpush1.bf16.msra.mxu0 %v982
  %2868 = vmatprep.subr.bf16.mxu0 0
  %2869 = vmatpush1.bf16.msra.mxu0 %v983
  %2870 = vmatprep.subr.bf16.mxu0 0
  %2871 = vmatpush1.bf16.msra.mxu0 %v984
  %2872 = vmatprep.subr.bf16.mxu0 0
  %2873 = vmatpush1.bf16.msra.mxu0 %v985
  %2874 = vmatprep.subr.bf16.mxu0 0
  %2875 = vmatpush1.bf16.msra.mxu0 %v986
  %2876 = vmatprep.subr.bf16.mxu0 0
  %2877 = vmatpush1.bf16.msra.mxu0 %v987
  %2878 = vmatprep.subr.bf16.mxu0 0
  %2879 = vmatpush1.bf16.msra.mxu0 %v988
  %2880 = vmatprep.subr.bf16.mxu0 0
  %2881 = vmatpush1.bf16.msra.mxu0 %v989
  %2882 = vmatprep.mubr.bf16.mxu0 %v2553
  %2883 = vmatmul.mubr.bf16.gmra.mrb[0].mxu0 %v2552
  %v2884 = vpop.f32.mrb[0].mxu0
  %v2885 = vadd.f32 %v2821, %v2884
  %v2886 = vpop.f32.mrb[0].mxu0
  %v2887 = vpop.f32.mrb[0].mxu0
  %v2888 = vadd.f32 %v2824, %v2887
  %v2889 = vpop.f32.mrb[0].mxu0
  %2890 = vmatprep.mubr.bf16.mxu0 %v2566
  %2891 = vmatmul.mubr.bf16.gmra.mrb[0].mxu0 %v2565
  %v2892 = vpop.f32.mrb[0].mxu0
  %v2893 = vadd.f32 %v2829, %v2892
  %v2894 = vpop.f32.mrb[0].mxu0
  %v2895 = vpop.f32.mrb[0].mxu0
  %v2896 = vadd.f32 %v2832, %v2895
  %v2897 = vpop.f32.mrb[0].mxu0
  %2898 = vmatprep.mubr.bf16.mxu0 %v2579
  %2899 = vmatmul.mubr.bf16.gmra.mrb[0].mxu0 %v2578
  %v2900 = vpop.f32.mrb[0].mxu0
  %v2901 = vadd.f32 %v2837, %v2900
  %v2902 = vpop.f32.mrb[0].mxu0
  %v2903 = vpop.f32.mrb[0].mxu0
  %v2904 = vadd.f32 %v2840, %v2903
  %v2905 = vpop.f32.mrb[0].mxu0
  %2906 = vmatprep.mubr.bf16.mxu0 %v2592
  %2907 = vmatmul.mubr.bf16.gmra.mrb[0].mxu0 %v2591
  %v2908 = vpop.f32.mrb[0].mxu0
  %v2909 = vadd.f32 %v2845, %v2908
  %v2910 = vpop.f32.mrb[0].mxu0
  %v2911 = vpop.f32.mrb[0].mxu0
  %v2912 = vpop.f32.mrb[0].mxu0
  %2913 = vdwg.mxu0
  %2914 = vmatprep.subr.bf16.mxu0 0
  %2915 = vmatpush1.bf16.msra.mxu0 %v990
  %2916 = vmatprep.subr.bf16.mxu0 0
  %2917 = vmatpush1.bf16.msra.mxu0 %v991
  %2918 = vmatprep.subr.bf16.mxu0 0
  %2919 = vmatpush1.bf16.msra.mxu0 %v992
  %2920 = vmatprep.subr.bf16.mxu0 0
  %2921 = vmatpush1.bf16.msra.mxu0 %v993
  %2922 = vmatprep.subr.bf16.mxu0 0
  %2923 = vmatpush1.bf16.msra.mxu0 %v994
  %2924 = vmatprep.subr.bf16.mxu0 0
  %2925 = vmatpush1.bf16.msra.mxu0 %v995
  %2926 = vmatprep.subr.bf16.mxu0 0
  %2927 = vmatpush1.bf16.msra.mxu0 %v996
  %2928 = vmatprep.subr.bf16.mxu0 0
  %2929 = vmatpush1.bf16.msra.mxu0 %v997
  %2930 = vmatprep.subr.bf16.mxu0 0
  %2931 = vmatpush1.bf16.msra.mxu0 %v998
  %2932 = vmatprep.subr.bf16.mxu0 0
  %2933 = vmatpush1.bf16.msra.mxu0 %v999
  %2934 = vmatprep.subr.bf16.mxu0 0
  %2935 = vmatpush1.bf16.msra.mxu0 %v1000
  %2936 = vmatprep.subr.bf16.mxu0 0
  %2937 = vmatpush1.bf16.msra.mxu0 %v1001
  %2938 = vmatprep.subr.bf16.mxu0 0
  %2939 = vmatpush1.bf16.msra.mxu0 %v1002
  %2940 = vmatprep.subr.bf16.mxu0 0
  %2941 = vmatpush1.bf16.msra.mxu0 %v1003
  %2942 = vmatprep.subr.bf16.mxu0 0
  %2943 = vmatpush1.bf16.msra.mxu0 %v1004
  %2944 = vmatprep.subr.bf16.mxu0 0
  %2945 = vmatpush1.bf16.msra.mxu0 %v1005
  %2946 = vmatprep.mubr.bf16.mxu0 %v2555
  %2947 = vmatmul.mubr.bf16.gmra.mrb[0].mxu0 %v2554
  %v2948 = vpop.f32.mrb[0].mxu0
  %v2949 = vadd.f32 %v2885, %v2948
  %v2950 = vpop.f32.mrb[0].mxu0
  %v2951 = vpop.f32.mrb[0].mxu0
  %v2952 = vadd.f32 %v2888, %v2951
  %v2953 = vpop.f32.mrb[0].mxu0
  %2954 = vmatprep.mubr.bf16.mxu0 %v2568
  %2955 = vmatmul.mubr.bf16.gmra.mrb[0].mxu0 %v2567
  %v2956 = vpop.f32.mrb[0].mxu0
  %v2957 = vadd.f32 %v2893, %v2956
  %v2958 = vpop.f32.mrb[0].mxu0
  %v2959 = vpop.f32.mrb[0].mxu0
  %v2960 = vadd.f32 %v2896, %v2959
  %v2961 = vpop.f32.mrb[0].mxu0
  %2962 = vmatprep.mubr.bf16.mxu0 %v2581
  %2963 = vmatmul.mubr.bf16.gmra.mrb[0].mxu0 %v2580
  %v2964 = vpop.f32.mrb[0].mxu0
  %v2965 = vadd.f32 %v2901, %v2964
  %v2966 = vpop.f32.mrb[0].mxu0
  %v2967 = vpop.f32.mrb[0].mxu0
  %v2968 = vadd.f32 %v2904, %v2967
  %v2969 = vpop.f32.mrb[0].mxu0
  %2970 = vmatprep.mubr.bf16.mxu0 %v2594
  %2971 = vmatmul.mubr.bf16.gmra.mrb[0].mxu0 %v2593
  %v2972 = vpop.f32.mrb[0].mxu0
  %v2973 = vadd.f32 %v2909, %v2972
  %v2974 = vpop.f32.mrb[0].mxu0
  %v2975 = vpop.f32.mrb[0].mxu0
  %v2976 = vpop.f32.mrb[0].mxu0
  %2977 = vdwg.mxu0
  %2978 = vmatprep.subr.bf16.mxu0 0
  %2979 = vmatpush1.bf16.msra.mxu0 %v1006
  %2980 = vmatprep.subr.bf16.mxu0 0
  %2981 = vmatpush1.bf16.msra.mxu0 %v1007
  %2982 = vmatprep.subr.bf16.mxu0 0
  %2983 = vmatpush1.bf16.msra.mxu0 %v1008
  %2984 = vmatprep.subr.bf16.mxu0 0
  %2985 = vmatpush1.bf16.msra.mxu0 %v1009
  %2986 = vmatprep.subr.bf16.mxu0 0
  %2987 = vmatpush1.bf16.msra.mxu0 %v1010
  %2988 = vmatprep.subr.bf16.mxu0 0
  %2989 = vmatpush1.bf16.msra.mxu0 %v1011
  %2990 = vmatprep.subr.bf16.mxu0 0
  %2991 = vmatpush1.bf16.msra.mxu0 %v1012
  %2992 = vmatprep.subr.bf16.mxu0 0
  %2993 = vmatpush1.bf16.msra.mxu0 %v1013
  %2994 = vmatprep.subr.bf16.mxu0 0
  %2995 = vmatpush1.bf16.msra.mxu0 %v1014
  %2996 = vmatprep.subr.bf16.mxu0 0
  %2997 = vmatpush1.bf16.msra.mxu0 %v1015
  %2998 = vmatprep.subr.bf16.mxu0 0
  %2999 = vmatpush1.bf16.msra.mxu0 %v1016
  %3000 = vmatprep.subr.bf16.mxu0 0
  %3001 = vmatpush1.bf16.msra.mxu0 %v1017
  %3002 = vmatprep.subr.bf16.mxu0 0
  %3003 = vmatpush1.bf16.msra.mxu0 %v1018
  %3004 = vmatprep.subr.bf16.mxu0 0
  %3005 = vmatpush1.bf16.msra.mxu0 %v1019
  %3006 = vmatprep.subr.bf16.mxu0 0
  %3007 = vmatpush1.bf16.msra.mxu0 %v1020
  %3008 = vmatprep.subr.bf16.mxu0 0
  %3009 = vmatpush1.bf16.msra.mxu0 %v1021
  %3010 = vmatprep.mubr.bf16.mxu0 %v2557
  %3011 = vmatmul.mubr.bf16.gmra.mrb[0].mxu0 %v2556
  %v3012 = vpop.f32.mrb[0].mxu0
  %v3013 = vadd.f32 %v2949, %v3012
  %v3014 = vpop.f32.mrb[0].mxu0
  %v3015 = vpop.f32.mrb[0].mxu0
  %v3016 = vadd.f32 %v2952, %v3015
  %v3017 = vpop.f32.mrb[0].mxu0
  %3018 = vmatprep.mubr.bf16.mxu0 %v2570
  %3019 = vmatmul.mubr.bf16.gmra.mrb[0].mxu0 %v2569
  %v3020 = vpop.f32.mrb[0].mxu0
  %v3021 = vadd.f32 %v2957, %v3020
  %v3022 = vpop.f32.mrb[0].mxu0
  %v3023 = vpop.f32.mrb[0].mxu0
  %v3024 = vadd.f32 %v2960, %v3023
  %v3025 = vpop.f32.mrb[0].mxu0
  %3026 = vmatprep.mubr.bf16.mxu0 %v2583
  %3027 = vmatmul.mubr.bf16.gmra.mrb[0].mxu0 %v2582
  %v3028 = vpop.f32.mrb[0].mxu0
  %v3029 = vadd.f32 %v2965, %v3028
  %v3030 = vpop.f32.mrb[0].mxu0
  %v3031 = vpop.f32.mrb[0].mxu0
  %v3032 = vadd.f32 %v2968, %v3031
  %v3033 = vpop.f32.mrb[0].mxu0
  %3034 = vmatprep.mubr.bf16.mxu0 %v2596
  %3035 = vmatmul.mubr.bf16.gmra.mrb[0].mxu0 %v2595
  %v3036 = vpop.f32.mrb[0].mxu0
  %v3037 = vadd.f32 %v2973, %v3036
  %v3038 = vpop.f32.mrb[0].mxu0
  %v3039 = vpop.f32.mrb[0].mxu0
  %v3040 = vpop.f32.mrb[0].mxu0
  %3041 = vdwg.mxu0
  %3042 = vmatprep.subr.bf16.mxu0 0
  %3043 = vmatpush1.bf16.msra.mxu0 %v1022
  %3044 = vmatprep.subr.bf16.mxu0 0
  %3045 = vmatpush1.bf16.msra.mxu0 %v1023
  %3046 = vmatprep.subr.bf16.mxu0 0
  %3047 = vmatpush1.bf16.msra.mxu0 %v1024
  %3048 = vmatprep.subr.bf16.mxu0 0
  %3049 = vmatpush1.bf16.msra.mxu0 %v1025
  %3050 = vmatprep.subr.bf16.mxu0 0
  %3051 = vmatpush1.bf16.msra.mxu0 0
  %3052 = vmatprep.subr.bf16.mxu0 0
  %3053 = vmatpush1.bf16.msra.mxu0 0
  %3054 = vmatprep.subr.bf16.mxu0 0
  %3055 = vmatpush1.bf16.msra.mxu0 0
  %3056 = vmatprep.subr.bf16.mxu0 0
  %3057 = vmatpush1.bf16.msra.mxu0 0
  %3058 = vmatprep.subr.bf16.mxu0 0
  %3059 = vmatpush1.bf16.msra.mxu0 0
  %3060 = vmatprep.subr.bf16.mxu0 0
  %3061 = vmatpush1.bf16.msra.mxu0 0
  %3062 = vmatprep.subr.bf16.mxu0 0
  %3063 = vmatpush1.bf16.msra.mxu0 0
  %3064 = vmatprep.subr.bf16.mxu0 0
  %3065 = vmatpush1.bf16.msra.mxu0 0
  %3066 = vmatprep.subr.bf16.mxu0 0
  %3067 = vmatpush1.bf16.msra.mxu0 0
  %3068 = vmatprep.subr.bf16.mxu0 0
  %3069 = vmatpush1.bf16.msra.mxu0 0
  %3070 = vmatprep.subr.bf16.mxu0 0
  %3071 = vmatpush1.bf16.msra.mxu0 0
  %3072 = vmatprep.subr.bf16.mxu0 0
  %3073 = vmatpush1.bf16.msra.mxu0 0
  %3074 = vmatprep.mubr.bf16.mxu0 0
  %3075 = vmatmul.mubr.bf16.gmra.mrb[0].mxu0 %v2647
  %v3076 = vpop.f32.mrb[0].mxu0
  %v3077 = vadd.f32 %v3013, %v3076
  %v3078 = vpop.f32.mrb[0].mxu0
  %v3079 = vpop.f32.mrb[0].mxu0
  %v3080 = vadd.f32 %v3016, %v3079
  %v3081 = vpop.f32.mrb[0].mxu0
  %3082 = vmatprep.mubr.bf16.mxu0 0
  %3083 = vmatmul.mubr.bf16.gmra.mrb[0].mxu0 %v2650
  %v3084 = vpop.f32.mrb[0].mxu0
  %v3085 = vadd.f32 %v3021, %v3084
  %v3086 = vpop.f32.mrb[0].mxu0
  %v3087 = vpop.f32.mrb[0].mxu0
  %v3088 = vadd.f32 %v3024, %v3087
  %v3089 = vpop.f32.mrb[0].mxu0
  %3090 = vmatprep.mubr.bf16.mxu0 0
  %3091 = vmatmul.mubr.bf16.gmra.mrb[0].mxu0 %v2653
  %v3092 = vpop.f32.mrb[0].mxu0
  %v3093 = vadd.f32 %v3029, %v3092
  %v3094 = vpop.f32.mrb[0].mxu0
  %v3095 = vpop.f32.mrb[0].mxu0
  %v3096 = vadd.f32 %v3032, %v3095
  %v3097 = vpop.f32.mrb[0].mxu0
  %3098 = vmatprep.mubr.bf16.mxu0 0
  %3099 = vmatmul.mubr.bf16.gmra.mrb[0].mxu0 %v2656
  %v3100 = vpop.f32.mrb[0].mxu0
  %v3101 = vadd.f32 %v3037, %v3100
  %v3102 = vpop.f32.mrb[0].mxu0
  %v3103 = vpop.f32.mrb[0].mxu0
  %v3104 = vpop.f32.mrb[0].mxu0
  %3105 = vdwg.mxu0
  %v3106 = vmax.f32 %v3077, 0.0
  %v3107 = vmax.f32 %v3080, 0.0
  %v3108 = vmax.f32 %v3085, 0.0
  %v3109 = vmax.f32 %v3088, 0.0
  %v3110 = vmax.f32 %v3093, 0.0
  %v3111 = vmax.f32 %v3096, 0.0
  %v3112 = vmax.f32 %v3101, 0.0
  %v3113 = vld [vmem:[%s3] sm:$0xff]
  %v3114 = vld [vmem:[%s3 + $0x8] sm:$0xff]
  %v3115 = vld [vmem:[%s3 + $0x10] sm:$0xff]
  %v3116 = vld [vmem:[%s3 + $0x18] sm:$0xff]
  %v3117 = vld [vmem:[%s3 + $0x20] sm:$0xff]
  %v3118 = vld [vmem:[%s3 + $0x28] sm:$0xff]
  %v3119 = vld [vmem:[%s3 + $0x30] sm:$0xf]
  %v3120 = vld [vmem:[%s3 + $0x34] sm:$0xff]
  %v3121 = vld [vmem:[%s3 + $0x3c] sm:$0xff]
  %v3122 = vld [vmem:[%s3 + $0x44] sm:$0xff]
  %v3123 = vld [vmem:[%s3 + $0x4c] sm:$0xff]
  %v3124 = vld [vmem:[%s3 + $0x54] sm:$0xff]
  %v3125 = vld [vmem:[%s3 + $0x5c] sm:$0xff]
  %v3126 = vld [vmem:[%s3 + $0x64] sm:$0xf]
  %v3127 = vld [vmem:[%s3 + $0x68] sm:$0xff]
  %v3128 = vld [vmem:[%s3 + $0x70] sm:$0xff]
  %v3129 = vld [vmem:[%s3 + $0x78] sm:$0xff]
  %v3130 = vld [vmem:[%s3 + $0x80] sm:$0xff]
  %v3131 = vld [vmem:[%s3 + $0x88] sm:$0xff]
  %v3132 = vld [vmem:[%s3 + $0x90] sm:$0xff]
  %v3133 = vld [vmem:[%s3 + $0x98] sm:$0xf]
  %v3134 = vld [vmem:[%s3 + $0x9c] sm:$0xff]
  %v3135 = vld [vmem:[%s3 + $0xa4] sm:$0xff]
  %v3136 = vld [vmem:[%s3 + $0xac] sm:$0xff]
  %v3137 = vld [vmem:[%s3 + $0xb4] sm:$0xff]
  %v3138 = vld [vmem:[%s3 + $0xbc] sm:$0xff]
  %v3139 = vld [vmem:[%s3 + $0xc4] sm:$0xff]
  %v3140 = vld [vmem:[%s3 + $0xcc] sm:$0xf]
  %v3141 = vld [vmem:[%s3 + $0xd0] sm:$0xff]
  %v3142 = vld [vmem:[%s3 + $0xd8] sm:$0xff]
  %v3143 = vld [vmem:[%s3 + $0xe0] sm:$0xff]
  %v3144 = vld [vmem:[%s3 + $0xe8] sm:$0xff]
  %v3145 = vld [vmem:[%s3 + $0xf0] sm:$0xff]
  %v3146 = vld [vmem:[%s3 + $0xf8] sm:$0xff]
  %v3147 = vld [vmem:[%s3 + $0x100] sm:$0xf]
  %v3148 = vld [vmem:[%s3 + $0x104] sm:$0xff]
  %v3149 = vld [vmem:[%s3 + $0x10c] sm:$0xff]
  %v3150 = vld [vmem:[%s3 + $0x114] sm:$0xff]
  %v3151 = vld [vmem:[%s3 + $0x11c] sm:$0xff]
  %v3152 = vld [vmem:[%s3 + $0x124] sm:$0xff]
  %v3153 = vld [vmem:[%s3 + $0x12c] sm:$0xff]
  %v3154 = vld [vmem:[%s3 + $0x134] sm:$0xf]
  %v3155 = vld [vmem:[%s3 + $0x138] sm:$0x11]
  %v3156 = vld [vmem:[%s3 + $0x140] sm:$0x11]
  %v3157 = vld [vmem:[%s3 + $0x148] sm:$0x11]
  %v3158 = vld [vmem:[%s3 + $0x150] sm:$0x11]
  %v3159 = vld [vmem:[%s3 + $0x158] sm:$0x11]
  %v3160 = vld [vmem:[%s3 + $0x160] sm:$0x11]
  %v3161 = vld [vmem:[%s3 + $0x168] sm:$0x1]
  %v3211 = vunpack.c.l.b16 %v3113
  %v3212 = vunpack.c.h.b16 %v3113
  %v3213 = vunpack.c.l.b16 %v3114
  %v3214 = vunpack.c.h.b16 %v3114
  %v3215 = vunpack.c.l.b16 %v3115
  %v3216 = vunpack.c.h.b16 %v3115
  %v3217 = vunpack.c.l.b16 %v3116
  %v3218 = vunpack.c.h.b16 %v3116
  %v3219 = vunpack.c.l.b16 %v3117
  %v3220 = vunpack.c.h.b16 %v3117
  %v3221 = vunpack.c.l.b16 %v3118
  %v3222 = vunpack.c.h.b16 %v3118
  %v3223 = vunpack.c.l.b16 %v3119
  %v3224 = vunpack.c.l.b16 %v3120
  %v3225 = vunpack.c.h.b16 %v3120
  %v3226 = vunpack.c.l.b16 %v3121
  %v3227 = vunpack.c.h.b16 %v3121
  %v3228 = vunpack.c.l.b16 %v3122
  %v3229 = vunpack.c.h.b16 %v3122
  %v3230 = vunpack.c.l.b16 %v3123
  %v3231 = vunpack.c.h.b16 %v3123
  %v3232 = vunpack.c.l.b16 %v3124
  %v3233 = vunpack.c.h.b16 %v3124
  %v3234 = vunpack.c.l.b16 %v3125
  %v3235 = vunpack.c.h.b16 %v3125
  %v3236 = vunpack.c.l.b16 %v3126
  %v3237 = vunpack.c.l.b16 %v3127
  %v3238 = vunpack.c.h.b16 %v3127
  %v3239 = vunpack.c.l.b16 %v3128
  %v3240 = vunpack.c.h.b16 %v3128
  %v3241 = vunpack.c.l.b16 %v3129
  %v3242 = vunpack.c.h.b16 %v3129
  %v3243 = vunpack.c.l.b16 %v3130
  %v3244 = vunpack.c.h.b16 %v3130
  %v3245 = vunpack.c.l.b16 %v3131
  %v3246 = vunpack.c.h.b16 %v3131
  %v3247 = vunpack.c.l.b16 %v3132
  %v3248 = vunpack.c.h.b16 %v3132
  %v3249 = vunpack.c.l.b16 %v3133
  %v3250 = vunpack.c.l.b16 %v3134
  %v3251 = vunpack.c.h.b16 %v3134
  %v3252 = vunpack.c.l.b16 %v3135
  %v3253 = vunpack.c.h.b16 %v3135
  %v3254 = vunpack.c.l.b16 %v3136
  %v3255 = vunpack.c.h.b16 %v3136
  %v3256 = vunpack.c.l.b16 %v3137
  %v3257 = vunpack.c.h.b16 %v3137
  %v3258 = vunpack.c.l.b16 %v3138
  %v3259 = vunpack.c.h.b16 %v3138
  %v3260 = vunpack.c.l.b16 %v3139
  %v3261 = vunpack.c.h.b16 %v3139
  %v3262 = vunpack.c.l.b16 %v3140
  %v3263 = vunpack.c.l.b16 %v3141
  %v3264 = vunpack.c.h.b16 %v3141
  %v3265 = vunpack.c.l.b16 %v3142
  %v3266 = vunpack.c.h.b16 %v3142
  %v3267 = vunpack.c.l.b16 %v3143
  %v3268 = vunpack.c.h.b16 %v3143
  %v3269 = vunpack.c.l.b16 %v3144
  %v3270 = vunpack.c.h.b16 %v3144
  %v3271 = vunpack.c.l.b16 %v3145
  %v3272 = vunpack.c.h.b16 %v3145
  %v3273 = vunpack.c.l.b16 %v3146
  %v3274 = vunpack.c.h.b16 %v3146
  %v3275 = vunpack.c.l.b16 %v3147
  %v3276 = vunpack.c.l.b16 %v3148
  %v3277 = vunpack.c.h.b16 %v3148
  %v3278 = vunpack.c.l.b16 %v3149
  %v3279 = vunpack.c.h.b16 %v3149
  %v3280 = vunpack.c.l.b16 %v3150
  %v3281 = vunpack.c.h.b16 %v3150
  %v3282 = vunpack.c.l.b16 %v3151
  %v3283 = vunpack.c.h.b16 %v3151
  %v3284 = vunpack.c.l.b16 %v3152
  %v3285 = vunpack.c.h.b16 %v3152
  %v3286 = vunpack.c.l.b16 %v3153
  %v3287 = vunpack.c.h.b16 %v3153
  %v3288 = vunpack.c.l.b16 %v3154
  %v3289 = vunpack.c.l.b16 %v3155
  %v3290 = vunpack.c.h.b16 %v3155
  %v3291 = vunpack.c.l.b16 %v3156
  %v3292 = vunpack.c.h.b16 %v3156
  %v3293 = vunpack.c.l.b16 %v3157
  %v3294 = vunpack.c.h.b16 %v3157
  %v3295 = vunpack.c.l.b16 %v3158
  %v3296 = vunpack.c.h.b16 %v3158
  %v3297 = vunpack.c.l.b16 %v3159
  %v3298 = vunpack.c.h.b16 %v3159
  %v3299 = vunpack.c.l.b16 %v3160
  %v3300 = vunpack.c.h.b16 %v3160
  %v3301 = vunpack.c.l.b16 %v3161
  %v3302 = vpack.c.b16 %v3224, %v3211
  %v3303 = vpack.c.b16 %v3225, %v3212
  %v3304 = vpack.c.b16 %v3226, %v3213
  %v3305 = vpack.c.b16 %v3227, %v3214
  %v3306 = vpack.c.b16 %v3228, %v3215
  %v3307 = vpack.c.b16 %v3229, %v3216
  %v3308 = vpack.c.b16 %v3230, %v3217
  %v3309 = vpack.c.b16 %v3231, %v3218
  %v3310 = vpack.c.b16 %v3232, %v3219
  %v3311 = vpack.c.b16 %v3233, %v3220
  %v3312 = vpack.c.b16 %v3234, %v3221
  %v3313 = vpack.c.b16 %v3235, %v3222
  %v3314 = vpack.c.b16 %v3236, %v3223
  %v3315 = vpack.c.b16 %v3250, %v3237
  %v3316 = vpack.c.b16 %v3251, %v3238
  %v3317 = vpack.c.b16 %v3252, %v3239
  %v3318 = vpack.c.b16 %v3253, %v3240
  %v3319 = vpack.c.b16 %v3254, %v3241
  %v3320 = vpack.c.b16 %v3255, %v3242
  %v3321 = vpack.c.b16 %v3256, %v3243
  %v3322 = vpack.c.b16 %v3257, %v3244
  %v3323 = vpack.c.b16 %v3258, %v3245
  %v3324 = vpack.c.b16 %v3259, %v3246
  %v3325 = vpack.c.b16 %v3260, %v3247
  %v3326 = vpack.c.b16 %v3261, %v3248
  %v3327 = vpack.c.b16 %v3262, %v3249
  %v3328 = vpack.c.b16 %v3276, %v3263
  %v3329 = vpack.c.b16 %v3277, %v3264
  %v3330 = vpack.c.b16 %v3278, %v3265
  %v3331 = vpack.c.b16 %v3279, %v3266
  %v3332 = vpack.c.b16 %v3280, %v3267
  %v3333 = vpack.c.b16 %v3281, %v3268
  %v3334 = vpack.c.b16 %v3282, %v3269
  %v3335 = vpack.c.b16 %v3283, %v3270
  %v3336 = vpack.c.b16 %v3284, %v3271
  %v3337 = vpack.c.b16 %v3285, %v3272
  %v3338 = vpack.c.b16 %v3286, %v3273
  %v3339 = vpack.c.b16 %v3287, %v3274
  %v3340 = vpack.c.b16 %v3288, %v3275
  %v3341 = vpack.c.b16 %v3289, %v3289
  %v3342 = vpack.c.b16 %v3290, %v3290
  %v3343 = vpack.c.b16 %v3291, %v3291
  %v3344 = vpack.c.b16 %v3292, %v3292
  %v3345 = vpack.c.b16 %v3293, %v3293
  %v3346 = vpack.c.b16 %v3294, %v3294
  %v3347 = vpack.c.b16 %v3295, %v3295
  %v3348 = vpack.c.b16 %v3296, %v3296
  %v3349 = vpack.c.b16 %v3297, %v3297
  %v3350 = vpack.c.b16 %v3298, %v3298
  %v3351 = vpack.c.b16 %v3299, %v3299
  %v3352 = vpack.c.b16 %v3300, %v3300
  %v3353 = vpack.c.b16 %v3301, %v3301
  %v3403 = vsel %vm1126, %v3314, 0
  %v3406 = vsel %vm1126, %v3327, 0
  %v3409 = vsel %vm1126, %v3340, 0
  %v3412 = vsel %vm1126, %v3353, 0
  %3414 = vmatprep.subr.bf16.mxu0 0
  %3415 = vmatpush1.bf16.msra.mxu0 %v926
  %3416 = vmatprep.subr.bf16.mxu0 0
  %3417 = vmatpush1.bf16.msra.mxu0 %v927
  %3418 = vmatprep.subr.bf16.mxu0 0
  %3419 = vmatpush1.bf16.msra.mxu0 %v928
  %3420 = vmatprep.subr.bf16.mxu0 0
  %3421 = vmatpush1.bf16.msra.mxu0 %v929
  %3422 = vmatprep.subr.bf16.mxu0 0
  %3423 = vmatpush1.bf16.msra.mxu0 %v930
  %3424 = vmatprep.subr.bf16.mxu0 0
  %3425 = vmatpush1.bf16.msra.mxu0 %v931
  %3426 = vmatprep.subr.bf16.mxu0 0
  %3427 = vmatpush1.bf16.msra.mxu0 %v932
  %3428 = vmatprep.subr.bf16.mxu0 0
  %3429 = vmatpush1.bf16.msra.mxu0 %v933
  %3430 = vmatprep.subr.bf16.mxu0 0
  %3431 = vmatpush1.bf16.msra.mxu0 %v934
  %3432 = vmatprep.subr.bf16.mxu0 0
  %3433 = vmatpush1.bf16.msra.mxu0 %v935
  %3434 = vmatprep.subr.bf16.mxu0 0
  %3435 = vmatpush1.bf16.msra.mxu0 %v936
  %3436 = vmatprep.subr.bf16.mxu0 0
  %3437 = vmatpush1.bf16.msra.mxu0 %v937
  %3438 = vmatprep.subr.bf16.mxu0 0
  %3439 = vmatpush1.bf16.msra.mxu0 %v938
  %3440 = vmatprep.subr.bf16.mxu0 0
  %3441 = vmatpush1.bf16.msra.mxu0 %v939
  %3442 = vmatprep.subr.bf16.mxu0 0
  %3443 = vmatpush1.bf16.msra.mxu0 %v940
  %3444 = vmatprep.subr.bf16.mxu0 0
  %3445 = vmatpush1.bf16.msra.mxu0 %v941
  %3446 = vmatprep.mubr.bf16.mxu0 %v3303
  %3447 = vmatmul.mubr.bf16.gmra.mrb[0].mxu0 %v3302
  %v3448 = vpop.f32.mrb[0].mxu0
  %v3449 = vadd.f32 %v284, %v3448
  %v3450 = vpop.f32.mrb[0].mxu0
  %v3451 = vpop.f32.mrb[0].mxu0
  %v3452 = vadd.f32 %v284, %v3451
  %v3453 = vpop.f32.mrb[0].mxu0
  %3454 = vmatprep.mubr.bf16.mxu0 %v3316
  %3455 = vmatmul.mubr.bf16.gmra.mrb[0].mxu0 %v3315
  %v3456 = vpop.f32.mrb[0].mxu0
  %v3457 = vadd.f32 %v284, %v3456
  %v3458 = vpop.f32.mrb[0].mxu0
  %v3459 = vpop.f32.mrb[0].mxu0
  %v3460 = vadd.f32 %v284, %v3459
  %v3461 = vpop.f32.mrb[0].mxu0
  %3462 = vmatprep.mubr.bf16.mxu0 %v3329
  %3463 = vmatmul.mubr.bf16.gmra.mrb[0].mxu0 %v3328
  %v3464 = vpop.f32.mrb[0].mxu0
  %v3465 = vadd.f32 %v284, %v3464
  %v3466 = vpop.f32.mrb[0].mxu0
  %v3467 = vpop.f32.mrb[0].mxu0
  %v3468 = vadd.f32 %v284, %v3467
  %v3469 = vpop.f32.mrb[0].mxu0
  %3470 = vmatprep.mubr.bf16.mxu0 %v3342
  %3471 = vmatmul.mubr.bf16.gmra.mrb[0].mxu0 %v3341
  %v3472 = vpop.f32.mrb[0].mxu0
  %v3473 = vadd.f32 %v284, %v3472
  %v3474 = vpop.f32.mrb[0].mxu0
  %v3475 = vpop.f32.mrb[0].mxu0
  %v3476 = vpop.f32.mrb[0].mxu0
  %3477 = vdwg.mxu0
  %3478 = vmatprep.subr.bf16.mxu0 0
  %3479 = vmatpush1.bf16.msra.mxu0 %v942
  %3480 = vmatprep.subr.bf16.mxu0 0
  %3481 = vmatpush1.bf16.msra.mxu0 %v943
  %3482 = vmatprep.subr.bf16.mxu0 0
  %3483 = vmatpush1.bf16.msra.mxu0 %v944
  %3484 = vmatprep.subr.bf16.mxu0 0
  %3485 = vmatpush1.bf16.msra.mxu0 %v945
  %3486 = vmatprep.subr.bf16.mxu0 0
  %3487 = vmatpush1.bf16.msra.mxu0 %v946
  %3488 = vmatprep.subr.bf16.mxu0 0
  %3489 = vmatpush1.bf16.msra.mxu0 %v947
  %3490 = vmatprep.subr.bf16.mxu0 0
  %3491 = vmatpush1.bf16.msra.mxu0 %v948
  %3492 = vmatprep.subr.bf16.mxu0 0
  %3493 = vmatpush1.bf16.msra.mxu0 %v949
  %3494 = vmatprep.subr.bf16.mxu0 0
  %3495 = vmatpush1.bf16.msra.mxu0 %v950
  %3496 = vmatprep.subr.bf16.mxu0 0
  %3497 = vmatpush1.bf16.msra.mxu0 %v951
  %3498 = vmatprep.subr.bf16.mxu0 0
  %3499 = vmatpush1.bf16.msra.mxu0 %v952
  %3500 = vmatprep.subr.bf16.mxu0 0
  %3501 = vmatpush1.bf16.msra.mxu0 %v953
  %3502 = vmatprep.subr.bf16.mxu0 0
  %3503 = vmatpush1.bf16.msra.mxu0 %v954
  %3504 = vmatprep.subr.bf16.mxu0 0
  %3505 = vmatpush1.bf16.msra.mxu0 %v955
  %3506 = vmatprep.subr.bf16.mxu0 0
  %3507 = vmatpush1.bf16.msra.mxu0 %v956
  %3508 = vmatprep.subr.bf16.mxu0 0
  %3509 = vmatpush1.bf16.msra.mxu0 %v957
  %3510 = vmatprep.mubr.bf16.mxu0 %v3305
  %3511 = vmatmul.mubr.bf16.gmra.mrb[0].mxu0 %v3304
  %v3512 = vpop.f32.mrb[0].mxu0
  %v3513 = vadd.f32 %v3449, %v3512
  %v3514 = vpop.f32.mrb[0].mxu0
  %v3515 = vpop.f32.mrb[0].mxu0
  %v3516 = vadd.f32 %v3452, %v3515
  %v3517 = vpop.f32.mrb[0].mxu0
  %3518 = vmatprep.mubr.bf16.mxu0 %v3318
  %3519 = vmatmul.mubr.bf16.gmra.mrb[0].mxu0 %v3317
  %v3520 = vpop.f32.mrb[0].mxu0
  %v3521 = vadd.f32 %v3457, %v3520
  %v3522 = vpop.f32.mrb[0].mxu0
  %v3523 = vpop.f32.mrb[0].mxu0
  %v3524 = vadd.f32 %v3460, %v3523
  %v3525 = vpop.f32.mrb[0].mxu0
  %3526 = vmatprep.mubr.bf16.mxu0 %v3331
  %3527 = vmatmul.mubr.bf16.gmra.mrb[0].mxu0 %v3330
  %v3528 = vpop.f32.mrb[0].mxu0
  %v3529 = vadd.f32 %v3465, %v3528
  %v3530 = vpop.f32.mrb[0].mxu0
  %v3531 = vpop.f32.mrb[0].mxu0
  %v3532 = vadd.f32 %v3468, %v3531
  %v3533 = vpop.f32.mrb[0].mxu0
  %3534 = vmatprep.mubr.bf16.mxu0 %v3344
  %3535 = vmatmul.mubr.bf16.gmra.mrb[0].mxu0 %v3343
  %v3536 = vpop.f32.mrb[0].mxu0
  %v3537 = vadd.f32 %v3473, %v3536
  %v3538 = vpop.f32.mrb[0].mxu0
  %v3539 = vpop.f32.mrb[0].mxu0
  %v3540 = vpop.f32.mrb[0].mxu0
  %3541 = vdwg.mxu0
  %3542 = vmatprep.subr.bf16.mxu0 0
  %3543 = vmatpush1.bf16.msra.mxu0 %v958
  %3544 = vmatprep.subr.bf16.mxu0 0
  %3545 = vmatpush1.bf16.msra.mxu0 %v959
  %3546 = vmatprep.subr.bf16.mxu0 0
  %3547 = vmatpush1.bf16.msra.mxu0 %v960
  %3548 = vmatprep.subr.bf16.mxu0 0
  %3549 = vmatpush1.bf16.msra.mxu0 %v961
  %3550 = vmatprep.subr.bf16.mxu0 0
  %3551 = vmatpush1.bf16.msra.mxu0 %v962
  %3552 = vmatprep.subr.bf16.mxu0 0
  %3553 = vmatpush1.bf16.msra.mxu0 %v963
  %3554 = vmatprep.subr.bf16.mxu0 0
  %3555 = vmatpush1.bf16.msra.mxu0 %v964
  %3556 = vmatprep.subr.bf16.mxu0 0
  %3557 = vmatpush1.bf16.msra.mxu0 %v965
  %3558 = vmatprep.subr.bf16.mxu0 0
  %3559 = vmatpush1.bf16.msra.mxu0 %v966
  %3560 = vmatprep.subr.bf16.mxu0 0
  %3561 = vmatpush1.bf16.msra.mxu0 %v967
  %3562 = vmatprep.subr.bf16.mxu0 0
  %3563 = vmatpush1.bf16.msra.mxu0 %v968
  %3564 = vmatprep.subr.bf16.mxu0 0
  %3565 = vmatpush1.bf16.msra.mxu0 %v969
  %3566 = vmatprep.subr.bf16.mxu0 0
  %3567 = vmatpush1.bf16.msra.mxu0 %v970
  %3568 = vmatprep.subr.bf16.mxu0 0
  %3569 = vmatpush1.bf16.msra.mxu0 %v971
  %3570 = vmatprep.subr.bf16.mxu0 0
  %3571 = vmatpush1.bf16.msra.mxu0 %v972
  %3572 = vmatprep.subr.bf16.mxu0 0
  %3573 = vmatpush1.bf16.msra.mxu0 %v973
  %3574 = vmatprep.mubr.bf16.mxu0 %v3307
  %3575 = vmatmul.mubr.bf16.gmra.mrb[0].mxu0 %v3306
  %v3576 = vpop.f32.mrb[0].mxu0
  %v3577 = vadd.f32 %v3513, %v3576
  %v3578 = vpop.f32.mrb[0].mxu0
  %v3579 = vpop.f32.mrb[0].mxu0
  %v3580 = vadd.f32 %v3516, %v3579
  %v3581 = vpop.f32.mrb[0].mxu0
  %3582 = vmatprep.mubr.bf16.mxu0 %v3320
  %3583 = vmatmul.mubr.bf16.gmra.mrb[0].mxu0 %v3319
  %v3584 = vpop.f32.mrb[0].mxu0
  %v3585 = vadd.f32 %v3521, %v3584
  %v3586 = vpop.f32.mrb[0].mxu0
  %v3587 = vpop.f32.mrb[0].mxu0
  %v3588 = vadd.f32 %v3524, %v3587
  %v3589 = vpop.f32.mrb[0].mxu0
  %3590 = vmatprep.mubr.bf16.mxu0 %v3333
  %3591 = vmatmul.mubr.bf16.gmra.mrb[0].mxu0 %v3332
  %v3592 = vpop.f32.mrb[0].mxu0
  %v3593 = vadd.f32 %v3529, %v3592
  %v3594 = vpop.f32.mrb[0].mxu0
  %v3595 = vpop.f32.mrb[0].mxu0
  %v3596 = vadd.f32 %v3532, %v3595
  %v3597 = vpop.f32.mrb[0].mxu0
  %3598 = vmatprep.mubr.bf16.mxu0 %v3346
  %3599 = vmatmul.mubr.bf16.gmra.mrb[0].mxu0 %v3345
  %v3600 = vpop.f32.mrb[0].mxu0
  %v3601 = vadd.f32 %v3537, %v3600
  %v3602 = vpop.f32.mrb[0].mxu0
  %v3603 = vpop.f32.mrb[0].mxu0
  %v3604 = vpop.f32.mrb[0].mxu0
  %3605 = vdwg.mxu0
  %3606 = vmatprep.subr.bf16.mxu0 0
  %3607 = vmatpush1.bf16.msra.mxu0 %v974
  %3608 = vmatprep.subr.bf16.mxu0 0
  %3609 = vmatpush1.bf16.msra.mxu0 %v975
  %3610 = vmatprep.subr.bf16.mxu0 0
  %3611 = vmatpush1.bf16.msra.mxu0 %v976
  %3612 = vmatprep.subr.bf16.mxu0 0
  %3613 = vmatpush1.bf16.msra.mxu0 %v977
  %3614 = vmatprep.subr.bf16.mxu0 0
  %3615 = vmatpush1.bf16.msra.mxu0 %v978
  %3616 = vmatprep.subr.bf16.mxu0 0
  %3617 = vmatpush1.bf16.msra.mxu0 %v979
  %3618 = vmatprep.subr.bf16.mxu0 0
  %3619 = vmatpush1.bf16.msra.mxu0 %v980
  %3620 = vmatprep.subr.bf16.mxu0 0
  %3621 = vmatpush1.bf16.msra.mxu0 %v981
  %3622 = vmatprep.subr.bf16.mxu0 0
  %3623 = vmatpush1.bf16.msra.mxu0 %v982
  %3624 = vmatprep.subr.bf16.mxu0 0
  %3625 = vmatpush1.bf16.msra.mxu0 %v983
  %3626 = vmatprep.subr.bf16.mxu0 0
  %3627 = vmatpush1.bf16.msra.mxu0 %v984
  %3628 = vmatprep.subr.bf16.mxu0 0
  %3629 = vmatpush1.bf16.msra.mxu0 %v985
  %3630 = vmatprep.subr.bf16.mxu0 0
  %3631 = vmatpush1.bf16.msra.mxu0 %v986
  %3632 = vmatprep.subr.bf16.mxu0 0
  %3633 = vmatpush1.bf16.msra.mxu0 %v987
  %3634 = vmatprep.subr.bf16.mxu0 0
  %3635 = vmatpush1.bf16.msra.mxu0 %v988
  %3636 = vmatprep.subr.bf16.mxu0 0
  %3637 = vmatpush1.bf16.msra.mxu0 %v989
  %3638 = vmatprep.mubr.bf16.mxu0 %v3309
  %3639 = vmatmul.mubr.bf16.gmra.mrb[0].mxu0 %v3308
  %v3640 = vpop.f32.mrb[0].mxu0
  %v3641 = vadd.f32 %v3577, %v3640
  %v3642 = vpop.f32.mrb[0].mxu0
  %v3643 = vpop.f32.mrb[0].mxu0
  %v3644 = vadd.f32 %v3580, %v3643
  %v3645 = vpop.f32.mrb[0].mxu0
  %3646 = vmatprep.mubr.bf16.mxu0 %v3322
  %3647 = vmatmul.mubr.bf16.gmra.mrb[0].mxu0 %v3321
  %v3648 = vpop.f32.mrb[0].mxu0
  %v3649 = vadd.f32 %v3585, %v3648
  %v3650 = vpop.f32.mrb[0].mxu0
  %v3651 = vpop.f32.mrb[0].mxu0
  %v3652 = vadd.f32 %v3588, %v3651
  %v3653 = vpop.f32.mrb[0].mxu0
  %3654 = vmatprep.mubr.bf16.mxu0 %v3335
  %3655 = vmatmul.mubr.bf16.gmra.mrb[0].mxu0 %v3334
  %v3656 = vpop.f32.mrb[0].mxu0
  %v3657 = vadd.f32 %v3593, %v3656
  %v3658 = vpop.f32.mrb[0].mxu0
  %v3659 = vpop.f32.mrb[0].mxu0
  %v3660 = vadd.f32 %v3596, %v3659
  %v3661 = vpop.f32.mrb[0].mxu0
  %3662 = vmatprep.mubr.bf16.mxu0 %v3348
  %3663 = vmatmul.mubr.bf16.gmra.mrb[0].mxu0 %v3347
  %v3664 = vpop.f32.mrb[0].mxu0
  %v3665 = vadd.f32 %v3601, %v3664
  %v3666 = vpop.f32.mrb[0].mxu0
  %v3667 = vpop.f32.mrb[0].mxu0
  %v3668 = vpop.f32.mrb[0].mxu0
  %3669 = vdwg.mxu0
  %3670 = vmatprep.subr.bf16.mxu0 0
  %3671 = vmatpush1.bf16.msra.mxu0 %v990
  %3672 = vmatprep.subr.bf16.mxu0 0
  %3673 = vmatpush1.bf16.msra.mxu0 %v991
  %3674 = vmatprep.subr.bf16.mxu0 0
  %3675 = vmatpush1.bf16.msra.mxu0 %v992
  %3676 = vmatprep.subr.bf16.mxu0 0
  %3677 = vmatpush1.bf16.msra.mxu0 %v993
  %3678 = vmatprep.subr.bf16.mxu0 0
  %3679 = vmatpush1.bf16.msra.mxu0 %v994
  %3680 = vmatprep.subr.bf16.mxu0 0
  %3681 = vmatpush1.bf16.msra.mxu0 %v995
  %3682 = vmatprep.subr.bf16.mxu0 0
  %3683 = vmatpush1.bf16.msra.mxu0 %v996
  %3684 = vmatprep.subr.bf16.mxu0 0
  %3685 = vmatpush1.bf16.msra.mxu0 %v997
  %3686 = vmatprep.subr.bf16.mxu0 0
  %3687 = vmatpush1.bf16.msra.mxu0 %v998
  %3688 = vmatprep.subr.bf16.mxu0 0
  %3689 = vmatpush1.bf16.msra.mxu0 %v999
  %3690 = vmatprep.subr.bf16.mxu0 0
  %3691 = vmatpush1.bf16.msra.mxu0 %v1000
  %3692 = vmatprep.subr.bf16.mxu0 0
  %3693 = vmatpush1.bf16.msra.mxu0 %v1001
  %3694 = vmatprep.subr.bf16.mxu0 0
  %3695 = vmatpush1.bf16.msra.mxu0 %v1002
  %3696 = vmatprep.subr.bf16.mxu0 0
  %3697 = vmatpush1.bf16.msra.mxu0 %v1003
  %3698 = vmatprep.subr.bf16.mxu0 0
  %3699 = vmatpush1.bf16.msra.mxu0 %v1004
  %3700 = vmatprep.subr.bf16.mxu0 0
  %3701 = vmatpush1.bf16.msra.mxu0 %v1005
  %3702 = vmatprep.mubr.bf16.mxu0 %v3311
  %3703 = vmatmul.mubr.bf16.gmra.mrb[0].mxu0 %v3310
  %v3704 = vpop.f32.mrb[0].mxu0
  %v3705 = vadd.f32 %v3641, %v3704
  %v3706 = vpop.f32.mrb[0].mxu0
  %v3707 = vpop.f32.mrb[0].mxu0
  %v3708 = vadd.f32 %v3644, %v3707
  %v3709 = vpop.f32.mrb[0].mxu0
  %3710 = vmatprep.mubr.bf16.mxu0 %v3324
  %3711 = vmatmul.mubr.bf16.gmra.mrb[0].mxu0 %v3323
  %v3712 = vpop.f32.mrb[0].mxu0
  %v3713 = vadd.f32 %v3649, %v3712
  %v3714 = vpop.f32.mrb[0].mxu0
  %v3715 = vpop.f32.mrb[0].mxu0
  %v3716 = vadd.f32 %v3652, %v3715
  %v3717 = vpop.f32.mrb[0].mxu0
  %3718 = vmatprep.mubr.bf16.mxu0 %v3337
  %3719 = vmatmul.mubr.bf16.gmra.mrb[0].mxu0 %v3336
  %v3720 = vpop.f32.mrb[0].mxu0
  %v3721 = vadd.f32 %v3657, %v3720
  %v3722 = vpop.f32.mrb[0].mxu0
  %v3723 = vpop.f32.mrb[0].mxu0
  %v3724 = vadd.f32 %v3660, %v3723
  %v3725 = vpop.f32.mrb[0].mxu0
  %3726 = vmatprep.mubr.bf16.mxu0 %v3350
  %3727 = vmatmul.mubr.bf16.gmra.mrb[0].mxu0 %v3349
  %v3728 = vpop.f32.mrb[0].mxu0
  %v3729 = vadd.f32 %v3665, %v3728
  %v3730 = vpop.f32.mrb[0].mxu0
  %v3731 = vpop.f32.mrb[0].mxu0
  %v3732 = vpop.f32.mrb[0].mxu0
  %3733 = vdwg.mxu0
  %3734 = vmatprep.subr.bf16.mxu0 0
  %3735 = vmatpush1.bf16.msra.mxu0 %v1006
  %3736 = vmatprep.subr.bf16.mxu0 0
  %3737 = vmatpush1.bf16.msra.mxu0 %v1007
  %3738 = vmatprep.subr.bf16.mxu0 0
  %3739 = vmatpush1.bf16.msra.mxu0 %v1008
  %3740 = vmatprep.subr.bf16.mxu0 0
  %3741 = vmatpush1.bf16.msra.mxu0 %v1009
  %3742 = vmatprep.subr.bf16.mxu0 0
  %3743 = vmatpush1.bf16.msra.mxu0 %v1010
  %3744 = vmatprep.subr.bf16.mxu0 0
  %3745 = vmatpush1.bf16.msra.mxu0 %v1011
  %3746 = vmatprep.subr.bf16.mxu0 0
  %3747 = vmatpush1.bf16.msra.mxu0 %v1012
  %3748 = vmatprep.subr.bf16.mxu0 0
  %3749 = vmatpush1.bf16.msra.mxu0 %v1013
  %3750 = vmatprep.subr.bf16.mxu0 0
  %3751 = vmatpush1.bf16.msra.mxu0 %v1014
  %3752 = vmatprep.subr.bf16.mxu0 0
  %3753 = vmatpush1.bf16.msra.mxu0 %v1015
  %3754 = vmatprep.subr.bf16.mxu0 0
  %3755 = vmatpush1.bf16.msra.mxu0 %v1016
  %3756 = vmatprep.subr.bf16.mxu0 0
  %3757 = vmatpush1.bf16.msra.mxu0 %v1017
  %3758 = vmatprep.subr.bf16.mxu0 0
  %3759 = vmatpush1.bf16.msra.mxu0 %v1018
  %3760 = vmatprep.subr.bf16.mxu0 0
  %3761 = vmatpush1.bf16.msra.mxu0 %v1019
  %3762 = vmatprep.subr.bf16.mxu0 0
  %3763 = vmatpush1.bf16.msra.mxu0 %v1020
  %3764 = vmatprep.subr.bf16.mxu0 0
  %3765 = vmatpush1.bf16.msra.mxu0 %v1021
  %3766 = vmatprep.mubr.bf16.mxu0 %v3313
  %3767 = vmatmul.mubr.bf16.gmra.mrb[0].mxu0 %v3312
  %v3768 = vpop.f32.mrb[0].mxu0
  %v3769 = vadd.f32 %v3705, %v3768
  %v3770 = vpop.f32.mrb[0].mxu0
  %v3771 = vpop.f32.mrb[0].mxu0
  %v3772 = vadd.f32 %v3708, %v3771
  %v3773 = vpop.f32.mrb[0].mxu0
  %3774 = vmatprep.mubr.bf16.mxu0 %v3326
  %3775 = vmatmul.mubr.bf16.gmra.mrb[0].mxu0 %v3325
  %v3776 = vpop.f32.mrb[0].mxu0
  %v3777 = vadd.f32 %v3713, %v3776
  %v3778 = vpop.f32.mrb[0].mxu0
  %v3779 = vpop.f32.mrb[0].mxu0
  %v3780 = vadd.f32 %v3716, %v3779
  %v3781 = vpop.f32.mrb[0].mxu0
  %3782 = vmatprep.mubr.bf16.mxu0 %v3339
  %3783 = vmatmul.mubr.bf16.gmra.mrb[0].mxu0 %v3338
  %v3784 = vpop.f32.mrb[0].mxu0
  %v3785 = vadd.f32 %v3721, %v3784
  %v3786 = vpop.f32.mrb[0].mxu0
  %v3787 = vpop.f32.mrb[0].mxu0
  %v3788 = vadd.f32 %v3724, %v3787
  %v3789 = vpop.f32.mrb[0].mxu0
  %3790 = vmatprep.mubr.bf16.mxu0 %v3352
  %3791 = vmatmul.mubr.bf16.gmra.mrb[0].mxu0 %v3351
  %v3792 = vpop.f32.mrb[0].mxu0
  %v3793 = vadd.f32 %v3729, %v3792
  %v3794 = vpop.f32.mrb[0].mxu0
  %v3795 = vpop.f32.mrb[0].mxu0
  %v3796 = vpop.f32.mrb[0].mxu0
  %3797 = vdwg.mxu0
  %3798 = vmatprep.subr.bf16.mxu0 0
  %3799 = vmatpush1.bf16.msra.mxu0 %v1022
  %3800 = vmatprep.subr.bf16.mxu0 0
  %3801 = vmatpush1.bf16.msra.mxu0 %v1023
  %3802 = vmatprep.subr.bf16.mxu0 0
  %3803 = vmatpush1.bf16.msra.mxu0 %v1024
  %3804 = vmatprep.subr.bf16.mxu0 0
  %3805 = vmatpush1.bf16.msra.mxu0 %v1025
  %3806 = vmatprep.subr.bf16.mxu0 0
  %3807 = vmatpush1.bf16.msra.mxu0 0
  %3808 = vmatprep.subr.bf16.mxu0 0
  %3809 = vmatpush1.bf16.msra.mxu0 0
  %3810 = vmatprep.subr.bf16.mxu0 0
  %3811 = vmatpush1.bf16.msra.mxu0 0
  %3812 = vmatprep.subr.bf16.mxu0 0
  %3813 = vmatpush1.bf16.msra.mxu0 0
  %3814 = vmatprep.subr.bf16.mxu0 0
  %3815 = vmatpush1.bf16.msra.mxu0 0
  %3816 = vmatprep.subr.bf16.mxu0 0
  %3817 = vmatpush1.bf16.msra.mxu0 0
  %3818 = vmatprep.subr.bf16.mxu0 0
  %3819 = vmatpush1.bf16.msra.mxu0 0
  %3820 = vmatprep.subr.bf16.mxu0 0
  %3821 = vmatpush1.bf16.msra.mxu0 0
  %3822 = vmatprep.subr.bf16.mxu0 0
  %3823 = vmatpush1.bf16.msra.mxu0 0
  %3824 = vmatprep.subr.bf16.mxu0 0
  %3825 = vmatpush1.bf16.msra.mxu0 0
  %3826 = vmatprep.subr.bf16.mxu0 0
  %3827 = vmatpush1.bf16.msra.mxu0 0
  %3828 = vmatprep.subr.bf16.mxu0 0
  %3829 = vmatpush1.bf16.msra.mxu0 0
  %3830 = vmatprep.mubr.bf16.mxu0 0
  %3831 = vmatmul.mubr.bf16.gmra.mrb[0].mxu0 %v3403
  %v3832 = vpop.f32.mrb[0].mxu0
  %v3833 = vadd.f32 %v3769, %v3832
  %v3834 = vpop.f32.mrb[0].mxu0
  %v3835 = vpop.f32.mrb[0].mxu0
  %v3836 = vadd.f32 %v3772, %v3835
  %v3837 = vpop.f32.mrb[0].mxu0
  %3838 = vmatprep.mubr.bf16.mxu0 0
  %3839 = vmatmul.mubr.bf16.gmra.mrb[0].mxu0 %v3406
  %v3840 = vpop.f32.mrb[0].mxu0
  %v3841 = vadd.f32 %v3777, %v3840
  %v3842 = vpop.f32.mrb[0].mxu0
  %v3843 = vpop.f32.mrb[0].mxu0
  %v3844 = vadd.f32 %v3780, %v3843
  %v3845 = vpop.f32.mrb[0].mxu0
  %3846 = vmatprep.mubr.bf16.mxu0 0
  %3847 = vmatmul.mubr.bf16.gmra.mrb[0].mxu0 %v3409
  %v3848 = vpop.f32.mrb[0].mxu0
  %v3849 = vadd.f32 %v3785, %v3848
  %v3850 = vpop.f32.mrb[0].mxu0
  %v3851 = vpop.f32.mrb[0].mxu0
  %v3852 = vadd.f32 %v3788, %v3851
  %v3853 = vpop.f32.mrb[0].mxu0
  %3854 = vmatprep.mubr.bf16.mxu0 0
  %3855 = vmatmul.mubr.bf16.gmra.mrb[0].mxu0 %v3412
  %v3856 = vpop.f32.mrb[0].mxu0
  %v3857 = vadd.f32 %v3793, %v3856
  %v3858 = vpop.f32.mrb[0].mxu0
  %v3859 = vpop.f32.mrb[0].mxu0
  %v3860 = vpop.f32.mrb[0].mxu0
  %3861 = vdwg.mxu0
  %v3862 = vmax.f32 %v3833, 0.0
  %v3863 = vmax.f32 %v3836, 0.0
  %v3864 = vmax.f32 %v3841, 0.0
  %v3865 = vmax.f32 %v3844, 0.0
  %v3866 = vmax.f32 %v3849, 0.0
  %v3867 = vmax.f32 %v3852, 0.0
  %v3868 = vmax.f32 %v3857, 0.0
  %v3869 = vmax.f32 %v3106, %v3862
  %v3870 = vmax.f32 %v3107, %v3863
  %v3871 = vmax.f32 %v3108, %v3864
  %v3872 = vmax.f32 %v3109, %v3865
  %v3873 = vmax.f32 %v3110, %v3866
  %v3874 = vmax.f32 %v3111, %v3867
  %v3875 = vmax.f32 %v3112, %v3868
  %v3876 = vmax.f32 %v2350, %v3869
  %v3877 = vmax.f32 %v2351, %v3870
  %v3878 = vmax.f32 %v2352, %v3871
  %v3879 = vmax.f32 %v2353, %v3872
  %v3880 = vmax.f32 %v2354, %v3873
  %v3881 = vmax.f32 %v2355, %v3874
  %v3882 = vmax.f32 %v2356, %v3875
  %v3883 = vld [vmem:[%s6] sm:$0x1]
  %v3885 = vlaneseq
  %v3886 = vshrl.u32 %v3885, 7
  %v3887 = vsub.s32 0, %v3886
  %v3888 = vrot.slane %v3883, %v3887
  %v3890 = vmul.f32 %v3876, %v3888
  %v3891 = vmul.f32 %v3877, %v3888
  %v3892 = vmul.f32 %v3878, %v3888
  %v3893 = vmul.f32 %v3879, %v3888
  %v3894 = vmul.f32 %v3880, %v3888
  %v3895 = vmul.f32 %v3881, %v3888
  %v3896 = vmul.f32 %v3882, %v3888
  %v3897 = vld [vmem:[%s7] sm:$0x1]
  %v3899 = vlaneseq
  %v3900 = vshrl.u32 %v3899, 7
  %v3901 = vsub.s32 0, %v3900
  %v3902 = vrot.slane %v3897, %v3901
  %v3904 = vadd.f32 %v3890, %v3902
  %v3905 = vadd.f32 %v3891, %v3902
  %v3906 = vadd.f32 %v3892, %v3902
  %v3907 = vadd.f32 %v3893, %v3902
  %v3908 = vadd.f32 %v3894, %v3902
  %v3909 = vadd.f32 %v3895, %v3902
  %v3910 = vadd.f32 %v3896, %v3902
  %v3911 = vpack.c.bf16 %v3905, %v3904
  %v3912 = vpack.c.bf16 %v3907, %v3906
  %v3913 = vpack.c.bf16 %v3909, %v3908
  %v3914 = vpack.c.bf16 %v3910, %v3910
  %v3919 = vunpack.c.l.b16 %v3911
  %v3920 = vunpack.c.h.b16 %v3911
  %v3921 = vunpack.c.l.b16 %v3912
  %v3922 = vunpack.c.h.b16 %v3912
  %v3923 = vunpack.c.l.b16 %v3913
  %v3924 = vunpack.c.h.b16 %v3913
  %v3925 = vunpack.c.l.b16 %v3914
  %v3926 = vpack.c.b16 %v3919, %v3919
  %v3927 = vpack.c.b16 %v3920, %v3920
  %v3928 = vpack.c.b16 %v3921, %v3921
  %v3929 = vpack.c.b16 %v3922, %v3922
  %v3930 = vpack.c.b16 %v3923, %v3923
  %v3931 = vpack.c.b16 %v3924, %v3924
  %v3932 = vpack.c.b16 %v3925, %v3925
  %3940 = vst [vmem:[%s8] sm:$0xf] %v3926
  %3941 = vst [vmem:[%s8 + $0x4] sm:$0xf] %v3927
  %3942 = vst [vmem:[%s8 + $0x8] sm:$0xf] %v3928
  %3943 = vst [vmem:[%s8 + $0xc] sm:$0xf] %v3929
  %3944 = vst [vmem:[%s8 + $0x10] sm:$0xf] %v3930
  %3945 = vst [vmem:[%s8 + $0x14] sm:$0xf] %v3931
  %3946 = vst [vmem:[%s8 + $0x18] sm:$0x1] %v3932
  // Predicated region
  $region34: #{cnn_forward.5} parent=0 // pred_check
    _
  $region35: #{cnn_forward.5} parent=0 // pred_check_branch
    %3948 = sbr.rel (0) target = $region37
  $region36: #{cnn_forward.5} parent=0 // pred_region
    _
  $region37: #{cnn_forward.5} parent=0 // pred_fallthru
    _
  // Predicated region
  $region38: #{cnn_forward.5} parent=0 // pred_check
    _
  $region39: #{cnn_forward.5} parent=0 // pred_check_branch
    %3950 = sbr.rel (0) target = $region41
  $region40: #{cnn_forward.5} parent=0 // pred_region
    _
  $region41: #{cnn_forward.5} parent=0 // pred_fallthru
    _

</llo_original>
